<compile_context>
chip_gen: v5e
topology: v5e:2x2
jax: 0.10.0
libtpu: 0.0.40
codegen_flags: <defaults>
</compile_context>

<pallas_src>
import functools
import math

import jax
import jax.numpy as jnp
from jax import lax
from jax.experimental import pallas as pl
from jax.experimental.pallas import tpu as pltpu

_VMEM = pl.BlockSpec(memory_space=pltpu.MemorySpace.VMEM)


def _sigmoid(x):
    # written via exp to guarantee a Mosaic-supported lowering (EUP exp)
    return 1.0 / (1.0 + jnp.exp(-x))


# ----------------------------- the fused kernel -----------------------------

def _gnn_fused_kernel(*refs, g2g_num, processing_steps):
    (edge_idx_ref, node_f_ref, edge_f_ref,
     w_ne_ref, b_ne_ref, w_ee_ref, b_ee_ref,
     w1f_ref, b1f_ref, w2f_ref, b2f_ref,
     nW0_ref, nb0_ref, nW1_ref, nb1_ref, nW2_ref, nb2_ref,
     eW0_ref, eb0_ref, eW1_ref, eb1_ref, eW2_ref, eb2_ref,
     gw1_ref, gb1_ref, gw2_ref, gb2_ref, gw3_ref, gb3_ref, gw4_ref, gb4_ref,
     o_ref) = refs

    f32 = jnp.float32

    def dot(a, b):
        return jnp.dot(a, b, preferred_element_type=f32)

    # ---- initial embeddings (Linear + ReLU) ----
    node_emb = jnp.maximum(dot(node_f_ref[...], w_ne_ref[...]) + b_ne_ref[...], 0.0)  # (N, D)
    edge_emb = jnp.maximum(dot(edge_f_ref[...], w_ee_ref[...]) + b_ee_ref[...], 0.0)  # (E, D)

    n_nodes = node_emb.shape[0]
    n_edges = edge_emb.shape[0]
    D = node_emb.shape[1]  # 24 (= Set2Set in_channels = LSTM hidden size)

    # ---- edge-endpoint gather as a one-hot matmul (MXU, no HBM round trip) ----
    idx = edge_idx_ref[...]                                               # (E, 2) int32
    cols = lax.broadcasted_iota(jnp.int32, (n_edges, n_nodes), 1)
    sel = ((cols == idx[:, 0:1]).astype(f32) +
           (cols == idx[:, 1:2]).astype(f32))                             # (E, N)
    node_sum = dot(sel, node_emb)                                         # (E, D)

    # ---- Graph2Graph edge update(s): FCNN_one + FCNN_two fused into 2 matmuls ----
    w1f = w1f_ref[...]; b1f = b1f_ref[...]
    w2f = w2f_ref[...]; b2f = b2f_ref[...]
    for _ in range(g2g_num):
        z = jnp.concatenate([node_sum, edge_emb], axis=-1)                # (E, 2D)
        h = jnp.maximum(dot(z, w1f) + b1f, 0.0)                           # (E, 512)
        s = dot(h, w2f) + b2f                                             # (E, D)
        # nn.InstanceNorm1d on a (1, D) view == per-edge zero-mean/unit-var over
        # the D features (biased variance, eps=1e-5, no affine).
        mean = jnp.mean(s, axis=-1, keepdims=True)
        var = jnp.mean((s - mean) * (s - mean), axis=-1, keepdims=True)
        sn = (s - mean) * lax.rsqrt(var + 1e-5)
        # TODO(synk): nn.Dropout(p=0.1) is stochastic; identity here (eval mode).
        edge_emb = edge_emb + jnp.maximum(sn, 0.0)

    # ---- Set2Set readout (3-layer LSTM + attention), fully unrolled in-kernel ----
    def lstm_step(q_star, hs, cs, Ws, bs):
        inp = q_star
        new_hs, new_cs = [], []
        for l in range(len(Ws)):
            zc = jnp.concatenate([inp, hs[l]], axis=-1)                   # (1, in+D)
            gates = dot(zc, Ws[l]) + bs[l]                                # (1, 4D)
            i_g = _sigmoid(gates[:, 0:D])
            f_g = _sigmoid(gates[:, D:2 * D])
            g_g = jnp.tanh(gates[:, 2 * D:3 * D])
            o_g = _sigmoid(gates[:, 3 * D:4 * D])
            c = f_g * cs[l] + i_g * g_g
            hcur = o_g * jnp.tanh(c)
            new_hs.append(hcur)
            new_cs.append(c)
            inp = hcur
        return inp, new_hs, new_cs

    def set2set(x, Ws, bs):
        num_layers = len(Ws)
        q_star = jnp.zeros((1, 2 * D), f32)
        hs = [jnp.zeros((1, D), f32) for _ in range(num_layers)]
        cs = [jnp.zeros((1, D), f32) for _ in range(num_layers)]
        for _ in range(processing_steps):                                 # unrolled (static)
            q, hs, cs = lstm_step(q_star, hs, cs, Ws, bs)                 # q: (1, D)
            # attention on the MXU: e = q @ x^T ; r = softmax(e) @ x
            e = lax.dot_general(q, x, (((1,), (1,)), ((), ())),
                                preferred_element_type=f32)               # (1, N)
            e = e - jnp.max(e, axis=-1, keepdims=True)
            a = jnp.exp(e)
            a = a / jnp.sum(a, axis=-1, keepdims=True)
            r = dot(a, x)                                                 # (1, D)
            q_star = jnp.concatenate([q, r], axis=-1)                     # (1, 2D)
        return q_star

    node_q = set2set(node_emb,
                     [nW0_ref[...], nW1_ref[...], nW2_ref[...]],
                     [nb0_ref[...], nb1_ref[...], nb2_ref[...]])
    edge_q = set2set(edge_emb,
                     [eW0_ref[...], eW1_ref[...], eW2_ref[...]],
                     [eb0_ref[...], eb1_ref[...], eb2_ref[...]])

    feats = jnp.concatenate([node_q, edge_q], axis=-1)                    # (1, 96)

    # ---- Graph2Property MLP (96 -> 256 -> 128 -> 64 -> 1) ----
    h1 = jnp.maximum(dot(feats, gw1_ref[...]) + gb1_ref[...], 0.0)
    h2 = jnp.maximum(dot(h1, gw2_ref[...]) + gb2_ref[...], 0.0)
    h3 = jnp.maximum(dot(h2, gw3_ref[...]) + gb3_ref[...], 0.0)
    out = dot(h3, gw4_ref[...]) + gb4_ref[...]                            # (1, 1)
    o_ref[...] = out.astype(o_ref.dtype)


# ----------------------------- parameter init -------------------------------

def _linear_init(key, fan_in, fan_out):
    k1, k2 = jax.random.split(key)
    bound = 1.0 / math.sqrt(fan_in)
    w = jax.random.uniform(k1, (fan_in, fan_out), jnp.float32, -bound, bound)
    b = jax.random.uniform(k2, (fan_out,), jnp.float32, -bound, bound)
    return w, b


def _lstm_init(key, input_size, hidden_size, num_layers):
    layers = []
    bound = 1.0 / math.sqrt(hidden_size)
    for layer in range(num_layers):
        in_sz = input_size if layer == 0 else hidden_size
        key, k1, k2, k3, k4 = jax.random.split(key, 5)
        w_ih = jax.random.uniform(k1, (4 * hidden_size, in_sz), jnp.float32, -bound, bound)
        w_hh = jax.random.uniform(k2, (4 * hidden_size, hidden_size), jnp.float32, -bound, bound)
        b_ih = jax.random.uniform(k3, (4 * hidden_size,), jnp.float32, -bound, bound)
        b_hh = jax.random.uniform(k4, (4 * hidden_size,), jnp.float32, -bound, bound)
        layers.append((w_ih, w_hh, b_ih, b_hh))
    return layers


def init_params(key,
                nodes_initial_dim_in=30, edges_initial_dim_in=11,
                initial_dim_out=24, g2g_input_dim=96, g2g_hidden_dim=256,
                g2p_dim_1=256, g2p_dim_2=128, g2p_dim_3=64):
    ks = jax.random.split(key, 12)
    params = {}
    params["node_emb"] = _linear_init(ks[0], nodes_initial_dim_in, initial_dim_out)
    params["edge_emb"] = _linear_init(ks[1], edges_initial_dim_in, initial_dim_out)
    # FCNN_one / FCNN_two inside EdgeFeatures: 24 -> 256 -> 24
    w1a, b1a = _linear_init(ks[2], initial_dim_out, g2g_hidden_dim)
    w2a, b2a = _linear_init(ks[3], g2g_hidden_dim, initial_dim_out)
    w1b, b1b = _linear_init(ks[4], initial_dim_out, g2g_hidden_dim)
    w2b, b2b = _linear_init(ks[5], g2g_hidden_dim, initial_dim_out)
    params["fcnn_one"] = (w1a, b1a, w2a, b2a)
    params["fcnn_two"] = (w1b, b1b, w2b, b2b)
    # Set2Set LSTMs: input 2*24=48, hidden 24, 3 layers
    params["node_lstm"] = _lstm_init(ks[6], 2 * initial_dim_out, initial_dim_out, 3)
    params["edge_lstm"] = _lstm_init(ks[7], 2 * initial_dim_out, initial_dim_out, 3)
    # Graph2Property MLP: 96 -> 256 -> 128 -> 64 -> 1
    params["g2p_1"] = _linear_init(ks[8], g2g_input_dim, g2p_dim_1)
    params["g2p_2"] = _linear_init(ks[9], g2p_dim_1, g2p_dim_2)
    params["g2p_3"] = _linear_init(ks[10], g2p_dim_2, g2p_dim_3)
    params["g2p_4"] = _linear_init(ks[11], g2p_dim_3, 1)
    return params


def pack_params(p):
    """Pre-pack weights ONCE into the flat, kernel-ready layout."""
    w_ne, b_ne = p["node_emb"]
    w_ee, b_ee = p["edge_emb"]
    w1a, b1a, w2a, b2a = p["fcnn_one"]
    w1b, b1b, w2b, b2b = p["fcnn_two"]
    D, Hh = w1a.shape  # (24, 256)

    # Fused edge-update weights:
    #   layer 1: block_diag(w1a, w1b)   (2D, 2Hh),  bias = [b1a | b1b]
    #   layer 2: vstack(w2a, w2b)       (2Hh, D),   bias = b2a + b2b
    w1f = jnp.zeros((2 * D, 2 * Hh), jnp.float32)
    w1f = w1f.at[:D, :Hh].set(w1a).at[D:, Hh:].set(w1b)
    b1f = jnp.concatenate([b1a, b1b]).reshape(1, 2 * Hh)
    w2f = jnp.concatenate([w2a, w2b], axis=0)
    b2f = (b2a + b2b).reshape(1, D)

    def pack_lstm(layers):
        packed = []
        for (w_ih, w_hh, b_ih, b_hh) in layers:
            W = jnp.concatenate([w_ih.T, w_hh.T], axis=0)   # (in+H, 4H)
            b = (b_ih + b_hh).reshape(1, -1)                # (1, 4H)
            packed += [W, b]
        return packed

    g2p = []
    for name in ("g2p_1", "g2p_2", "g2p_3", "g2p_4"):
        w, b = p[name]
        g2p += [w, b.reshape(1, -1)]

    packed = [w_ne, b_ne.reshape(1, -1), w_ee, b_ee.reshape(1, -1),
              w1f, b1f, w2f, b2f]
    packed += pack_lstm(p["node_lstm"])
    packed += pack_lstm(p["edge_lstm"])
    packed += g2p
    return tuple(packed)   # 28 arrays


# ----------------------------- forward pass ---------------------------------

def gnn_forward(packed_params, X1, X2, X3, g2g_num=1, processing_steps=6):
    node_f = X1[0]                                        # (N, 30)
    edge_idx = jnp.transpose(X2[0]).astype(jnp.int32)     # (E, 2)
    edge_f = X3[0]                                        # (E, 11)

    # TODO(synk): at much larger E, grid the edge update over E with a
    # (TILE_E, 128) BlockSpec and dimension_semantics=("parallel",) (v7x 2-TC,
    # 64 MiB VMEM budget); unnecessary at these sizes.
    kernel = functools.partial(_gnn_fused_kernel, g2g_num=g2g_num,
                               processing_steps=processing_steps)
    n_in = 3 + len(packed_params)
    out = pl.pallas_call(
        kernel,
        out_shape=jax.ShapeDtypeStruct((1, 1), jnp.float32),
        in_specs=[_VMEM] * n_in,
        out_specs=_VMEM,
    )(edge_idx, node_f, edge_f, *packed_params)
    return out.reshape(-1)                                # (1,) — matches torch


# ----------------------------- main ------------------------------------------

if __name__ == "__main__":
    N_NODES, N_EDGES = 8, 12

    key = jax.random.PRNGKey(0)
    kx1, kx3, kidx = jax.random.split(key, 3)
    X1 = jax.random.normal(kx1, (1, N_NODES, 30), jnp.float32)               # node features
    X2 = jax.random.randint(kidx, (1, 2, N_EDGES), 0, N_NODES, jnp.int32)    # edge index
    X3 = jax.random.normal(kx3, (1, N_EDGES, 11), jnp.float32)               # edge features

    params = init_params(jax.random.PRNGKey(42))
    packed = pack_params(params)

    predicted = gnn_forward(packed, X1, X2, X3, g2g_num=1)
    predicted = jax.block_until_ready(predicted)
    assert predicted.shape == (1,)
    assert bool(jnp.all(jnp.isfinite(predicted)))
    print("KERNEL_OK")
</pallas_src>

<mosaic_0001>
module attributes {stable_mosaic.version = 11 : i64} {
  func.func @_gnn_fused_kernel(%arg0: memref<12x2xi32, #tpu.memory_space<vmem>>, %arg1: memref<8x30xf32, #tpu.memory_space<vmem>>, %arg2: memref<12x11xf32, #tpu.memory_space<vmem>>, %arg3: memref<30x24xf32, #tpu.memory_space<vmem>>, %arg4: memref<1x24xf32, #tpu.memory_space<vmem>>, %arg5: memref<11x24xf32, #tpu.memory_space<vmem>>, %arg6: memref<1x24xf32, #tpu.memory_space<vmem>>, %arg7: memref<48x512xf32, #tpu.memory_space<vmem>>, %arg8: memref<1x512xf32, #tpu.memory_space<vmem>>, %arg9: memref<512x24xf32, #tpu.memory_space<vmem>>, %arg10: memref<1x24xf32, #tpu.memory_space<vmem>>, %arg11: memref<72x96xf32, #tpu.memory_space<vmem>>, %arg12: memref<1x96xf32, #tpu.memory_space<vmem>>, %arg13: memref<48x96xf32, #tpu.memory_space<vmem>>, %arg14: memref<1x96xf32, #tpu.memory_space<vmem>>, %arg15: memref<48x96xf32, #tpu.memory_space<vmem>>, %arg16: memref<1x96xf32, #tpu.memory_space<vmem>>, %arg17: memref<72x96xf32, #tpu.memory_space<vmem>>, %arg18: memref<1x96xf32, #tpu.memory_space<vmem>>, %arg19: memref<48x96xf32, #tpu.memory_space<vmem>>, %arg20: memref<1x96xf32, #tpu.memory_space<vmem>>, %arg21: memref<48x96xf32, #tpu.memory_space<vmem>>, %arg22: memref<1x96xf32, #tpu.memory_space<vmem>>, %arg23: memref<96x256xf32, #tpu.memory_space<vmem>>, %arg24: memref<1x256xf32, #tpu.memory_space<vmem>>, %arg25: memref<256x128xf32, #tpu.memory_space<vmem>>, %arg26: memref<1x128xf32, #tpu.memory_space<vmem>>, %arg27: memref<128x64xf32, #tpu.memory_space<vmem>>, %arg28: memref<1x64xf32, #tpu.memory_space<vmem>>, %arg29: memref<64x1xf32, #tpu.memory_space<vmem>>, %arg30: memref<1x1xf32, #tpu.memory_space<vmem>>, %arg31: memref<1x1xf32, #tpu.memory_space<vmem>>) attributes {dimension_semantics = [], scalar_prefetch = 0 : i64, scratch_operands = 0 : i64, tpu.core_type = #tpu.core_type<tc>} {
    %c0 = arith.constant 0 : index
    %c0_0 = arith.constant 0 : index
    %0 = vector.load %arg1[%c0, %c0_0] : memref<8x30xf32, #tpu.memory_space<vmem>>, vector<8x30xf32>
    %c0_1 = arith.constant 0 : index
    %c0_2 = arith.constant 0 : index
    %1 = vector.load %arg3[%c0_1, %c0_2] : memref<30x24xf32, #tpu.memory_space<vmem>>, vector<30x24xf32>
    %cst = arith.constant dense<0.000000e+00> : vector<8x24xf32>
    %2 = tpu.matmul %0, %1, %cst {dimension_numbers = #tpu.dot_dimension_numbers<[1], [0], [0], [1], [0, 0, 1, 1], [], []>} : vector<8x30xf32>, vector<30x24xf32>, vector<8x24xf32> -> vector<8x24xf32>
    %c0_3 = arith.constant 0 : index
    %c0_4 = arith.constant 0 : index
    %3 = vector.load %arg4[%c0_3, %c0_4] : memref<1x24xf32, #tpu.memory_space<vmem>>, vector<1x24xf32>
    %4 = vector.broadcast %3 : vector<1x24xf32> to vector<8x24xf32>
    %5 = arith.addf %2, %4 : vector<8x24xf32>
    %cst_5 = arith.constant 0.000000e+00 : f32
    %6 = vector.broadcast %cst_5 : f32 to vector<8x24xf32>
    %7 = arith.maximumf %5, %6 : vector<8x24xf32>
    %c0_6 = arith.constant 0 : index
    %c0_7 = arith.constant 0 : index
    %8 = vector.load %arg2[%c0_6, %c0_7] : memref<12x11xf32, #tpu.memory_space<vmem>>, vector<12x11xf32>
    %c0_8 = arith.constant 0 : index
    %c0_9 = arith.constant 0 : index
    %9 = vector.load %arg5[%c0_8, %c0_9] : memref<11x24xf32, #tpu.memory_space<vmem>>, vector<11x24xf32>
    %cst_10 = arith.constant dense<0.000000e+00> : vector<12x24xf32>
    %10 = tpu.matmul %8, %9, %cst_10 {dimension_numbers = #tpu.dot_dimension_numbers<[1], [0], [0], [1], [0, 0, 1, 1], [], []>} : vector<12x11xf32>, vector<11x24xf32>, vector<12x24xf32> -> vector<12x24xf32>
    %c0_11 = arith.constant 0 : index
    %c0_12 = arith.constant 0 : index
    %11 = vector.load %arg6[%c0_11, %c0_12] : memref<1x24xf32, #tpu.memory_space<vmem>>, vector<1x24xf32>
    %12 = vector.broadcast %11 : vector<1x24xf32> to vector<12x24xf32>
    %13 = arith.addf %10, %12 : vector<12x24xf32>
    %cst_13 = arith.constant 0.000000e+00 : f32
    %14 = vector.broadcast %cst_13 : f32 to vector<12x24xf32>
    %15 = arith.maximumf %13, %14 : vector<12x24xf32>
    %c0_14 = arith.constant 0 : index
    %c0_15 = arith.constant 0 : index
    %16 = vector.load %arg0[%c0_14, %c0_15] : memref<12x2xi32, #tpu.memory_space<vmem>>, vector<12x2xi32>
    %17 = tpu.iota {dimensions = array<i32: 1>} : vector<12x8xi32>
    %18 = vector.extract_strided_slice %16 {offsets = [0, 0], sizes = [12, 1], strides = [1, 1]} : vector<12x2xi32> to vector<12x1xi32>
    %19 = vector.broadcast %18 : vector<12x1xi32> to vector<12x8xi32>
    %20 = arith.cmpi eq, %17, %19 : vector<12x8xi32>
    %21 = arith.extui %20 : vector<12x8xi1> to vector<12x8xi32>
    %22 = arith.sitofp %21 : vector<12x8xi32> to vector<12x8xf32>
    %23 = vector.extract_strided_slice %16 {offsets = [0, 1], sizes = [12, 1], strides = [1, 1]} : vector<12x2xi32> to vector<12x1xi32>
    %24 = vector.broadcast %23 : vector<12x1xi32> to vector<12x8xi32>
    %25 = arith.cmpi eq, %17, %24 : vector<12x8xi32>
    %26 = arith.extui %25 : vector<12x8xi1> to vector<12x8xi32>
    %27 = arith.sitofp %26 : vector<12x8xi32> to vector<12x8xf32>
    %28 = arith.addf %22, %27 : vector<12x8xf32>
    %cst_16 = arith.constant dense<0.000000e+00> : vector<12x24xf32>
    %29 = tpu.matmul %28, %7, %cst_16 {dimension_numbers = #tpu.dot_dimension_numbers<[1], [0], [0], [1], [0, 0, 1, 1], [], []>} : vector<12x8xf32>, vector<8x24xf32>, vector<12x24xf32> -> vector<12x24xf32>
    %c0_17 = arith.constant 0 : index
    %c0_18 = arith.constant 0 : index
    %30 = vector.load %arg7[%c0_17, %c0_18] : memref<48x512xf32, #tpu.memory_space<vmem>>, vector<48x512xf32>
    %c0_19 = arith.constant 0 : index
    %c0_20 = arith.constant 0 : index
    %31 = vector.load %arg8[%c0_19, %c0_20] : memref<1x512xf32, #tpu.memory_space<vmem>>, vector<1x512xf32>
    %c0_21 = arith.constant 0 : index
    %c0_22 = arith.constant 0 : index
    %32 = vector.load %arg9[%c0_21, %c0_22] : memref<512x24xf32, #tpu.memory_space<vmem>>, vector<512x24xf32>
    %c0_23 = arith.constant 0 : index
    %c0_24 = arith.constant 0 : index
    %33 = vector.load %arg10[%c0_23, %c0_24] : memref<1x24xf32, #tpu.memory_space<vmem>>, vector<1x24xf32>
    %34 = tpu.concatenate %29, %15 in 1 : vector<12x24xf32>, vector<12x24xf32> -> vector<12x48xf32>
    %cst_25 = arith.constant dense<0.000000e+00> : vector<12x512xf32>
    %35 = tpu.matmul %34, %30, %cst_25 {dimension_numbers = #tpu.dot_dimension_numbers<[1], [0], [0], [1], [0, 0, 1, 1], [], []>} : vector<12x48xf32>, vector<48x512xf32>, vector<12x512xf32> -> vector<12x512xf32>
    %36 = vector.broadcast %31 : vector<1x512xf32> to vector<12x512xf32>
    %37 = arith.addf %35, %36 : vector<12x512xf32>
    %cst_26 = arith.constant 0.000000e+00 : f32
    %38 = vector.broadcast %cst_26 : f32 to vector<12x512xf32>
    %39 = arith.maximumf %37, %38 : vector<12x512xf32>
    %cst_27 = arith.constant dense<0.000000e+00> : vector<12x24xf32>
    %40 = tpu.matmul %39, %32, %cst_27 {dimension_numbers = #tpu.dot_dimension_numbers<[1], [0], [0], [1], [0, 0, 1, 1], [], []>} : vector<12x512xf32>, vector<512x24xf32>, vector<12x24xf32> -> vector<12x24xf32>
    %41 = vector.broadcast %33 : vector<1x24xf32> to vector<12x24xf32>
    %42 = arith.addf %40, %41 : vector<12x24xf32>
    %cst_28 = arith.constant dense<0.000000e+00> : vector<12xf32>
    %43 = vector.multi_reduction <add>, %42, %cst_28 [1] : vector<12x24xf32> to vector<12xf32>
    %44 = vector.shape_cast %43 : vector<12xf32> to vector<12x1xf32>
    %cst_29 = arith.constant 2.400000e+01 : f32
    %45 = vector.broadcast %cst_29 : f32 to vector<12x1xf32>
    %46 = arith.divf %44, %45 : vector<12x1xf32>
    %47 = vector.broadcast %46 : vector<12x1xf32> to vector<12x24xf32>
    %48 = arith.subf %42, %47 : vector<12x24xf32>
    %49 = vector.broadcast %46 : vector<12x1xf32> to vector<12x24xf32>
    %50 = arith.subf %42, %49 : vector<12x24xf32>
    %51 = arith.mulf %48, %50 : vector<12x24xf32>
    %cst_30 = arith.constant dense<0.000000e+00> : vector<12xf32>
    %52 = vector.multi_reduction <add>, %51, %cst_30 [1] : vector<12x24xf32> to vector<12xf32>
    %53 = vector.shape_cast %52 : vector<12xf32> to vector<12x1xf32>
    %cst_31 = arith.constant 2.400000e+01 : f32
    %54 = vector.broadcast %cst_31 : f32 to vector<12x1xf32>
    %55 = arith.divf %53, %54 : vector<12x1xf32>
    %56 = vector.broadcast %46 : vector<12x1xf32> to vector<12x24xf32>
    %57 = arith.subf %42, %56 : vector<12x24xf32>
    %cst_32 = arith.constant 9.99999974E-6 : f32
    %58 = vector.broadcast %cst_32 : f32 to vector<12x1xf32>
    %59 = arith.addf %55, %58 : vector<12x1xf32>
    %60 = math.rsqrt %59 : vector<12x1xf32>
    %61 = vector.broadcast %60 : vector<12x1xf32> to vector<12x24xf32>
    %62 = arith.mulf %57, %61 : vector<12x24xf32>
    %cst_33 = arith.constant 0.000000e+00 : f32
    %63 = vector.broadcast %cst_33 : f32 to vector<12x24xf32>
    %64 = arith.maximumf %62, %63 : vector<12x24xf32>
    %65 = arith.addf %15, %64 : vector<12x24xf32>
    %c0_34 = arith.constant 0 : index
    %c0_35 = arith.constant 0 : index
    %66 = vector.load %arg11[%c0_34, %c0_35] : memref<72x96xf32, #tpu.memory_space<vmem>>, vector<72x96xf32>
    %c0_36 = arith.constant 0 : index
    %c0_37 = arith.constant 0 : index
    %67 = vector.load %arg13[%c0_36, %c0_37] : memref<48x96xf32, #tpu.memory_space<vmem>>, vector<48x96xf32>
    %c0_38 = arith.constant 0 : index
    %c0_39 = arith.constant 0 : index
    %68 = vector.load %arg15[%c0_38, %c0_39] : memref<48x96xf32, #tpu.memory_space<vmem>>, vector<48x96xf32>
    %c0_40 = arith.constant 0 : index
    %c0_41 = arith.constant 0 : index
    %69 = vector.load %arg12[%c0_40, %c0_41] : memref<1x96xf32, #tpu.memory_space<vmem>>, vector<1x96xf32>
    %c0_42 = arith.constant 0 : index
    %c0_43 = arith.constant 0 : index
    %70 = vector.load %arg14[%c0_42, %c0_43] : memref<1x96xf32, #tpu.memory_space<vmem>>, vector<1x96xf32>
    %c0_44 = arith.constant 0 : index
    %c0_45 = arith.constant 0 : index
    %71 = vector.load %arg16[%c0_44, %c0_45] : memref<1x96xf32, #tpu.memory_space<vmem>>, vector<1x96xf32>
    %cst_46 = arith.constant 0.000000e+00 : f32
    %72 = vector.broadcast %cst_46 : f32 to vector<1x48xf32>
    %cst_47 = arith.constant 0.000000e+00 : f32
    %73 = vector.broadcast %cst_47 : f32 to vector<1x24xf32>
    %cst_48 = arith.constant 0.000000e+00 : f32
    %74 = vector.broadcast %cst_48 : f32 to vector<1x24xf32>
    %cst_49 = arith.constant 0.000000e+00 : f32
    %75 = vector.broadcast %cst_49 : f32 to vector<1x24xf32>
    %cst_50 = arith.constant 0.000000e+00 : f32
    %76 = vector.broadcast %cst_50 : f32 to vector<1x24xf32>
    %cst_51 = arith.constant 0.000000e+00 : f32
    %77 = vector.broadcast %cst_51 : f32 to vector<1x24xf32>
    %cst_52 = arith.constant 0.000000e+00 : f32
    %78 = vector.broadcast %cst_52 : f32 to vector<1x24xf32>
    %79 = tpu.concatenate %72, %73 in 1 : vector<1x48xf32>, vector<1x24xf32> -> vector<1x72xf32>
    %cst_53 = arith.constant dense<0.000000e+00> : vector<1x96xf32>
    %80 = tpu.matmul %79, %66, %cst_53 {dimension_numbers = #tpu.dot_dimension_numbers<[1], [0], [0], [1], [0, 0, 1, 1], [], []>} : vector<1x72xf32>, vector<72x96xf32>, vector<1x96xf32> -> vector<1x96xf32>
    %81 = arith.addf %80, %69 : vector<1x96xf32>
    %82 = vector.extract_strided_slice %81 {offsets = [0, 0], sizes = [1, 24], strides = [1, 1]} : vector<1x96xf32> to vector<1x24xf32>
    %cst_54 = arith.constant 0.000000e+00 : f32
    %83 = vector.broadcast %cst_54 : f32 to vector<1x24xf32>
    %84 = arith.subf %83, %82 : vector<1x24xf32>
    %85 = math.exp %84 : vector<1x24xf32>
    %cst_55 = arith.constant 1.000000e+00 : f32
    %86 = vector.broadcast %cst_55 : f32 to vector<1x24xf32>
    %87 = arith.addf %86, %85 : vector<1x24xf32>
    %cst_56 = arith.constant 1.000000e+00 : f32
    %88 = vector.broadcast %cst_56 : f32 to vector<1x24xf32>
    %89 = arith.divf %88, %87 : vector<1x24xf32>
    %90 = vector.extract_strided_slice %81 {offsets = [0, 24], sizes = [1, 24], strides = [1, 1]} : vector<1x96xf32> to vector<1x24xf32>
    %cst_57 = arith.constant 0.000000e+00 : f32
    %91 = vector.broadcast %cst_57 : f32 to vector<1x24xf32>
    %92 = arith.subf %91, %90 : vector<1x24xf32>
    %93 = math.exp %92 : vector<1x24xf32>
    %cst_58 = arith.constant 1.000000e+00 : f32
    %94 = vector.broadcast %cst_58 : f32 to vector<1x24xf32>
    %95 = arith.addf %94, %93 : vector<1x24xf32>
    %cst_59 = arith.constant 1.000000e+00 : f32
    %96 = vector.broadcast %cst_59 : f32 to vector<1x24xf32>
    %97 = arith.divf %96, %95 : vector<1x24xf32>
    %98 = vector.extract_strided_slice %81 {offsets = [0, 48], sizes = [1, 24], strides = [1, 1]} : vector<1x96xf32> to vector<1x24xf32>
    %99 = math.tanh %98 : vector<1x24xf32>
    %100 = vector.extract_strided_slice %81 {offsets = [0, 72], sizes = [1, 24], strides = [1, 1]} : vector<1x96xf32> to vector<1x24xf32>
    %cst_60 = arith.constant 0.000000e+00 : f32
    %101 = vector.broadcast %cst_60 : f32 to vector<1x24xf32>
    %102 = arith.subf %101, %100 : vector<1x24xf32>
    %103 = math.exp %102 : vector<1x24xf32>
    %cst_61 = arith.constant 1.000000e+00 : f32
    %104 = vector.broadcast %cst_61 : f32 to vector<1x24xf32>
    %105 = arith.addf %104, %103 : vector<1x24xf32>
    %cst_62 = arith.constant 1.000000e+00 : f32
    %106 = vector.broadcast %cst_62 : f32 to vector<1x24xf32>
    %107 = arith.divf %106, %105 : vector<1x24xf32>
    %108 = arith.mulf %97, %76 : vector<1x24xf32>
    %109 = arith.mulf %89, %99 : vector<1x24xf32>
    %110 = arith.addf %108, %109 : vector<1x24xf32>
    %111 = math.tanh %110 : vector<1x24xf32>
    %112 = arith.mulf %107, %111 : vector<1x24xf32>
    %113 = tpu.concatenate %112, %74 in 1 : vector<1x24xf32>, vector<1x24xf32> -> vector<1x48xf32>
    %cst_63 = arith.constant dense<0.000000e+00> : vector<1x96xf32>
    %114 = tpu.matmul %113, %67, %cst_63 {dimension_numbers = #tpu.dot_dimension_numbers<[1], [0], [0], [1], [0, 0, 1, 1], [], []>} : vector<1x48xf32>, vector<48x96xf32>, vector<1x96xf32> -> vector<1x96xf32>
    %115 = arith.addf %114, %70 : vector<1x96xf32>
    %116 = vector.extract_strided_slice %115 {offsets = [0, 0], sizes = [1, 24], strides = [1, 1]} : vector<1x96xf32> to vector<1x24xf32>
    %cst_64 = arith.constant 0.000000e+00 : f32
    %117 = vector.broadcast %cst_64 : f32 to vector<1x24xf32>
    %118 = arith.subf %117, %116 : vector<1x24xf32>
    %119 = math.exp %118 : vector<1x24xf32>
    %cst_65 = arith.constant 1.000000e+00 : f32
    %120 = vector.broadcast %cst_65 : f32 to vector<1x24xf32>
    %121 = arith.addf %120, %119 : vector<1x24xf32>
    %cst_66 = arith.constant 1.000000e+00 : f32
    %122 = vector.broadcast %cst_66 : f32 to vector<1x24xf32>
    %123 = arith.divf %122, %121 : vector<1x24xf32>
    %124 = vector.extract_strided_slice %115 {offsets = [0, 24], sizes = [1, 24], strides = [1, 1]} : vector<1x96xf32> to vector<1x24xf32>
    %cst_67 = arith.constant 0.000000e+00 : f32
    %125 = vector.broadcast %cst_67 : f32 to vector<1x24xf32>
    %126 = arith.subf %125, %124 : vector<1x24xf32>
    %127 = math.exp %126 : vector<1x24xf32>
    %cst_68 = arith.constant 1.000000e+00 : f32
    %128 = vector.broadcast %cst_68 : f32 to vector<1x24xf32>
    %129 = arith.addf %128, %127 : vector<1x24xf32>
    %cst_69 = arith.constant 1.000000e+00 : f32
    %130 = vector.broadcast %cst_69 : f32 to vector<1x24xf32>
    %131 = arith.divf %130, %129 : vector<1x24xf32>
    %132 = vector.extract_strided_slice %115 {offsets = [0, 48], sizes = [1, 24], strides = [1, 1]} : vector<1x96xf32> to vector<1x24xf32>
    %133 = math.tanh %132 : vector<1x24xf32>
    %134 = vector.extract_strided_slice %115 {offsets = [0, 72], sizes = [1, 24], strides = [1, 1]} : vector<1x96xf32> to vector<1x24xf32>
    %cst_70 = arith.constant 0.000000e+00 : f32
    %135 = vector.broadcast %cst_70 : f32 to vector<1x24xf32>
    %136 = arith.subf %135, %134 : vector<1x24xf32>
    %137 = math.exp %136 : vector<1x24xf32>
    %cst_71 = arith.constant 1.000000e+00 : f32
    %138 = vector.broadcast %cst_71 : f32 to vector<1x24xf32>
    %139 = arith.addf %138, %137 : vector<1x24xf32>
    %cst_72 = arith.constant 1.000000e+00 : f32
    %140 = vector.broadcast %cst_72 : f32 to vector<1x24xf32>
    %141 = arith.divf %140, %139 : vector<1x24xf32>
    %142 = arith.mulf %131, %77 : vector<1x24xf32>
    %143 = arith.mulf %123, %133 : vector<1x24xf32>
    %144 = arith.addf %142, %143 : vector<1x24xf32>
    %145 = math.tanh %144 : vector<1x24xf32>
    %146 = arith.mulf %141, %145 : vector<1x24xf32>
    %147 = tpu.concatenate %146, %75 in 1 : vector<1x24xf32>, vector<1x24xf32> -> vector<1x48xf32>
    %cst_73 = arith.constant dense<0.000000e+00> : vector<1x96xf32>
    %148 = tpu.matmul %147, %68, %cst_73 {dimension_numbers = #tpu.dot_dimension_numbers<[1], [0], [0], [1], [0, 0, 1, 1], [], []>} : vector<1x48xf32>, vector<48x96xf32>, vector<1x96xf32> -> vector<1x96xf32>
    %149 = arith.addf %148, %71 : vector<1x96xf32>
    %150 = vector.extract_strided_slice %149 {offsets = [0, 0], sizes = [1, 24], strides = [1, 1]} : vector<1x96xf32> to vector<1x24xf32>
    %cst_74 = arith.constant 0.000000e+00 : f32
    %151 = vector.broadcast %cst_74 : f32 to vector<1x24xf32>
    %152 = arith.subf %151, %150 : vector<1x24xf32>
    %153 = math.exp %152 : vector<1x24xf32>
    %cst_75 = arith.constant 1.000000e+00 : f32
    %154 = vector.broadcast %cst_75 : f32 to vector<1x24xf32>
    %155 = arith.addf %154, %153 : vector<1x24xf32>
    %cst_76 = arith.constant 1.000000e+00 : f32
    %156 = vector.broadcast %cst_76 : f32 to vector<1x24xf32>
    %157 = arith.divf %156, %155 : vector<1x24xf32>
    %158 = vector.extract_strided_slice %149 {offsets = [0, 24], sizes = [1, 24], strides = [1, 1]} : vector<1x96xf32> to vector<1x24xf32>
    %cst_77 = arith.constant 0.000000e+00 : f32
    %159 = vector.broadcast %cst_77 : f32 to vector<1x24xf32>
    %160 = arith.subf %159, %158 : vector<1x24xf32>
    %161 = math.exp %160 : vector<1x24xf32>
    %cst_78 = arith.constant 1.000000e+00 : f32
    %162 = vector.broadcast %cst_78 : f32 to vector<1x24xf32>
    %163 = arith.addf %162, %161 : vector<1x24xf32>
    %cst_79 = arith.constant 1.000000e+00 : f32
    %164 = vector.broadcast %cst_79 : f32 to vector<1x24xf32>
    %165 = arith.divf %164, %163 : vector<1x24xf32>
    %166 = vector.extract_strided_slice %149 {offsets = [0, 48], sizes = [1, 24], strides = [1, 1]} : vector<1x96xf32> to vector<1x24xf32>
    %167 = math.tanh %166 : vector<1x24xf32>
    %168 = vector.extract_strided_slice %149 {offsets = [0, 72], sizes = [1, 24], strides = [1, 1]} : vector<1x96xf32> to vector<1x24xf32>
    %cst_80 = arith.constant 0.000000e+00 : f32
    %169 = vector.broadcast %cst_80 : f32 to vector<1x24xf32>
    %170 = arith.subf %169, %168 : vector<1x24xf32>
    %171 = math.exp %170 : vector<1x24xf32>
    %cst_81 = arith.constant 1.000000e+00 : f32
    %172 = vector.broadcast %cst_81 : f32 to vector<1x24xf32>
    %173 = arith.addf %172, %171 : vector<1x24xf32>
    %cst_82 = arith.constant 1.000000e+00 : f32
    %174 = vector.broadcast %cst_82 : f32 to vector<1x24xf32>
    %175 = arith.divf %174, %173 : vector<1x24xf32>
    %176 = arith.mulf %165, %78 : vector<1x24xf32>
    %177 = arith.mulf %157, %167 : vector<1x24xf32>
    %178 = arith.addf %176, %177 : vector<1x24xf32>
    %179 = math.tanh %178 : vector<1x24xf32>
    %180 = arith.mulf %175, %179 : vector<1x24xf32>
    %cst_83 = arith.constant dense<0.000000e+00> : vector<1x8xf32>
    %181 = tpu.matmul %180, %7, %cst_83 {dimension_numbers = #tpu.dot_dimension_numbers<[1], [1], [0], [0], [0, 0, 1, 0], [], []>} : vector<1x24xf32>, vector<8x24xf32>, vector<1x8xf32> -> vector<1x8xf32>
    %cst_84 = arith.constant dense<0xFF800000> : vector<1xf32>
    %182 = vector.multi_reduction <maximumf>, %181, %cst_84 [1] : vector<1x8xf32> to vector<1xf32>
    %183 = vector.shape_cast %182 : vector<1xf32> to vector<1x1xf32>
    %184 = vector.broadcast %183 : vector<1x1xf32> to vector<1x8xf32>
    %185 = arith.subf %181, %184 : vector<1x8xf32>
    %186 = math.exp %185 : vector<1x8xf32>
    %cst_85 = arith.constant dense<0.000000e+00> : vector<1xf32>
    %187 = vector.multi_reduction <add>, %186, %cst_85 [1] : vector<1x8xf32> to vector<1xf32>
    %188 = vector.shape_cast %187 : vector<1xf32> to vector<1x1xf32>
    %189 = vector.broadcast %188 : vector<1x1xf32> to vector<1x8xf32>
    %190 = arith.divf %186, %189 : vector<1x8xf32>
    %cst_86 = arith.constant dense<0.000000e+00> : vector<1x24xf32>
    %191 = tpu.matmul %190, %7, %cst_86 {dimension_numbers = #tpu.dot_dimension_numbers<[1], [0], [0], [1], [0, 0, 1, 1], [], []>} : vector<1x8xf32>, vector<8x24xf32>, vector<1x24xf32> -> vector<1x24xf32>
    %192 = tpu.concatenate %180, %191 in 1 : vector<1x24xf32>, vector<1x24xf32> -> vector<1x48xf32>
    %193 = tpu.concatenate %192, %112 in 1 : vector<1x48xf32>, vector<1x24xf32> -> vector<1x72xf32>
    %cst_87 = arith.constant dense<0.000000e+00> : vector<1x96xf32>
    %194 = tpu.matmul %193, %66, %cst_87 {dimension_numbers = #tpu.dot_dimension_numbers<[1], [0], [0], [1], [0, 0, 1, 1], [], []>} : vector<1x72xf32>, vector<72x96xf32>, vector<1x96xf32> -> vector<1x96xf32>
    %195 = arith.addf %194, %69 : vector<1x96xf32>
    %196 = vector.extract_strided_slice %195 {offsets = [0, 0], sizes = [1, 24], strides = [1, 1]} : vector<1x96xf32> to vector<1x24xf32>
    %cst_88 = arith.constant 0.000000e+00 : f32
    %197 = vector.broadcast %cst_88 : f32 to vector<1x24xf32>
    %198 = arith.subf %197, %196 : vector<1x24xf32>
    %199 = math.exp %198 : vector<1x24xf32>
    %cst_89 = arith.constant 1.000000e+00 : f32
    %200 = vector.broadcast %cst_89 : f32 to vector<1x24xf32>
    %201 = arith.addf %200, %199 : vector<1x24xf32>
    %cst_90 = arith.constant 1.000000e+00 : f32
    %202 = vector.broadcast %cst_90 : f32 to vector<1x24xf32>
    %203 = arith.divf %202, %201 : vector<1x24xf32>
    %204 = vector.extract_strided_slice %195 {offsets = [0, 24], sizes = [1, 24], strides = [1, 1]} : vector<1x96xf32> to vector<1x24xf32>
    %cst_91 = arith.constant 0.000000e+00 : f32
    %205 = vector.broadcast %cst_91 : f32 to vector<1x24xf32>
    %206 = arith.subf %205, %204 : vector<1x24xf32>
    %207 = math.exp %206 : vector<1x24xf32>
    %cst_92 = arith.constant 1.000000e+00 : f32
    %208 = vector.broadcast %cst_92 : f32 to vector<1x24xf32>
    %209 = arith.addf %208, %207 : vector<1x24xf32>
    %cst_93 = arith.constant 1.000000e+00 : f32
    %210 = vector.broadcast %cst_93 : f32 to vector<1x24xf32>
    %211 = arith.divf %210, %209 : vector<1x24xf32>
    %212 = vector.extract_strided_slice %195 {offsets = [0, 48], sizes = [1, 24], strides = [1, 1]} : vector<1x96xf32> to vector<1x24xf32>
    %213 = math.tanh %212 : vector<1x24xf32>
    %214 = vector.extract_strided_slice %195 {offsets = [0, 72], sizes = [1, 24], strides = [1, 1]} : vector<1x96xf32> to vector<1x24xf32>
    %cst_94 = arith.constant 0.000000e+00 : f32
    %215 = vector.broadcast %cst_94 : f32 to vector<1x24xf32>
    %216 = arith.subf %215, %214 : vector<1x24xf32>
    %217 = math.exp %216 : vector<1x24xf32>
    %cst_95 = arith.constant 1.000000e+00 : f32
    %218 = vector.broadcast %cst_95 : f32 to vector<1x24xf32>
    %219 = arith.addf %218, %217 : vector<1x24xf32>
    %cst_96 = arith.constant 1.000000e+00 : f32
    %220 = vector.broadcast %cst_96 : f32 to vector<1x24xf32>
    %221 = arith.divf %220, %219 : vector<1x24xf32>
    %222 = arith.mulf %211, %110 : vector<1x24xf32>
    %223 = arith.mulf %203, %213 : vector<1x24xf32>
    %224 = arith.addf %222, %223 : vector<1x24xf32>
    %225 = math.tanh %224 : vector<1x24xf32>
    %226 = arith.mulf %221, %225 : vector<1x24xf32>
    %227 = tpu.concatenate %226, %146 in 1 : vector<1x24xf32>, vector<1x24xf32> -> vector<1x48xf32>
    %cst_97 = arith.constant dense<0.000000e+00> : vector<1x96xf32>
    %228 = tpu.matmul %227, %67, %cst_97 {dimension_numbers = #tpu.dot_dimension_numbers<[1], [0], [0], [1], [0, 0, 1, 1], [], []>} : vector<1x48xf32>, vector<48x96xf32>, vector<1x96xf32> -> vector<1x96xf32>
    %229 = arith.addf %228, %70 : vector<1x96xf32>
    %230 = vector.extract_strided_slice %229 {offsets = [0, 0], sizes = [1, 24], strides = [1, 1]} : vector<1x96xf32> to vector<1x24xf32>
    %cst_98 = arith.constant 0.000000e+00 : f32
    %231 = vector.broadcast %cst_98 : f32 to vector<1x24xf32>
    %232 = arith.subf %231, %230 : vector<1x24xf32>
    %233 = math.exp %232 : vector<1x24xf32>
    %cst_99 = arith.constant 1.000000e+00 : f32
    %234 = vector.broadcast %cst_99 : f32 to vector<1x24xf32>
    %235 = arith.addf %234, %233 : vector<1x24xf32>
    %cst_100 = arith.constant 1.000000e+00 : f32
    %236 = vector.broadcast %cst_100 : f32 to vector<1x24xf32>
    %237 = arith.divf %236, %235 : vector<1x24xf32>
    %238 = vector.extract_strided_slice %229 {offsets = [0, 24], sizes = [1, 24], strides = [1, 1]} : vector<1x96xf32> to vector<1x24xf32>
    %cst_101 = arith.constant 0.000000e+00 : f32
    %239 = vector.broadcast %cst_101 : f32 to vector<1x24xf32>
    %240 = arith.subf %239, %238 : vector<1x24xf32>
    %241 = math.exp %240 : vector<1x24xf32>
    %cst_102 = arith.constant 1.000000e+00 : f32
    %242 = vector.broadcast %cst_102 : f32 to vector<1x24xf32>
    %243 = arith.addf %242, %241 : vector<1x24xf32>
    %cst_103 = arith.constant 1.000000e+00 : f32
    %244 = vector.broadcast %cst_103 : f32 to vector<1x24xf32>
    %245 = arith.divf %244, %243 : vector<1x24xf32>
    %246 = vector.extract_strided_slice %229 {offsets = [0, 48], sizes = [1, 24], strides = [1, 1]} : vector<1x96xf32> to vector<1x24xf32>
    %247 = math.tanh %246 : vector<1x24xf32>
    %248 = vector.extract_strided_slice %229 {offsets = [0, 72], sizes = [1, 24], strides = [1, 1]} : vector<1x96xf32> to vector<1x24xf32>
    %cst_104 = arith.constant 0.000000e+00 : f32
    %249 = vector.broadcast %cst_104 : f32 to vector<1x24xf32>
    %250 = arith.subf %249, %248 : vector<1x24xf32>
    %251 = math.exp %250 : vector<1x24xf32>
    %cst_105 = arith.constant 1.000000e+00 : f32
    %252 = vector.broadcast %cst_105 : f32 to vector<1x24xf32>
    %253 = arith.addf %252, %251 : vector<1x24xf32>
    %cst_106 = arith.constant 1.000000e+00 : f32
    %254 = vector.broadcast %cst_106 : f32 to vector<1x24xf32>
    %255 = arith.divf %254, %253 : vector<1x24xf32>
    %256 = arith.mulf %245, %144 : vector<1x24xf32>
    %257 = arith.mulf %237, %247 : vector<1x24xf32>
    %258 = arith.addf %256, %257 : vector<1x24xf32>
    %259 = math.tanh %258 : vector<1x24xf32>
    %260 = arith.mulf %255, %259 : vector<1x24xf32>
    %261 = tpu.concatenate %260, %180 in 1 : vector<1x24xf32>, vector<1x24xf32> -> vector<1x48xf32>
    %cst_107 = arith.constant dense<0.000000e+00> : vector<1x96xf32>
    %262 = tpu.matmul %261, %68, %cst_107 {dimension_numbers = #tpu.dot_dimension_numbers<[1], [0], [0], [1], [0, 0, 1, 1], [], []>} : vector<1x48xf32>, vector<48x96xf32>, vector<1x96xf32> -> vector<1x96xf32>
    %263 = arith.addf %262, %71 : vector<1x96xf32>
    %264 = vector.extract_strided_slice %263 {offsets = [0, 0], sizes = [1, 24], strides = [1, 1]} : vector<1x96xf32> to vector<1x24xf32>
    %cst_108 = arith.constant 0.000000e+00 : f32
    %265 = vector.broadcast %cst_108 : f32 to vector<1x24xf32>
    %266 = arith.subf %265, %264 : vector<1x24xf32>
    %267 = math.exp %266 : vector<1x24xf32>
    %cst_109 = arith.constant 1.000000e+00 : f32
    %268 = vector.broadcast %cst_109 : f32 to vector<1x24xf32>
    %269 = arith.addf %268, %267 : vector<1x24xf32>
    %cst_110 = arith.constant 1.000000e+00 : f32
    %270 = vector.broadcast %cst_110 : f32 to vector<1x24xf32>
    %271 = arith.divf %270, %269 : vector<1x24xf32>
    %272 = vector.extract_strided_slice %263 {offsets = [0, 24], sizes = [1, 24], strides = [1, 1]} : vector<1x96xf32> to vector<1x24xf32>
    %cst_111 = arith.constant 0.000000e+00 : f32
    %273 = vector.broadcast %cst_111 : f32 to vector<1x24xf32>
    %274 = arith.subf %273, %272 : vector<1x24xf32>
    %275 = math.exp %274 : vector<1x24xf32>
    %cst_112 = arith.constant 1.000000e+00 : f32
    %276 = vector.broadcast %cst_112 : f32 to vector<1x24xf32>
    %277 = arith.addf %276, %275 : vector<1x24xf32>
    %cst_113 = arith.constant 1.000000e+00 : f32
    %278 = vector.broadcast %cst_113 : f32 to vector<1x24xf32>
    %279 = arith.divf %278, %277 : vector<1x24xf32>
    %280 = vector.extract_strided_slice %263 {offsets = [0, 48], sizes = [1, 24], strides = [1, 1]} : vector<1x96xf32> to vector<1x24xf32>
    %281 = math.tanh %280 : vector<1x24xf32>
    %282 = vector.extract_strided_slice %263 {offsets = [0, 72], sizes = [1, 24], strides = [1, 1]} : vector<1x96xf32> to vector<1x24xf32>
    %cst_114 = arith.constant 0.000000e+00 : f32
    %283 = vector.broadcast %cst_114 : f32 to vector<1x24xf32>
    %284 = arith.subf %283, %282 : vector<1x24xf32>
    %285 = math.exp %284 : vector<1x24xf32>
    %cst_115 = arith.constant 1.000000e+00 : f32
    %286 = vector.broadcast %cst_115 : f32 to vector<1x24xf32>
    %287 = arith.addf %286, %285 : vector<1x24xf32>
    %cst_116 = arith.constant 1.000000e+00 : f32
    %288 = vector.broadcast %cst_116 : f32 to vector<1x24xf32>
    %289 = arith.divf %288, %287 : vector<1x24xf32>
    %290 = arith.mulf %279, %178 : vector<1x24xf32>
    %291 = arith.mulf %271, %281 : vector<1x24xf32>
    %292 = arith.addf %290, %291 : vector<1x24xf32>
    %293 = math.tanh %292 : vector<1x24xf32>
    %294 = arith.mulf %289, %293 : vector<1x24xf32>
    %cst_117 = arith.constant dense<0.000000e+00> : vector<1x8xf32>
    %295 = tpu.matmul %294, %7, %cst_117 {dimension_numbers = #tpu.dot_dimension_numbers<[1], [1], [0], [0], [0, 0, 1, 0], [], []>} : vector<1x24xf32>, vector<8x24xf32>, vector<1x8xf32> -> vector<1x8xf32>
    %cst_118 = arith.constant dense<0xFF800000> : vector<1xf32>
    %296 = vector.multi_reduction <maximumf>, %295, %cst_118 [1] : vector<1x8xf32> to vector<1xf32>
    %297 = vector.shape_cast %296 : vector<1xf32> to vector<1x1xf32>
    %298 = vector.broadcast %297 : vector<1x1xf32> to vector<1x8xf32>
    %299 = arith.subf %295, %298 : vector<1x8xf32>
    %300 = math.exp %299 : vector<1x8xf32>
    %cst_119 = arith.constant dense<0.000000e+00> : vector<1xf32>
    %301 = vector.multi_reduction <add>, %300, %cst_119 [1] : vector<1x8xf32> to vector<1xf32>
    %302 = vector.shape_cast %301 : vector<1xf32> to vector<1x1xf32>
    %303 = vector.broadcast %302 : vector<1x1xf32> to vector<1x8xf32>
    %304 = arith.divf %300, %303 : vector<1x8xf32>
    %cst_120 = arith.constant dense<0.000000e+00> : vector<1x24xf32>
    %305 = tpu.matmul %304, %7, %cst_120 {dimension_numbers = #tpu.dot_dimension_numbers<[1], [0], [0], [1], [0, 0, 1, 1], [], []>} : vector<1x8xf32>, vector<8x24xf32>, vector<1x24xf32> -> vector<1x24xf32>
    %306 = tpu.concatenate %294, %305 in 1 : vector<1x24xf32>, vector<1x24xf32> -> vector<1x48xf32>
    %307 = tpu.concatenate %306, %226 in 1 : vector<1x48xf32>, vector<1x24xf32> -> vector<1x72xf32>
    %cst_121 = arith.constant dense<0.000000e+00> : vector<1x96xf32>
    %308 = tpu.matmul %307, %66, %cst_121 {dimension_numbers = #tpu.dot_dimension_numbers<[1], [0], [0], [1], [0, 0, 1, 1], [], []>} : vector<1x72xf32>, vector<72x96xf32>, vector<1x96xf32> -> vector<1x96xf32>
    %309 = arith.addf %308, %69 : vector<1x96xf32>
    %310 = vector.extract_strided_slice %309 {offsets = [0, 0], sizes = [1, 24], strides = [1, 1]} : vector<1x96xf32> to vector<1x24xf32>
    %cst_122 = arith.constant 0.000000e+00 : f32
    %311 = vector.broadcast %cst_122 : f32 to vector<1x24xf32>
    %312 = arith.subf %311, %310 : vector<1x24xf32>
    %313 = math.exp %312 : vector<1x24xf32>
    %cst_123 = arith.constant 1.000000e+00 : f32
    %314 = vector.broadcast %cst_123 : f32 to vector<1x24xf32>
    %315 = arith.addf %314, %313 : vector<1x24xf32>
    %cst_124 = arith.constant 1.000000e+00 : f32
    %316 = vector.broadcast %cst_124 : f32 to vector<1x24xf32>
    %317 = arith.divf %316, %315 : vector<1x24xf32>
    %318 = vector.extract_strided_slice %309 {offsets = [0, 24], sizes = [1, 24], strides = [1, 1]} : vector<1x96xf32> to vector<1x24xf32>
    %cst_125 = arith.constant 0.000000e+00 : f32
    %319 = vector.broadcast %cst_125 : f32 to vector<1x24xf32>
    %320 = arith.subf %319, %318 : vector<1x24xf32>
    %321 = math.exp %320 : vector<1x24xf32>
    %cst_126 = arith.constant 1.000000e+00 : f32
    %322 = vector.broadcast %cst_126 : f32 to vector<1x24xf32>
    %323 = arith.addf %322, %321 : vector<1x24xf32>
    %cst_127 = arith.constant 1.000000e+00 : f32
    %324 = vector.broadcast %cst_127 : f32 to vector<1x24xf32>
    %325 = arith.divf %324, %323 : vector<1x24xf32>
    %326 = vector.extract_strided_slice %309 {offsets = [0, 48], sizes = [1, 24], strides = [1, 1]} : vector<1x96xf32> to vector<1x24xf32>
    %327 = math.tanh %326 : vector<1x24xf32>
    %328 = vector.extract_strided_slice %309 {offsets = [0, 72], sizes = [1, 24], strides = [1, 1]} : vector<1x96xf32> to vector<1x24xf32>
    %cst_128 = arith.constant 0.000000e+00 : f32
    %329 = vector.broadcast %cst_128 : f32 to vector<1x24xf32>
    %330 = arith.subf %329, %328 : vector<1x24xf32>
    %331 = math.exp %330 : vector<1x24xf32>
    %cst_129 = arith.constant 1.000000e+00 : f32
    %332 = vector.broadcast %cst_129 : f32 to vector<1x24xf32>
    %333 = arith.addf %332, %331 : vector<1x24xf32>
    %cst_130 = arith.constant 1.000000e+00 : f32
    %334 = vector.broadcast %cst_130 : f32 to vector<1x24xf32>
    %335 = arith.divf %334, %333 : vector<1x24xf32>
    %336 = arith.mulf %325, %224 : vector<1x24xf32>
    %337 = arith.mulf %317, %327 : vector<1x24xf32>
    %338 = arith.addf %336, %337 : vector<1x24xf32>
    %339 = math.tanh %338 : vector<1x24xf32>
    %340 = arith.mulf %335, %339 : vector<1x24xf32>
    %341 = tpu.concatenate %340, %260 in 1 : vector<1x24xf32>, vector<1x24xf32> -> vector<1x48xf32>
    %cst_131 = arith.constant dense<0.000000e+00> : vector<1x96xf32>
    %342 = tpu.matmul %341, %67, %cst_131 {dimension_numbers = #tpu.dot_dimension_numbers<[1], [0], [0], [1], [0, 0, 1, 1], [], []>} : vector<1x48xf32>, vector<48x96xf32>, vector<1x96xf32> -> vector<1x96xf32>
    %343 = arith.addf %342, %70 : vector<1x96xf32>
    %344 = vector.extract_strided_slice %343 {offsets = [0, 0], sizes = [1, 24], strides = [1, 1]} : vector<1x96xf32> to vector<1x24xf32>
    %cst_132 = arith.constant 0.000000e+00 : f32
    %345 = vector.broadcast %cst_132 : f32 to vector<1x24xf32>
    %346 = arith.subf %345, %344 : vector<1x24xf32>
    %347 = math.exp %346 : vector<1x24xf32>
    %cst_133 = arith.constant 1.000000e+00 : f32
    %348 = vector.broadcast %cst_133 : f32 to vector<1x24xf32>
    %349 = arith.addf %348, %347 : vector<1x24xf32>
    %cst_134 = arith.constant 1.000000e+00 : f32
    %350 = vector.broadcast %cst_134 : f32 to vector<1x24xf32>
    %351 = arith.divf %350, %349 : vector<1x24xf32>
    %352 = vector.extract_strided_slice %343 {offsets = [0, 24], sizes = [1, 24], strides = [1, 1]} : vector<1x96xf32> to vector<1x24xf32>
    %cst_135 = arith.constant 0.000000e+00 : f32
    %353 = vector.broadcast %cst_135 : f32 to vector<1x24xf32>
    %354 = arith.subf %353, %352 : vector<1x24xf32>
    %355 = math.exp %354 : vector<1x24xf32>
    %cst_136 = arith.constant 1.000000e+00 : f32
    %356 = vector.broadcast %cst_136 : f32 to vector<1x24xf32>
    %357 = arith.addf %356, %355 : vector<1x24xf32>
    %cst_137 = arith.constant 1.000000e+00 : f32
    %358 = vector.broadcast %cst_137 : f32 to vector<1x24xf32>
    %359 = arith.divf %358, %357 : vector<1x24xf32>
    %360 = vector.extract_strided_slice %343 {offsets = [0, 48], sizes = [1, 24], strides = [1, 1]} : vector<1x96xf32> to vector<1x24xf32>
    %361 = math.tanh %360 : vector<1x24xf32>
    %362 = vector.extract_strided_slice %343 {offsets = [0, 72], sizes = [1, 24], strides = [1, 1]} : vector<1x96xf32> to vector<1x24xf32>
    %cst_138 = arith.constant 0.000000e+00 : f32
    %363 = vector.broadcast %cst_138 : f32 to vector<1x24xf32>
    %364 = arith.subf %363, %362 : vector<1x24xf32>
    %365 = math.exp %364 : vector<1x24xf32>
    %cst_139 = arith.constant 1.000000e+00 : f32
    %366 = vector.broadcast %cst_139 : f32 to vector<1x24xf32>
    %367 = arith.addf %366, %365 : vector<1x24xf32>
    %cst_140 = arith.constant 1.000000e+00 : f32
    %368 = vector.broadcast %cst_140 : f32 to vector<1x24xf32>
    %369 = arith.divf %368, %367 : vector<1x24xf32>
    %370 = arith.mulf %359, %258 : vector<1x24xf32>
    %371 = arith.mulf %351, %361 : vector<1x24xf32>
    %372 = arith.addf %370, %371 : vector<1x24xf32>
    %373 = math.tanh %372 : vector<1x24xf32>
    %374 = arith.mulf %369, %373 : vector<1x24xf32>
    %375 = tpu.concatenate %374, %294 in 1 : vector<1x24xf32>, vector<1x24xf32> -> vector<1x48xf32>
    %cst_141 = arith.constant dense<0.000000e+00> : vector<1x96xf32>
    %376 = tpu.matmul %375, %68, %cst_141 {dimension_numbers = #tpu.dot_dimension_numbers<[1], [0], [0], [1], [0, 0, 1, 1], [], []>} : vector<1x48xf32>, vector<48x96xf32>, vector<1x96xf32> -> vector<1x96xf32>
    %377 = arith.addf %376, %71 : vector<1x96xf32>
    %378 = vector.extract_strided_slice %377 {offsets = [0, 0], sizes = [1, 24], strides = [1, 1]} : vector<1x96xf32> to vector<1x24xf32>
    %cst_142 = arith.constant 0.000000e+00 : f32
    %379 = vector.broadcast %cst_142 : f32 to vector<1x24xf32>
    %380 = arith.subf %379, %378 : vector<1x24xf32>
    %381 = math.exp %380 : vector<1x24xf32>
    %cst_143 = arith.constant 1.000000e+00 : f32
    %382 = vector.broadcast %cst_143 : f32 to vector<1x24xf32>
    %383 = arith.addf %382, %381 : vector<1x24xf32>
    %cst_144 = arith.constant 1.000000e+00 : f32
    %384 = vector.broadcast %cst_144 : f32 to vector<1x24xf32>
    %385 = arith.divf %384, %383 : vector<1x24xf32>
    %386 = vector.extract_strided_slice %377 {offsets = [0, 24], sizes = [1, 24], strides = [1, 1]} : vector<1x96xf32> to vector<1x24xf32>
    %cst_145 = arith.constant 0.000000e+00 : f32
    %387 = vector.broadcast %cst_145 : f32 to vector<1x24xf32>
    %388 = arith.subf %387, %386 : vector<1x24xf32>
    %389 = math.exp %388 : vector<1x24xf32>
    %cst_146 = arith.constant 1.000000e+00 : f32
    %390 = vector.broadcast %cst_146 : f32 to vector<1x24xf32>
    %391 = arith.addf %390, %389 : vector<1x24xf32>
    %cst_147 = arith.constant 1.000000e+00 : f32
    %392 = vector.broadcast %cst_147 : f32 to vector<1x24xf32>
    %393 = arith.divf %392, %391 : vector<1x24xf32>
    %394 = vector.extract_strided_slice %377 {offsets = [0, 48], sizes = [1, 24], strides = [1, 1]} : vector<1x96xf32> to vector<1x24xf32>
    %395 = math.tanh %394 : vector<1x24xf32>
    %396 = vector.extract_strided_slice %377 {offsets = [0, 72], sizes = [1, 24], strides = [1, 1]} : vector<1x96xf32> to vector<1x24xf32>
    %cst_148 = arith.constant 0.000000e+00 : f32
    %397 = vector.broadcast %cst_148 : f32 to vector<1x24xf32>
    %398 = arith.subf %397, %396 : vector<1x24xf32>
    %399 = math.exp %398 : vector<1x24xf32>
    %cst_149 = arith.constant 1.000000e+00 : f32
    %400 = vector.broadcast %cst_149 : f32 to vector<1x24xf32>
    %401 = arith.addf %400, %399 : vector<1x24xf32>
    %cst_150 = arith.constant 1.000000e+00 : f32
    %402 = vector.broadcast %cst_150 : f32 to vector<1x24xf32>
    %403 = arith.divf %402, %401 : vector<1x24xf32>
    %404 = arith.mulf %393, %292 : vector<1x24xf32>
    %405 = arith.mulf %385, %395 : vector<1x24xf32>
    %406 = arith.addf %404, %405 : vector<1x24xf32>
    %407 = math.tanh %406 : vector<1x24xf32>
    %408 = arith.mulf %403, %407 : vector<1x24xf32>
    %cst_151 = arith.constant dense<0.000000e+00> : vector<1x8xf32>
    %409 = tpu.matmul %408, %7, %cst_151 {dimension_numbers = #tpu.dot_dimension_numbers<[1], [1], [0], [0], [0, 0, 1, 0], [], []>} : vector<1x24xf32>, vector<8x24xf32>, vector<1x8xf32> -> vector<1x8xf32>
    %cst_152 = arith.constant dense<0xFF800000> : vector<1xf32>
    %410 = vector.multi_reduction <maximumf>, %409, %cst_152 [1] : vector<1x8xf32> to vector<1xf32>
    %411 = vector.shape_cast %410 : vector<1xf32> to vector<1x1xf32>
    %412 = vector.broadcast %411 : vector<1x1xf32> to vector<1x8xf32>
    %413 = arith.subf %409, %412 : vector<1x8xf32>
    %414 = math.exp %413 : vector<1x8xf32>
    %cst_153 = arith.constant dense<0.000000e+00> : vector<1xf32>
    %415 = vector.multi_reduction <add>, %414, %cst_153 [1] : vector<1x8xf32> to vector<1xf32>
    %416 = vector.shape_cast %415 : vector<1xf32> to vector<1x1xf32>
    %417 = vector.broadcast %416 : vector<1x1xf32> to vector<1x8xf32>
    %418 = arith.divf %414, %417 : vector<1x8xf32>
    %cst_154 = arith.constant dense<0.000000e+00> : vector<1x24xf32>
    %419 = tpu.matmul %418, %7, %cst_154 {dimension_numbers = #tpu.dot_dimension_numbers<[1], [0], [0], [1], [0, 0, 1, 1], [], []>} : vector<1x8xf32>, vector<8x24xf32>, vector<1x24xf32> -> vector<1x24xf32>
    %420 = tpu.concatenate %408, %419 in 1 : vector<1x24xf32>, vector<1x24xf32> -> vector<1x48xf32>
    %421 = tpu.concatenate %420, %340 in 1 : vector<1x48xf32>, vector<1x24xf32> -> vector<1x72xf32>
    %cst_155 = arith.constant dense<0.000000e+00> : vector<1x96xf32>
    %422 = tpu.matmul %421, %66, %cst_155 {dimension_numbers = #tpu.dot_dimension_numbers<[1], [0], [0], [1], [0, 0, 1, 1], [], []>} : vector<1x72xf32>, vector<72x96xf32>, vector<1x96xf32> -> vector<1x96xf32>
    %423 = arith.addf %422, %69 : vector<1x96xf32>
    %424 = vector.extract_strided_slice %423 {offsets = [0, 0], sizes = [1, 24], strides = [1, 1]} : vector<1x96xf32> to vector<1x24xf32>
    %cst_156 = arith.constant 0.000000e+00 : f32
    %425 = vector.broadcast %cst_156 : f32 to vector<1x24xf32>
    %426 = arith.subf %425, %424 : vector<1x24xf32>
    %427 = math.exp %426 : vector<1x24xf32>
    %cst_157 = arith.constant 1.000000e+00 : f32
    %428 = vector.broadcast %cst_157 : f32 to vector<1x24xf32>
    %429 = arith.addf %428, %427 : vector<1x24xf32>
    %cst_158 = arith.constant 1.000000e+00 : f32
    %430 = vector.broadcast %cst_158 : f32 to vector<1x24xf32>
    %431 = arith.divf %430, %429 : vector<1x24xf32>
    %432 = vector.extract_strided_slice %423 {offsets = [0, 24], sizes = [1, 24], strides = [1, 1]} : vector<1x96xf32> to vector<1x24xf32>
    %cst_159 = arith.constant 0.000000e+00 : f32
    %433 = vector.broadcast %cst_159 : f32 to vector<1x24xf32>
    %434 = arith.subf %433, %432 : vector<1x24xf32>
    %435 = math.exp %434 : vector<1x24xf32>
    %cst_160 = arith.constant 1.000000e+00 : f32
    %436 = vector.broadcast %cst_160 : f32 to vector<1x24xf32>
    %437 = arith.addf %436, %435 : vector<1x24xf32>
    %cst_161 = arith.constant 1.000000e+00 : f32
    %438 = vector.broadcast %cst_161 : f32 to vector<1x24xf32>
    %439 = arith.divf %438, %437 : vector<1x24xf32>
    %440 = vector.extract_strided_slice %423 {offsets = [0, 48], sizes = [1, 24], strides = [1, 1]} : vector<1x96xf32> to vector<1x24xf32>
    %441 = math.tanh %440 : vector<1x24xf32>
    %442 = vector.extract_strided_slice %423 {offsets = [0, 72], sizes = [1, 24], strides = [1, 1]} : vector<1x96xf32> to vector<1x24xf32>
    %cst_162 = arith.constant 0.000000e+00 : f32
    %443 = vector.broadcast %cst_162 : f32 to vector<1x24xf32>
    %444 = arith.subf %443, %442 : vector<1x24xf32>
    %445 = math.exp %444 : vector<1x24xf32>
    %cst_163 = arith.constant 1.000000e+00 : f32
    %446 = vector.broadcast %cst_163 : f32 to vector<1x24xf32>
    %447 = arith.addf %446, %445 : vector<1x24xf32>
    %cst_164 = arith.constant 1.000000e+00 : f32
    %448 = vector.broadcast %cst_164 : f32 to vector<1x24xf32>
    %449 = arith.divf %448, %447 : vector<1x24xf32>
    %450 = arith.mulf %439, %338 : vector<1x24xf32>
    %451 = arith.mulf %431, %441 : vector<1x24xf32>
    %452 = arith.addf %450, %451 : vector<1x24xf32>
    %453 = math.tanh %452 : vector<1x24xf32>
    %454 = arith.mulf %449, %453 : vector<1x24xf32>
    %455 = tpu.concatenate %454, %374 in 1 : vector<1x24xf32>, vector<1x24xf32> -> vector<1x48xf32>
    %cst_165 = arith.constant dense<0.000000e+00> : vector<1x96xf32>
    %456 = tpu.matmul %455, %67, %cst_165 {dimension_numbers = #tpu.dot_dimension_numbers<[1], [0], [0], [1], [0, 0, 1, 1], [], []>} : vector<1x48xf32>, vector<48x96xf32>, vector<1x96xf32> -> vector<1x96xf32>
    %457 = arith.addf %456, %70 : vector<1x96xf32>
    %458 = vector.extract_strided_slice %457 {offsets = [0, 0], sizes = [1, 24], strides = [1, 1]} : vector<1x96xf32> to vector<1x24xf32>
    %cst_166 = arith.constant 0.000000e+00 : f32
    %459 = vector.broadcast %cst_166 : f32 to vector<1x24xf32>
    %460 = arith.subf %459, %458 : vector<1x24xf32>
    %461 = math.exp %460 : vector<1x24xf32>
    %cst_167 = arith.constant 1.000000e+00 : f32
    %462 = vector.broadcast %cst_167 : f32 to vector<1x24xf32>
    %463 = arith.addf %462, %461 : vector<1x24xf32>
    %cst_168 = arith.constant 1.000000e+00 : f32
    %464 = vector.broadcast %cst_168 : f32 to vector<1x24xf32>
    %465 = arith.divf %464, %463 : vector<1x24xf32>
    %466 = vector.extract_strided_slice %457 {offsets = [0, 24], sizes = [1, 24], strides = [1, 1]} : vector<1x96xf32> to vector<1x24xf32>
    %cst_169 = arith.constant 0.000000e+00 : f32
    %467 = vector.broadcast %cst_169 : f32 to vector<1x24xf32>
    %468 = arith.subf %467, %466 : vector<1x24xf32>
    %469 = math.exp %468 : vector<1x24xf32>
    %cst_170 = arith.constant 1.000000e+00 : f32
    %470 = vector.broadcast %cst_170 : f32 to vector<1x24xf32>
    %471 = arith.addf %470, %469 : vector<1x24xf32>
    %cst_171 = arith.constant 1.000000e+00 : f32
    %472 = vector.broadcast %cst_171 : f32 to vector<1x24xf32>
    %473 = arith.divf %472, %471 : vector<1x24xf32>
    %474 = vector.extract_strided_slice %457 {offsets = [0, 48], sizes = [1, 24], strides = [1, 1]} : vector<1x96xf32> to vector<1x24xf32>
    %475 = math.tanh %474 : vector<1x24xf32>
    %476 = vector.extract_strided_slice %457 {offsets = [0, 72], sizes = [1, 24], strides = [1, 1]} : vector<1x96xf32> to vector<1x24xf32>
    %cst_172 = arith.constant 0.000000e+00 : f32
    %477 = vector.broadcast %cst_172 : f32 to vector<1x24xf32>
    %478 = arith.subf %477, %476 : vector<1x24xf32>
    %479 = math.exp %478 : vector<1x24xf32>
    %cst_173 = arith.constant 1.000000e+00 : f32
    %480 = vector.broadcast %cst_173 : f32 to vector<1x24xf32>
    %481 = arith.addf %480, %479 : vector<1x24xf32>
    %cst_174 = arith.constant 1.000000e+00 : f32
    %482 = vector.broadcast %cst_174 : f32 to vector<1x24xf32>
    %483 = arith.divf %482, %481 : vector<1x24xf32>
    %484 = arith.mulf %473, %372 : vector<1x24xf32>
    %485 = arith.mulf %465, %475 : vector<1x24xf32>
    %486 = arith.addf %484, %485 : vector<1x24xf32>
    %487 = math.tanh %486 : vector<1x24xf32>
    %488 = arith.mulf %483, %487 : vector<1x24xf32>
    %489 = tpu.concatenate %488, %408 in 1 : vector<1x24xf32>, vector<1x24xf32> -> vector<1x48xf32>
    %cst_175 = arith.constant dense<0.000000e+00> : vector<1x96xf32>
    %490 = tpu.matmul %489, %68, %cst_175 {dimension_numbers = #tpu.dot_dimension_numbers<[1], [0], [0], [1], [0, 0, 1, 1], [], []>} : vector<1x48xf32>, vector<48x96xf32>, vector<1x96xf32> -> vector<1x96xf32>
    %491 = arith.addf %490, %71 : vector<1x96xf32>
    %492 = vector.extract_strided_slice %491 {offsets = [0, 0], sizes = [1, 24], strides = [1, 1]} : vector<1x96xf32> to vector<1x24xf32>
    %cst_176 = arith.constant 0.000000e+00 : f32
    %493 = vector.broadcast %cst_176 : f32 to vector<1x24xf32>
    %494 = arith.subf %493, %492 : vector<1x24xf32>
    %495 = math.exp %494 : vector<1x24xf32>
    %cst_177 = arith.constant 1.000000e+00 : f32
    %496 = vector.broadcast %cst_177 : f32 to vector<1x24xf32>
    %497 = arith.addf %496, %495 : vector<1x24xf32>
    %cst_178 = arith.constant 1.000000e+00 : f32
    %498 = vector.broadcast %cst_178 : f32 to vector<1x24xf32>
    %499 = arith.divf %498, %497 : vector<1x24xf32>
    %500 = vector.extract_strided_slice %491 {offsets = [0, 24], sizes = [1, 24], strides = [1, 1]} : vector<1x96xf32> to vector<1x24xf32>
    %cst_179 = arith.constant 0.000000e+00 : f32
    %501 = vector.broadcast %cst_179 : f32 to vector<1x24xf32>
    %502 = arith.subf %501, %500 : vector<1x24xf32>
    %503 = math.exp %502 : vector<1x24xf32>
    %cst_180 = arith.constant 1.000000e+00 : f32
    %504 = vector.broadcast %cst_180 : f32 to vector<1x24xf32>
    %505 = arith.addf %504, %503 : vector<1x24xf32>
    %cst_181 = arith.constant 1.000000e+00 : f32
    %506 = vector.broadcast %cst_181 : f32 to vector<1x24xf32>
    %507 = arith.divf %506, %505 : vector<1x24xf32>
    %508 = vector.extract_strided_slice %491 {offsets = [0, 48], sizes = [1, 24], strides = [1, 1]} : vector<1x96xf32> to vector<1x24xf32>
    %509 = math.tanh %508 : vector<1x24xf32>
    %510 = vector.extract_strided_slice %491 {offsets = [0, 72], sizes = [1, 24], strides = [1, 1]} : vector<1x96xf32> to vector<1x24xf32>
    %cst_182 = arith.constant 0.000000e+00 : f32
    %511 = vector.broadcast %cst_182 : f32 to vector<1x24xf32>
    %512 = arith.subf %511, %510 : vector<1x24xf32>
    %513 = math.exp %512 : vector<1x24xf32>
    %cst_183 = arith.constant 1.000000e+00 : f32
    %514 = vector.broadcast %cst_183 : f32 to vector<1x24xf32>
    %515 = arith.addf %514, %513 : vector<1x24xf32>
    %cst_184 = arith.constant 1.000000e+00 : f32
    %516 = vector.broadcast %cst_184 : f32 to vector<1x24xf32>
    %517 = arith.divf %516, %515 : vector<1x24xf32>
    %518 = arith.mulf %507, %406 : vector<1x24xf32>
    %519 = arith.mulf %499, %509 : vector<1x24xf32>
    %520 = arith.addf %518, %519 : vector<1x24xf32>
    %521 = math.tanh %520 : vector<1x24xf32>
    %522 = arith.mulf %517, %521 : vector<1x24xf32>
    %cst_185 = arith.constant dense<0.000000e+00> : vector<1x8xf32>
    %523 = tpu.matmul %522, %7, %cst_185 {dimension_numbers = #tpu.dot_dimension_numbers<[1], [1], [0], [0], [0, 0, 1, 0], [], []>} : vector<1x24xf32>, vector<8x24xf32>, vector<1x8xf32> -> vector<1x8xf32>
    %cst_186 = arith.constant dense<0xFF800000> : vector<1xf32>
    %524 = vector.multi_reduction <maximumf>, %523, %cst_186 [1] : vector<1x8xf32> to vector<1xf32>
    %525 = vector.shape_cast %524 : vector<1xf32> to vector<1x1xf32>
    %526 = vector.broadcast %525 : vector<1x1xf32> to vector<1x8xf32>
    %527 = arith.subf %523, %526 : vector<1x8xf32>
    %528 = math.exp %527 : vector<1x8xf32>
    %cst_187 = arith.constant dense<0.000000e+00> : vector<1xf32>
    %529 = vector.multi_reduction <add>, %528, %cst_187 [1] : vector<1x8xf32> to vector<1xf32>
    %530 = vector.shape_cast %529 : vector<1xf32> to vector<1x1xf32>
    %531 = vector.broadcast %530 : vector<1x1xf32> to vector<1x8xf32>
    %532 = arith.divf %528, %531 : vector<1x8xf32>
    %cst_188 = arith.constant dense<0.000000e+00> : vector<1x24xf32>
    %533 = tpu.matmul %532, %7, %cst_188 {dimension_numbers = #tpu.dot_dimension_numbers<[1], [0], [0], [1], [0, 0, 1, 1], [], []>} : vector<1x8xf32>, vector<8x24xf32>, vector<1x24xf32> -> vector<1x24xf32>
    %534 = tpu.concatenate %522, %533 in 1 : vector<1x24xf32>, vector<1x24xf32> -> vector<1x48xf32>
    %535 = tpu.concatenate %534, %454 in 1 : vector<1x48xf32>, vector<1x24xf32> -> vector<1x72xf32>
    %cst_189 = arith.constant dense<0.000000e+00> : vector<1x96xf32>
    %536 = tpu.matmul %535, %66, %cst_189 {dimension_numbers = #tpu.dot_dimension_numbers<[1], [0], [0], [1], [0, 0, 1, 1], [], []>} : vector<1x72xf32>, vector<72x96xf32>, vector<1x96xf32> -> vector<1x96xf32>
    %537 = arith.addf %536, %69 : vector<1x96xf32>
    %538 = vector.extract_strided_slice %537 {offsets = [0, 0], sizes = [1, 24], strides = [1, 1]} : vector<1x96xf32> to vector<1x24xf32>
    %cst_190 = arith.constant 0.000000e+00 : f32
    %539 = vector.broadcast %cst_190 : f32 to vector<1x24xf32>
    %540 = arith.subf %539, %538 : vector<1x24xf32>
    %541 = math.exp %540 : vector<1x24xf32>
    %cst_191 = arith.constant 1.000000e+00 : f32
    %542 = vector.broadcast %cst_191 : f32 to vector<1x24xf32>
    %543 = arith.addf %542, %541 : vector<1x24xf32>
    %cst_192 = arith.constant 1.000000e+00 : f32
    %544 = vector.broadcast %cst_192 : f32 to vector<1x24xf32>
    %545 = arith.divf %544, %543 : vector<1x24xf32>
    %546 = vector.extract_strided_slice %537 {offsets = [0, 24], sizes = [1, 24], strides = [1, 1]} : vector<1x96xf32> to vector<1x24xf32>
    %cst_193 = arith.constant 0.000000e+00 : f32
    %547 = vector.broadcast %cst_193 : f32 to vector<1x24xf32>
    %548 = arith.subf %547, %546 : vector<1x24xf32>
    %549 = math.exp %548 : vector<1x24xf32>
    %cst_194 = arith.constant 1.000000e+00 : f32
    %550 = vector.broadcast %cst_194 : f32 to vector<1x24xf32>
    %551 = arith.addf %550, %549 : vector<1x24xf32>
    %cst_195 = arith.constant 1.000000e+00 : f32
    %552 = vector.broadcast %cst_195 : f32 to vector<1x24xf32>
    %553 = arith.divf %552, %551 : vector<1x24xf32>
    %554 = vector.extract_strided_slice %537 {offsets = [0, 48], sizes = [1, 24], strides = [1, 1]} : vector<1x96xf32> to vector<1x24xf32>
    %555 = math.tanh %554 : vector<1x24xf32>
    %556 = vector.extract_strided_slice %537 {offsets = [0, 72], sizes = [1, 24], strides = [1, 1]} : vector<1x96xf32> to vector<1x24xf32>
    %cst_196 = arith.constant 0.000000e+00 : f32
    %557 = vector.broadcast %cst_196 : f32 to vector<1x24xf32>
    %558 = arith.subf %557, %556 : vector<1x24xf32>
    %559 = math.exp %558 : vector<1x24xf32>
    %cst_197 = arith.constant 1.000000e+00 : f32
    %560 = vector.broadcast %cst_197 : f32 to vector<1x24xf32>
    %561 = arith.addf %560, %559 : vector<1x24xf32>
    %cst_198 = arith.constant 1.000000e+00 : f32
    %562 = vector.broadcast %cst_198 : f32 to vector<1x24xf32>
    %563 = arith.divf %562, %561 : vector<1x24xf32>
    %564 = arith.mulf %553, %452 : vector<1x24xf32>
    %565 = arith.mulf %545, %555 : vector<1x24xf32>
    %566 = arith.addf %564, %565 : vector<1x24xf32>
    %567 = math.tanh %566 : vector<1x24xf32>
    %568 = arith.mulf %563, %567 : vector<1x24xf32>
    %569 = tpu.concatenate %568, %488 in 1 : vector<1x24xf32>, vector<1x24xf32> -> vector<1x48xf32>
    %cst_199 = arith.constant dense<0.000000e+00> : vector<1x96xf32>
    %570 = tpu.matmul %569, %67, %cst_199 {dimension_numbers = #tpu.dot_dimension_numbers<[1], [0], [0], [1], [0, 0, 1, 1], [], []>} : vector<1x48xf32>, vector<48x96xf32>, vector<1x96xf32> -> vector<1x96xf32>
    %571 = arith.addf %570, %70 : vector<1x96xf32>
    %572 = vector.extract_strided_slice %571 {offsets = [0, 0], sizes = [1, 24], strides = [1, 1]} : vector<1x96xf32> to vector<1x24xf32>
    %cst_200 = arith.constant 0.000000e+00 : f32
    %573 = vector.broadcast %cst_200 : f32 to vector<1x24xf32>
    %574 = arith.subf %573, %572 : vector<1x24xf32>
    %575 = math.exp %574 : vector<1x24xf32>
    %cst_201 = arith.constant 1.000000e+00 : f32
    %576 = vector.broadcast %cst_201 : f32 to vector<1x24xf32>
    %577 = arith.addf %576, %575 : vector<1x24xf32>
    %cst_202 = arith.constant 1.000000e+00 : f32
    %578 = vector.broadcast %cst_202 : f32 to vector<1x24xf32>
    %579 = arith.divf %578, %577 : vector<1x24xf32>
    %580 = vector.extract_strided_slice %571 {offsets = [0, 24], sizes = [1, 24], strides = [1, 1]} : vector<1x96xf32> to vector<1x24xf32>
    %cst_203 = arith.constant 0.000000e+00 : f32
    %581 = vector.broadcast %cst_203 : f32 to vector<1x24xf32>
    %582 = arith.subf %581, %580 : vector<1x24xf32>
    %583 = math.exp %582 : vector<1x24xf32>
    %cst_204 = arith.constant 1.000000e+00 : f32
    %584 = vector.broadcast %cst_204 : f32 to vector<1x24xf32>
    %585 = arith.addf %584, %583 : vector<1x24xf32>
    %cst_205 = arith.constant 1.000000e+00 : f32
    %586 = vector.broadcast %cst_205 : f32 to vector<1x24xf32>
    %587 = arith.divf %586, %585 : vector<1x24xf32>
    %588 = vector.extract_strided_slice %571 {offsets = [0, 48], sizes = [1, 24], strides = [1, 1]} : vector<1x96xf32> to vector<1x24xf32>
    %589 = math.tanh %588 : vector<1x24xf32>
    %590 = vector.extract_strided_slice %571 {offsets = [0, 72], sizes = [1, 24], strides = [1, 1]} : vector<1x96xf32> to vector<1x24xf32>
    %cst_206 = arith.constant 0.000000e+00 : f32
    %591 = vector.broadcast %cst_206 : f32 to vector<1x24xf32>
    %592 = arith.subf %591, %590 : vector<1x24xf32>
    %593 = math.exp %592 : vector<1x24xf32>
    %cst_207 = arith.constant 1.000000e+00 : f32
    %594 = vector.broadcast %cst_207 : f32 to vector<1x24xf32>
    %595 = arith.addf %594, %593 : vector<1x24xf32>
    %cst_208 = arith.constant 1.000000e+00 : f32
    %596 = vector.broadcast %cst_208 : f32 to vector<1x24xf32>
    %597 = arith.divf %596, %595 : vector<1x24xf32>
    %598 = arith.mulf %587, %486 : vector<1x24xf32>
    %599 = arith.mulf %579, %589 : vector<1x24xf32>
    %600 = arith.addf %598, %599 : vector<1x24xf32>
    %601 = math.tanh %600 : vector<1x24xf32>
    %602 = arith.mulf %597, %601 : vector<1x24xf32>
    %603 = tpu.concatenate %602, %522 in 1 : vector<1x24xf32>, vector<1x24xf32> -> vector<1x48xf32>
    %cst_209 = arith.constant dense<0.000000e+00> : vector<1x96xf32>
    %604 = tpu.matmul %603, %68, %cst_209 {dimension_numbers = #tpu.dot_dimension_numbers<[1], [0], [0], [1], [0, 0, 1, 1], [], []>} : vector<1x48xf32>, vector<48x96xf32>, vector<1x96xf32> -> vector<1x96xf32>
    %605 = arith.addf %604, %71 : vector<1x96xf32>
    %606 = vector.extract_strided_slice %605 {offsets = [0, 0], sizes = [1, 24], strides = [1, 1]} : vector<1x96xf32> to vector<1x24xf32>
    %cst_210 = arith.constant 0.000000e+00 : f32
    %607 = vector.broadcast %cst_210 : f32 to vector<1x24xf32>
    %608 = arith.subf %607, %606 : vector<1x24xf32>
    %609 = math.exp %608 : vector<1x24xf32>
    %cst_211 = arith.constant 1.000000e+00 : f32
    %610 = vector.broadcast %cst_211 : f32 to vector<1x24xf32>
    %611 = arith.addf %610, %609 : vector<1x24xf32>
    %cst_212 = arith.constant 1.000000e+00 : f32
    %612 = vector.broadcast %cst_212 : f32 to vector<1x24xf32>
    %613 = arith.divf %612, %611 : vector<1x24xf32>
    %614 = vector.extract_strided_slice %605 {offsets = [0, 24], sizes = [1, 24], strides = [1, 1]} : vector<1x96xf32> to vector<1x24xf32>
    %cst_213 = arith.constant 0.000000e+00 : f32
    %615 = vector.broadcast %cst_213 : f32 to vector<1x24xf32>
    %616 = arith.subf %615, %614 : vector<1x24xf32>
    %617 = math.exp %616 : vector<1x24xf32>
    %cst_214 = arith.constant 1.000000e+00 : f32
    %618 = vector.broadcast %cst_214 : f32 to vector<1x24xf32>
    %619 = arith.addf %618, %617 : vector<1x24xf32>
    %cst_215 = arith.constant 1.000000e+00 : f32
    %620 = vector.broadcast %cst_215 : f32 to vector<1x24xf32>
    %621 = arith.divf %620, %619 : vector<1x24xf32>
    %622 = vector.extract_strided_slice %605 {offsets = [0, 48], sizes = [1, 24], strides = [1, 1]} : vector<1x96xf32> to vector<1x24xf32>
    %623 = math.tanh %622 : vector<1x24xf32>
    %624 = vector.extract_strided_slice %605 {offsets = [0, 72], sizes = [1, 24], strides = [1, 1]} : vector<1x96xf32> to vector<1x24xf32>
    %cst_216 = arith.constant 0.000000e+00 : f32
    %625 = vector.broadcast %cst_216 : f32 to vector<1x24xf32>
    %626 = arith.subf %625, %624 : vector<1x24xf32>
    %627 = math.exp %626 : vector<1x24xf32>
    %cst_217 = arith.constant 1.000000e+00 : f32
    %628 = vector.broadcast %cst_217 : f32 to vector<1x24xf32>
    %629 = arith.addf %628, %627 : vector<1x24xf32>
    %cst_218 = arith.constant 1.000000e+00 : f32
    %630 = vector.broadcast %cst_218 : f32 to vector<1x24xf32>
    %631 = arith.divf %630, %629 : vector<1x24xf32>
    %632 = arith.mulf %621, %520 : vector<1x24xf32>
    %633 = arith.mulf %613, %623 : vector<1x24xf32>
    %634 = arith.addf %632, %633 : vector<1x24xf32>
    %635 = math.tanh %634 : vector<1x24xf32>
    %636 = arith.mulf %631, %635 : vector<1x24xf32>
    %cst_219 = arith.constant dense<0.000000e+00> : vector<1x8xf32>
    %637 = tpu.matmul %636, %7, %cst_219 {dimension_numbers = #tpu.dot_dimension_numbers<[1], [1], [0], [0], [0, 0, 1, 0], [], []>} : vector<1x24xf32>, vector<8x24xf32>, vector<1x8xf32> -> vector<1x8xf32>
    %cst_220 = arith.constant dense<0xFF800000> : vector<1xf32>
    %638 = vector.multi_reduction <maximumf>, %637, %cst_220 [1] : vector<1x8xf32> to vector<1xf32>
    %639 = vector.shape_cast %638 : vector<1xf32> to vector<1x1xf32>
    %640 = vector.broadcast %639 : vector<1x1xf32> to vector<1x8xf32>
    %641 = arith.subf %637, %640 : vector<1x8xf32>
    %642 = math.exp %641 : vector<1x8xf32>
    %cst_221 = arith.constant dense<0.000000e+00> : vector<1xf32>
    %643 = vector.multi_reduction <add>, %642, %cst_221 [1] : vector<1x8xf32> to vector<1xf32>
    %644 = vector.shape_cast %643 : vector<1xf32> to vector<1x1xf32>
    %645 = vector.broadcast %644 : vector<1x1xf32> to vector<1x8xf32>
    %646 = arith.divf %642, %645 : vector<1x8xf32>
    %cst_222 = arith.constant dense<0.000000e+00> : vector<1x24xf32>
    %647 = tpu.matmul %646, %7, %cst_222 {dimension_numbers = #tpu.dot_dimension_numbers<[1], [0], [0], [1], [0, 0, 1, 1], [], []>} : vector<1x8xf32>, vector<8x24xf32>, vector<1x24xf32> -> vector<1x24xf32>
    %648 = tpu.concatenate %636, %647 in 1 : vector<1x24xf32>, vector<1x24xf32> -> vector<1x48xf32>
    %649 = tpu.concatenate %648, %568 in 1 : vector<1x48xf32>, vector<1x24xf32> -> vector<1x72xf32>
    %cst_223 = arith.constant dense<0.000000e+00> : vector<1x96xf32>
    %650 = tpu.matmul %649, %66, %cst_223 {dimension_numbers = #tpu.dot_dimension_numbers<[1], [0], [0], [1], [0, 0, 1, 1], [], []>} : vector<1x72xf32>, vector<72x96xf32>, vector<1x96xf32> -> vector<1x96xf32>
    %651 = arith.addf %650, %69 : vector<1x96xf32>
    %652 = vector.extract_strided_slice %651 {offsets = [0, 0], sizes = [1, 24], strides = [1, 1]} : vector<1x96xf32> to vector<1x24xf32>
    %cst_224 = arith.constant 0.000000e+00 : f32
    %653 = vector.broadcast %cst_224 : f32 to vector<1x24xf32>
    %654 = arith.subf %653, %652 : vector<1x24xf32>
    %655 = math.exp %654 : vector<1x24xf32>
    %cst_225 = arith.constant 1.000000e+00 : f32
    %656 = vector.broadcast %cst_225 : f32 to vector<1x24xf32>
    %657 = arith.addf %656, %655 : vector<1x24xf32>
    %cst_226 = arith.constant 1.000000e+00 : f32
    %658 = vector.broadcast %cst_226 : f32 to vector<1x24xf32>
    %659 = arith.divf %658, %657 : vector<1x24xf32>
    %660 = vector.extract_strided_slice %651 {offsets = [0, 24], sizes = [1, 24], strides = [1, 1]} : vector<1x96xf32> to vector<1x24xf32>
    %cst_227 = arith.constant 0.000000e+00 : f32
    %661 = vector.broadcast %cst_227 : f32 to vector<1x24xf32>
    %662 = arith.subf %661, %660 : vector<1x24xf32>
    %663 = math.exp %662 : vector<1x24xf32>
    %cst_228 = arith.constant 1.000000e+00 : f32
    %664 = vector.broadcast %cst_228 : f32 to vector<1x24xf32>
    %665 = arith.addf %664, %663 : vector<1x24xf32>
    %cst_229 = arith.constant 1.000000e+00 : f32
    %666 = vector.broadcast %cst_229 : f32 to vector<1x24xf32>
    %667 = arith.divf %666, %665 : vector<1x24xf32>
    %668 = vector.extract_strided_slice %651 {offsets = [0, 48], sizes = [1, 24], strides = [1, 1]} : vector<1x96xf32> to vector<1x24xf32>
    %669 = math.tanh %668 : vector<1x24xf32>
    %670 = vector.extract_strided_slice %651 {offsets = [0, 72], sizes = [1, 24], strides = [1, 1]} : vector<1x96xf32> to vector<1x24xf32>
    %cst_230 = arith.constant 0.000000e+00 : f32
    %671 = vector.broadcast %cst_230 : f32 to vector<1x24xf32>
    %672 = arith.subf %671, %670 : vector<1x24xf32>
    %673 = math.exp %672 : vector<1x24xf32>
    %cst_231 = arith.constant 1.000000e+00 : f32
    %674 = vector.broadcast %cst_231 : f32 to vector<1x24xf32>
    %675 = arith.addf %674, %673 : vector<1x24xf32>
    %cst_232 = arith.constant 1.000000e+00 : f32
    %676 = vector.broadcast %cst_232 : f32 to vector<1x24xf32>
    %677 = arith.divf %676, %675 : vector<1x24xf32>
    %678 = arith.mulf %667, %566 : vector<1x24xf32>
    %679 = arith.mulf %659, %669 : vector<1x24xf32>
    %680 = arith.addf %678, %679 : vector<1x24xf32>
    %681 = math.tanh %680 : vector<1x24xf32>
    %682 = arith.mulf %677, %681 : vector<1x24xf32>
    %683 = tpu.concatenate %682, %602 in 1 : vector<1x24xf32>, vector<1x24xf32> -> vector<1x48xf32>
    %cst_233 = arith.constant dense<0.000000e+00> : vector<1x96xf32>
    %684 = tpu.matmul %683, %67, %cst_233 {dimension_numbers = #tpu.dot_dimension_numbers<[1], [0], [0], [1], [0, 0, 1, 1], [], []>} : vector<1x48xf32>, vector<48x96xf32>, vector<1x96xf32> -> vector<1x96xf32>
    %685 = arith.addf %684, %70 : vector<1x96xf32>
    %686 = vector.extract_strided_slice %685 {offsets = [0, 0], sizes = [1, 24], strides = [1, 1]} : vector<1x96xf32> to vector<1x24xf32>
    %cst_234 = arith.constant 0.000000e+00 : f32
    %687 = vector.broadcast %cst_234 : f32 to vector<1x24xf32>
    %688 = arith.subf %687, %686 : vector<1x24xf32>
    %689 = math.exp %688 : vector<1x24xf32>
    %cst_235 = arith.constant 1.000000e+00 : f32
    %690 = vector.broadcast %cst_235 : f32 to vector<1x24xf32>
    %691 = arith.addf %690, %689 : vector<1x24xf32>
    %cst_236 = arith.constant 1.000000e+00 : f32
    %692 = vector.broadcast %cst_236 : f32 to vector<1x24xf32>
    %693 = arith.divf %692, %691 : vector<1x24xf32>
    %694 = vector.extract_strided_slice %685 {offsets = [0, 24], sizes = [1, 24], strides = [1, 1]} : vector<1x96xf32> to vector<1x24xf32>
    %cst_237 = arith.constant 0.000000e+00 : f32
    %695 = vector.broadcast %cst_237 : f32 to vector<1x24xf32>
    %696 = arith.subf %695, %694 : vector<1x24xf32>
    %697 = math.exp %696 : vector<1x24xf32>
    %cst_238 = arith.constant 1.000000e+00 : f32
    %698 = vector.broadcast %cst_238 : f32 to vector<1x24xf32>
    %699 = arith.addf %698, %697 : vector<1x24xf32>
    %cst_239 = arith.constant 1.000000e+00 : f32
    %700 = vector.broadcast %cst_239 : f32 to vector<1x24xf32>
    %701 = arith.divf %700, %699 : vector<1x24xf32>
    %702 = vector.extract_strided_slice %685 {offsets = [0, 48], sizes = [1, 24], strides = [1, 1]} : vector<1x96xf32> to vector<1x24xf32>
    %703 = math.tanh %702 : vector<1x24xf32>
    %704 = vector.extract_strided_slice %685 {offsets = [0, 72], sizes = [1, 24], strides = [1, 1]} : vector<1x96xf32> to vector<1x24xf32>
    %cst_240 = arith.constant 0.000000e+00 : f32
    %705 = vector.broadcast %cst_240 : f32 to vector<1x24xf32>
    %706 = arith.subf %705, %704 : vector<1x24xf32>
    %707 = math.exp %706 : vector<1x24xf32>
    %cst_241 = arith.constant 1.000000e+00 : f32
    %708 = vector.broadcast %cst_241 : f32 to vector<1x24xf32>
    %709 = arith.addf %708, %707 : vector<1x24xf32>
    %cst_242 = arith.constant 1.000000e+00 : f32
    %710 = vector.broadcast %cst_242 : f32 to vector<1x24xf32>
    %711 = arith.divf %710, %709 : vector<1x24xf32>
    %712 = arith.mulf %701, %600 : vector<1x24xf32>
    %713 = arith.mulf %693, %703 : vector<1x24xf32>
    %714 = arith.addf %712, %713 : vector<1x24xf32>
    %715 = math.tanh %714 : vector<1x24xf32>
    %716 = arith.mulf %711, %715 : vector<1x24xf32>
    %717 = tpu.concatenate %716, %636 in 1 : vector<1x24xf32>, vector<1x24xf32> -> vector<1x48xf32>
    %cst_243 = arith.constant dense<0.000000e+00> : vector<1x96xf32>
    %718 = tpu.matmul %717, %68, %cst_243 {dimension_numbers = #tpu.dot_dimension_numbers<[1], [0], [0], [1], [0, 0, 1, 1], [], []>} : vector<1x48xf32>, vector<48x96xf32>, vector<1x96xf32> -> vector<1x96xf32>
    %719 = arith.addf %718, %71 : vector<1x96xf32>
    %720 = vector.extract_strided_slice %719 {offsets = [0, 0], sizes = [1, 24], strides = [1, 1]} : vector<1x96xf32> to vector<1x24xf32>
    %cst_244 = arith.constant 0.000000e+00 : f32
    %721 = vector.broadcast %cst_244 : f32 to vector<1x24xf32>
    %722 = arith.subf %721, %720 : vector<1x24xf32>
    %723 = math.exp %722 : vector<1x24xf32>
    %cst_245 = arith.constant 1.000000e+00 : f32
    %724 = vector.broadcast %cst_245 : f32 to vector<1x24xf32>
    %725 = arith.addf %724, %723 : vector<1x24xf32>
    %cst_246 = arith.constant 1.000000e+00 : f32
    %726 = vector.broadcast %cst_246 : f32 to vector<1x24xf32>
    %727 = arith.divf %726, %725 : vector<1x24xf32>
    %728 = vector.extract_strided_slice %719 {offsets = [0, 24], sizes = [1, 24], strides = [1, 1]} : vector<1x96xf32> to vector<1x24xf32>
    %cst_247 = arith.constant 0.000000e+00 : f32
    %729 = vector.broadcast %cst_247 : f32 to vector<1x24xf32>
    %730 = arith.subf %729, %728 : vector<1x24xf32>
    %731 = math.exp %730 : vector<1x24xf32>
    %cst_248 = arith.constant 1.000000e+00 : f32
    %732 = vector.broadcast %cst_248 : f32 to vector<1x24xf32>
    %733 = arith.addf %732, %731 : vector<1x24xf32>
    %cst_249 = arith.constant 1.000000e+00 : f32
    %734 = vector.broadcast %cst_249 : f32 to vector<1x24xf32>
    %735 = arith.divf %734, %733 : vector<1x24xf32>
    %736 = vector.extract_strided_slice %719 {offsets = [0, 48], sizes = [1, 24], strides = [1, 1]} : vector<1x96xf32> to vector<1x24xf32>
    %737 = math.tanh %736 : vector<1x24xf32>
    %738 = vector.extract_strided_slice %719 {offsets = [0, 72], sizes = [1, 24], strides = [1, 1]} : vector<1x96xf32> to vector<1x24xf32>
    %cst_250 = arith.constant 0.000000e+00 : f32
    %739 = vector.broadcast %cst_250 : f32 to vector<1x24xf32>
    %740 = arith.subf %739, %738 : vector<1x24xf32>
    %741 = math.exp %740 : vector<1x24xf32>
    %cst_251 = arith.constant 1.000000e+00 : f32
    %742 = vector.broadcast %cst_251 : f32 to vector<1x24xf32>
    %743 = arith.addf %742, %741 : vector<1x24xf32>
    %cst_252 = arith.constant 1.000000e+00 : f32
    %744 = vector.broadcast %cst_252 : f32 to vector<1x24xf32>
    %745 = arith.divf %744, %743 : vector<1x24xf32>
    %746 = arith.mulf %735, %634 : vector<1x24xf32>
    %747 = arith.mulf %727, %737 : vector<1x24xf32>
    %748 = arith.addf %746, %747 : vector<1x24xf32>
    %749 = math.tanh %748 : vector<1x24xf32>
    %750 = arith.mulf %745, %749 : vector<1x24xf32>
    %cst_253 = arith.constant dense<0.000000e+00> : vector<1x8xf32>
    %751 = tpu.matmul %750, %7, %cst_253 {dimension_numbers = #tpu.dot_dimension_numbers<[1], [1], [0], [0], [0, 0, 1, 0], [], []>} : vector<1x24xf32>, vector<8x24xf32>, vector<1x8xf32> -> vector<1x8xf32>
    %cst_254 = arith.constant dense<0xFF800000> : vector<1xf32>
    %752 = vector.multi_reduction <maximumf>, %751, %cst_254 [1] : vector<1x8xf32> to vector<1xf32>
    %753 = vector.shape_cast %752 : vector<1xf32> to vector<1x1xf32>
    %754 = vector.broadcast %753 : vector<1x1xf32> to vector<1x8xf32>
    %755 = arith.subf %751, %754 : vector<1x8xf32>
    %756 = math.exp %755 : vector<1x8xf32>
    %cst_255 = arith.constant dense<0.000000e+00> : vector<1xf32>
    %757 = vector.multi_reduction <add>, %756, %cst_255 [1] : vector<1x8xf32> to vector<1xf32>
    %758 = vector.shape_cast %757 : vector<1xf32> to vector<1x1xf32>
    %759 = vector.broadcast %758 : vector<1x1xf32> to vector<1x8xf32>
    %760 = arith.divf %756, %759 : vector<1x8xf32>
    %cst_256 = arith.constant dense<0.000000e+00> : vector<1x24xf32>
    %761 = tpu.matmul %760, %7, %cst_256 {dimension_numbers = #tpu.dot_dimension_numbers<[1], [0], [0], [1], [0, 0, 1, 1], [], []>} : vector<1x8xf32>, vector<8x24xf32>, vector<1x24xf32> -> vector<1x24xf32>
    %762 = tpu.concatenate %750, %761 in 1 : vector<1x24xf32>, vector<1x24xf32> -> vector<1x48xf32>
    %c0_257 = arith.constant 0 : index
    %c0_258 = arith.constant 0 : index
    %763 = vector.load %arg17[%c0_257, %c0_258] : memref<72x96xf32, #tpu.memory_space<vmem>>, vector<72x96xf32>
    %c0_259 = arith.constant 0 : index
    %c0_260 = arith.constant 0 : index
    %764 = vector.load %arg19[%c0_259, %c0_260] : memref<48x96xf32, #tpu.memory_space<vmem>>, vector<48x96xf32>
    %c0_261 = arith.constant 0 : index
    %c0_262 = arith.constant 0 : index
    %765 = vector.load %arg21[%c0_261, %c0_262] : memref<48x96xf32, #tpu.memory_space<vmem>>, vector<48x96xf32>
    %c0_263 = arith.constant 0 : index
    %c0_264 = arith.constant 0 : index
    %766 = vector.load %arg18[%c0_263, %c0_264] : memref<1x96xf32, #tpu.memory_space<vmem>>, vector<1x96xf32>
    %c0_265 = arith.constant 0 : index
    %c0_266 = arith.constant 0 : index
    %767 = vector.load %arg20[%c0_265, %c0_266] : memref<1x96xf32, #tpu.memory_space<vmem>>, vector<1x96xf32>
    %c0_267 = arith.constant 0 : index
    %c0_268 = arith.constant 0 : index
    %768 = vector.load %arg22[%c0_267, %c0_268] : memref<1x96xf32, #tpu.memory_space<vmem>>, vector<1x96xf32>
    %cst_269 = arith.constant 0.000000e+00 : f32
    %769 = vector.broadcast %cst_269 : f32 to vector<1x48xf32>
    %cst_270 = arith.constant 0.000000e+00 : f32
    %770 = vector.broadcast %cst_270 : f32 to vector<1x24xf32>
    %cst_271 = arith.constant 0.000000e+00 : f32
    %771 = vector.broadcast %cst_271 : f32 to vector<1x24xf32>
    %cst_272 = arith.constant 0.000000e+00 : f32
    %772 = vector.broadcast %cst_272 : f32 to vector<1x24xf32>
    %cst_273 = arith.constant 0.000000e+00 : f32
    %773 = vector.broadcast %cst_273 : f32 to vector<1x24xf32>
    %cst_274 = arith.constant 0.000000e+00 : f32
    %774 = vector.broadcast %cst_274 : f32 to vector<1x24xf32>
    %cst_275 = arith.constant 0.000000e+00 : f32
    %775 = vector.broadcast %cst_275 : f32 to vector<1x24xf32>
    %776 = tpu.concatenate %769, %770 in 1 : vector<1x48xf32>, vector<1x24xf32> -> vector<1x72xf32>
    %cst_276 = arith.constant dense<0.000000e+00> : vector<1x96xf32>
    %777 = tpu.matmul %776, %763, %cst_276 {dimension_numbers = #tpu.dot_dimension_numbers<[1], [0], [0], [1], [0, 0, 1, 1], [], []>} : vector<1x72xf32>, vector<72x96xf32>, vector<1x96xf32> -> vector<1x96xf32>
    %778 = arith.addf %777, %766 : vector<1x96xf32>
    %779 = vector.extract_strided_slice %778 {offsets = [0, 0], sizes = [1, 24], strides = [1, 1]} : vector<1x96xf32> to vector<1x24xf32>
    %cst_277 = arith.constant 0.000000e+00 : f32
    %780 = vector.broadcast %cst_277 : f32 to vector<1x24xf32>
    %781 = arith.subf %780, %779 : vector<1x24xf32>
    %782 = math.exp %781 : vector<1x24xf32>
    %cst_278 = arith.constant 1.000000e+00 : f32
    %783 = vector.broadcast %cst_278 : f32 to vector<1x24xf32>
    %784 = arith.addf %783, %782 : vector<1x24xf32>
    %cst_279 = arith.constant 1.000000e+00 : f32
    %785 = vector.broadcast %cst_279 : f32 to vector<1x24xf32>
    %786 = arith.divf %785, %784 : vector<1x24xf32>
    %787 = vector.extract_strided_slice %778 {offsets = [0, 24], sizes = [1, 24], strides = [1, 1]} : vector<1x96xf32> to vector<1x24xf32>
    %cst_280 = arith.constant 0.000000e+00 : f32
    %788 = vector.broadcast %cst_280 : f32 to vector<1x24xf32>
    %789 = arith.subf %788, %787 : vector<1x24xf32>
    %790 = math.exp %789 : vector<1x24xf32>
    %cst_281 = arith.constant 1.000000e+00 : f32
    %791 = vector.broadcast %cst_281 : f32 to vector<1x24xf32>
    %792 = arith.addf %791, %790 : vector<1x24xf32>
    %cst_282 = arith.constant 1.000000e+00 : f32
    %793 = vector.broadcast %cst_282 : f32 to vector<1x24xf32>
    %794 = arith.divf %793, %792 : vector<1x24xf32>
    %795 = vector.extract_strided_slice %778 {offsets = [0, 48], sizes = [1, 24], strides = [1, 1]} : vector<1x96xf32> to vector<1x24xf32>
    %796 = math.tanh %795 : vector<1x24xf32>
    %797 = vector.extract_strided_slice %778 {offsets = [0, 72], sizes = [1, 24], strides = [1, 1]} : vector<1x96xf32> to vector<1x24xf32>
    %cst_283 = arith.constant 0.000000e+00 : f32
    %798 = vector.broadcast %cst_283 : f32 to vector<1x24xf32>
    %799 = arith.subf %798, %797 : vector<1x24xf32>
    %800 = math.exp %799 : vector<1x24xf32>
    %cst_284 = arith.constant 1.000000e+00 : f32
    %801 = vector.broadcast %cst_284 : f32 to vector<1x24xf32>
    %802 = arith.addf %801, %800 : vector<1x24xf32>
    %cst_285 = arith.constant 1.000000e+00 : f32
    %803 = vector.broadcast %cst_285 : f32 to vector<1x24xf32>
    %804 = arith.divf %803, %802 : vector<1x24xf32>
    %805 = arith.mulf %794, %773 : vector<1x24xf32>
    %806 = arith.mulf %786, %796 : vector<1x24xf32>
    %807 = arith.addf %805, %806 : vector<1x24xf32>
    %808 = math.tanh %807 : vector<1x24xf32>
    %809 = arith.mulf %804, %808 : vector<1x24xf32>
    %810 = tpu.concatenate %809, %771 in 1 : vector<1x24xf32>, vector<1x24xf32> -> vector<1x48xf32>
    %cst_286 = arith.constant dense<0.000000e+00> : vector<1x96xf32>
    %811 = tpu.matmul %810, %764, %cst_286 {dimension_numbers = #tpu.dot_dimension_numbers<[1], [0], [0], [1], [0, 0, 1, 1], [], []>} : vector<1x48xf32>, vector<48x96xf32>, vector<1x96xf32> -> vector<1x96xf32>
    %812 = arith.addf %811, %767 : vector<1x96xf32>
    %813 = vector.extract_strided_slice %812 {offsets = [0, 0], sizes = [1, 24], strides = [1, 1]} : vector<1x96xf32> to vector<1x24xf32>
    %cst_287 = arith.constant 0.000000e+00 : f32
    %814 = vector.broadcast %cst_287 : f32 to vector<1x24xf32>
    %815 = arith.subf %814, %813 : vector<1x24xf32>
    %816 = math.exp %815 : vector<1x24xf32>
    %cst_288 = arith.constant 1.000000e+00 : f32
    %817 = vector.broadcast %cst_288 : f32 to vector<1x24xf32>
    %818 = arith.addf %817, %816 : vector<1x24xf32>
    %cst_289 = arith.constant 1.000000e+00 : f32
    %819 = vector.broadcast %cst_289 : f32 to vector<1x24xf32>
    %820 = arith.divf %819, %818 : vector<1x24xf32>
    %821 = vector.extract_strided_slice %812 {offsets = [0, 24], sizes = [1, 24], strides = [1, 1]} : vector<1x96xf32> to vector<1x24xf32>
    %cst_290 = arith.constant 0.000000e+00 : f32
    %822 = vector.broadcast %cst_290 : f32 to vector<1x24xf32>
    %823 = arith.subf %822, %821 : vector<1x24xf32>
    %824 = math.exp %823 : vector<1x24xf32>
    %cst_291 = arith.constant 1.000000e+00 : f32
    %825 = vector.broadcast %cst_291 : f32 to vector<1x24xf32>
    %826 = arith.addf %825, %824 : vector<1x24xf32>
    %cst_292 = arith.constant 1.000000e+00 : f32
    %827 = vector.broadcast %cst_292 : f32 to vector<1x24xf32>
    %828 = arith.divf %827, %826 : vector<1x24xf32>
    %829 = vector.extract_strided_slice %812 {offsets = [0, 48], sizes = [1, 24], strides = [1, 1]} : vector<1x96xf32> to vector<1x24xf32>
    %830 = math.tanh %829 : vector<1x24xf32>
    %831 = vector.extract_strided_slice %812 {offsets = [0, 72], sizes = [1, 24], strides = [1, 1]} : vector<1x96xf32> to vector<1x24xf32>
    %cst_293 = arith.constant 0.000000e+00 : f32
    %832 = vector.broadcast %cst_293 : f32 to vector<1x24xf32>
    %833 = arith.subf %832, %831 : vector<1x24xf32>
    %834 = math.exp %833 : vector<1x24xf32>
    %cst_294 = arith.constant 1.000000e+00 : f32
    %835 = vector.broadcast %cst_294 : f32 to vector<1x24xf32>
    %836 = arith.addf %835, %834 : vector<1x24xf32>
    %cst_295 = arith.constant 1.000000e+00 : f32
    %837 = vector.broadcast %cst_295 : f32 to vector<1x24xf32>
    %838 = arith.divf %837, %836 : vector<1x24xf32>
    %839 = arith.mulf %828, %774 : vector<1x24xf32>
    %840 = arith.mulf %820, %830 : vector<1x24xf32>
    %841 = arith.addf %839, %840 : vector<1x24xf32>
    %842 = math.tanh %841 : vector<1x24xf32>
    %843 = arith.mulf %838, %842 : vector<1x24xf32>
    %844 = tpu.concatenate %843, %772 in 1 : vector<1x24xf32>, vector<1x24xf32> -> vector<1x48xf32>
    %cst_296 = arith.constant dense<0.000000e+00> : vector<1x96xf32>
    %845 = tpu.matmul %844, %765, %cst_296 {dimension_numbers = #tpu.dot_dimension_numbers<[1], [0], [0], [1], [0, 0, 1, 1], [], []>} : vector<1x48xf32>, vector<48x96xf32>, vector<1x96xf32> -> vector<1x96xf32>
    %846 = arith.addf %845, %768 : vector<1x96xf32>
    %847 = vector.extract_strided_slice %846 {offsets = [0, 0], sizes = [1, 24], strides = [1, 1]} : vector<1x96xf32> to vector<1x24xf32>
    %cst_297 = arith.constant 0.000000e+00 : f32
    %848 = vector.broadcast %cst_297 : f32 to vector<1x24xf32>
    %849 = arith.subf %848, %847 : vector<1x24xf32>
    %850 = math.exp %849 : vector<1x24xf32>
    %cst_298 = arith.constant 1.000000e+00 : f32
    %851 = vector.broadcast %cst_298 : f32 to vector<1x24xf32>
    %852 = arith.addf %851, %850 : vector<1x24xf32>
    %cst_299 = arith.constant 1.000000e+00 : f32
    %853 = vector.broadcast %cst_299 : f32 to vector<1x24xf32>
    %854 = arith.divf %853, %852 : vector<1x24xf32>
    %855 = vector.extract_strided_slice %846 {offsets = [0, 24], sizes = [1, 24], strides = [1, 1]} : vector<1x96xf32> to vector<1x24xf32>
    %cst_300 = arith.constant 0.000000e+00 : f32
    %856 = vector.broadcast %cst_300 : f32 to vector<1x24xf32>
    %857 = arith.subf %856, %855 : vector<1x24xf32>
    %858 = math.exp %857 : vector<1x24xf32>
    %cst_301 = arith.constant 1.000000e+00 : f32
    %859 = vector.broadcast %cst_301 : f32 to vector<1x24xf32>
    %860 = arith.addf %859, %858 : vector<1x24xf32>
    %cst_302 = arith.constant 1.000000e+00 : f32
    %861 = vector.broadcast %cst_302 : f32 to vector<1x24xf32>
    %862 = arith.divf %861, %860 : vector<1x24xf32>
    %863 = vector.extract_strided_slice %846 {offsets = [0, 48], sizes = [1, 24], strides = [1, 1]} : vector<1x96xf32> to vector<1x24xf32>
    %864 = math.tanh %863 : vector<1x24xf32>
    %865 = vector.extract_strided_slice %846 {offsets = [0, 72], sizes = [1, 24], strides = [1, 1]} : vector<1x96xf32> to vector<1x24xf32>
    %cst_303 = arith.constant 0.000000e+00 : f32
    %866 = vector.broadcast %cst_303 : f32 to vector<1x24xf32>
    %867 = arith.subf %866, %865 : vector<1x24xf32>
    %868 = math.exp %867 : vector<1x24xf32>
    %cst_304 = arith.constant 1.000000e+00 : f32
    %869 = vector.broadcast %cst_304 : f32 to vector<1x24xf32>
    %870 = arith.addf %869, %868 : vector<1x24xf32>
    %cst_305 = arith.constant 1.000000e+00 : f32
    %871 = vector.broadcast %cst_305 : f32 to vector<1x24xf32>
    %872 = arith.divf %871, %870 : vector<1x24xf32>
    %873 = arith.mulf %862, %775 : vector<1x24xf32>
    %874 = arith.mulf %854, %864 : vector<1x24xf32>
    %875 = arith.addf %873, %874 : vector<1x24xf32>
    %876 = math.tanh %875 : vector<1x24xf32>
    %877 = arith.mulf %872, %876 : vector<1x24xf32>
    %cst_306 = arith.constant dense<0.000000e+00> : vector<1x12xf32>
    %878 = tpu.matmul %877, %65, %cst_306 {dimension_numbers = #tpu.dot_dimension_numbers<[1], [1], [0], [0], [0, 0, 1, 0], [], []>} : vector<1x24xf32>, vector<12x24xf32>, vector<1x12xf32> -> vector<1x12xf32>
    %cst_307 = arith.constant dense<0xFF800000> : vector<1xf32>
    %879 = vector.multi_reduction <maximumf>, %878, %cst_307 [1] : vector<1x12xf32> to vector<1xf32>
    %880 = vector.shape_cast %879 : vector<1xf32> to vector<1x1xf32>
    %881 = vector.broadcast %880 : vector<1x1xf32> to vector<1x12xf32>
    %882 = arith.subf %878, %881 : vector<1x12xf32>
    %883 = math.exp %882 : vector<1x12xf32>
    %cst_308 = arith.constant dense<0.000000e+00> : vector<1xf32>
    %884 = vector.multi_reduction <add>, %883, %cst_308 [1] : vector<1x12xf32> to vector<1xf32>
    %885 = vector.shape_cast %884 : vector<1xf32> to vector<1x1xf32>
    %886 = vector.broadcast %885 : vector<1x1xf32> to vector<1x12xf32>
    %887 = arith.divf %883, %886 : vector<1x12xf32>
    %cst_309 = arith.constant dense<0.000000e+00> : vector<1x24xf32>
    %888 = tpu.matmul %887, %65, %cst_309 {dimension_numbers = #tpu.dot_dimension_numbers<[1], [0], [0], [1], [0, 0, 1, 1], [], []>} : vector<1x12xf32>, vector<12x24xf32>, vector<1x24xf32> -> vector<1x24xf32>
    %889 = tpu.concatenate %877, %888 in 1 : vector<1x24xf32>, vector<1x24xf32> -> vector<1x48xf32>
    %890 = tpu.concatenate %889, %809 in 1 : vector<1x48xf32>, vector<1x24xf32> -> vector<1x72xf32>
    %cst_310 = arith.constant dense<0.000000e+00> : vector<1x96xf32>
    %891 = tpu.matmul %890, %763, %cst_310 {dimension_numbers = #tpu.dot_dimension_numbers<[1], [0], [0], [1], [0, 0, 1, 1], [], []>} : vector<1x72xf32>, vector<72x96xf32>, vector<1x96xf32> -> vector<1x96xf32>
    %892 = arith.addf %891, %766 : vector<1x96xf32>
    %893 = vector.extract_strided_slice %892 {offsets = [0, 0], sizes = [1, 24], strides = [1, 1]} : vector<1x96xf32> to vector<1x24xf32>
    %cst_311 = arith.constant 0.000000e+00 : f32
    %894 = vector.broadcast %cst_311 : f32 to vector<1x24xf32>
    %895 = arith.subf %894, %893 : vector<1x24xf32>
    %896 = math.exp %895 : vector<1x24xf32>
    %cst_312 = arith.constant 1.000000e+00 : f32
    %897 = vector.broadcast %cst_312 : f32 to vector<1x24xf32>
    %898 = arith.addf %897, %896 : vector<1x24xf32>
    %cst_313 = arith.constant 1.000000e+00 : f32
    %899 = vector.broadcast %cst_313 : f32 to vector<1x24xf32>
    %900 = arith.divf %899, %898 : vector<1x24xf32>
    %901 = vector.extract_strided_slice %892 {offsets = [0, 24], sizes = [1, 24], strides = [1, 1]} : vector<1x96xf32> to vector<1x24xf32>
    %cst_314 = arith.constant 0.000000e+00 : f32
    %902 = vector.broadcast %cst_314 : f32 to vector<1x24xf32>
    %903 = arith.subf %902, %901 : vector<1x24xf32>
    %904 = math.exp %903 : vector<1x24xf32>
    %cst_315 = arith.constant 1.000000e+00 : f32
    %905 = vector.broadcast %cst_315 : f32 to vector<1x24xf32>
    %906 = arith.addf %905, %904 : vector<1x24xf32>
    %cst_316 = arith.constant 1.000000e+00 : f32
    %907 = vector.broadcast %cst_316 : f32 to vector<1x24xf32>
    %908 = arith.divf %907, %906 : vector<1x24xf32>
    %909 = vector.extract_strided_slice %892 {offsets = [0, 48], sizes = [1, 24], strides = [1, 1]} : vector<1x96xf32> to vector<1x24xf32>
    %910 = math.tanh %909 : vector<1x24xf32>
    %911 = vector.extract_strided_slice %892 {offsets = [0, 72], sizes = [1, 24], strides = [1, 1]} : vector<1x96xf32> to vector<1x24xf32>
    %cst_317 = arith.constant 0.000000e+00 : f32
    %912 = vector.broadcast %cst_317 : f32 to vector<1x24xf32>
    %913 = arith.subf %912, %911 : vector<1x24xf32>
    %914 = math.exp %913 : vector<1x24xf32>
    %cst_318 = arith.constant 1.000000e+00 : f32
    %915 = vector.broadcast %cst_318 : f32 to vector<1x24xf32>
    %916 = arith.addf %915, %914 : vector<1x24xf32>
    %cst_319 = arith.constant 1.000000e+00 : f32
    %917 = vector.broadcast %cst_319 : f32 to vector<1x24xf32>
    %918 = arith.divf %917, %916 : vector<1x24xf32>
    %919 = arith.mulf %908, %807 : vector<1x24xf32>
    %920 = arith.mulf %900, %910 : vector<1x24xf32>
    %921 = arith.addf %919, %920 : vector<1x24xf32>
    %922 = math.tanh %921 : vector<1x24xf32>
    %923 = arith.mulf %918, %922 : vector<1x24xf32>
    %924 = tpu.concatenate %923, %843 in 1 : vector<1x24xf32>, vector<1x24xf32> -> vector<1x48xf32>
    %cst_320 = arith.constant dense<0.000000e+00> : vector<1x96xf32>
    %925 = tpu.matmul %924, %764, %cst_320 {dimension_numbers = #tpu.dot_dimension_numbers<[1], [0], [0], [1], [0, 0, 1, 1], [], []>} : vector<1x48xf32>, vector<48x96xf32>, vector<1x96xf32> -> vector<1x96xf32>
    %926 = arith.addf %925, %767 : vector<1x96xf32>
    %927 = vector.extract_strided_slice %926 {offsets = [0, 0], sizes = [1, 24], strides = [1, 1]} : vector<1x96xf32> to vector<1x24xf32>
    %cst_321 = arith.constant 0.000000e+00 : f32
    %928 = vector.broadcast %cst_321 : f32 to vector<1x24xf32>
    %929 = arith.subf %928, %927 : vector<1x24xf32>
    %930 = math.exp %929 : vector<1x24xf32>
    %cst_322 = arith.constant 1.000000e+00 : f32
    %931 = vector.broadcast %cst_322 : f32 to vector<1x24xf32>
    %932 = arith.addf %931, %930 : vector<1x24xf32>
    %cst_323 = arith.constant 1.000000e+00 : f32
    %933 = vector.broadcast %cst_323 : f32 to vector<1x24xf32>
    %934 = arith.divf %933, %932 : vector<1x24xf32>
    %935 = vector.extract_strided_slice %926 {offsets = [0, 24], sizes = [1, 24], strides = [1, 1]} : vector<1x96xf32> to vector<1x24xf32>
    %cst_324 = arith.constant 0.000000e+00 : f32
    %936 = vector.broadcast %cst_324 : f32 to vector<1x24xf32>
    %937 = arith.subf %936, %935 : vector<1x24xf32>
    %938 = math.exp %937 : vector<1x24xf32>
    %cst_325 = arith.constant 1.000000e+00 : f32
    %939 = vector.broadcast %cst_325 : f32 to vector<1x24xf32>
    %940 = arith.addf %939, %938 : vector<1x24xf32>
    %cst_326 = arith.constant 1.000000e+00 : f32
    %941 = vector.broadcast %cst_326 : f32 to vector<1x24xf32>
    %942 = arith.divf %941, %940 : vector<1x24xf32>
    %943 = vector.extract_strided_slice %926 {offsets = [0, 48], sizes = [1, 24], strides = [1, 1]} : vector<1x96xf32> to vector<1x24xf32>
    %944 = math.tanh %943 : vector<1x24xf32>
    %945 = vector.extract_strided_slice %926 {offsets = [0, 72], sizes = [1, 24], strides = [1, 1]} : vector<1x96xf32> to vector<1x24xf32>
    %cst_327 = arith.constant 0.000000e+00 : f32
    %946 = vector.broadcast %cst_327 : f32 to vector<1x24xf32>
    %947 = arith.subf %946, %945 : vector<1x24xf32>
    %948 = math.exp %947 : vector<1x24xf32>
    %cst_328 = arith.constant 1.000000e+00 : f32
    %949 = vector.broadcast %cst_328 : f32 to vector<1x24xf32>
    %950 = arith.addf %949, %948 : vector<1x24xf32>
    %cst_329 = arith.constant 1.000000e+00 : f32
    %951 = vector.broadcast %cst_329 : f32 to vector<1x24xf32>
    %952 = arith.divf %951, %950 : vector<1x24xf32>
    %953 = arith.mulf %942, %841 : vector<1x24xf32>
    %954 = arith.mulf %934, %944 : vector<1x24xf32>
    %955 = arith.addf %953, %954 : vector<1x24xf32>
    %956 = math.tanh %955 : vector<1x24xf32>
    %957 = arith.mulf %952, %956 : vector<1x24xf32>
    %958 = tpu.concatenate %957, %877 in 1 : vector<1x24xf32>, vector<1x24xf32> -> vector<1x48xf32>
    %cst_330 = arith.constant dense<0.000000e+00> : vector<1x96xf32>
    %959 = tpu.matmul %958, %765, %cst_330 {dimension_numbers = #tpu.dot_dimension_numbers<[1], [0], [0], [1], [0, 0, 1, 1], [], []>} : vector<1x48xf32>, vector<48x96xf32>, vector<1x96xf32> -> vector<1x96xf32>
    %960 = arith.addf %959, %768 : vector<1x96xf32>
    %961 = vector.extract_strided_slice %960 {offsets = [0, 0], sizes = [1, 24], strides = [1, 1]} : vector<1x96xf32> to vector<1x24xf32>
    %cst_331 = arith.constant 0.000000e+00 : f32
    %962 = vector.broadcast %cst_331 : f32 to vector<1x24xf32>
    %963 = arith.subf %962, %961 : vector<1x24xf32>
    %964 = math.exp %963 : vector<1x24xf32>
    %cst_332 = arith.constant 1.000000e+00 : f32
    %965 = vector.broadcast %cst_332 : f32 to vector<1x24xf32>
    %966 = arith.addf %965, %964 : vector<1x24xf32>
    %cst_333 = arith.constant 1.000000e+00 : f32
    %967 = vector.broadcast %cst_333 : f32 to vector<1x24xf32>
    %968 = arith.divf %967, %966 : vector<1x24xf32>
    %969 = vector.extract_strided_slice %960 {offsets = [0, 24], sizes = [1, 24], strides = [1, 1]} : vector<1x96xf32> to vector<1x24xf32>
    %cst_334 = arith.constant 0.000000e+00 : f32
    %970 = vector.broadcast %cst_334 : f32 to vector<1x24xf32>
    %971 = arith.subf %970, %969 : vector<1x24xf32>
    %972 = math.exp %971 : vector<1x24xf32>
    %cst_335 = arith.constant 1.000000e+00 : f32
    %973 = vector.broadcast %cst_335 : f32 to vector<1x24xf32>
    %974 = arith.addf %973, %972 : vector<1x24xf32>
    %cst_336 = arith.constant 1.000000e+00 : f32
    %975 = vector.broadcast %cst_336 : f32 to vector<1x24xf32>
    %976 = arith.divf %975, %974 : vector<1x24xf32>
    %977 = vector.extract_strided_slice %960 {offsets = [0, 48], sizes = [1, 24], strides = [1, 1]} : vector<1x96xf32> to vector<1x24xf32>
    %978 = math.tanh %977 : vector<1x24xf32>
    %979 = vector.extract_strided_slice %960 {offsets = [0, 72], sizes = [1, 24], strides = [1, 1]} : vector<1x96xf32> to vector<1x24xf32>
    %cst_337 = arith.constant 0.000000e+00 : f32
    %980 = vector.broadcast %cst_337 : f32 to vector<1x24xf32>
    %981 = arith.subf %980, %979 : vector<1x24xf32>
    %982 = math.exp %981 : vector<1x24xf32>
    %cst_338 = arith.constant 1.000000e+00 : f32
    %983 = vector.broadcast %cst_338 : f32 to vector<1x24xf32>
    %984 = arith.addf %983, %982 : vector<1x24xf32>
    %cst_339 = arith.constant 1.000000e+00 : f32
    %985 = vector.broadcast %cst_339 : f32 to vector<1x24xf32>
    %986 = arith.divf %985, %984 : vector<1x24xf32>
    %987 = arith.mulf %976, %875 : vector<1x24xf32>
    %988 = arith.mulf %968, %978 : vector<1x24xf32>
    %989 = arith.addf %987, %988 : vector<1x24xf32>
    %990 = math.tanh %989 : vector<1x24xf32>
    %991 = arith.mulf %986, %990 : vector<1x24xf32>
    %cst_340 = arith.constant dense<0.000000e+00> : vector<1x12xf32>
    %992 = tpu.matmul %991, %65, %cst_340 {dimension_numbers = #tpu.dot_dimension_numbers<[1], [1], [0], [0], [0, 0, 1, 0], [], []>} : vector<1x24xf32>, vector<12x24xf32>, vector<1x12xf32> -> vector<1x12xf32>
    %cst_341 = arith.constant dense<0xFF800000> : vector<1xf32>
    %993 = vector.multi_reduction <maximumf>, %992, %cst_341 [1] : vector<1x12xf32> to vector<1xf32>
    %994 = vector.shape_cast %993 : vector<1xf32> to vector<1x1xf32>
    %995 = vector.broadcast %994 : vector<1x1xf32> to vector<1x12xf32>
    %996 = arith.subf %992, %995 : vector<1x12xf32>
    %997 = math.exp %996 : vector<1x12xf32>
    %cst_342 = arith.constant dense<0.000000e+00> : vector<1xf32>
    %998 = vector.multi_reduction <add>, %997, %cst_342 [1] : vector<1x12xf32> to vector<1xf32>
    %999 = vector.shape_cast %998 : vector<1xf32> to vector<1x1xf32>
    %1000 = vector.broadcast %999 : vector<1x1xf32> to vector<1x12xf32>
    %1001 = arith.divf %997, %1000 : vector<1x12xf32>
    %cst_343 = arith.constant dense<0.000000e+00> : vector<1x24xf32>
    %1002 = tpu.matmul %1001, %65, %cst_343 {dimension_numbers = #tpu.dot_dimension_numbers<[1], [0], [0], [1], [0, 0, 1, 1], [], []>} : vector<1x12xf32>, vector<12x24xf32>, vector<1x24xf32> -> vector<1x24xf32>
    %1003 = tpu.concatenate %991, %1002 in 1 : vector<1x24xf32>, vector<1x24xf32> -> vector<1x48xf32>
    %1004 = tpu.concatenate %1003, %923 in 1 : vector<1x48xf32>, vector<1x24xf32> -> vector<1x72xf32>
    %cst_344 = arith.constant dense<0.000000e+00> : vector<1x96xf32>
    %1005 = tpu.matmul %1004, %763, %cst_344 {dimension_numbers = #tpu.dot_dimension_numbers<[1], [0], [0], [1], [0, 0, 1, 1], [], []>} : vector<1x72xf32>, vector<72x96xf32>, vector<1x96xf32> -> vector<1x96xf32>
    %1006 = arith.addf %1005, %766 : vector<1x96xf32>
    %1007 = vector.extract_strided_slice %1006 {offsets = [0, 0], sizes = [1, 24], strides = [1, 1]} : vector<1x96xf32> to vector<1x24xf32>
    %cst_345 = arith.constant 0.000000e+00 : f32
    %1008 = vector.broadcast %cst_345 : f32 to vector<1x24xf32>
    %1009 = arith.subf %1008, %1007 : vector<1x24xf32>
    %1010 = math.exp %1009 : vector<1x24xf32>
    %cst_346 = arith.constant 1.000000e+00 : f32
    %1011 = vector.broadcast %cst_346 : f32 to vector<1x24xf32>
    %1012 = arith.addf %1011, %1010 : vector<1x24xf32>
    %cst_347 = arith.constant 1.000000e+00 : f32
    %1013 = vector.broadcast %cst_347 : f32 to vector<1x24xf32>
    %1014 = arith.divf %1013, %1012 : vector<1x24xf32>
    %1015 = vector.extract_strided_slice %1006 {offsets = [0, 24], sizes = [1, 24], strides = [1, 1]} : vector<1x96xf32> to vector<1x24xf32>
    %cst_348 = arith.constant 0.000000e+00 : f32
    %1016 = vector.broadcast %cst_348 : f32 to vector<1x24xf32>
    %1017 = arith.subf %1016, %1015 : vector<1x24xf32>
    %1018 = math.exp %1017 : vector<1x24xf32>
    %cst_349 = arith.constant 1.000000e+00 : f32
    %1019 = vector.broadcast %cst_349 : f32 to vector<1x24xf32>
    %1020 = arith.addf %1019, %1018 : vector<1x24xf32>
    %cst_350 = arith.constant 1.000000e+00 : f32
    %1021 = vector.broadcast %cst_350 : f32 to vector<1x24xf32>
    %1022 = arith.divf %1021, %1020 : vector<1x24xf32>
    %1023 = vector.extract_strided_slice %1006 {offsets = [0, 48], sizes = [1, 24], strides = [1, 1]} : vector<1x96xf32> to vector<1x24xf32>
    %1024 = math.tanh %1023 : vector<1x24xf32>
    %1025 = vector.extract_strided_slice %1006 {offsets = [0, 72], sizes = [1, 24], strides = [1, 1]} : vector<1x96xf32> to vector<1x24xf32>
    %cst_351 = arith.constant 0.000000e+00 : f32
    %1026 = vector.broadcast %cst_351 : f32 to vector<1x24xf32>
    %1027 = arith.subf %1026, %1025 : vector<1x24xf32>
    %1028 = math.exp %1027 : vector<1x24xf32>
    %cst_352 = arith.constant 1.000000e+00 : f32
    %1029 = vector.broadcast %cst_352 : f32 to vector<1x24xf32>
    %1030 = arith.addf %1029, %1028 : vector<1x24xf32>
    %cst_353 = arith.constant 1.000000e+00 : f32
    %1031 = vector.broadcast %cst_353 : f32 to vector<1x24xf32>
    %1032 = arith.divf %1031, %1030 : vector<1x24xf32>
    %1033 = arith.mulf %1022, %921 : vector<1x24xf32>
    %1034 = arith.mulf %1014, %1024 : vector<1x24xf32>
    %1035 = arith.addf %1033, %1034 : vector<1x24xf32>
    %1036 = math.tanh %1035 : vector<1x24xf32>
    %1037 = arith.mulf %1032, %1036 : vector<1x24xf32>
    %1038 = tpu.concatenate %1037, %957 in 1 : vector<1x24xf32>, vector<1x24xf32> -> vector<1x48xf32>
    %cst_354 = arith.constant dense<0.000000e+00> : vector<1x96xf32>
    %1039 = tpu.matmul %1038, %764, %cst_354 {dimension_numbers = #tpu.dot_dimension_numbers<[1], [0], [0], [1], [0, 0, 1, 1], [], []>} : vector<1x48xf32>, vector<48x96xf32>, vector<1x96xf32> -> vector<1x96xf32>
    %1040 = arith.addf %1039, %767 : vector<1x96xf32>
    %1041 = vector.extract_strided_slice %1040 {offsets = [0, 0], sizes = [1, 24], strides = [1, 1]} : vector<1x96xf32> to vector<1x24xf32>
    %cst_355 = arith.constant 0.000000e+00 : f32
    %1042 = vector.broadcast %cst_355 : f32 to vector<1x24xf32>
    %1043 = arith.subf %1042, %1041 : vector<1x24xf32>
    %1044 = math.exp %1043 : vector<1x24xf32>
    %cst_356 = arith.constant 1.000000e+00 : f32
    %1045 = vector.broadcast %cst_356 : f32 to vector<1x24xf32>
    %1046 = arith.addf %1045, %1044 : vector<1x24xf32>
    %cst_357 = arith.constant 1.000000e+00 : f32
    %1047 = vector.broadcast %cst_357 : f32 to vector<1x24xf32>
    %1048 = arith.divf %1047, %1046 : vector<1x24xf32>
    %1049 = vector.extract_strided_slice %1040 {offsets = [0, 24], sizes = [1, 24], strides = [1, 1]} : vector<1x96xf32> to vector<1x24xf32>
    %cst_358 = arith.constant 0.000000e+00 : f32
    %1050 = vector.broadcast %cst_358 : f32 to vector<1x24xf32>
    %1051 = arith.subf %1050, %1049 : vector<1x24xf32>
    %1052 = math.exp %1051 : vector<1x24xf32>
    %cst_359 = arith.constant 1.000000e+00 : f32
    %1053 = vector.broadcast %cst_359 : f32 to vector<1x24xf32>
    %1054 = arith.addf %1053, %1052 : vector<1x24xf32>
    %cst_360 = arith.constant 1.000000e+00 : f32
    %1055 = vector.broadcast %cst_360 : f32 to vector<1x24xf32>
    %1056 = arith.divf %1055, %1054 : vector<1x24xf32>
    %1057 = vector.extract_strided_slice %1040 {offsets = [0, 48], sizes = [1, 24], strides = [1, 1]} : vector<1x96xf32> to vector<1x24xf32>
    %1058 = math.tanh %1057 : vector<1x24xf32>
    %1059 = vector.extract_strided_slice %1040 {offsets = [0, 72], sizes = [1, 24], strides = [1, 1]} : vector<1x96xf32> to vector<1x24xf32>
    %cst_361 = arith.constant 0.000000e+00 : f32
    %1060 = vector.broadcast %cst_361 : f32 to vector<1x24xf32>
    %1061 = arith.subf %1060, %1059 : vector<1x24xf32>
    %1062 = math.exp %1061 : vector<1x24xf32>
    %cst_362 = arith.constant 1.000000e+00 : f32
    %1063 = vector.broadcast %cst_362 : f32 to vector<1x24xf32>
    %1064 = arith.addf %1063, %1062 : vector<1x24xf32>
    %cst_363 = arith.constant 1.000000e+00 : f32
    %1065 = vector.broadcast %cst_363 : f32 to vector<1x24xf32>
    %1066 = arith.divf %1065, %1064 : vector<1x24xf32>
    %1067 = arith.mulf %1056, %955 : vector<1x24xf32>
    %1068 = arith.mulf %1048, %1058 : vector<1x24xf32>
    %1069 = arith.addf %1067, %1068 : vector<1x24xf32>
    %1070 = math.tanh %1069 : vector<1x24xf32>
    %1071 = arith.mulf %1066, %1070 : vector<1x24xf32>
    %1072 = tpu.concatenate %1071, %991 in 1 : vector<1x24xf32>, vector<1x24xf32> -> vector<1x48xf32>
    %cst_364 = arith.constant dense<0.000000e+00> : vector<1x96xf32>
    %1073 = tpu.matmul %1072, %765, %cst_364 {dimension_numbers = #tpu.dot_dimension_numbers<[1], [0], [0], [1], [0, 0, 1, 1], [], []>} : vector<1x48xf32>, vector<48x96xf32>, vector<1x96xf32> -> vector<1x96xf32>
    %1074 = arith.addf %1073, %768 : vector<1x96xf32>
    %1075 = vector.extract_strided_slice %1074 {offsets = [0, 0], sizes = [1, 24], strides = [1, 1]} : vector<1x96xf32> to vector<1x24xf32>
    %cst_365 = arith.constant 0.000000e+00 : f32
    %1076 = vector.broadcast %cst_365 : f32 to vector<1x24xf32>
    %1077 = arith.subf %1076, %1075 : vector<1x24xf32>
    %1078 = math.exp %1077 : vector<1x24xf32>
    %cst_366 = arith.constant 1.000000e+00 : f32
    %1079 = vector.broadcast %cst_366 : f32 to vector<1x24xf32>
    %1080 = arith.addf %1079, %1078 : vector<1x24xf32>
    %cst_367 = arith.constant 1.000000e+00 : f32
    %1081 = vector.broadcast %cst_367 : f32 to vector<1x24xf32>
    %1082 = arith.divf %1081, %1080 : vector<1x24xf32>
    %1083 = vector.extract_strided_slice %1074 {offsets = [0, 24], sizes = [1, 24], strides = [1, 1]} : vector<1x96xf32> to vector<1x24xf32>
    %cst_368 = arith.constant 0.000000e+00 : f32
    %1084 = vector.broadcast %cst_368 : f32 to vector<1x24xf32>
    %1085 = arith.subf %1084, %1083 : vector<1x24xf32>
    %1086 = math.exp %1085 : vector<1x24xf32>
    %cst_369 = arith.constant 1.000000e+00 : f32
    %1087 = vector.broadcast %cst_369 : f32 to vector<1x24xf32>
    %1088 = arith.addf %1087, %1086 : vector<1x24xf32>
    %cst_370 = arith.constant 1.000000e+00 : f32
    %1089 = vector.broadcast %cst_370 : f32 to vector<1x24xf32>
    %1090 = arith.divf %1089, %1088 : vector<1x24xf32>
    %1091 = vector.extract_strided_slice %1074 {offsets = [0, 48], sizes = [1, 24], strides = [1, 1]} : vector<1x96xf32> to vector<1x24xf32>
    %1092 = math.tanh %1091 : vector<1x24xf32>
    %1093 = vector.extract_strided_slice %1074 {offsets = [0, 72], sizes = [1, 24], strides = [1, 1]} : vector<1x96xf32> to vector<1x24xf32>
    %cst_371 = arith.constant 0.000000e+00 : f32
    %1094 = vector.broadcast %cst_371 : f32 to vector<1x24xf32>
    %1095 = arith.subf %1094, %1093 : vector<1x24xf32>
    %1096 = math.exp %1095 : vector<1x24xf32>
    %cst_372 = arith.constant 1.000000e+00 : f32
    %1097 = vector.broadcast %cst_372 : f32 to vector<1x24xf32>
    %1098 = arith.addf %1097, %1096 : vector<1x24xf32>
    %cst_373 = arith.constant 1.000000e+00 : f32
    %1099 = vector.broadcast %cst_373 : f32 to vector<1x24xf32>
    %1100 = arith.divf %1099, %1098 : vector<1x24xf32>
    %1101 = arith.mulf %1090, %989 : vector<1x24xf32>
    %1102 = arith.mulf %1082, %1092 : vector<1x24xf32>
    %1103 = arith.addf %1101, %1102 : vector<1x24xf32>
    %1104 = math.tanh %1103 : vector<1x24xf32>
    %1105 = arith.mulf %1100, %1104 : vector<1x24xf32>
    %cst_374 = arith.constant dense<0.000000e+00> : vector<1x12xf32>
    %1106 = tpu.matmul %1105, %65, %cst_374 {dimension_numbers = #tpu.dot_dimension_numbers<[1], [1], [0], [0], [0, 0, 1, 0], [], []>} : vector<1x24xf32>, vector<12x24xf32>, vector<1x12xf32> -> vector<1x12xf32>
    %cst_375 = arith.constant dense<0xFF800000> : vector<1xf32>
    %1107 = vector.multi_reduction <maximumf>, %1106, %cst_375 [1] : vector<1x12xf32> to vector<1xf32>
    %1108 = vector.shape_cast %1107 : vector<1xf32> to vector<1x1xf32>
    %1109 = vector.broadcast %1108 : vector<1x1xf32> to vector<1x12xf32>
    %1110 = arith.subf %1106, %1109 : vector<1x12xf32>
    %1111 = math.exp %1110 : vector<1x12xf32>
    %cst_376 = arith.constant dense<0.000000e+00> : vector<1xf32>
    %1112 = vector.multi_reduction <add>, %1111, %cst_376 [1] : vector<1x12xf32> to vector<1xf32>
    %1113 = vector.shape_cast %1112 : vector<1xf32> to vector<1x1xf32>
    %1114 = vector.broadcast %1113 : vector<1x1xf32> to vector<1x12xf32>
    %1115 = arith.divf %1111, %1114 : vector<1x12xf32>
    %cst_377 = arith.constant dense<0.000000e+00> : vector<1x24xf32>
    %1116 = tpu.matmul %1115, %65, %cst_377 {dimension_numbers = #tpu.dot_dimension_numbers<[1], [0], [0], [1], [0, 0, 1, 1], [], []>} : vector<1x12xf32>, vector<12x24xf32>, vector<1x24xf32> -> vector<1x24xf32>
    %1117 = tpu.concatenate %1105, %1116 in 1 : vector<1x24xf32>, vector<1x24xf32> -> vector<1x48xf32>
    %1118 = tpu.concatenate %1117, %1037 in 1 : vector<1x48xf32>, vector<1x24xf32> -> vector<1x72xf32>
    %cst_378 = arith.constant dense<0.000000e+00> : vector<1x96xf32>
    %1119 = tpu.matmul %1118, %763, %cst_378 {dimension_numbers = #tpu.dot_dimension_numbers<[1], [0], [0], [1], [0, 0, 1, 1], [], []>} : vector<1x72xf32>, vector<72x96xf32>, vector<1x96xf32> -> vector<1x96xf32>
    %1120 = arith.addf %1119, %766 : vector<1x96xf32>
    %1121 = vector.extract_strided_slice %1120 {offsets = [0, 0], sizes = [1, 24], strides = [1, 1]} : vector<1x96xf32> to vector<1x24xf32>
    %cst_379 = arith.constant 0.000000e+00 : f32
    %1122 = vector.broadcast %cst_379 : f32 to vector<1x24xf32>
    %1123 = arith.subf %1122, %1121 : vector<1x24xf32>
    %1124 = math.exp %1123 : vector<1x24xf32>
    %cst_380 = arith.constant 1.000000e+00 : f32
    %1125 = vector.broadcast %cst_380 : f32 to vector<1x24xf32>
    %1126 = arith.addf %1125, %1124 : vector<1x24xf32>
    %cst_381 = arith.constant 1.000000e+00 : f32
    %1127 = vector.broadcast %cst_381 : f32 to vector<1x24xf32>
    %1128 = arith.divf %1127, %1126 : vector<1x24xf32>
    %1129 = vector.extract_strided_slice %1120 {offsets = [0, 24], sizes = [1, 24], strides = [1, 1]} : vector<1x96xf32> to vector<1x24xf32>
    %cst_382 = arith.constant 0.000000e+00 : f32
    %1130 = vector.broadcast %cst_382 : f32 to vector<1x24xf32>
    %1131 = arith.subf %1130, %1129 : vector<1x24xf32>
    %1132 = math.exp %1131 : vector<1x24xf32>
    %cst_383 = arith.constant 1.000000e+00 : f32
    %1133 = vector.broadcast %cst_383 : f32 to vector<1x24xf32>
    %1134 = arith.addf %1133, %1132 : vector<1x24xf32>
    %cst_384 = arith.constant 1.000000e+00 : f32
    %1135 = vector.broadcast %cst_384 : f32 to vector<1x24xf32>
    %1136 = arith.divf %1135, %1134 : vector<1x24xf32>
    %1137 = vector.extract_strided_slice %1120 {offsets = [0, 48], sizes = [1, 24], strides = [1, 1]} : vector<1x96xf32> to vector<1x24xf32>
    %1138 = math.tanh %1137 : vector<1x24xf32>
    %1139 = vector.extract_strided_slice %1120 {offsets = [0, 72], sizes = [1, 24], strides = [1, 1]} : vector<1x96xf32> to vector<1x24xf32>
    %cst_385 = arith.constant 0.000000e+00 : f32
    %1140 = vector.broadcast %cst_385 : f32 to vector<1x24xf32>
    %1141 = arith.subf %1140, %1139 : vector<1x24xf32>
    %1142 = math.exp %1141 : vector<1x24xf32>
    %cst_386 = arith.constant 1.000000e+00 : f32
    %1143 = vector.broadcast %cst_386 : f32 to vector<1x24xf32>
    %1144 = arith.addf %1143, %1142 : vector<1x24xf32>
    %cst_387 = arith.constant 1.000000e+00 : f32
    %1145 = vector.broadcast %cst_387 : f32 to vector<1x24xf32>
    %1146 = arith.divf %1145, %1144 : vector<1x24xf32>
    %1147 = arith.mulf %1136, %1035 : vector<1x24xf32>
    %1148 = arith.mulf %1128, %1138 : vector<1x24xf32>
    %1149 = arith.addf %1147, %1148 : vector<1x24xf32>
    %1150 = math.tanh %1149 : vector<1x24xf32>
    %1151 = arith.mulf %1146, %1150 : vector<1x24xf32>
    %1152 = tpu.concatenate %1151, %1071 in 1 : vector<1x24xf32>, vector<1x24xf32> -> vector<1x48xf32>
    %cst_388 = arith.constant dense<0.000000e+00> : vector<1x96xf32>
    %1153 = tpu.matmul %1152, %764, %cst_388 {dimension_numbers = #tpu.dot_dimension_numbers<[1], [0], [0], [1], [0, 0, 1, 1], [], []>} : vector<1x48xf32>, vector<48x96xf32>, vector<1x96xf32> -> vector<1x96xf32>
    %1154 = arith.addf %1153, %767 : vector<1x96xf32>
    %1155 = vector.extract_strided_slice %1154 {offsets = [0, 0], sizes = [1, 24], strides = [1, 1]} : vector<1x96xf32> to vector<1x24xf32>
    %cst_389 = arith.constant 0.000000e+00 : f32
    %1156 = vector.broadcast %cst_389 : f32 to vector<1x24xf32>
    %1157 = arith.subf %1156, %1155 : vector<1x24xf32>
    %1158 = math.exp %1157 : vector<1x24xf32>
    %cst_390 = arith.constant 1.000000e+00 : f32
    %1159 = vector.broadcast %cst_390 : f32 to vector<1x24xf32>
    %1160 = arith.addf %1159, %1158 : vector<1x24xf32>
    %cst_391 = arith.constant 1.000000e+00 : f32
    %1161 = vector.broadcast %cst_391 : f32 to vector<1x24xf32>
    %1162 = arith.divf %1161, %1160 : vector<1x24xf32>
    %1163 = vector.extract_strided_slice %1154 {offsets = [0, 24], sizes = [1, 24], strides = [1, 1]} : vector<1x96xf32> to vector<1x24xf32>
    %cst_392 = arith.constant 0.000000e+00 : f32
    %1164 = vector.broadcast %cst_392 : f32 to vector<1x24xf32>
    %1165 = arith.subf %1164, %1163 : vector<1x24xf32>
    %1166 = math.exp %1165 : vector<1x24xf32>
    %cst_393 = arith.constant 1.000000e+00 : f32
    %1167 = vector.broadcast %cst_393 : f32 to vector<1x24xf32>
    %1168 = arith.addf %1167, %1166 : vector<1x24xf32>
    %cst_394 = arith.constant 1.000000e+00 : f32
    %1169 = vector.broadcast %cst_394 : f32 to vector<1x24xf32>
    %1170 = arith.divf %1169, %1168 : vector<1x24xf32>
    %1171 = vector.extract_strided_slice %1154 {offsets = [0, 48], sizes = [1, 24], strides = [1, 1]} : vector<1x96xf32> to vector<1x24xf32>
    %1172 = math.tanh %1171 : vector<1x24xf32>
    %1173 = vector.extract_strided_slice %1154 {offsets = [0, 72], sizes = [1, 24], strides = [1, 1]} : vector<1x96xf32> to vector<1x24xf32>
    %cst_395 = arith.constant 0.000000e+00 : f32
    %1174 = vector.broadcast %cst_395 : f32 to vector<1x24xf32>
    %1175 = arith.subf %1174, %1173 : vector<1x24xf32>
    %1176 = math.exp %1175 : vector<1x24xf32>
    %cst_396 = arith.constant 1.000000e+00 : f32
    %1177 = vector.broadcast %cst_396 : f32 to vector<1x24xf32>
    %1178 = arith.addf %1177, %1176 : vector<1x24xf32>
    %cst_397 = arith.constant 1.000000e+00 : f32
    %1179 = vector.broadcast %cst_397 : f32 to vector<1x24xf32>
    %1180 = arith.divf %1179, %1178 : vector<1x24xf32>
    %1181 = arith.mulf %1170, %1069 : vector<1x24xf32>
    %1182 = arith.mulf %1162, %1172 : vector<1x24xf32>
    %1183 = arith.addf %1181, %1182 : vector<1x24xf32>
    %1184 = math.tanh %1183 : vector<1x24xf32>
    %1185 = arith.mulf %1180, %1184 : vector<1x24xf32>
    %1186 = tpu.concatenate %1185, %1105 in 1 : vector<1x24xf32>, vector<1x24xf32> -> vector<1x48xf32>
    %cst_398 = arith.constant dense<0.000000e+00> : vector<1x96xf32>
    %1187 = tpu.matmul %1186, %765, %cst_398 {dimension_numbers = #tpu.dot_dimension_numbers<[1], [0], [0], [1], [0, 0, 1, 1], [], []>} : vector<1x48xf32>, vector<48x96xf32>, vector<1x96xf32> -> vector<1x96xf32>
    %1188 = arith.addf %1187, %768 : vector<1x96xf32>
    %1189 = vector.extract_strided_slice %1188 {offsets = [0, 0], sizes = [1, 24], strides = [1, 1]} : vector<1x96xf32> to vector<1x24xf32>
    %cst_399 = arith.constant 0.000000e+00 : f32
    %1190 = vector.broadcast %cst_399 : f32 to vector<1x24xf32>
    %1191 = arith.subf %1190, %1189 : vector<1x24xf32>
    %1192 = math.exp %1191 : vector<1x24xf32>
    %cst_400 = arith.constant 1.000000e+00 : f32
    %1193 = vector.broadcast %cst_400 : f32 to vector<1x24xf32>
    %1194 = arith.addf %1193, %1192 : vector<1x24xf32>
    %cst_401 = arith.constant 1.000000e+00 : f32
    %1195 = vector.broadcast %cst_401 : f32 to vector<1x24xf32>
    %1196 = arith.divf %1195, %1194 : vector<1x24xf32>
    %1197 = vector.extract_strided_slice %1188 {offsets = [0, 24], sizes = [1, 24], strides = [1, 1]} : vector<1x96xf32> to vector<1x24xf32>
    %cst_402 = arith.constant 0.000000e+00 : f32
    %1198 = vector.broadcast %cst_402 : f32 to vector<1x24xf32>
    %1199 = arith.subf %1198, %1197 : vector<1x24xf32>
    %1200 = math.exp %1199 : vector<1x24xf32>
    %cst_403 = arith.constant 1.000000e+00 : f32
    %1201 = vector.broadcast %cst_403 : f32 to vector<1x24xf32>
    %1202 = arith.addf %1201, %1200 : vector<1x24xf32>
    %cst_404 = arith.constant 1.000000e+00 : f32
    %1203 = vector.broadcast %cst_404 : f32 to vector<1x24xf32>
    %1204 = arith.divf %1203, %1202 : vector<1x24xf32>
    %1205 = vector.extract_strided_slice %1188 {offsets = [0, 48], sizes = [1, 24], strides = [1, 1]} : vector<1x96xf32> to vector<1x24xf32>
    %1206 = math.tanh %1205 : vector<1x24xf32>
    %1207 = vector.extract_strided_slice %1188 {offsets = [0, 72], sizes = [1, 24], strides = [1, 1]} : vector<1x96xf32> to vector<1x24xf32>
    %cst_405 = arith.constant 0.000000e+00 : f32
    %1208 = vector.broadcast %cst_405 : f32 to vector<1x24xf32>
    %1209 = arith.subf %1208, %1207 : vector<1x24xf32>
    %1210 = math.exp %1209 : vector<1x24xf32>
    %cst_406 = arith.constant 1.000000e+00 : f32
    %1211 = vector.broadcast %cst_406 : f32 to vector<1x24xf32>
    %1212 = arith.addf %1211, %1210 : vector<1x24xf32>
    %cst_407 = arith.constant 1.000000e+00 : f32
    %1213 = vector.broadcast %cst_407 : f32 to vector<1x24xf32>
    %1214 = arith.divf %1213, %1212 : vector<1x24xf32>
    %1215 = arith.mulf %1204, %1103 : vector<1x24xf32>
    %1216 = arith.mulf %1196, %1206 : vector<1x24xf32>
    %1217 = arith.addf %1215, %1216 : vector<1x24xf32>
    %1218 = math.tanh %1217 : vector<1x24xf32>
    %1219 = arith.mulf %1214, %1218 : vector<1x24xf32>
    %cst_408 = arith.constant dense<0.000000e+00> : vector<1x12xf32>
    %1220 = tpu.matmul %1219, %65, %cst_408 {dimension_numbers = #tpu.dot_dimension_numbers<[1], [1], [0], [0], [0, 0, 1, 0], [], []>} : vector<1x24xf32>, vector<12x24xf32>, vector<1x12xf32> -> vector<1x12xf32>
    %cst_409 = arith.constant dense<0xFF800000> : vector<1xf32>
    %1221 = vector.multi_reduction <maximumf>, %1220, %cst_409 [1] : vector<1x12xf32> to vector<1xf32>
    %1222 = vector.shape_cast %1221 : vector<1xf32> to vector<1x1xf32>
    %1223 = vector.broadcast %1222 : vector<1x1xf32> to vector<1x12xf32>
    %1224 = arith.subf %1220, %1223 : vector<1x12xf32>
    %1225 = math.exp %1224 : vector<1x12xf32>
    %cst_410 = arith.constant dense<0.000000e+00> : vector<1xf32>
    %1226 = vector.multi_reduction <add>, %1225, %cst_410 [1] : vector<1x12xf32> to vector<1xf32>
    %1227 = vector.shape_cast %1226 : vector<1xf32> to vector<1x1xf32>
    %1228 = vector.broadcast %1227 : vector<1x1xf32> to vector<1x12xf32>
    %1229 = arith.divf %1225, %1228 : vector<1x12xf32>
    %cst_411 = arith.constant dense<0.000000e+00> : vector<1x24xf32>
    %1230 = tpu.matmul %1229, %65, %cst_411 {dimension_numbers = #tpu.dot_dimension_numbers<[1], [0], [0], [1], [0, 0, 1, 1], [], []>} : vector<1x12xf32>, vector<12x24xf32>, vector<1x24xf32> -> vector<1x24xf32>
    %1231 = tpu.concatenate %1219, %1230 in 1 : vector<1x24xf32>, vector<1x24xf32> -> vector<1x48xf32>
    %1232 = tpu.concatenate %1231, %1151 in 1 : vector<1x48xf32>, vector<1x24xf32> -> vector<1x72xf32>
    %cst_412 = arith.constant dense<0.000000e+00> : vector<1x96xf32>
    %1233 = tpu.matmul %1232, %763, %cst_412 {dimension_numbers = #tpu.dot_dimension_numbers<[1], [0], [0], [1], [0, 0, 1, 1], [], []>} : vector<1x72xf32>, vector<72x96xf32>, vector<1x96xf32> -> vector<1x96xf32>
    %1234 = arith.addf %1233, %766 : vector<1x96xf32>
    %1235 = vector.extract_strided_slice %1234 {offsets = [0, 0], sizes = [1, 24], strides = [1, 1]} : vector<1x96xf32> to vector<1x24xf32>
    %cst_413 = arith.constant 0.000000e+00 : f32
    %1236 = vector.broadcast %cst_413 : f32 to vector<1x24xf32>
    %1237 = arith.subf %1236, %1235 : vector<1x24xf32>
    %1238 = math.exp %1237 : vector<1x24xf32>
    %cst_414 = arith.constant 1.000000e+00 : f32
    %1239 = vector.broadcast %cst_414 : f32 to vector<1x24xf32>
    %1240 = arith.addf %1239, %1238 : vector<1x24xf32>
    %cst_415 = arith.constant 1.000000e+00 : f32
    %1241 = vector.broadcast %cst_415 : f32 to vector<1x24xf32>
    %1242 = arith.divf %1241, %1240 : vector<1x24xf32>
    %1243 = vector.extract_strided_slice %1234 {offsets = [0, 24], sizes = [1, 24], strides = [1, 1]} : vector<1x96xf32> to vector<1x24xf32>
    %cst_416 = arith.constant 0.000000e+00 : f32
    %1244 = vector.broadcast %cst_416 : f32 to vector<1x24xf32>
    %1245 = arith.subf %1244, %1243 : vector<1x24xf32>
    %1246 = math.exp %1245 : vector<1x24xf32>
    %cst_417 = arith.constant 1.000000e+00 : f32
    %1247 = vector.broadcast %cst_417 : f32 to vector<1x24xf32>
    %1248 = arith.addf %1247, %1246 : vector<1x24xf32>
    %cst_418 = arith.constant 1.000000e+00 : f32
    %1249 = vector.broadcast %cst_418 : f32 to vector<1x24xf32>
    %1250 = arith.divf %1249, %1248 : vector<1x24xf32>
    %1251 = vector.extract_strided_slice %1234 {offsets = [0, 48], sizes = [1, 24], strides = [1, 1]} : vector<1x96xf32> to vector<1x24xf32>
    %1252 = math.tanh %1251 : vector<1x24xf32>
    %1253 = vector.extract_strided_slice %1234 {offsets = [0, 72], sizes = [1, 24], strides = [1, 1]} : vector<1x96xf32> to vector<1x24xf32>
    %cst_419 = arith.constant 0.000000e+00 : f32
    %1254 = vector.broadcast %cst_419 : f32 to vector<1x24xf32>
    %1255 = arith.subf %1254, %1253 : vector<1x24xf32>
    %1256 = math.exp %1255 : vector<1x24xf32>
    %cst_420 = arith.constant 1.000000e+00 : f32
    %1257 = vector.broadcast %cst_420 : f32 to vector<1x24xf32>
    %1258 = arith.addf %1257, %1256 : vector<1x24xf32>
    %cst_421 = arith.constant 1.000000e+00 : f32
    %1259 = vector.broadcast %cst_421 : f32 to vector<1x24xf32>
    %1260 = arith.divf %1259, %1258 : vector<1x24xf32>
    %1261 = arith.mulf %1250, %1149 : vector<1x24xf32>
    %1262 = arith.mulf %1242, %1252 : vector<1x24xf32>
    %1263 = arith.addf %1261, %1262 : vector<1x24xf32>
    %1264 = math.tanh %1263 : vector<1x24xf32>
    %1265 = arith.mulf %1260, %1264 : vector<1x24xf32>
    %1266 = tpu.concatenate %1265, %1185 in 1 : vector<1x24xf32>, vector<1x24xf32> -> vector<1x48xf32>
    %cst_422 = arith.constant dense<0.000000e+00> : vector<1x96xf32>
    %1267 = tpu.matmul %1266, %764, %cst_422 {dimension_numbers = #tpu.dot_dimension_numbers<[1], [0], [0], [1], [0, 0, 1, 1], [], []>} : vector<1x48xf32>, vector<48x96xf32>, vector<1x96xf32> -> vector<1x96xf32>
    %1268 = arith.addf %1267, %767 : vector<1x96xf32>
    %1269 = vector.extract_strided_slice %1268 {offsets = [0, 0], sizes = [1, 24], strides = [1, 1]} : vector<1x96xf32> to vector<1x24xf32>
    %cst_423 = arith.constant 0.000000e+00 : f32
    %1270 = vector.broadcast %cst_423 : f32 to vector<1x24xf32>
    %1271 = arith.subf %1270, %1269 : vector<1x24xf32>
    %1272 = math.exp %1271 : vector<1x24xf32>
    %cst_424 = arith.constant 1.000000e+00 : f32
    %1273 = vector.broadcast %cst_424 : f32 to vector<1x24xf32>
    %1274 = arith.addf %1273, %1272 : vector<1x24xf32>
    %cst_425 = arith.constant 1.000000e+00 : f32
    %1275 = vector.broadcast %cst_425 : f32 to vector<1x24xf32>
    %1276 = arith.divf %1275, %1274 : vector<1x24xf32>
    %1277 = vector.extract_strided_slice %1268 {offsets = [0, 24], sizes = [1, 24], strides = [1, 1]} : vector<1x96xf32> to vector<1x24xf32>
    %cst_426 = arith.constant 0.000000e+00 : f32
    %1278 = vector.broadcast %cst_426 : f32 to vector<1x24xf32>
    %1279 = arith.subf %1278, %1277 : vector<1x24xf32>
    %1280 = math.exp %1279 : vector<1x24xf32>
    %cst_427 = arith.constant 1.000000e+00 : f32
    %1281 = vector.broadcast %cst_427 : f32 to vector<1x24xf32>
    %1282 = arith.addf %1281, %1280 : vector<1x24xf32>
    %cst_428 = arith.constant 1.000000e+00 : f32
    %1283 = vector.broadcast %cst_428 : f32 to vector<1x24xf32>
    %1284 = arith.divf %1283, %1282 : vector<1x24xf32>
    %1285 = vector.extract_strided_slice %1268 {offsets = [0, 48], sizes = [1, 24], strides = [1, 1]} : vector<1x96xf32> to vector<1x24xf32>
    %1286 = math.tanh %1285 : vector<1x24xf32>
    %1287 = vector.extract_strided_slice %1268 {offsets = [0, 72], sizes = [1, 24], strides = [1, 1]} : vector<1x96xf32> to vector<1x24xf32>
    %cst_429 = arith.constant 0.000000e+00 : f32
    %1288 = vector.broadcast %cst_429 : f32 to vector<1x24xf32>
    %1289 = arith.subf %1288, %1287 : vector<1x24xf32>
    %1290 = math.exp %1289 : vector<1x24xf32>
    %cst_430 = arith.constant 1.000000e+00 : f32
    %1291 = vector.broadcast %cst_430 : f32 to vector<1x24xf32>
    %1292 = arith.addf %1291, %1290 : vector<1x24xf32>
    %cst_431 = arith.constant 1.000000e+00 : f32
    %1293 = vector.broadcast %cst_431 : f32 to vector<1x24xf32>
    %1294 = arith.divf %1293, %1292 : vector<1x24xf32>
    %1295 = arith.mulf %1284, %1183 : vector<1x24xf32>
    %1296 = arith.mulf %1276, %1286 : vector<1x24xf32>
    %1297 = arith.addf %1295, %1296 : vector<1x24xf32>
    %1298 = math.tanh %1297 : vector<1x24xf32>
    %1299 = arith.mulf %1294, %1298 : vector<1x24xf32>
    %1300 = tpu.concatenate %1299, %1219 in 1 : vector<1x24xf32>, vector<1x24xf32> -> vector<1x48xf32>
    %cst_432 = arith.constant dense<0.000000e+00> : vector<1x96xf32>
    %1301 = tpu.matmul %1300, %765, %cst_432 {dimension_numbers = #tpu.dot_dimension_numbers<[1], [0], [0], [1], [0, 0, 1, 1], [], []>} : vector<1x48xf32>, vector<48x96xf32>, vector<1x96xf32> -> vector<1x96xf32>
    %1302 = arith.addf %1301, %768 : vector<1x96xf32>
    %1303 = vector.extract_strided_slice %1302 {offsets = [0, 0], sizes = [1, 24], strides = [1, 1]} : vector<1x96xf32> to vector<1x24xf32>
    %cst_433 = arith.constant 0.000000e+00 : f32
    %1304 = vector.broadcast %cst_433 : f32 to vector<1x24xf32>
    %1305 = arith.subf %1304, %1303 : vector<1x24xf32>
    %1306 = math.exp %1305 : vector<1x24xf32>
    %cst_434 = arith.constant 1.000000e+00 : f32
    %1307 = vector.broadcast %cst_434 : f32 to vector<1x24xf32>
    %1308 = arith.addf %1307, %1306 : vector<1x24xf32>
    %cst_435 = arith.constant 1.000000e+00 : f32
    %1309 = vector.broadcast %cst_435 : f32 to vector<1x24xf32>
    %1310 = arith.divf %1309, %1308 : vector<1x24xf32>
    %1311 = vector.extract_strided_slice %1302 {offsets = [0, 24], sizes = [1, 24], strides = [1, 1]} : vector<1x96xf32> to vector<1x24xf32>
    %cst_436 = arith.constant 0.000000e+00 : f32
    %1312 = vector.broadcast %cst_436 : f32 to vector<1x24xf32>
    %1313 = arith.subf %1312, %1311 : vector<1x24xf32>
    %1314 = math.exp %1313 : vector<1x24xf32>
    %cst_437 = arith.constant 1.000000e+00 : f32
    %1315 = vector.broadcast %cst_437 : f32 to vector<1x24xf32>
    %1316 = arith.addf %1315, %1314 : vector<1x24xf32>
    %cst_438 = arith.constant 1.000000e+00 : f32
    %1317 = vector.broadcast %cst_438 : f32 to vector<1x24xf32>
    %1318 = arith.divf %1317, %1316 : vector<1x24xf32>
    %1319 = vector.extract_strided_slice %1302 {offsets = [0, 48], sizes = [1, 24], strides = [1, 1]} : vector<1x96xf32> to vector<1x24xf32>
    %1320 = math.tanh %1319 : vector<1x24xf32>
    %1321 = vector.extract_strided_slice %1302 {offsets = [0, 72], sizes = [1, 24], strides = [1, 1]} : vector<1x96xf32> to vector<1x24xf32>
    %cst_439 = arith.constant 0.000000e+00 : f32
    %1322 = vector.broadcast %cst_439 : f32 to vector<1x24xf32>
    %1323 = arith.subf %1322, %1321 : vector<1x24xf32>
    %1324 = math.exp %1323 : vector<1x24xf32>
    %cst_440 = arith.constant 1.000000e+00 : f32
    %1325 = vector.broadcast %cst_440 : f32 to vector<1x24xf32>
    %1326 = arith.addf %1325, %1324 : vector<1x24xf32>
    %cst_441 = arith.constant 1.000000e+00 : f32
    %1327 = vector.broadcast %cst_441 : f32 to vector<1x24xf32>
    %1328 = arith.divf %1327, %1326 : vector<1x24xf32>
    %1329 = arith.mulf %1318, %1217 : vector<1x24xf32>
    %1330 = arith.mulf %1310, %1320 : vector<1x24xf32>
    %1331 = arith.addf %1329, %1330 : vector<1x24xf32>
    %1332 = math.tanh %1331 : vector<1x24xf32>
    %1333 = arith.mulf %1328, %1332 : vector<1x24xf32>
    %cst_442 = arith.constant dense<0.000000e+00> : vector<1x12xf32>
    %1334 = tpu.matmul %1333, %65, %cst_442 {dimension_numbers = #tpu.dot_dimension_numbers<[1], [1], [0], [0], [0, 0, 1, 0], [], []>} : vector<1x24xf32>, vector<12x24xf32>, vector<1x12xf32> -> vector<1x12xf32>
    %cst_443 = arith.constant dense<0xFF800000> : vector<1xf32>
    %1335 = vector.multi_reduction <maximumf>, %1334, %cst_443 [1] : vector<1x12xf32> to vector<1xf32>
    %1336 = vector.shape_cast %1335 : vector<1xf32> to vector<1x1xf32>
    %1337 = vector.broadcast %1336 : vector<1x1xf32> to vector<1x12xf32>
    %1338 = arith.subf %1334, %1337 : vector<1x12xf32>
    %1339 = math.exp %1338 : vector<1x12xf32>
    %cst_444 = arith.constant dense<0.000000e+00> : vector<1xf32>
    %1340 = vector.multi_reduction <add>, %1339, %cst_444 [1] : vector<1x12xf32> to vector<1xf32>
    %1341 = vector.shape_cast %1340 : vector<1xf32> to vector<1x1xf32>
    %1342 = vector.broadcast %1341 : vector<1x1xf32> to vector<1x12xf32>
    %1343 = arith.divf %1339, %1342 : vector<1x12xf32>
    %cst_445 = arith.constant dense<0.000000e+00> : vector<1x24xf32>
    %1344 = tpu.matmul %1343, %65, %cst_445 {dimension_numbers = #tpu.dot_dimension_numbers<[1], [0], [0], [1], [0, 0, 1, 1], [], []>} : vector<1x12xf32>, vector<12x24xf32>, vector<1x24xf32> -> vector<1x24xf32>
    %1345 = tpu.concatenate %1333, %1344 in 1 : vector<1x24xf32>, vector<1x24xf32> -> vector<1x48xf32>
    %1346 = tpu.concatenate %1345, %1265 in 1 : vector<1x48xf32>, vector<1x24xf32> -> vector<1x72xf32>
    %cst_446 = arith.constant dense<0.000000e+00> : vector<1x96xf32>
    %1347 = tpu.matmul %1346, %763, %cst_446 {dimension_numbers = #tpu.dot_dimension_numbers<[1], [0], [0], [1], [0, 0, 1, 1], [], []>} : vector<1x72xf32>, vector<72x96xf32>, vector<1x96xf32> -> vector<1x96xf32>
    %1348 = arith.addf %1347, %766 : vector<1x96xf32>
    %1349 = vector.extract_strided_slice %1348 {offsets = [0, 0], sizes = [1, 24], strides = [1, 1]} : vector<1x96xf32> to vector<1x24xf32>
    %cst_447 = arith.constant 0.000000e+00 : f32
    %1350 = vector.broadcast %cst_447 : f32 to vector<1x24xf32>
    %1351 = arith.subf %1350, %1349 : vector<1x24xf32>
    %1352 = math.exp %1351 : vector<1x24xf32>
    %cst_448 = arith.constant 1.000000e+00 : f32
    %1353 = vector.broadcast %cst_448 : f32 to vector<1x24xf32>
    %1354 = arith.addf %1353, %1352 : vector<1x24xf32>
    %cst_449 = arith.constant 1.000000e+00 : f32
    %1355 = vector.broadcast %cst_449 : f32 to vector<1x24xf32>
    %1356 = arith.divf %1355, %1354 : vector<1x24xf32>
    %1357 = vector.extract_strided_slice %1348 {offsets = [0, 24], sizes = [1, 24], strides = [1, 1]} : vector<1x96xf32> to vector<1x24xf32>
    %cst_450 = arith.constant 0.000000e+00 : f32
    %1358 = vector.broadcast %cst_450 : f32 to vector<1x24xf32>
    %1359 = arith.subf %1358, %1357 : vector<1x24xf32>
    %1360 = math.exp %1359 : vector<1x24xf32>
    %cst_451 = arith.constant 1.000000e+00 : f32
    %1361 = vector.broadcast %cst_451 : f32 to vector<1x24xf32>
    %1362 = arith.addf %1361, %1360 : vector<1x24xf32>
    %cst_452 = arith.constant 1.000000e+00 : f32
    %1363 = vector.broadcast %cst_452 : f32 to vector<1x24xf32>
    %1364 = arith.divf %1363, %1362 : vector<1x24xf32>
    %1365 = vector.extract_strided_slice %1348 {offsets = [0, 48], sizes = [1, 24], strides = [1, 1]} : vector<1x96xf32> to vector<1x24xf32>
    %1366 = math.tanh %1365 : vector<1x24xf32>
    %1367 = vector.extract_strided_slice %1348 {offsets = [0, 72], sizes = [1, 24], strides = [1, 1]} : vector<1x96xf32> to vector<1x24xf32>
    %cst_453 = arith.constant 0.000000e+00 : f32
    %1368 = vector.broadcast %cst_453 : f32 to vector<1x24xf32>
    %1369 = arith.subf %1368, %1367 : vector<1x24xf32>
    %1370 = math.exp %1369 : vector<1x24xf32>
    %cst_454 = arith.constant 1.000000e+00 : f32
    %1371 = vector.broadcast %cst_454 : f32 to vector<1x24xf32>
    %1372 = arith.addf %1371, %1370 : vector<1x24xf32>
    %cst_455 = arith.constant 1.000000e+00 : f32
    %1373 = vector.broadcast %cst_455 : f32 to vector<1x24xf32>
    %1374 = arith.divf %1373, %1372 : vector<1x24xf32>
    %1375 = arith.mulf %1364, %1263 : vector<1x24xf32>
    %1376 = arith.mulf %1356, %1366 : vector<1x24xf32>
    %1377 = arith.addf %1375, %1376 : vector<1x24xf32>
    %1378 = math.tanh %1377 : vector<1x24xf32>
    %1379 = arith.mulf %1374, %1378 : vector<1x24xf32>
    %1380 = tpu.concatenate %1379, %1299 in 1 : vector<1x24xf32>, vector<1x24xf32> -> vector<1x48xf32>
    %cst_456 = arith.constant dense<0.000000e+00> : vector<1x96xf32>
    %1381 = tpu.matmul %1380, %764, %cst_456 {dimension_numbers = #tpu.dot_dimension_numbers<[1], [0], [0], [1], [0, 0, 1, 1], [], []>} : vector<1x48xf32>, vector<48x96xf32>, vector<1x96xf32> -> vector<1x96xf32>
    %1382 = arith.addf %1381, %767 : vector<1x96xf32>
    %1383 = vector.extract_strided_slice %1382 {offsets = [0, 0], sizes = [1, 24], strides = [1, 1]} : vector<1x96xf32> to vector<1x24xf32>
    %cst_457 = arith.constant 0.000000e+00 : f32
    %1384 = vector.broadcast %cst_457 : f32 to vector<1x24xf32>
    %1385 = arith.subf %1384, %1383 : vector<1x24xf32>
    %1386 = math.exp %1385 : vector<1x24xf32>
    %cst_458 = arith.constant 1.000000e+00 : f32
    %1387 = vector.broadcast %cst_458 : f32 to vector<1x24xf32>
    %1388 = arith.addf %1387, %1386 : vector<1x24xf32>
    %cst_459 = arith.constant 1.000000e+00 : f32
    %1389 = vector.broadcast %cst_459 : f32 to vector<1x24xf32>
    %1390 = arith.divf %1389, %1388 : vector<1x24xf32>
    %1391 = vector.extract_strided_slice %1382 {offsets = [0, 24], sizes = [1, 24], strides = [1, 1]} : vector<1x96xf32> to vector<1x24xf32>
    %cst_460 = arith.constant 0.000000e+00 : f32
    %1392 = vector.broadcast %cst_460 : f32 to vector<1x24xf32>
    %1393 = arith.subf %1392, %1391 : vector<1x24xf32>
    %1394 = math.exp %1393 : vector<1x24xf32>
    %cst_461 = arith.constant 1.000000e+00 : f32
    %1395 = vector.broadcast %cst_461 : f32 to vector<1x24xf32>
    %1396 = arith.addf %1395, %1394 : vector<1x24xf32>
    %cst_462 = arith.constant 1.000000e+00 : f32
    %1397 = vector.broadcast %cst_462 : f32 to vector<1x24xf32>
    %1398 = arith.divf %1397, %1396 : vector<1x24xf32>
    %1399 = vector.extract_strided_slice %1382 {offsets = [0, 48], sizes = [1, 24], strides = [1, 1]} : vector<1x96xf32> to vector<1x24xf32>
    %1400 = math.tanh %1399 : vector<1x24xf32>
    %1401 = vector.extract_strided_slice %1382 {offsets = [0, 72], sizes = [1, 24], strides = [1, 1]} : vector<1x96xf32> to vector<1x24xf32>
    %cst_463 = arith.constant 0.000000e+00 : f32
    %1402 = vector.broadcast %cst_463 : f32 to vector<1x24xf32>
    %1403 = arith.subf %1402, %1401 : vector<1x24xf32>
    %1404 = math.exp %1403 : vector<1x24xf32>
    %cst_464 = arith.constant 1.000000e+00 : f32
    %1405 = vector.broadcast %cst_464 : f32 to vector<1x24xf32>
    %1406 = arith.addf %1405, %1404 : vector<1x24xf32>
    %cst_465 = arith.constant 1.000000e+00 : f32
    %1407 = vector.broadcast %cst_465 : f32 to vector<1x24xf32>
    %1408 = arith.divf %1407, %1406 : vector<1x24xf32>
    %1409 = arith.mulf %1398, %1297 : vector<1x24xf32>
    %1410 = arith.mulf %1390, %1400 : vector<1x24xf32>
    %1411 = arith.addf %1409, %1410 : vector<1x24xf32>
    %1412 = math.tanh %1411 : vector<1x24xf32>
    %1413 = arith.mulf %1408, %1412 : vector<1x24xf32>
    %1414 = tpu.concatenate %1413, %1333 in 1 : vector<1x24xf32>, vector<1x24xf32> -> vector<1x48xf32>
    %cst_466 = arith.constant dense<0.000000e+00> : vector<1x96xf32>
    %1415 = tpu.matmul %1414, %765, %cst_466 {dimension_numbers = #tpu.dot_dimension_numbers<[1], [0], [0], [1], [0, 0, 1, 1], [], []>} : vector<1x48xf32>, vector<48x96xf32>, vector<1x96xf32> -> vector<1x96xf32>
    %1416 = arith.addf %1415, %768 : vector<1x96xf32>
    %1417 = vector.extract_strided_slice %1416 {offsets = [0, 0], sizes = [1, 24], strides = [1, 1]} : vector<1x96xf32> to vector<1x24xf32>
    %cst_467 = arith.constant 0.000000e+00 : f32
    %1418 = vector.broadcast %cst_467 : f32 to vector<1x24xf32>
    %1419 = arith.subf %1418, %1417 : vector<1x24xf32>
    %1420 = math.exp %1419 : vector<1x24xf32>
    %cst_468 = arith.constant 1.000000e+00 : f32
    %1421 = vector.broadcast %cst_468 : f32 to vector<1x24xf32>
    %1422 = arith.addf %1421, %1420 : vector<1x24xf32>
    %cst_469 = arith.constant 1.000000e+00 : f32
    %1423 = vector.broadcast %cst_469 : f32 to vector<1x24xf32>
    %1424 = arith.divf %1423, %1422 : vector<1x24xf32>
    %1425 = vector.extract_strided_slice %1416 {offsets = [0, 24], sizes = [1, 24], strides = [1, 1]} : vector<1x96xf32> to vector<1x24xf32>
    %cst_470 = arith.constant 0.000000e+00 : f32
    %1426 = vector.broadcast %cst_470 : f32 to vector<1x24xf32>
    %1427 = arith.subf %1426, %1425 : vector<1x24xf32>
    %1428 = math.exp %1427 : vector<1x24xf32>
    %cst_471 = arith.constant 1.000000e+00 : f32
    %1429 = vector.broadcast %cst_471 : f32 to vector<1x24xf32>
    %1430 = arith.addf %1429, %1428 : vector<1x24xf32>
    %cst_472 = arith.constant 1.000000e+00 : f32
    %1431 = vector.broadcast %cst_472 : f32 to vector<1x24xf32>
    %1432 = arith.divf %1431, %1430 : vector<1x24xf32>
    %1433 = vector.extract_strided_slice %1416 {offsets = [0, 48], sizes = [1, 24], strides = [1, 1]} : vector<1x96xf32> to vector<1x24xf32>
    %1434 = math.tanh %1433 : vector<1x24xf32>
    %1435 = vector.extract_strided_slice %1416 {offsets = [0, 72], sizes = [1, 24], strides = [1, 1]} : vector<1x96xf32> to vector<1x24xf32>
    %cst_473 = arith.constant 0.000000e+00 : f32
    %1436 = vector.broadcast %cst_473 : f32 to vector<1x24xf32>
    %1437 = arith.subf %1436, %1435 : vector<1x24xf32>
    %1438 = math.exp %1437 : vector<1x24xf32>
    %cst_474 = arith.constant 1.000000e+00 : f32
    %1439 = vector.broadcast %cst_474 : f32 to vector<1x24xf32>
    %1440 = arith.addf %1439, %1438 : vector<1x24xf32>
    %cst_475 = arith.constant 1.000000e+00 : f32
    %1441 = vector.broadcast %cst_475 : f32 to vector<1x24xf32>
    %1442 = arith.divf %1441, %1440 : vector<1x24xf32>
    %1443 = arith.mulf %1432, %1331 : vector<1x24xf32>
    %1444 = arith.mulf %1424, %1434 : vector<1x24xf32>
    %1445 = arith.addf %1443, %1444 : vector<1x24xf32>
    %1446 = math.tanh %1445 : vector<1x24xf32>
    %1447 = arith.mulf %1442, %1446 : vector<1x24xf32>
    %cst_476 = arith.constant dense<0.000000e+00> : vector<1x12xf32>
    %1448 = tpu.matmul %1447, %65, %cst_476 {dimension_numbers = #tpu.dot_dimension_numbers<[1], [1], [0], [0], [0, 0, 1, 0], [], []>} : vector<1x24xf32>, vector<12x24xf32>, vector<1x12xf32> -> vector<1x12xf32>
    %cst_477 = arith.constant dense<0xFF800000> : vector<1xf32>
    %1449 = vector.multi_reduction <maximumf>, %1448, %cst_477 [1] : vector<1x12xf32> to vector<1xf32>
    %1450 = vector.shape_cast %1449 : vector<1xf32> to vector<1x1xf32>
    %1451 = vector.broadcast %1450 : vector<1x1xf32> to vector<1x12xf32>
    %1452 = arith.subf %1448, %1451 : vector<1x12xf32>
    %1453 = math.exp %1452 : vector<1x12xf32>
    %cst_478 = arith.constant dense<0.000000e+00> : vector<1xf32>
    %1454 = vector.multi_reduction <add>, %1453, %cst_478 [1] : vector<1x12xf32> to vector<1xf32>
    %1455 = vector.shape_cast %1454 : vector<1xf32> to vector<1x1xf32>
    %1456 = vector.broadcast %1455 : vector<1x1xf32> to vector<1x12xf32>
    %1457 = arith.divf %1453, %1456 : vector<1x12xf32>
    %cst_479 = arith.constant dense<0.000000e+00> : vector<1x24xf32>
    %1458 = tpu.matmul %1457, %65, %cst_479 {dimension_numbers = #tpu.dot_dimension_numbers<[1], [0], [0], [1], [0, 0, 1, 1], [], []>} : vector<1x12xf32>, vector<12x24xf32>, vector<1x24xf32> -> vector<1x24xf32>
    %1459 = tpu.concatenate %1447, %1458 in 1 : vector<1x24xf32>, vector<1x24xf32> -> vector<1x48xf32>
    %1460 = tpu.concatenate %762, %1459 in 1 : vector<1x48xf32>, vector<1x48xf32> -> vector<1x96xf32>
    %c0_480 = arith.constant 0 : index
    %c0_481 = arith.constant 0 : index
    %1461 = vector.load %arg23[%c0_480, %c0_481] : memref<96x256xf32, #tpu.memory_space<vmem>>, vector<96x256xf32>
    %cst_482 = arith.constant dense<0.000000e+00> : vector<1x256xf32>
    %1462 = tpu.matmul %1460, %1461, %cst_482 {dimension_numbers = #tpu.dot_dimension_numbers<[1], [0], [0], [1], [0, 0, 1, 1], [], []>} : vector<1x96xf32>, vector<96x256xf32>, vector<1x256xf32> -> vector<1x256xf32>
    %c0_483 = arith.constant 0 : index
    %c0_484 = arith.constant 0 : index
    %1463 = vector.load %arg24[%c0_483, %c0_484] : memref<1x256xf32, #tpu.memory_space<vmem>>, vector<1x256xf32>
    %1464 = arith.addf %1462, %1463 : vector<1x256xf32>
    %cst_485 = arith.constant 0.000000e+00 : f32
    %1465 = vector.broadcast %cst_485 : f32 to vector<1x256xf32>
    %1466 = arith.maximumf %1464, %1465 : vector<1x256xf32>
    %c0_486 = arith.constant 0 : index
    %c0_487 = arith.constant 0 : index
    %1467 = vector.load %arg25[%c0_486, %c0_487] : memref<256x128xf32, #tpu.memory_space<vmem>>, vector<256x128xf32>
    %cst_488 = arith.constant dense<0.000000e+00> : vector<1x128xf32>
    %1468 = tpu.matmul %1466, %1467, %cst_488 {dimension_numbers = #tpu.dot_dimension_numbers<[1], [0], [0], [1], [0, 0, 1, 1], [], []>} : vector<1x256xf32>, vector<256x128xf32>, vector<1x128xf32> -> vector<1x128xf32>
    %c0_489 = arith.constant 0 : index
    %c0_490 = arith.constant 0 : index
    %1469 = vector.load %arg26[%c0_489, %c0_490] : memref<1x128xf32, #tpu.memory_space<vmem>>, vector<1x128xf32>
    %1470 = arith.addf %1468, %1469 : vector<1x128xf32>
    %cst_491 = arith.constant 0.000000e+00 : f32
    %1471 = vector.broadcast %cst_491 : f32 to vector<1x128xf32>
    %1472 = arith.maximumf %1470, %1471 : vector<1x128xf32>
    %c0_492 = arith.constant 0 : index
    %c0_493 = arith.constant 0 : index
    %1473 = vector.load %arg27[%c0_492, %c0_493] : memref<128x64xf32, #tpu.memory_space<vmem>>, vector<128x64xf32>
    %cst_494 = arith.constant dense<0.000000e+00> : vector<1x64xf32>
    %1474 = tpu.matmul %1472, %1473, %cst_494 {dimension_numbers = #tpu.dot_dimension_numbers<[1], [0], [0], [1], [0, 0, 1, 1], [], []>} : vector<1x128xf32>, vector<128x64xf32>, vector<1x64xf32> -> vector<1x64xf32>
    %c0_495 = arith.constant 0 : index
    %c0_496 = arith.constant 0 : index
    %1475 = vector.load %arg28[%c0_495, %c0_496] : memref<1x64xf32, #tpu.memory_space<vmem>>, vector<1x64xf32>
    %1476 = arith.addf %1474, %1475 : vector<1x64xf32>
    %cst_497 = arith.constant 0.000000e+00 : f32
    %1477 = vector.broadcast %cst_497 : f32 to vector<1x64xf32>
    %1478 = arith.maximumf %1476, %1477 : vector<1x64xf32>
    %c0_498 = arith.constant 0 : index
    %c0_499 = arith.constant 0 : index
    %1479 = vector.load %arg29[%c0_498, %c0_499] : memref<64x1xf32, #tpu.memory_space<vmem>>, vector<64x1xf32>
    %cst_500 = arith.constant dense<0.000000e+00> : vector<1x1xf32>
    %1480 = tpu.matmul %1478, %1479, %cst_500 {dimension_numbers = #tpu.dot_dimension_numbers<[1], [0], [0], [1], [0, 0, 1, 1], [], []>} : vector<1x64xf32>, vector<64x1xf32>, vector<1x1xf32> -> vector<1x1xf32>
    %c0_501 = arith.constant 0 : index
    %c0_502 = arith.constant 0 : index
    %1481 = vector.load %arg30[%c0_501, %c0_502] : memref<1x1xf32, #tpu.memory_space<vmem>>, vector<1x1xf32>
    %1482 = arith.addf %1480, %1481 : vector<1x1xf32>
    %c0_503 = arith.constant 0 : index
    %c0_504 = arith.constant 0 : index
    %1483 = vector.load %arg31[%c0_503, %c0_504] : memref<1x1xf32, #tpu.memory_space<vmem>>, vector<1x1xf32>
    tpu.vector_store %arg31[%c0_503, %c0_504], %1482 {strides = array<i32>} : memref<1x1xf32, #tpu.memory_space<vmem>>, vector<1x1xf32>,
    return
  }
}

</mosaic_0001>

<llo_original>
// kernel: tpu_custom_call.1
$region0: #{tpu_custom_call.1}
  #allocation0 [shape = 'u32[]', space=smem, size = 0x4, offset = 0x4, fixed_abs, tag = 'smem constant byte address 0x4 - core index']
  #allocation1 [shape = 'u32[72,128]{1,0:T(1,128)}', space=vmem, size = 0x9000, scoped, tag = 'internal scratch']
  #allocation2 [shape = 'f32[1,1]{1,0:T(1,128)S(1)}', space=vmem, size = 0x200, scoped, tag = 'scoped memory for tpu_custom_call.1']
  %s0 = inlined_call_operand.smem [shape: u32[32], index: -1, kind: input, shape index: {}]
  %s1 = sld [smem:[%s0]]
  %s2 = scalar_lea.smem %s0, 1
  %s3 = sld [smem:[%s2]]
  %s4 = scalar_lea.smem %s0, 2
  %s5 = sld [smem:[%s4]]
  %s6 = scalar_lea.smem %s0, 3
  %s7 = sld [smem:[%s6]]
  %s8 = scalar_lea.smem %s0, 4
  %s9 = sld [smem:[%s8]]
  %s10 = scalar_lea.smem %s0, 5
  %s11 = sld [smem:[%s10]]
  %s12 = scalar_lea.smem %s0, 6
  %s13 = sld [smem:[%s12]]
  %s14 = scalar_lea.smem %s0, 7
  %s15 = sld [smem:[%s14]]
  %s16 = scalar_lea.smem %s0, 8
  %s17 = sld [smem:[%s16]]
  %s18 = scalar_lea.smem %s0, 9
  %s19 = sld [smem:[%s18]]
  %s20 = scalar_lea.smem %s0, 10
  %s21 = sld [smem:[%s20]]
  %s22 = scalar_lea.smem %s0, 11
  %s23 = sld [smem:[%s22]]
  %s24 = scalar_lea.smem %s0, 12
  %s25 = sld [smem:[%s24]]
  %s26 = scalar_lea.smem %s0, 13
  %s27 = sld [smem:[%s26]]
  %s28 = scalar_lea.smem %s0, 14
  %s29 = sld [smem:[%s28]]
  %s30 = scalar_lea.smem %s0, 15
  %s31 = sld [smem:[%s30]]
  %s32 = scalar_lea.smem %s0, 16
  %s33 = sld [smem:[%s32]]
  %s34 = scalar_lea.smem %s0, 17
  %s35 = sld [smem:[%s34]]
  %s36 = scalar_lea.smem %s0, 18
  %s37 = sld [smem:[%s36]]
  %s38 = scalar_lea.smem %s0, 19
  %s39 = sld [smem:[%s38]]
  %s40 = scalar_lea.smem %s0, 20
  %s41 = sld [smem:[%s40]]
  %s42 = scalar_lea.smem %s0, 21
  %s43 = sld [smem:[%s42]]
  %s44 = scalar_lea.smem %s0, 22
  %s45 = sld [smem:[%s44]]
  %s46 = scalar_lea.smem %s0, 23
  %s47 = sld [smem:[%s46]]
  %s48 = scalar_lea.smem %s0, 24
  %s49 = sld [smem:[%s48]]
  %s50 = scalar_lea.smem %s0, 25
  %s51 = sld [smem:[%s50]]
  %s52 = scalar_lea.smem %s0, 26
  %s53 = sld [smem:[%s52]]
  %s54 = scalar_lea.smem %s0, 27
  %s55 = sld [smem:[%s54]]
  %s56 = scalar_lea.smem %s0, 28
  %s57 = sld [smem:[%s56]]
  %s58 = scalar_lea.smem %s0, 29
  %s59 = sld [smem:[%s58]]
  %s60 = scalar_lea.smem %s0, 30
  %s61 = sld [smem:[%s60]]
  %s62 = scalar_lea.smem %s0, 31
  %s63 = sld [smem:[%s62]]
  %s64 = sld [smem:[#allocation0]]
  $region170: #{tpu_custom_call.1} parent=0
    _
  %s66 = ssub.s32 1, %s64
  %s67 = scalar_select 0, %s66, %s64
  %v68 = vstv %s61
  %69 = vst [vmem:[#allocation2] sm:$0x1] %v68
  $region1: #{tpu_custom_call.1} parent=0
    #allocation3 [shape = 'u8[4096]{0}', space=vmem, size = 0x1000, scoped, tag = 'input window, operand 1, single buffered']
    #allocation4 [shape = 's32[1]{0}', space=sflag, size = 0x4, scoped, tag = 'scoped memory for tpu_custom_call.1']
    #allocation5 [shape = 's32[1]{0}', space=sflag, size = 0x4, scoped, tag = 'scoped memory for tpu_custom_call.1']
    #allocation6 [shape = 'u8[512]{0}', space=vmem, size = 0x400, scoped, tag = 'input window, operand 4, single buffered']
    #allocation7 [shape = 's32[1]{0}', space=sflag, size = 0x4, scoped, tag = 'scoped memory for tpu_custom_call.1']
    #allocation8 [shape = 'u8[8192]{0}', space=vmem, size = 0x2000, scoped, tag = 'input window, operand 5, single buffered']
    #allocation9 [shape = 'u8[512]{0}', space=vmem, size = 0x400, scoped, tag = 'input window, operand 6, single buffered']
    #allocation10 [shape = 's32[1]{0}', space=sflag, size = 0x4, scoped, tag = 'scoped memory for tpu_custom_call.1']
    #allocation11 [shape = 'u8[24576]{0}', space=vmem, size = 0x6000, scoped, tag = 'input window, operand 15, single buffered']
    #allocation12 [shape = 'u8[512]{0}', space=vmem, size = 0x400, scoped, tag = 'input window, operand 16, single buffered']
    #allocation13 [shape = 's32[1]{0}', space=sflag, size = 0x4, scoped, tag = 'scoped memory for tpu_custom_call.1']
    #allocation14 [shape = 'u8[36864]{0}', space=vmem, size = 0x9000, scoped, tag = 'input window, operand 17, single buffered']
    #allocation15 [shape = 'u8[24576]{0}', space=vmem, size = 0x6000, scoped, tag = 'input window, operand 19, single buffered']
    #allocation16 [shape = 's32[1]{0}', space=sflag, size = 0x4, scoped, tag = 'scoped memory for tpu_custom_call.1']
    #allocation17 [shape = 'u8[24576]{0}', space=vmem, size = 0x6000, scoped, tag = 'input window, operand 21, single buffered']
    #allocation18 [shape = 'u8[512]{0}', space=vmem, size = 0x400, scoped, tag = 'output window, operand 0, single buffered']
    %70 = vsyncpa [#allocation4], 0
    %71 = vsyncpa [#allocation7], 0
    %72 = vsyncpa [#allocation10], 0
    %73 = vsyncpa [#allocation13], 0
    %74 = vsyncpa [#allocation16], 0
    %75 = vsyncpa [#allocation5], 0
    // Predicated region
    $region2: #{tpu_custom_call.1} parent=1 // pred_check
      _
    $region3: #{tpu_custom_call.1} parent=1 // pred_check_branch
      %77 = sbr.rel (0) target = $region5
    $region4: #{tpu_custom_call.1} parent=1 // pred_region
      _
    $region5: #{tpu_custom_call.1} parent=1 // pred_fallthru
      _
    // Predicated region
    $region6: #{tpu_custom_call.1} parent=1 // pred_check
      _
    $region7: #{tpu_custom_call.1} parent=1 // pred_check_branch
      %79 = sbr.rel (0) target = $region9
    $region8: #{tpu_custom_call.1} parent=1 // pred_region
      %81 = vsyncadd [#allocation4], 0
      %s83 = sshll.u32 %s3, 4
      %s84 = int_to_ptr.hbm [resolvable:$true] %s83
      %s85 = sshll.u32 [#allocation3], 4
      %s86 = int_to_ptr.vmem [resolvable:$true] %s85
      %88 = dma.hbm_to_vmem [thread:$0]  %s84, 128, %s86, [#allocation4]
    $region9: #{tpu_custom_call.1} parent=1 // pred_fallthru
      _
    // Predicated region
    $region10: #{tpu_custom_call.1} parent=1 // pred_check
      _
    $region11: #{tpu_custom_call.1} parent=1 // pred_check_branch
      %90 = sbr.rel (0) target = $region13
    $region12: #{tpu_custom_call.1} parent=1 // pred_region
      _
    $region13: #{tpu_custom_call.1} parent=1 // pred_fallthru
      _
    // Predicated region
    $region14: #{tpu_custom_call.1} parent=1 // pred_check
      _
    $region15: #{tpu_custom_call.1} parent=1 // pred_check_branch
      %92 = sbr.rel (0) target = $region17
    $region16: #{tpu_custom_call.1} parent=1 // pred_region
      _
    $region17: #{tpu_custom_call.1} parent=1 // pred_fallthru
      _
    // Predicated region
    $region18: #{tpu_custom_call.1} parent=1 // pred_check
      _
    $region19: #{tpu_custom_call.1} parent=1 // pred_check_branch
      %94 = sbr.rel (0) target = $region21
    $region20: #{tpu_custom_call.1} parent=1 // pred_region
      %96 = vsyncadd [#allocation7], 0
      %s98 = sshll.u32 %s9, 4
      %s99 = int_to_ptr.hbm [resolvable:$true] %s98
      %s100 = sshll.u32 [#allocation6], 4
      %s101 = int_to_ptr.vmem [resolvable:$true] %s100
      %103 = dma.hbm_to_vmem [thread:$0]  %s99, 16, %s101, [#allocation7]
    $region21: #{tpu_custom_call.1} parent=1 // pred_fallthru
      _
    // Predicated region
    $region22: #{tpu_custom_call.1} parent=1 // pred_check
      _
    $region23: #{tpu_custom_call.1} parent=1 // pred_check_branch
      %105 = sbr.rel (0) target = $region25
    $region24: #{tpu_custom_call.1} parent=1 // pred_region
      %107 = vsyncadd [#allocation7], 0
      %s108 = sshll.u32 %s11, 4
      %s109 = int_to_ptr.hbm [resolvable:$true] %s108
      %s110 = sshll.u32 [#allocation8], 4
      %s111 = int_to_ptr.vmem [resolvable:$true] %s110
      %116 = dma.hbm_to_vmem [thread:$0]  %s109, 256, %s111, [#allocation7], 128, 128, 8
    $region25: #{tpu_custom_call.1} parent=1 // pred_fallthru
      _
    // Predicated region
    $region26: #{tpu_custom_call.1} parent=1 // pred_check
      _
    $region27: #{tpu_custom_call.1} parent=1 // pred_check_branch
      %118 = sbr.rel (0) target = $region29
    $region28: #{tpu_custom_call.1} parent=1 // pred_region
      %120 = vsyncadd [#allocation10], 0
      %s122 = sshll.u32 %s13, 4
      %s123 = int_to_ptr.hbm [resolvable:$true] %s122
      %s124 = sshll.u32 [#allocation9], 4
      %s125 = int_to_ptr.vmem [resolvable:$true] %s124
      %127 = dma.hbm_to_vmem [thread:$0]  %s123, 16, %s125, [#allocation10]
    $region29: #{tpu_custom_call.1} parent=1 // pred_fallthru
      _
    // Predicated region
    $region30: #{tpu_custom_call.1} parent=1 // pred_check
      _
    $region31: #{tpu_custom_call.1} parent=1 // pred_check_branch
      %129 = sbr.rel (0) target = $region33
    $region32: #{tpu_custom_call.1} parent=1 // pred_region
      _
    $region33: #{tpu_custom_call.1} parent=1 // pred_fallthru
      _
    // Predicated region
    $region34: #{tpu_custom_call.1} parent=1 // pred_check
      _
    $region35: #{tpu_custom_call.1} parent=1 // pred_check_branch
      %131 = sbr.rel (0) target = $region37
    $region36: #{tpu_custom_call.1} parent=1 // pred_region
      _
    $region37: #{tpu_custom_call.1} parent=1 // pred_fallthru
      _
    // Predicated region
    $region38: #{tpu_custom_call.1} parent=1 // pred_check
      _
    $region39: #{tpu_custom_call.1} parent=1 // pred_check_branch
      %133 = sbr.rel (0) target = $region41
    $region40: #{tpu_custom_call.1} parent=1 // pred_region
      _
    $region41: #{tpu_custom_call.1} parent=1 // pred_fallthru
      _
    // Predicated region
    $region42: #{tpu_custom_call.1} parent=1 // pred_check
      _
    $region43: #{tpu_custom_call.1} parent=1 // pred_check_branch
      %135 = sbr.rel (0) target = $region45
    $region44: #{tpu_custom_call.1} parent=1 // pred_region
      _
    $region45: #{tpu_custom_call.1} parent=1 // pred_fallthru
      _
    // Predicated region
    $region46: #{tpu_custom_call.1} parent=1 // pred_check
      _
    $region47: #{tpu_custom_call.1} parent=1 // pred_check_branch
      %137 = sbr.rel (0) target = $region49
    $region48: #{tpu_custom_call.1} parent=1 // pred_region
      _
    $region49: #{tpu_custom_call.1} parent=1 // pred_fallthru
      _
    // Predicated region
    $region50: #{tpu_custom_call.1} parent=1 // pred_check
      _
    $region51: #{tpu_custom_call.1} parent=1 // pred_check_branch
      %139 = sbr.rel (0) target = $region53
    $region52: #{tpu_custom_call.1} parent=1 // pred_region
      _
    $region53: #{tpu_custom_call.1} parent=1 // pred_fallthru
      _
    // Predicated region
    $region54: #{tpu_custom_call.1} parent=1 // pred_check
      _
    $region55: #{tpu_custom_call.1} parent=1 // pred_check_branch
      %141 = sbr.rel (0) target = $region57
    $region56: #{tpu_custom_call.1} parent=1 // pred_region
      _
    $region57: #{tpu_custom_call.1} parent=1 // pred_fallthru
      _
    // Predicated region
    $region58: #{tpu_custom_call.1} parent=1 // pred_check
      _
    $region59: #{tpu_custom_call.1} parent=1 // pred_check_branch
      %143 = sbr.rel (0) target = $region61
    $region60: #{tpu_custom_call.1} parent=1 // pred_region
      _
    $region61: #{tpu_custom_call.1} parent=1 // pred_fallthru
      _
    // Predicated region
    $region62: #{tpu_custom_call.1} parent=1 // pred_check
      _
    $region63: #{tpu_custom_call.1} parent=1 // pred_check_branch
      %145 = sbr.rel (0) target = $region65
    $region64: #{tpu_custom_call.1} parent=1 // pred_region
      %147 = vsyncadd [#allocation10], 0
      %s148 = sshll.u32 %s31, 4
      %s149 = int_to_ptr.hbm [resolvable:$true] %s148
      %s150 = sshll.u32 [#allocation11], 4
      %s151 = int_to_ptr.vmem [resolvable:$true] %s150
      %156 = dma.hbm_to_vmem [thread:$0]  %s149, 768, %s151, [#allocation10], 128, 128, 8
    $region65: #{tpu_custom_call.1} parent=1 // pred_fallthru
      _
    // Predicated region
    $region66: #{tpu_custom_call.1} parent=1 // pred_check
      _
    $region67: #{tpu_custom_call.1} parent=1 // pred_check_branch
      %158 = sbr.rel (0) target = $region69
    $region68: #{tpu_custom_call.1} parent=1 // pred_region
      %160 = vsyncadd [#allocation13], 0
      %s162 = sshll.u32 %s33, 4
      %s163 = int_to_ptr.hbm [resolvable:$true] %s162
      %s164 = sshll.u32 [#allocation12], 4
      %s165 = int_to_ptr.vmem [resolvable:$true] %s164
      %167 = dma.hbm_to_vmem [thread:$0]  %s163, 16, %s165, [#allocation13]
    $region69: #{tpu_custom_call.1} parent=1 // pred_fallthru
      _
    // Predicated region
    $region70: #{tpu_custom_call.1} parent=1 // pred_check
      _
    $region71: #{tpu_custom_call.1} parent=1 // pred_check_branch
      %169 = sbr.rel (0) target = $region73
    $region72: #{tpu_custom_call.1} parent=1 // pred_region
      %171 = vsyncadd [#allocation13], 0
      %s172 = sshll.u32 %s35, 4
      %s173 = int_to_ptr.hbm [resolvable:$true] %s172
      %s174 = sshll.u32 [#allocation14], 4
      %s175 = int_to_ptr.vmem [resolvable:$true] %s174
      %180 = dma.hbm_to_vmem [thread:$0]  %s173, 1152, %s175, [#allocation13], 128, 128, 8
    $region73: #{tpu_custom_call.1} parent=1 // pred_fallthru
      _
    // Predicated region
    $region74: #{tpu_custom_call.1} parent=1 // pred_check
      _
    $region75: #{tpu_custom_call.1} parent=1 // pred_check_branch
      %182 = sbr.rel (0) target = $region77
    $region76: #{tpu_custom_call.1} parent=1 // pred_region
      _
    $region77: #{tpu_custom_call.1} parent=1 // pred_fallthru
      _
    // Predicated region
    $region78: #{tpu_custom_call.1} parent=1 // pred_check
      _
    $region79: #{tpu_custom_call.1} parent=1 // pred_check_branch
      %184 = sbr.rel (0) target = $region81
    $region80: #{tpu_custom_call.1} parent=1 // pred_region
      %186 = vsyncadd [#allocation16], 0
      %s187 = sshll.u32 %s39, 4
      %s188 = int_to_ptr.hbm [resolvable:$true] %s187
      %s189 = sshll.u32 [#allocation15], 4
      %s190 = int_to_ptr.vmem [resolvable:$true] %s189
      %195 = dma.hbm_to_vmem [thread:$0]  %s188, 768, %s190, [#allocation16], 128, 128, 8
    $region81: #{tpu_custom_call.1} parent=1 // pred_fallthru
      _
    // Predicated region
    $region82: #{tpu_custom_call.1} parent=1 // pred_check
      _
    $region83: #{tpu_custom_call.1} parent=1 // pred_check_branch
      %197 = sbr.rel (0) target = $region85
    $region84: #{tpu_custom_call.1} parent=1 // pred_region
      _
    $region85: #{tpu_custom_call.1} parent=1 // pred_fallthru
      _
    // Predicated region
    $region86: #{tpu_custom_call.1} parent=1 // pred_check
      _
    $region87: #{tpu_custom_call.1} parent=1 // pred_check_branch
      %199 = sbr.rel (0) target = $region89
    $region88: #{tpu_custom_call.1} parent=1 // pred_region
      %201 = vsyncadd [#allocation16], 0
      %s202 = sshll.u32 %s43, 4
      %s203 = int_to_ptr.hbm [resolvable:$true] %s202
      %s204 = sshll.u32 [#allocation17], 4
      %s205 = int_to_ptr.vmem [resolvable:$true] %s204
      %210 = dma.hbm_to_vmem [thread:$0]  %s203, 768, %s205, [#allocation16], 128, 128, 8
    $region89: #{tpu_custom_call.1} parent=1 // pred_fallthru
      _
    // Predicated region
    $region90: #{tpu_custom_call.1} parent=1 // pred_check
      _
    $region91: #{tpu_custom_call.1} parent=1 // pred_check_branch
      %212 = sbr.rel (0) target = $region93
    $region92: #{tpu_custom_call.1} parent=1 // pred_region
      _
    $region93: #{tpu_custom_call.1} parent=1 // pred_fallthru
      _
    // Predicated region
    $region94: #{tpu_custom_call.1} parent=1 // pred_check
      _
    $region95: #{tpu_custom_call.1} parent=1 // pred_check_branch
      %214 = sbr.rel (0) target = $region97
    $region96: #{tpu_custom_call.1} parent=1 // pred_region
      _
    $region97: #{tpu_custom_call.1} parent=1 // pred_fallthru
      _
    // Predicated region
    $region98: #{tpu_custom_call.1} parent=1 // pred_check
      _
    $region99: #{tpu_custom_call.1} parent=1 // pred_check_branch
      %216 = sbr.rel (0) target = $region101
    $region100: #{tpu_custom_call.1} parent=1 // pred_region
      _
    $region101: #{tpu_custom_call.1} parent=1 // pred_fallthru
      _
    // Predicated region
    $region102: #{tpu_custom_call.1} parent=1 // pred_check
      _
    $region103: #{tpu_custom_call.1} parent=1 // pred_check_branch
      %218 = sbr.rel (0) target = $region105
    $region104: #{tpu_custom_call.1} parent=1 // pred_region
      _
    $region105: #{tpu_custom_call.1} parent=1 // pred_fallthru
      _
    // Predicated region
    $region106: #{tpu_custom_call.1} parent=1 // pred_check
      _
    $region107: #{tpu_custom_call.1} parent=1 // pred_check_branch
      %220 = sbr.rel (0) target = $region109
    $region108: #{tpu_custom_call.1} parent=1 // pred_region
      _
    $region109: #{tpu_custom_call.1} parent=1 // pred_fallthru
      _
    // Predicated region
    $region110: #{tpu_custom_call.1} parent=1 // pred_check
      _
    $region111: #{tpu_custom_call.1} parent=1 // pred_check_branch
      %222 = sbr.rel (0) target = $region113
    $region112: #{tpu_custom_call.1} parent=1 // pred_region
      _
    $region113: #{tpu_custom_call.1} parent=1 // pred_fallthru
      _
    // Predicated region
    $region114: #{tpu_custom_call.1} parent=1 // pred_check
      _
    $region115: #{tpu_custom_call.1} parent=1 // pred_check_branch
      %224 = sbr.rel (0) target = $region117
    $region116: #{tpu_custom_call.1} parent=1 // pred_region
      _
    $region117: #{tpu_custom_call.1} parent=1 // pred_fallthru
      _
    // Predicated region
    $region118: #{tpu_custom_call.1} parent=1 // pred_check
      _
    $region119: #{tpu_custom_call.1} parent=1 // pred_check_branch
      %226 = sbr.rel (0) target = $region121
    $region120: #{tpu_custom_call.1} parent=1 // pred_region
      _
    $region121: #{tpu_custom_call.1} parent=1 // pred_fallthru
      _
    // Predicated region
    $region122: #{tpu_custom_call.1} parent=1 // pred_check
      _
    $region123: #{tpu_custom_call.1} parent=1 // pred_check_branch
      %228 = sbr.rel (0) target = $region125
    $region124: #{tpu_custom_call.1} parent=1 // pred_region
      _
    $region125: #{tpu_custom_call.1} parent=1 // pred_fallthru
      _
    // Predicated region
    $region126: #{tpu_custom_call.1} parent=1 // pred_check
      _
    $region127: #{tpu_custom_call.1} parent=1 // pred_check_branch
      %230 = sbr.rel (0) target = $region129
    $region128: #{tpu_custom_call.1} parent=1 // pred_region
      %232 = dma.done [#allocation4], 128
    $region129: #{tpu_custom_call.1} parent=1 // pred_fallthru
      _
    // Predicated region
    $region130: #{tpu_custom_call.1} parent=1 // pred_check
      _
    $region131: #{tpu_custom_call.1} parent=1 // pred_check_branch
      %234 = sbr.rel (0) target = $region133
    $region132: #{tpu_custom_call.1} parent=1 // pred_region
      %236 = dma.done [#allocation7], 16
    $region133: #{tpu_custom_call.1} parent=1 // pred_fallthru
      _
    // Predicated region
    $region134: #{tpu_custom_call.1} parent=1 // pred_check
      _
    $region135: #{tpu_custom_call.1} parent=1 // pred_check_branch
      %238 = sbr.rel (0) target = $region137
    $region136: #{tpu_custom_call.1} parent=1 // pred_region
      %240 = dma.done [#allocation7], 256
    $region137: #{tpu_custom_call.1} parent=1 // pred_fallthru
      _
    // Predicated region
    $region138: #{tpu_custom_call.1} parent=1 // pred_check
      _
    $region139: #{tpu_custom_call.1} parent=1 // pred_check_branch
      %242 = sbr.rel (0) target = $region141
    $region140: #{tpu_custom_call.1} parent=1 // pred_region
      %244 = dma.done [#allocation10], 16
    $region141: #{tpu_custom_call.1} parent=1 // pred_fallthru
      _
    // Predicated region
    $region142: #{tpu_custom_call.1} parent=1 // pred_check
      _
    $region143: #{tpu_custom_call.1} parent=1 // pred_check_branch
      %246 = sbr.rel (0) target = $region145
    $region144: #{tpu_custom_call.1} parent=1 // pred_region
      %248 = dma.done [#allocation10], 768
    $region145: #{tpu_custom_call.1} parent=1 // pred_fallthru
      _
    // Predicated region
    $region146: #{tpu_custom_call.1} parent=1 // pred_check
      _
    $region147: #{tpu_custom_call.1} parent=1 // pred_check_branch
      %250 = sbr.rel (0) target = $region149
    $region148: #{tpu_custom_call.1} parent=1 // pred_region
      %252 = dma.done [#allocation13], 16
    $region149: #{tpu_custom_call.1} parent=1 // pred_fallthru
      _
    // Predicated region
    $region150: #{tpu_custom_call.1} parent=1 // pred_check
      _
    $region151: #{tpu_custom_call.1} parent=1 // pred_check_branch
      %254 = sbr.rel (0) target = $region153
    $region152: #{tpu_custom_call.1} parent=1 // pred_region
      %256 = dma.done [#allocation13], 1152
    $region153: #{tpu_custom_call.1} parent=1 // pred_fallthru
      _
    // Predicated region
    $region154: #{tpu_custom_call.1} parent=1 // pred_check
      _
    $region155: #{tpu_custom_call.1} parent=1 // pred_check_branch
      %258 = sbr.rel (0) target = $region157
    $region156: #{tpu_custom_call.1} parent=1 // pred_region
      %260 = dma.done [#allocation16], 768
    $region157: #{tpu_custom_call.1} parent=1 // pred_fallthru
      _
    // Predicated region
    $region158: #{tpu_custom_call.1} parent=1 // pred_check
      _
    $region159: #{tpu_custom_call.1} parent=1 // pred_check_branch
      %262 = sbr.rel (0) target = $region161
    $region160: #{tpu_custom_call.1} parent=1 // pred_region
      %264 = dma.done [#allocation16], 768
    $region161: #{tpu_custom_call.1} parent=1 // pred_fallthru
      _
    %v265 = vld [vmem:[#allocation3] sm:$0xff]
    %v266 = vld [vmem:[%s7] sm:$0xff]
    %v267 = vld [vmem:[%s7 + $0x8] sm:$0xff]
    %v268 = vld [vmem:[%s7 + $0x10] sm:$0xff]
    %v269 = vld [vmem:[%s7 + $0x18] sm:$0x3f]
    %v270 = vld [vmem:[#allocation6] sm:$0x1]
    %v272 = vperm.slane %v270, 0
    %vm274 = vcmask 244736
    %v276 = vsel %vm274, %v265, 0
    %vm278 = vcmask 1045504
    %v280 = vsel %vm278, %v269, 0
    %282 = vmatpush.msra.mxu0 0.0
    %283 = vmatpush.msra.mxu0 0.0
    %284 = vmatpush.msra.mxu0 0.0
    %285 = vmatpush.msra.mxu0 0.0
    %286 = vmatpush.msra.mxu0 0.0
    %287 = vmatpush.msra.mxu0 0.0
    %288 = vmatpush.msra.mxu0 0.0
    %289 = vmatpush.msra.mxu0 0.0
    %290 = vmatpush.msra.mxu0 0.0
    %291 = vmatpush.msra.mxu0 0.0
    %292 = vmatpush.msra.mxu0 0.0
    %293 = vmatpush.msra.mxu0 0.0
    %294 = vmatpush.msra.mxu0 %v280
    %295 = vmatpush.msra.mxu0 %v268
    %296 = vmatpush.msra.mxu0 %v267
    %297 = vmatpush.msra.mxu0 %v266
    %298 = vmatmul.f32.gmra.mxu0 %v276
    %v299 = vpop.f32.mrf.mxu0
    %v300 = vadd.f32 %v272, %v299
    %301 = vdwg.mxu0
    %v302 = vmax.f32 %v300, 0.0
    %v303 = vld [vmem:[%s5] sm:$0xff]
    %v304 = vld [vmem:[%s5 + $0x8] sm:$0xf]
    %v305 = vld [vmem:[#allocation8] sm:$0xff]
    %v306 = vld [vmem:[#allocation8 + $0x8] sm:$0x7]
    %v307 = vld [vmem:[#allocation9] sm:$0x1]
    %v309 = vperm.slane %v307, 0
    %vm311 = vcmask 89088
    %v313 = vsel %vm311, %v303, 0
    %v316 = vsel %vm311, %v304, 0
    %vm318 = vcmask 1042432
    %v320 = vsel %vm318, %v306, 0
    %322 = vmatpush.msra.mxu0 0.0
    %323 = vmatpush.msra.mxu0 0.0
    %324 = vmatpush.msra.mxu0 0.0
    %325 = vmatpush.msra.mxu0 0.0
    %326 = vmatpush.msra.mxu0 0.0
    %327 = vmatpush.msra.mxu0 0.0
    %328 = vmatpush.msra.mxu0 0.0
    %329 = vmatpush.msra.mxu0 0.0
    %330 = vmatpush.msra.mxu0 0.0
    %331 = vmatpush.msra.mxu0 0.0
    %332 = vmatpush.msra.mxu0 0.0
    %333 = vmatpush.msra.mxu0 0.0
    %334 = vmatpush.msra.mxu0 0.0
    %335 = vmatpush.msra.mxu0 0.0
    %336 = vmatpush.msra.mxu0 %v320
    %337 = vmatpush.msra.mxu0 %v305
    %338 = vmatmul.f32.gmra.mxu0 %v313
    %v339 = vpop.f32.mrf.mxu0
    %v340 = vadd.f32 %v309, %v339
    %341 = vmatmul.f32.gmra.mxu0 %v316
    %v342 = vpop.f32.mrf.mxu0
    %v343 = vadd.f32 %v309, %v342
    %344 = vdwg.mxu0
    %v345 = vmax.f32 %v340, 0.0
    %v346 = vmax.f32 %v343, 0.0
    %v347 = vld [vmem:[%s1] sm:$0xff]
    %v348 = vld [vmem:[%s1 + $0x8] sm:$0xf]
    %v349 = vlaneseq
    %v350 = vand.u32 %v349, 127
    %351 = vset.pattern.permute.xlu0 0
    %352 = vperm.xlu0 %351, %v347
    %v353 = vpop.permute.xlu0 %352
    %354 = vset.pattern.permute.xlu0 0
    %355 = vperm.xlu0 %354, %v348
    %v356 = vpop.permute.xlu0 %355
    %vm357 = vcmp.eq.s32.totalorder %v350, %v353
    %vm358 = vcmp.eq.s32.totalorder %v350, %v356
    %v359 = vsel %vm357, 1, 0
    %v360 = vsel %vm358, 1, 0
    %v361 = vcvt.s32.f32 %v359
    %v362 = vcvt.s32.f32 %v360
    %363 = vset.pattern.permute.xlu0 1
    %364 = vperm.xlu0 %363, %v347
    %v365 = vpop.permute.xlu0 %364
    %366 = vset.pattern.permute.xlu0 1
    %367 = vperm.xlu0 %366, %v348
    %v368 = vpop.permute.xlu0 %367
    %vm369 = vcmp.eq.s32.totalorder %v350, %v365
    %vm370 = vcmp.eq.s32.totalorder %v350, %v368
    %v371 = vsel %vm369, 1, 0
    %v372 = vsel %vm370, 1, 0
    %v373 = vcvt.s32.f32 %v371
    %v374 = vcvt.s32.f32 %v372
    %v375 = vadd.f32 %v361, %v373
    %v376 = vadd.f32 %v362, %v374
    %vm377 = vcmask 64512
    %v379 = vsel %vm377, %v375, 0
    %v382 = vsel %vm377, %v376, 0
    %384 = vmatpush.msra.mxu0 0.0
    %385 = vmatpush.msra.mxu0 0.0
    %386 = vmatpush.msra.mxu0 0.0
    %387 = vmatpush.msra.mxu0 0.0
    %388 = vmatpush.msra.mxu0 0.0
    %389 = vmatpush.msra.mxu0 0.0
    %390 = vmatpush.msra.mxu0 0.0
    %391 = vmatpush.msra.mxu0 0.0
    %392 = vmatpush.msra.mxu0 0.0
    %393 = vmatpush.msra.mxu0 0.0
    %394 = vmatpush.msra.mxu0 0.0
    %395 = vmatpush.msra.mxu0 0.0
    %396 = vmatpush.msra.mxu0 0.0
    %397 = vmatpush.msra.mxu0 0.0
    %398 = vmatpush.msra.mxu0 0.0
    %399 = vmatpush.msra.mxu0 %v302
    %400 = vmatmul.f32.gmra.mxu0 %v379
    %v401 = vpop.f32.mrf.mxu0
    %v402 = vadd.f32 0.0, %v401
    %403 = vmatmul.f32.gmra.mxu0 %v382
    %v404 = vpop.f32.mrf.mxu0
    %v405 = vadd.f32 0.0, %v404
    %406 = vdwg.mxu0
    %v407 = vld [vmem:[%s15] sm:$0xff]
    %v408 = vld [vmem:[%s15 + $0x8] sm:$0xff]
    %v409 = vld [vmem:[%s15 + $0x10] sm:$0xff]
    %v410 = vld [vmem:[%s15 + $0x18] sm:$0xff]
    %v411 = vld [vmem:[%s15 + $0x20] sm:$0xff]
    %v412 = vld [vmem:[%s15 + $0x28] sm:$0xff]
    %v413 = vld [vmem:[%s15 + $0x30] sm:$0xff]
    %v414 = vld [vmem:[%s15 + $0x38] sm:$0xff]
    %v415 = vld [vmem:[%s15 + $0x40] sm:$0xff]
    %v416 = vld [vmem:[%s15 + $0x48] sm:$0xff]
    %v417 = vld [vmem:[%s15 + $0x50] sm:$0xff]
    %v418 = vld [vmem:[%s15 + $0x58] sm:$0xff]
    %v419 = vld [vmem:[%s15 + $0x60] sm:$0xff]
    %v420 = vld [vmem:[%s15 + $0x68] sm:$0xff]
    %v421 = vld [vmem:[%s15 + $0x70] sm:$0xff]
    %v422 = vld [vmem:[%s15 + $0x78] sm:$0xff]
    %v423 = vld [vmem:[%s15 + $0x80] sm:$0xff]
    %v424 = vld [vmem:[%s15 + $0x88] sm:$0xff]
    %v425 = vld [vmem:[%s15 + $0x90] sm:$0xff]
    %v426 = vld [vmem:[%s15 + $0x98] sm:$0xff]
    %v427 = vld [vmem:[%s15 + $0xa0] sm:$0xff]
    %v428 = vld [vmem:[%s15 + $0xa8] sm:$0xff]
    %v429 = vld [vmem:[%s15 + $0xb0] sm:$0xff]
    %v430 = vld [vmem:[%s15 + $0xb8] sm:$0xff]
    %v431 = vld [vmem:[%s17] sm:$0xf]
    %v432 = vld [vmem:[%s19] sm:$0xff]
    %v433 = vld [vmem:[%s19 + $0x8] sm:$0xff]
    %v434 = vld [vmem:[%s19 + $0x10] sm:$0xff]
    %v435 = vld [vmem:[%s19 + $0x18] sm:$0xff]
    %v436 = vld [vmem:[%s19 + $0x20] sm:$0xff]
    %v437 = vld [vmem:[%s19 + $0x28] sm:$0xff]
    %v438 = vld [vmem:[%s19 + $0x30] sm:$0xff]
    %v439 = vld [vmem:[%s19 + $0x38] sm:$0xff]
    %v440 = vld [vmem:[%s19 + $0x40] sm:$0xff]
    %v441 = vld [vmem:[%s19 + $0x48] sm:$0xff]
    %v442 = vld [vmem:[%s19 + $0x50] sm:$0xff]
    %v443 = vld [vmem:[%s19 + $0x58] sm:$0xff]
    %v444 = vld [vmem:[%s19 + $0x60] sm:$0xff]
    %v445 = vld [vmem:[%s19 + $0x68] sm:$0xff]
    %v446 = vld [vmem:[%s19 + $0x70] sm:$0xff]
    %v447 = vld [vmem:[%s19 + $0x78] sm:$0xff]
    %v448 = vld [vmem:[%s19 + $0x80] sm:$0xff]
    %v449 = vld [vmem:[%s19 + $0x88] sm:$0xff]
    %v450 = vld [vmem:[%s19 + $0x90] sm:$0xff]
    %v451 = vld [vmem:[%s19 + $0x98] sm:$0xff]
    %v452 = vld [vmem:[%s19 + $0xa0] sm:$0xff]
    %v453 = vld [vmem:[%s19 + $0xa8] sm:$0xff]
    %v454 = vld [vmem:[%s19 + $0xb0] sm:$0xff]
    %v455 = vld [vmem:[%s19 + $0xb8] sm:$0xff]
    %v456 = vld [vmem:[%s19 + $0xc0] sm:$0xff]
    %v457 = vld [vmem:[%s19 + $0xc8] sm:$0xff]
    %v458 = vld [vmem:[%s19 + $0xd0] sm:$0xff]
    %v459 = vld [vmem:[%s19 + $0xd8] sm:$0xff]
    %v460 = vld [vmem:[%s19 + $0xe0] sm:$0xff]
    %v461 = vld [vmem:[%s19 + $0xe8] sm:$0xff]
    %v462 = vld [vmem:[%s19 + $0xf0] sm:$0xff]
    %v463 = vld [vmem:[%s19 + $0xf8] sm:$0xff]
    %v464 = vld [vmem:[%s19 + $0x100] sm:$0xff]
    %v465 = vld [vmem:[%s19 + $0x108] sm:$0xff]
    %v466 = vld [vmem:[%s19 + $0x110] sm:$0xff]
    %v467 = vld [vmem:[%s19 + $0x118] sm:$0xff]
    %v468 = vld [vmem:[%s19 + $0x120] sm:$0xff]
    %v469 = vld [vmem:[%s19 + $0x128] sm:$0xff]
    %v470 = vld [vmem:[%s19 + $0x130] sm:$0xff]
    %v471 = vld [vmem:[%s19 + $0x138] sm:$0xff]
    %v472 = vld [vmem:[%s19 + $0x140] sm:$0xff]
    %v473 = vld [vmem:[%s19 + $0x148] sm:$0xff]
    %v474 = vld [vmem:[%s19 + $0x150] sm:$0xff]
    %v475 = vld [vmem:[%s19 + $0x158] sm:$0xff]
    %v476 = vld [vmem:[%s19 + $0x160] sm:$0xff]
    %v477 = vld [vmem:[%s19 + $0x168] sm:$0xff]
    %v478 = vld [vmem:[%s19 + $0x170] sm:$0xff]
    %v479 = vld [vmem:[%s19 + $0x178] sm:$0xff]
    %v480 = vld [vmem:[%s19 + $0x180] sm:$0xff]
    %v481 = vld [vmem:[%s19 + $0x188] sm:$0xff]
    %v482 = vld [vmem:[%s19 + $0x190] sm:$0xff]
    %v483 = vld [vmem:[%s19 + $0x198] sm:$0xff]
    %v484 = vld [vmem:[%s19 + $0x1a0] sm:$0xff]
    %v485 = vld [vmem:[%s19 + $0x1a8] sm:$0xff]
    %v486 = vld [vmem:[%s19 + $0x1b0] sm:$0xff]
    %v487 = vld [vmem:[%s19 + $0x1b8] sm:$0xff]
    %v488 = vld [vmem:[%s19 + $0x1c0] sm:$0xff]
    %v489 = vld [vmem:[%s19 + $0x1c8] sm:$0xff]
    %v490 = vld [vmem:[%s19 + $0x1d0] sm:$0xff]
    %v491 = vld [vmem:[%s19 + $0x1d8] sm:$0xff]
    %v492 = vld [vmem:[%s19 + $0x1e0] sm:$0xff]
    %v493 = vld [vmem:[%s19 + $0x1e8] sm:$0xff]
    %v494 = vld [vmem:[%s19 + $0x1f0] sm:$0xff]
    %v495 = vld [vmem:[%s19 + $0x1f8] sm:$0xff]
    %v496 = vld [vmem:[%s21] sm:$0x1]
    %499 = vrot.lane.b32.xlu0 %v345, 24
    %v500 = vpop.permute.xlu0 %499
    %501 = vrot.lane.b32.xlu0 %v346, 24
    %v502 = vpop.permute.xlu0 %501
    %vm505 = vcmask 195584
    %v506 = vsel %vm505, %v402, %v500
    %v507 = vsel %vm505, %v405, %v502
    %v509 = vperm.slane %v431, 0
    %v510 = vperm.slane %v431, 1
    %v511 = vperm.slane %v431, 2
    %v512 = vperm.slane %v431, 3
    %vm517 = vcmask 392192
    %v519 = vsel %vm517, %v506, 0
    %v522 = vsel %vm517, %v507, 0
    %524 = vmatpush.msra.mxu0 0.0
    %525 = vmatpush.msra.mxu0 0.0
    %526 = vmatpush.msra.mxu0 0.0
    %527 = vmatpush.msra.mxu0 0.0
    %528 = vmatpush.msra.mxu0 0.0
    %529 = vmatpush.msra.mxu0 0.0
    %530 = vmatpush.msra.mxu0 0.0
    %531 = vmatpush.msra.mxu0 0.0
    %532 = vmatpush.msra.mxu0 0.0
    %533 = vmatpush.msra.mxu0 0.0
    %534 = vmatpush.msra.mxu0 %v427
    %535 = vmatpush.msra.mxu0 %v423
    %536 = vmatpush.msra.mxu0 %v419
    %537 = vmatpush.msra.mxu0 %v415
    %538 = vmatpush.msra.mxu0 %v411
    %539 = vmatpush.msra.mxu0 %v407
    %540 = vmatmul.f32.gmra.mxu0 %v519
    %v541 = vpop.f32.mrf.mxu0
    %v542 = vadd.f32 %v509, %v541
    %543 = vmatmul.f32.gmra.mxu0 %v522
    %v544 = vpop.f32.mrf.mxu0
    %v545 = vadd.f32 %v509, %v544
    %546 = vdwg.mxu0
    %547 = vmatpush.msra.mxu0 0.0
    %548 = vmatpush.msra.mxu0 0.0
    %549 = vmatpush.msra.mxu0 0.0
    %550 = vmatpush.msra.mxu0 0.0
    %551 = vmatpush.msra.mxu0 0.0
    %552 = vmatpush.msra.mxu0 0.0
    %553 = vmatpush.msra.mxu0 0.0
    %554 = vmatpush.msra.mxu0 0.0
    %555 = vmatpush.msra.mxu0 0.0
    %556 = vmatpush.msra.mxu0 0.0
    %557 = vmatpush.msra.mxu0 %v428
    %558 = vmatpush.msra.mxu0 %v424
    %559 = vmatpush.msra.mxu0 %v420
    %560 = vmatpush.msra.mxu0 %v416
    %561 = vmatpush.msra.mxu0 %v412
    %562 = vmatpush.msra.mxu0 %v408
    %563 = vmatmul.f32.gmra.mxu0 %v519
    %v564 = vpop.f32.mrf.mxu0
    %v565 = vadd.f32 %v510, %v564
    %566 = vmatmul.f32.gmra.mxu0 %v522
    %v567 = vpop.f32.mrf.mxu0
    %v568 = vadd.f32 %v510, %v567
    %569 = vdwg.mxu0
    %570 = vmatpush.msra.mxu0 0.0
    %571 = vmatpush.msra.mxu0 0.0
    %572 = vmatpush.msra.mxu0 0.0
    %573 = vmatpush.msra.mxu0 0.0
    %574 = vmatpush.msra.mxu0 0.0
    %575 = vmatpush.msra.mxu0 0.0
    %576 = vmatpush.msra.mxu0 0.0
    %577 = vmatpush.msra.mxu0 0.0
    %578 = vmatpush.msra.mxu0 0.0
    %579 = vmatpush.msra.mxu0 0.0
    %580 = vmatpush.msra.mxu0 %v429
    %581 = vmatpush.msra.mxu0 %v425
    %582 = vmatpush.msra.mxu0 %v421
    %583 = vmatpush.msra.mxu0 %v417
    %584 = vmatpush.msra.mxu0 %v413
    %585 = vmatpush.msra.mxu0 %v409
    %586 = vmatmul.f32.gmra.mxu0 %v519
    %v587 = vpop.f32.mrf.mxu0
    %v588 = vadd.f32 %v511, %v587
    %589 = vmatmul.f32.gmra.mxu0 %v522
    %v590 = vpop.f32.mrf.mxu0
    %v591 = vadd.f32 %v511, %v590
    %592 = vdwg.mxu0
    %593 = vmatpush.msra.mxu0 0.0
    %594 = vmatpush.msra.mxu0 0.0
    %595 = vmatpush.msra.mxu0 0.0
    %596 = vmatpush.msra.mxu0 0.0
    %597 = vmatpush.msra.mxu0 0.0
    %598 = vmatpush.msra.mxu0 0.0
    %599 = vmatpush.msra.mxu0 0.0
    %600 = vmatpush.msra.mxu0 0.0
    %601 = vmatpush.msra.mxu0 0.0
    %602 = vmatpush.msra.mxu0 0.0
    %603 = vmatpush.msra.mxu0 %v430
    %604 = vmatpush.msra.mxu0 %v426
    %605 = vmatpush.msra.mxu0 %v422
    %606 = vmatpush.msra.mxu0 %v418
    %607 = vmatpush.msra.mxu0 %v414
    %608 = vmatpush.msra.mxu0 %v410
    %609 = vmatmul.f32.gmra.mxu0 %v519
    %v610 = vpop.f32.mrf.mxu0
    %v611 = vadd.f32 %v512, %v610
    %612 = vmatmul.f32.gmra.mxu0 %v522
    %v613 = vpop.f32.mrf.mxu0
    %v614 = vadd.f32 %v512, %v613
    %615 = vdwg.mxu0
    %v616 = vmax.f32 %v542, 0.0
    %v617 = vmax.f32 %v565, 0.0
    %v618 = vmax.f32 %v588, 0.0
    %v619 = vmax.f32 %v611, 0.0
    %v620 = vmax.f32 %v545, 0.0
    %v621 = vmax.f32 %v568, 0.0
    %v622 = vmax.f32 %v591, 0.0
    %v623 = vmax.f32 %v614, 0.0
    %v625 = vperm.slane %v496, 0
    %627 = vmatpush.msra.mxu0 %v447
    %628 = vmatpush.msra.mxu0 %v446
    %629 = vmatpush.msra.mxu0 %v445
    %630 = vmatpush.msra.mxu0 %v444
    %631 = vmatpush.msra.mxu0 %v443
    %632 = vmatpush.msra.mxu0 %v442
    %633 = vmatpush.msra.mxu0 %v441
    %634 = vmatpush.msra.mxu0 %v440
    %635 = vmatpush.msra.mxu0 %v439
    %636 = vmatpush.msra.mxu0 %v438
    %637 = vmatpush.msra.mxu0 %v437
    %638 = vmatpush.msra.mxu0 %v436
    %639 = vmatpush.msra.mxu0 %v435
    %640 = vmatpush.msra.mxu0 %v434
    %641 = vmatpush.msra.mxu0 %v433
    %642 = vmatpush.msra.mxu0 %v432
    %643 = vmatmul.f32.gmra.mxu0 %v616
    %v644 = vpop.f32.mrf.mxu0
    %v645 = vadd.f32 %v625, %v644
    %646 = vmatmul.f32.gmra.mxu0 %v620
    %v647 = vpop.f32.mrf.mxu0
    %v648 = vadd.f32 %v625, %v647
    %649 = vdwg.mxu0
    %650 = vmatpush.msra.mxu0 %v463
    %651 = vmatpush.msra.mxu0 %v462
    %652 = vmatpush.msra.mxu0 %v461
    %653 = vmatpush.msra.mxu0 %v460
    %654 = vmatpush.msra.mxu0 %v459
    %655 = vmatpush.msra.mxu0 %v458
    %656 = vmatpush.msra.mxu0 %v457
    %657 = vmatpush.msra.mxu0 %v456
    %658 = vmatpush.msra.mxu0 %v455
    %659 = vmatpush.msra.mxu0 %v454
    %660 = vmatpush.msra.mxu0 %v453
    %661 = vmatpush.msra.mxu0 %v452
    %662 = vmatpush.msra.mxu0 %v451
    %663 = vmatpush.msra.mxu0 %v450
    %664 = vmatpush.msra.mxu0 %v449
    %665 = vmatpush.msra.mxu0 %v448
    %666 = vmatmul.f32.gmra.mxu0 %v617
    %v667 = vpop.f32.mrf.mxu0
    %v668 = vadd.f32 %v645, %v667
    %669 = vmatmul.f32.gmra.mxu0 %v621
    %v670 = vpop.f32.mrf.mxu0
    %v671 = vadd.f32 %v648, %v670
    %672 = vdwg.mxu0
    %673 = vmatpush.msra.mxu0 %v479
    %674 = vmatpush.msra.mxu0 %v478
    %675 = vmatpush.msra.mxu0 %v477
    %676 = vmatpush.msra.mxu0 %v476
    %677 = vmatpush.msra.mxu0 %v475
    %678 = vmatpush.msra.mxu0 %v474
    %679 = vmatpush.msra.mxu0 %v473
    %680 = vmatpush.msra.mxu0 %v472
    %681 = vmatpush.msra.mxu0 %v471
    %682 = vmatpush.msra.mxu0 %v470
    %683 = vmatpush.msra.mxu0 %v469
    %684 = vmatpush.msra.mxu0 %v468
    %685 = vmatpush.msra.mxu0 %v467
    %686 = vmatpush.msra.mxu0 %v466
    %687 = vmatpush.msra.mxu0 %v465
    %688 = vmatpush.msra.mxu0 %v464
    %689 = vmatmul.f32.gmra.mxu0 %v618
    %v690 = vpop.f32.mrf.mxu0
    %v691 = vadd.f32 %v668, %v690
    %692 = vmatmul.f32.gmra.mxu0 %v622
    %v693 = vpop.f32.mrf.mxu0
    %v694 = vadd.f32 %v671, %v693
    %695 = vdwg.mxu0
    %696 = vmatpush.msra.mxu0 %v495
    %697 = vmatpush.msra.mxu0 %v494
    %698 = vmatpush.msra.mxu0 %v493
    %699 = vmatpush.msra.mxu0 %v492
    %700 = vmatpush.msra.mxu0 %v491
    %701 = vmatpush.msra.mxu0 %v490
    %702 = vmatpush.msra.mxu0 %v489
    %703 = vmatpush.msra.mxu0 %v488
    %704 = vmatpush.msra.mxu0 %v487
    %705 = vmatpush.msra.mxu0 %v486
    %706 = vmatpush.msra.mxu0 %v485
    %707 = vmatpush.msra.mxu0 %v484
    %708 = vmatpush.msra.mxu0 %v483
    %709 = vmatpush.msra.mxu0 %v482
    %710 = vmatpush.msra.mxu0 %v481
    %711 = vmatpush.msra.mxu0 %v480
    %712 = vmatmul.f32.gmra.mxu0 %v619
    %v713 = vpop.f32.mrf.mxu0
    %v714 = vadd.f32 %v691, %v713
    %715 = vmatmul.f32.gmra.mxu0 %v623
    %v716 = vpop.f32.mrf.mxu0
    %v717 = vadd.f32 %v694, %v716
    %718 = vdwg.mxu0
    %v719 = vsel %vm505, %v714, 0.0
    %720 = vadd.xlane.f32.xlu0 %v719
    %v721 = vpop.xlane.xlu0 %720
    %vm722 = vcmask 191488
    %v723 = vsel %vm722, %v717, 0.0
    %724 = vadd.xlane.f32.xlu0 %v723
    %v725 = vpop.xlane.xlu0 %724
    %v726 = vrcp.pop 24.0
    %v727 = vmul.f32 24.0, %v726
    %v728 = vsub.f32 1.0, %v727
    %v729 = vmul.f32 %v726, %v728
    %v730 = vadd.f32 %v726, %v729
    %vm731 = vweird.f32 %v726
    %v732 = vsel %vm731, %v726, %v730
    %v733 = vmul.f32 %v721, %v732
    %v734 = vmul.f32 %v725, %v732
    %v735 = vsub.f32 %v714, %v733
    %v736 = vsub.f32 %v717, %v734
    %v737 = vmul.f32 %v735, %v735
    %v738 = vmul.f32 %v736, %v736
    %v739 = vsel %vm505, %v737, 0.0
    %740 = vadd.xlane.f32.xlu0 %v739
    %v741 = vpop.xlane.xlu0 %740
    %v742 = vsel %vm722, %v738, 0.0
    %743 = vadd.xlane.f32.xlu0 %v742
    %v744 = vpop.xlane.xlu0 %743
    %v745 = vmul.f32 %v741, %v732
    %v746 = vmul.f32 %v744, %v732
    %v747 = vadd.f32 %v745, 1e-05
    %v748 = vadd.f32 %v746, 1e-05
    %v749 = vrsqrt.pop %v747
    %v750 = vmul.f32 %v749, %v747
    %v751 = vmul.f32 %v750, %v749
    %v752 = vmul.f32 0.5, %v751
    %v753 = vsub.f32 1.5, %v752
    %v754 = vmul.f32 %v749, %v753
    %vm755 = vweird.f32 %v747
    %vm756 = vweird.f32 %v749
    %vm757 = vmor %vm755, %vm756
    %v758 = vsel %vm757, %v749, %v754
    %v759 = vrsqrt.pop %v748
    %v760 = vmul.f32 %v759, %v748
    %v761 = vmul.f32 %v760, %v759
    %v762 = vmul.f32 0.5, %v761
    %v763 = vsub.f32 1.5, %v762
    %v764 = vmul.f32 %v759, %v763
    %vm765 = vweird.f32 %v748
    %vm766 = vweird.f32 %v759
    %vm767 = vmor %vm765, %vm766
    %v768 = vsel %vm767, %v759, %v764
    %v769 = vmul.f32 %v735, %v758
    %v770 = vmul.f32 %v736, %v768
    %v771 = vmax.f32 %v769, 0.0
    %v772 = vmax.f32 %v770, 0.0
    %v773 = vadd.f32 %v345, %v771
    %v774 = vadd.f32 %v346, %v772
    %v775 = vld [vmem:[%s23] sm:$0xff]
    %v776 = vld [vmem:[%s23 + $0x8] sm:$0xff]
    %v777 = vld [vmem:[%s23 + $0x10] sm:$0xff]
    %v778 = vld [vmem:[%s23 + $0x18] sm:$0xff]
    %v779 = vld [vmem:[%s23 + $0x20] sm:$0xff]
    %v780 = vld [vmem:[%s23 + $0x28] sm:$0xff]
    %v781 = vld [vmem:[%s23 + $0x30] sm:$0xff]
    %v782 = vld [vmem:[%s23 + $0x38] sm:$0xff]
    %v783 = vld [vmem:[%s23 + $0x40] sm:$0xff]
    %v784 = vld [vmem:[%s27] sm:$0xff]
    %v785 = vld [vmem:[%s27 + $0x8] sm:$0xff]
    %v786 = vld [vmem:[%s27 + $0x10] sm:$0xff]
    %v787 = vld [vmem:[%s27 + $0x18] sm:$0xff]
    %v788 = vld [vmem:[%s27 + $0x20] sm:$0xff]
    %v789 = vld [vmem:[%s27 + $0x28] sm:$0xff]
    %v790 = vld [vmem:[#allocation11] sm:$0xff]
    %v791 = vld [vmem:[#allocation11 + $0x8] sm:$0xff]
    %v792 = vld [vmem:[#allocation11 + $0x10] sm:$0xff]
    %v793 = vld [vmem:[#allocation11 + $0x18] sm:$0xff]
    %v794 = vld [vmem:[#allocation11 + $0x20] sm:$0xff]
    %v795 = vld [vmem:[#allocation11 + $0x28] sm:$0xff]
    %v796 = vld [vmem:[%s25] sm:$0x1]
    %v797 = vld [vmem:[%s29] sm:$0x1]
    %v798 = vld [vmem:[#allocation12] sm:$0x1]
    %vm799 = vcmask 588800
    %v801 = vsel %vm799, 0.0, 0
    %803 = vmatpush.msra.mxu0 0.0
    %804 = vmatpush.msra.mxu0 0.0
    %805 = vmatpush.msra.mxu0 0.0
    %806 = vmatpush.msra.mxu0 0.0
    %807 = vmatpush.msra.mxu0 0.0
    %808 = vmatpush.msra.mxu0 0.0
    %809 = vmatpush.msra.mxu0 0.0
    %810 = vmatpush.msra.mxu0 %v783
    %811 = vmatpush.msra.mxu0 %v782
    %812 = vmatpush.msra.mxu0 %v781
    %813 = vmatpush.msra.mxu0 %v780
    %814 = vmatpush.msra.mxu0 %v779
    %815 = vmatpush.msra.mxu0 %v778
    %816 = vmatpush.msra.mxu0 %v777
    %817 = vmatpush.msra.mxu0 %v776
    %818 = vmatpush.msra.mxu0 %v775
    %819 = vmatmul.f32.gmra.mxu0 %v801
    %v820 = vpop.f32.mrf.mxu0
    %v821 = vadd.f32 %v796, %v820
    %822 = vdwg.mxu0
    %v823 = vsub.f32 0.0, %v821
    %v824 = vmul.f32 %v823, 1.442695
    %v825 = vpow.pop %v824
    %v826 = vadd.f32 %v825, 1.0
    %v827 = vrcp.pop %v826
    %v828 = vmul.f32 %v826, %v827
    %v829 = vsub.f32 1.0, %v828
    %v830 = vmul.f32 %v827, %v829
    %v831 = vadd.f32 %v827, %v830
    %vm832 = vweird.f32 %v826
    %vm833 = vweird.f32 %v827
    %vm834 = vmor %vm832, %vm833
    %v835 = vsel %vm834, %v827, %v831
    %v836 = vand.u32 2147483647, %v826
    %vm837 = vcmp.eq.f32.partialorder %v836, 8.507059e+37
    %v838 = vand.u32 %v826, 2147483648
    %v839 = vor.u32 1.1754944e-38, %v838
    %v840 = vsel %vm837, %v839, %v835
    %v841 = vmul.f32 1.0, %v840
    %v842 = vtanh.pop %v821
    %v843 = vmul.f32 %v841, 0.0
    %845 = vrot.lane.b32.xlu0 %v842, 80
    %v846 = vpop.permute.xlu0 %845
    %v848 = vmul.f32 %v841, %v846
    %850 = vrot.lane.b32.xlu0 %v848, 24
    %v851 = vpop.permute.xlu0 %850
    %v853 = vadd.f32 %v843, %v851
    %v854 = vtanh.pop %v853
    %856 = vrot.lane.b32.xlu0 %v854, 48
    %v857 = vpop.permute.xlu0 %856
    %v859 = vmul.f32 %v841, %v857
    %861 = vrot.lane.b32.xlu0 %v859, 56
    %v862 = vpop.permute.xlu0 %861
    %v864 = vsel %vm505, %v862, 0.0
    %v866 = vsel %vm517, %v864, 0
    %868 = vmatpush.msra.mxu0 0.0
    %869 = vmatpush.msra.mxu0 0.0
    %870 = vmatpush.msra.mxu0 0.0
    %871 = vmatpush.msra.mxu0 0.0
    %872 = vmatpush.msra.mxu0 0.0
    %873 = vmatpush.msra.mxu0 0.0
    %874 = vmatpush.msra.mxu0 0.0
    %875 = vmatpush.msra.mxu0 0.0
    %876 = vmatpush.msra.mxu0 0.0
    %877 = vmatpush.msra.mxu0 0.0
    %878 = vmatpush.msra.mxu0 %v789
    %879 = vmatpush.msra.mxu0 %v788
    %880 = vmatpush.msra.mxu0 %v787
    %881 = vmatpush.msra.mxu0 %v786
    %882 = vmatpush.msra.mxu0 %v785
    %883 = vmatpush.msra.mxu0 %v784
    %884 = vmatmul.f32.gmra.mxu0 %v866
    %v885 = vpop.f32.mrf.mxu0
    %v886 = vadd.f32 %v797, %v885
    %887 = vdwg.mxu0
    %v888 = vsub.f32 0.0, %v886
    %v889 = vmul.f32 %v888, 1.442695
    %v890 = vpow.pop %v889
    %v891 = vadd.f32 %v890, 1.0
    %v892 = vrcp.pop %v891
    %v893 = vmul.f32 %v891, %v892
    %v894 = vsub.f32 1.0, %v893
    %v895 = vmul.f32 %v892, %v894
    %v896 = vadd.f32 %v892, %v895
    %vm897 = vweird.f32 %v891
    %vm898 = vweird.f32 %v892
    %vm899 = vmor %vm897, %vm898
    %v900 = vsel %vm899, %v892, %v896
    %v901 = vand.u32 2147483647, %v891
    %vm902 = vcmp.eq.f32.partialorder %v901, 8.507059e+37
    %v903 = vand.u32 %v891, 2147483648
    %v904 = vor.u32 1.1754944e-38, %v903
    %v905 = vsel %vm902, %v904, %v900
    %v906 = vmul.f32 1.0, %v905
    %v907 = vtanh.pop %v886
    %v908 = vmul.f32 %v906, 0.0
    %910 = vrot.lane.b32.xlu0 %v907, 80
    %v911 = vpop.permute.xlu0 %910
    %v913 = vmul.f32 %v906, %v911
    %915 = vrot.lane.b32.xlu0 %v913, 24
    %v916 = vpop.permute.xlu0 %915
    %v918 = vadd.f32 %v908, %v916
    %v919 = vtanh.pop %v918
    %921 = vrot.lane.b32.xlu0 %v919, 48
    %v922 = vpop.permute.xlu0 %921
    %v924 = vmul.f32 %v906, %v922
    %926 = vrot.lane.b32.xlu0 %v924, 56
    %v927 = vpop.permute.xlu0 %926
    %v929 = vsel %vm505, %v927, 0.0
    %v931 = vsel %vm517, %v929, 0
    %933 = vmatpush.msra.mxu0 0.0
    %934 = vmatpush.msra.mxu0 0.0
    %935 = vmatpush.msra.mxu0 0.0
    %936 = vmatpush.msra.mxu0 0.0
    %937 = vmatpush.msra.mxu0 0.0
    %938 = vmatpush.msra.mxu0 0.0
    %939 = vmatpush.msra.mxu0 0.0
    %940 = vmatpush.msra.mxu0 0.0
    %941 = vmatpush.msra.mxu0 0.0
    %942 = vmatpush.msra.mxu0 0.0
    %943 = vmatpush.msra.mxu0 %v795
    %944 = vmatpush.msra.mxu0 %v794
    %945 = vmatpush.msra.mxu0 %v793
    %946 = vmatpush.msra.mxu0 %v792
    %947 = vmatpush.msra.mxu0 %v791
    %948 = vmatpush.msra.mxu0 %v790
    %949 = vmatmul.f32.gmra.mxu0 %v931
    %v950 = vpop.f32.mrf.mxu0
    %v951 = vadd.f32 %v798, %v950
    %952 = vdwg.mxu0
    %v953 = vsub.f32 0.0, %v951
    %v954 = vmul.f32 %v953, 1.442695
    %v955 = vpow.pop %v954
    %v956 = vadd.f32 %v955, 1.0
    %v957 = vrcp.pop %v956
    %v958 = vmul.f32 %v956, %v957
    %v959 = vsub.f32 1.0, %v958
    %v960 = vmul.f32 %v957, %v959
    %v961 = vadd.f32 %v957, %v960
    %vm962 = vweird.f32 %v956
    %vm963 = vweird.f32 %v957
    %vm964 = vmor %vm962, %vm963
    %v965 = vsel %vm964, %v957, %v961
    %v966 = vand.u32 2147483647, %v956
    %vm967 = vcmp.eq.f32.partialorder %v966, 8.507059e+37
    %v968 = vand.u32 %v956, 2147483648
    %v969 = vor.u32 1.1754944e-38, %v968
    %v970 = vsel %vm967, %v969, %v965
    %v971 = vmul.f32 1.0, %v970
    %v972 = vtanh.pop %v951
    %v973 = vmul.f32 %v971, 0.0
    %975 = vrot.lane.b32.xlu0 %v972, 80
    %v976 = vpop.permute.xlu0 %975
    %v978 = vmul.f32 %v971, %v976
    %980 = vrot.lane.b32.xlu0 %v978, 24
    %v981 = vpop.permute.xlu0 %980
    %v983 = vadd.f32 %v973, %v981
    %v984 = vtanh.pop %v983
    %986 = vrot.lane.b32.xlu0 %v984, 48
    %v987 = vpop.permute.xlu0 %986
    %v989 = vmul.f32 %v971, %v987
    %991 = vrot.lane.b32.xlu0 %v989, 56
    %v992 = vpop.permute.xlu0 %991
    %v993 = vsel %vm505, %v992, 0
    %v996 = vsel %vm505, %v302, 0
    %998 = vmatpush.xpose.msra.mxu0 0.0
    %999 = vmatpush.xpose.msra.mxu0 0.0
    %1000 = vmatpush.xpose.msra.mxu0 0.0
    %1001 = vmatpush.xpose.msra.mxu0 0.0
    %1002 = vmatpush.xpose.msra.mxu0 0.0
    %1003 = vmatpush.xpose.msra.mxu0 0.0
    %1004 = vmatpush.xpose.msra.mxu0 0.0
    %1005 = vmatpush.xpose.msra.mxu0 0.0
    %1006 = vmatpush.xpose.msra.mxu0 0.0
    %1007 = vmatpush.xpose.msra.mxu0 0.0
    %1008 = vmatpush.xpose.msra.mxu0 0.0
    %1009 = vmatpush.xpose.msra.mxu0 0.0
    %1010 = vmatpush.xpose.msra.mxu0 0.0
    %1011 = vmatpush.xpose.msra.mxu0 0.0
    %1012 = vmatpush.xpose.msra.mxu0 0.0
    %1013 = vmatpush.xpose.msra.mxu0 %v996
    %1014 = vmatmul.f32.gmra.mxu0 %v993
    %v1015 = vpop.f32.mrf.mxu0
    %v1016 = vadd.f32 0.0, %v1015
    %1017 = vdwg.mxu0
    %vm1018 = vcmask 57344
    %v1019 = vsel %vm1018, %v1016, -inf
    %1020 = vmax.xlane.f32.xlu0 %v1019
    %v1021 = vpop.xlane.xlu0 %1020
    %v1022 = vsub.f32 %v1016, %v1021
    %v1023 = vmul.f32 %v1022, 1.442695
    %v1024 = vpow.pop %v1023
    %v1025 = vsel %vm1018, %v1024, 0.0
    %1026 = vadd.xlane.f32.xlu0 %v1025
    %v1027 = vpop.xlane.xlu0 %1026
    %v1028 = vrcp.pop %v1027
    %v1029 = vmul.f32 %v1027, %v1028
    %v1030 = vsub.f32 1.0, %v1029
    %v1031 = vmul.f32 %v1028, %v1030
    %v1032 = vadd.f32 %v1028, %v1031
    %vm1033 = vweird.f32 %v1027
    %vm1034 = vweird.f32 %v1028
    %vm1035 = vmor %vm1033, %vm1034
    %v1036 = vsel %vm1035, %v1028, %v1032
    %v1037 = vand.u32 2147483647, %v1027
    %vm1038 = vcmp.eq.f32.partialorder %v1037, 8.507059e+37
    %v1039 = vand.u32 %v1027, 2147483648
    %v1040 = vor.u32 1.1754944e-38, %v1039
    %v1041 = vsel %vm1038, %v1040, %v1036
    %v1042 = vmul.f32 %v1024, %v1041
    %v1044 = vsel %vm377, %v1042, 0
    %1046 = vmatpush.msra.mxu0 0.0
    %1047 = vmatpush.msra.mxu0 0.0
    %1048 = vmatpush.msra.mxu0 0.0
    %1049 = vmatpush.msra.mxu0 0.0
    %1050 = vmatpush.msra.mxu0 0.0
    %1051 = vmatpush.msra.mxu0 0.0
    %1052 = vmatpush.msra.mxu0 0.0
    %1053 = vmatpush.msra.mxu0 0.0
    %1054 = vmatpush.msra.mxu0 0.0
    %1055 = vmatpush.msra.mxu0 0.0
    %1056 = vmatpush.msra.mxu0 0.0
    %1057 = vmatpush.msra.mxu0 0.0
    %1058 = vmatpush.msra.mxu0 0.0
    %1059 = vmatpush.msra.mxu0 0.0
    %1060 = vmatpush.msra.mxu0 0.0
    %1061 = vmatpush.msra.mxu0 %v302
    %1062 = vmatmul.f32.gmra.mxu0 %v1044
    %v1063 = vpop.f32.mrf.mxu0
    %v1064 = vadd.f32 0.0, %v1063
    %1065 = vdwg.mxu0
    %1068 = vrot.lane.b32.xlu0 %v1064, 24
    %v1069 = vpop.permute.xlu0 %1068
    %v1071 = vsel %vm505, %v992, %v1069
    %1072 = vrot.lane.b32.xlu0 %v859, 104
    %v1073 = vpop.permute.xlu0 %1072
    %v1075 = vsel %vm517, %v1071, %v1073
    %v1077 = vsel %vm799, %v1075, 0
    %1079 = vmatpush.msra.mxu0 0.0
    %1080 = vmatpush.msra.mxu0 0.0
    %1081 = vmatpush.msra.mxu0 0.0
    %1082 = vmatpush.msra.mxu0 0.0
    %1083 = vmatpush.msra.mxu0 0.0
    %1084 = vmatpush.msra.mxu0 0.0
    %1085 = vmatpush.msra.mxu0 0.0
    %1086 = vmatpush.msra.mxu0 %v783
    %1087 = vmatpush.msra.mxu0 %v782
    %1088 = vmatpush.msra.mxu0 %v781
    %1089 = vmatpush.msra.mxu0 %v780
    %1090 = vmatpush.msra.mxu0 %v779
    %1091 = vmatpush.msra.mxu0 %v778
    %1092 = vmatpush.msra.mxu0 %v777
    %1093 = vmatpush.msra.mxu0 %v776
    %1094 = vmatpush.msra.mxu0 %v775
    %1095 = vmatmul.f32.gmra.mxu0 %v1077
    %v1096 = vpop.f32.mrf.mxu0
    %v1097 = vadd.f32 %v796, %v1096
    %1098 = vdwg.mxu0
    %v1099 = vsub.f32 0.0, %v1097
    %v1100 = vmul.f32 %v1099, 1.442695
    %v1101 = vpow.pop %v1100
    %v1102 = vadd.f32 %v1101, 1.0
    %v1103 = vrcp.pop %v1102
    %v1104 = vmul.f32 %v1102, %v1103
    %v1105 = vsub.f32 1.0, %v1104
    %v1106 = vmul.f32 %v1103, %v1105
    %v1107 = vadd.f32 %v1103, %v1106
    %vm1108 = vweird.f32 %v1102
    %vm1109 = vweird.f32 %v1103
    %vm1110 = vmor %vm1108, %vm1109
    %v1111 = vsel %vm1110, %v1103, %v1107
    %v1112 = vand.u32 2147483647, %v1102
    %vm1113 = vcmp.eq.f32.partialorder %v1112, 8.507059e+37
    %v1114 = vand.u32 %v1102, 2147483648
    %v1115 = vor.u32 1.1754944e-38, %v1114
    %v1116 = vsel %vm1113, %v1115, %v1111
    %v1117 = vmul.f32 1.0, %v1116
    %v1118 = vtanh.pop %v1097
    %v1119 = vmul.f32 %v1117, %v853
    %1121 = vrot.lane.b32.xlu0 %v1118, 80
    %v1122 = vpop.permute.xlu0 %1121
    %v1124 = vmul.f32 %v1117, %v1122
    %1126 = vrot.lane.b32.xlu0 %v1124, 24
    %v1127 = vpop.permute.xlu0 %1126
    %v1129 = vadd.f32 %v1119, %v1127
    %v1130 = vtanh.pop %v1129
    %1132 = vrot.lane.b32.xlu0 %v1130, 48
    %v1133 = vpop.permute.xlu0 %1132
    %v1135 = vmul.f32 %v1117, %v1133
    %1137 = vrot.lane.b32.xlu0 %v1135, 56
    %v1138 = vpop.permute.xlu0 %1137
    %1140 = vrot.lane.b32.xlu0 %v924, 80
    %v1141 = vpop.permute.xlu0 %1140
    %v1143 = vsel %vm505, %v1138, %v1141
    %v1145 = vsel %vm517, %v1143, 0
    %1147 = vmatpush.msra.mxu0 0.0
    %1148 = vmatpush.msra.mxu0 0.0
    %1149 = vmatpush.msra.mxu0 0.0
    %1150 = vmatpush.msra.mxu0 0.0
    %1151 = vmatpush.msra.mxu0 0.0
    %1152 = vmatpush.msra.mxu0 0.0
    %1153 = vmatpush.msra.mxu0 0.0
    %1154 = vmatpush.msra.mxu0 0.0
    %1155 = vmatpush.msra.mxu0 0.0
    %1156 = vmatpush.msra.mxu0 0.0
    %1157 = vmatpush.msra.mxu0 %v789
    %1158 = vmatpush.msra.mxu0 %v788
    %1159 = vmatpush.msra.mxu0 %v787
    %1160 = vmatpush.msra.mxu0 %v786
    %1161 = vmatpush.msra.mxu0 %v785
    %1162 = vmatpush.msra.mxu0 %v784
    %1163 = vmatmul.f32.gmra.mxu0 %v1145
    %v1164 = vpop.f32.mrf.mxu0
    %v1165 = vadd.f32 %v797, %v1164
    %1166 = vdwg.mxu0
    %v1167 = vsub.f32 0.0, %v1165
    %v1168 = vmul.f32 %v1167, 1.442695
    %v1169 = vpow.pop %v1168
    %v1170 = vadd.f32 %v1169, 1.0
    %v1171 = vrcp.pop %v1170
    %v1172 = vmul.f32 %v1170, %v1171
    %v1173 = vsub.f32 1.0, %v1172
    %v1174 = vmul.f32 %v1171, %v1173
    %v1175 = vadd.f32 %v1171, %v1174
    %vm1176 = vweird.f32 %v1170
    %vm1177 = vweird.f32 %v1171
    %vm1178 = vmor %vm1176, %vm1177
    %v1179 = vsel %vm1178, %v1171, %v1175
    %v1180 = vand.u32 2147483647, %v1170
    %vm1181 = vcmp.eq.f32.partialorder %v1180, 8.507059e+37
    %v1182 = vand.u32 %v1170, 2147483648
    %v1183 = vor.u32 1.1754944e-38, %v1182
    %v1184 = vsel %vm1181, %v1183, %v1179
    %v1185 = vmul.f32 1.0, %v1184
    %v1186 = vtanh.pop %v1165
    %v1187 = vmul.f32 %v1185, %v918
    %1189 = vrot.lane.b32.xlu0 %v1186, 80
    %v1190 = vpop.permute.xlu0 %1189
    %v1192 = vmul.f32 %v1185, %v1190
    %1194 = vrot.lane.b32.xlu0 %v1192, 24
    %v1195 = vpop.permute.xlu0 %1194
    %v1197 = vadd.f32 %v1187, %v1195
    %v1198 = vtanh.pop %v1197
    %1200 = vrot.lane.b32.xlu0 %v1198, 48
    %v1201 = vpop.permute.xlu0 %1200
    %v1203 = vmul.f32 %v1185, %v1201
    %1205 = vrot.lane.b32.xlu0 %v1203, 56
    %v1206 = vpop.permute.xlu0 %1205
    %1208 = vrot.lane.b32.xlu0 %v989, 80
    %v1209 = vpop.permute.xlu0 %1208
    %v1211 = vsel %vm505, %v1206, %v1209
    %v1213 = vsel %vm517, %v1211, 0
    %1215 = vmatpush.msra.mxu0 0.0
    %1216 = vmatpush.msra.mxu0 0.0
    %1217 = vmatpush.msra.mxu0 0.0
    %1218 = vmatpush.msra.mxu0 0.0
    %1219 = vmatpush.msra.mxu0 0.0
    %1220 = vmatpush.msra.mxu0 0.0
    %1221 = vmatpush.msra.mxu0 0.0
    %1222 = vmatpush.msra.mxu0 0.0
    %1223 = vmatpush.msra.mxu0 0.0
    %1224 = vmatpush.msra.mxu0 0.0
    %1225 = vmatpush.msra.mxu0 %v795
    %1226 = vmatpush.msra.mxu0 %v794
    %1227 = vmatpush.msra.mxu0 %v793
    %1228 = vmatpush.msra.mxu0 %v792
    %1229 = vmatpush.msra.mxu0 %v791
    %1230 = vmatpush.msra.mxu0 %v790
    %1231 = vmatmul.f32.gmra.mxu0 %v1213
    %v1232 = vpop.f32.mrf.mxu0
    %v1233 = vadd.f32 %v798, %v1232
    %1234 = vdwg.mxu0
    %v1235 = vsub.f32 0.0, %v1233
    %v1236 = vmul.f32 %v1235, 1.442695
    %v1237 = vpow.pop %v1236
    %v1238 = vadd.f32 %v1237, 1.0
    %v1239 = vrcp.pop %v1238
    %v1240 = vmul.f32 %v1238, %v1239
    %v1241 = vsub.f32 1.0, %v1240
    %v1242 = vmul.f32 %v1239, %v1241
    %v1243 = vadd.f32 %v1239, %v1242
    %vm1244 = vweird.f32 %v1238
    %vm1245 = vweird.f32 %v1239
    %vm1246 = vmor %vm1244, %vm1245
    %v1247 = vsel %vm1246, %v1239, %v1243
    %v1248 = vand.u32 2147483647, %v1238
    %vm1249 = vcmp.eq.f32.partialorder %v1248, 8.507059e+37
    %v1250 = vand.u32 %v1238, 2147483648
    %v1251 = vor.u32 1.1754944e-38, %v1250
    %v1252 = vsel %vm1249, %v1251, %v1247
    %v1253 = vmul.f32 1.0, %v1252
    %v1254 = vtanh.pop %v1233
    %v1255 = vmul.f32 %v1253, %v983
    %1257 = vrot.lane.b32.xlu0 %v1254, 80
    %v1258 = vpop.permute.xlu0 %1257
    %v1260 = vmul.f32 %v1253, %v1258
    %1262 = vrot.lane.b32.xlu0 %v1260, 24
    %v1263 = vpop.permute.xlu0 %1262
    %v1265 = vadd.f32 %v1255, %v1263
    %v1266 = vtanh.pop %v1265
    %1268 = vrot.lane.b32.xlu0 %v1266, 48
    %v1269 = vpop.permute.xlu0 %1268
    %v1271 = vmul.f32 %v1253, %v1269
    %1273 = vrot.lane.b32.xlu0 %v1271, 56
    %v1274 = vpop.permute.xlu0 %1273
    %v1275 = vsel %vm505, %v1274, 0
    %1277 = vmatpush.xpose.msra.mxu0 0.0
    %1278 = vmatpush.xpose.msra.mxu0 0.0
    %1279 = vmatpush.xpose.msra.mxu0 0.0
    %1280 = vmatpush.xpose.msra.mxu0 0.0
    %1281 = vmatpush.xpose.msra.mxu0 0.0
    %1282 = vmatpush.xpose.msra.mxu0 0.0
    %1283 = vmatpush.xpose.msra.mxu0 0.0
    %1284 = vmatpush.xpose.msra.mxu0 0.0
    %1285 = vmatpush.xpose.msra.mxu0 0.0
    %1286 = vmatpush.xpose.msra.mxu0 0.0
    %1287 = vmatpush.xpose.msra.mxu0 0.0
    %1288 = vmatpush.xpose.msra.mxu0 0.0
    %1289 = vmatpush.xpose.msra.mxu0 0.0
    %1290 = vmatpush.xpose.msra.mxu0 0.0
    %1291 = vmatpush.xpose.msra.mxu0 0.0
    %1292 = vmatpush.xpose.msra.mxu0 %v996
    %1293 = vmatmul.f32.gmra.mxu0 %v1275
    %v1294 = vpop.f32.mrf.mxu0
    %v1295 = vadd.f32 0.0, %v1294
    %1296 = vdwg.mxu0
    %v1297 = vsel %vm1018, %v1295, -inf
    %1298 = vmax.xlane.f32.xlu0 %v1297
    %v1299 = vpop.xlane.xlu0 %1298
    %v1300 = vsub.f32 %v1295, %v1299
    %v1301 = vmul.f32 %v1300, 1.442695
    %v1302 = vpow.pop %v1301
    %v1303 = vsel %vm1018, %v1302, 0.0
    %1304 = vadd.xlane.f32.xlu0 %v1303
    %v1305 = vpop.xlane.xlu0 %1304
    %v1306 = vrcp.pop %v1305
    %v1307 = vmul.f32 %v1305, %v1306
    %v1308 = vsub.f32 1.0, %v1307
    %v1309 = vmul.f32 %v1306, %v1308
    %v1310 = vadd.f32 %v1306, %v1309
    %vm1311 = vweird.f32 %v1305
    %vm1312 = vweird.f32 %v1306
    %vm1313 = vmor %vm1311, %vm1312
    %v1314 = vsel %vm1313, %v1306, %v1310
    %v1315 = vand.u32 2147483647, %v1305
    %vm1316 = vcmp.eq.f32.partialorder %v1315, 8.507059e+37
    %v1317 = vand.u32 %v1305, 2147483648
    %v1318 = vor.u32 1.1754944e-38, %v1317
    %v1319 = vsel %vm1316, %v1318, %v1314
    %v1320 = vmul.f32 %v1302, %v1319
    %v1322 = vsel %vm377, %v1320, 0
    %1324 = vmatpush.msra.mxu0 0.0
    %1325 = vmatpush.msra.mxu0 0.0
    %1326 = vmatpush.msra.mxu0 0.0
    %1327 = vmatpush.msra.mxu0 0.0
    %1328 = vmatpush.msra.mxu0 0.0
    %1329 = vmatpush.msra.mxu0 0.0
    %1330 = vmatpush.msra.mxu0 0.0
    %1331 = vmatpush.msra.mxu0 0.0
    %1332 = vmatpush.msra.mxu0 0.0
    %1333 = vmatpush.msra.mxu0 0.0
    %1334 = vmatpush.msra.mxu0 0.0
    %1335 = vmatpush.msra.mxu0 0.0
    %1336 = vmatpush.msra.mxu0 0.0
    %1337 = vmatpush.msra.mxu0 0.0
    %1338 = vmatpush.msra.mxu0 0.0
    %1339 = vmatpush.msra.mxu0 %v302
    %1340 = vmatmul.f32.gmra.mxu0 %v1322
    %v1341 = vpop.f32.mrf.mxu0
    %v1342 = vadd.f32 0.0, %v1341
    %1343 = vdwg.mxu0
    %1346 = vrot.lane.b32.xlu0 %v1342, 24
    %v1347 = vpop.permute.xlu0 %1346
    %v1349 = vsel %vm505, %v1274, %v1347
    %1350 = vrot.lane.b32.xlu0 %v1135, 104
    %v1351 = vpop.permute.xlu0 %1350
    %v1353 = vsel %vm517, %v1349, %v1351
    %v1355 = vsel %vm799, %v1353, 0
    %1357 = vmatpush.msra.mxu0 0.0
    %1358 = vmatpush.msra.mxu0 0.0
    %1359 = vmatpush.msra.mxu0 0.0
    %1360 = vmatpush.msra.mxu0 0.0
    %1361 = vmatpush.msra.mxu0 0.0
    %1362 = vmatpush.msra.mxu0 0.0
    %1363 = vmatpush.msra.mxu0 0.0
    %1364 = vmatpush.msra.mxu0 %v783
    %1365 = vmatpush.msra.mxu0 %v782
    %1366 = vmatpush.msra.mxu0 %v781
    %1367 = vmatpush.msra.mxu0 %v780
    %1368 = vmatpush.msra.mxu0 %v779
    %1369 = vmatpush.msra.mxu0 %v778
    %1370 = vmatpush.msra.mxu0 %v777
    %1371 = vmatpush.msra.mxu0 %v776
    %1372 = vmatpush.msra.mxu0 %v775
    %1373 = vmatmul.f32.gmra.mxu0 %v1355
    %v1374 = vpop.f32.mrf.mxu0
    %v1375 = vadd.f32 %v796, %v1374
    %1376 = vdwg.mxu0
    %v1377 = vsub.f32 0.0, %v1375
    %v1378 = vmul.f32 %v1377, 1.442695
    %v1379 = vpow.pop %v1378
    %v1380 = vadd.f32 %v1379, 1.0
    %v1381 = vrcp.pop %v1380
    %v1382 = vmul.f32 %v1380, %v1381
    %v1383 = vsub.f32 1.0, %v1382
    %v1384 = vmul.f32 %v1381, %v1383
    %v1385 = vadd.f32 %v1381, %v1384
    %vm1386 = vweird.f32 %v1380
    %vm1387 = vweird.f32 %v1381
    %vm1388 = vmor %vm1386, %vm1387
    %v1389 = vsel %vm1388, %v1381, %v1385
    %v1390 = vand.u32 2147483647, %v1380
    %vm1391 = vcmp.eq.f32.partialorder %v1390, 8.507059e+37
    %v1392 = vand.u32 %v1380, 2147483648
    %v1393 = vor.u32 1.1754944e-38, %v1392
    %v1394 = vsel %vm1391, %v1393, %v1389
    %v1395 = vmul.f32 1.0, %v1394
    %v1396 = vtanh.pop %v1375
    %v1397 = vmul.f32 %v1395, %v1129
    %1399 = vrot.lane.b32.xlu0 %v1396, 80
    %v1400 = vpop.permute.xlu0 %1399
    %v1402 = vmul.f32 %v1395, %v1400
    %1404 = vrot.lane.b32.xlu0 %v1402, 24
    %v1405 = vpop.permute.xlu0 %1404
    %v1407 = vadd.f32 %v1397, %v1405
    %v1408 = vtanh.pop %v1407
    %1410 = vrot.lane.b32.xlu0 %v1408, 48
    %v1411 = vpop.permute.xlu0 %1410
    %v1413 = vmul.f32 %v1395, %v1411
    %1415 = vrot.lane.b32.xlu0 %v1413, 56
    %v1416 = vpop.permute.xlu0 %1415
    %1418 = vrot.lane.b32.xlu0 %v1203, 80
    %v1419 = vpop.permute.xlu0 %1418
    %v1421 = vsel %vm505, %v1416, %v1419
    %v1423 = vsel %vm517, %v1421, 0
    %1425 = vmatpush.msra.mxu0 0.0
    %1426 = vmatpush.msra.mxu0 0.0
    %1427 = vmatpush.msra.mxu0 0.0
    %1428 = vmatpush.msra.mxu0 0.0
    %1429 = vmatpush.msra.mxu0 0.0
    %1430 = vmatpush.msra.mxu0 0.0
    %1431 = vmatpush.msra.mxu0 0.0
    %1432 = vmatpush.msra.mxu0 0.0
    %1433 = vmatpush.msra.mxu0 0.0
    %1434 = vmatpush.msra.mxu0 0.0
    %1435 = vmatpush.msra.mxu0 %v789
    %1436 = vmatpush.msra.mxu0 %v788
    %1437 = vmatpush.msra.mxu0 %v787
    %1438 = vmatpush.msra.mxu0 %v786
    %1439 = vmatpush.msra.mxu0 %v785
    %1440 = vmatpush.msra.mxu0 %v784
    %1441 = vmatmul.f32.gmra.mxu0 %v1423
    %v1442 = vpop.f32.mrf.mxu0
    %v1443 = vadd.f32 %v797, %v1442
    %1444 = vdwg.mxu0
    %v1445 = vsub.f32 0.0, %v1443
    %v1446 = vmul.f32 %v1445, 1.442695
    %v1447 = vpow.pop %v1446
    %v1448 = vadd.f32 %v1447, 1.0
    %v1449 = vrcp.pop %v1448
    %v1450 = vmul.f32 %v1448, %v1449
    %v1451 = vsub.f32 1.0, %v1450
    %v1452 = vmul.f32 %v1449, %v1451
    %v1453 = vadd.f32 %v1449, %v1452
    %vm1454 = vweird.f32 %v1448
    %vm1455 = vweird.f32 %v1449
    %vm1456 = vmor %vm1454, %vm1455
    %v1457 = vsel %vm1456, %v1449, %v1453
    %v1458 = vand.u32 2147483647, %v1448
    %vm1459 = vcmp.eq.f32.partialorder %v1458, 8.507059e+37
    %v1460 = vand.u32 %v1448, 2147483648
    %v1461 = vor.u32 1.1754944e-38, %v1460
    %v1462 = vsel %vm1459, %v1461, %v1457
    %v1463 = vmul.f32 1.0, %v1462
    %v1464 = vtanh.pop %v1443
    %v1465 = vmul.f32 %v1463, %v1197
    %1467 = vrot.lane.b32.xlu0 %v1464, 80
    %v1468 = vpop.permute.xlu0 %1467
    %v1470 = vmul.f32 %v1463, %v1468
    %1472 = vrot.lane.b32.xlu0 %v1470, 24
    %v1473 = vpop.permute.xlu0 %1472
    %v1475 = vadd.f32 %v1465, %v1473
    %v1476 = vtanh.pop %v1475
    %1478 = vrot.lane.b32.xlu0 %v1476, 48
    %v1479 = vpop.permute.xlu0 %1478
    %v1481 = vmul.f32 %v1463, %v1479
    %1483 = vrot.lane.b32.xlu0 %v1481, 56
    %v1484 = vpop.permute.xlu0 %1483
    %1486 = vrot.lane.b32.xlu0 %v1271, 80
    %v1487 = vpop.permute.xlu0 %1486
    %v1489 = vsel %vm505, %v1484, %v1487
    %v1491 = vsel %vm517, %v1489, 0
    %1493 = vmatpush.msra.mxu0 0.0
    %1494 = vmatpush.msra.mxu0 0.0
    %1495 = vmatpush.msra.mxu0 0.0
    %1496 = vmatpush.msra.mxu0 0.0
    %1497 = vmatpush.msra.mxu0 0.0
    %1498 = vmatpush.msra.mxu0 0.0
    %1499 = vmatpush.msra.mxu0 0.0
    %1500 = vmatpush.msra.mxu0 0.0
    %1501 = vmatpush.msra.mxu0 0.0
    %1502 = vmatpush.msra.mxu0 0.0
    %1503 = vmatpush.msra.mxu0 %v795
    %1504 = vmatpush.msra.mxu0 %v794
    %1505 = vmatpush.msra.mxu0 %v793
    %1506 = vmatpush.msra.mxu0 %v792
    %1507 = vmatpush.msra.mxu0 %v791
    %1508 = vmatpush.msra.mxu0 %v790
    %1509 = vmatmul.f32.gmra.mxu0 %v1491
    %v1510 = vpop.f32.mrf.mxu0
    %v1511 = vadd.f32 %v798, %v1510
    %1512 = vdwg.mxu0
    %v1513 = vsub.f32 0.0, %v1511
    %v1514 = vmul.f32 %v1513, 1.442695
    %v1515 = vpow.pop %v1514
    %v1516 = vadd.f32 %v1515, 1.0
    %v1517 = vrcp.pop %v1516
    %v1518 = vmul.f32 %v1516, %v1517
    %v1519 = vsub.f32 1.0, %v1518
    %v1520 = vmul.f32 %v1517, %v1519
    %v1521 = vadd.f32 %v1517, %v1520
    %vm1522 = vweird.f32 %v1516
    %vm1523 = vweird.f32 %v1517
    %vm1524 = vmor %vm1522, %vm1523
    %v1525 = vsel %vm1524, %v1517, %v1521
    %v1526 = vand.u32 2147483647, %v1516
    %vm1527 = vcmp.eq.f32.partialorder %v1526, 8.507059e+37
    %v1528 = vand.u32 %v1516, 2147483648
    %v1529 = vor.u32 1.1754944e-38, %v1528
    %v1530 = vsel %vm1527, %v1529, %v1525
    %v1531 = vmul.f32 1.0, %v1530
    %v1532 = vtanh.pop %v1511
    %v1533 = vmul.f32 %v1531, %v1265
    %1535 = vrot.lane.b32.xlu0 %v1532, 80
    %v1536 = vpop.permute.xlu0 %1535
    %v1538 = vmul.f32 %v1531, %v1536
    %1540 = vrot.lane.b32.xlu0 %v1538, 24
    %v1541 = vpop.permute.xlu0 %1540
    %v1543 = vadd.f32 %v1533, %v1541
    %v1544 = vtanh.pop %v1543
    %1546 = vrot.lane.b32.xlu0 %v1544, 48
    %v1547 = vpop.permute.xlu0 %1546
    %v1549 = vmul.f32 %v1531, %v1547
    %1551 = vrot.lane.b32.xlu0 %v1549, 56
    %v1552 = vpop.permute.xlu0 %1551
    %v1553 = vsel %vm505, %v1552, 0
    %1555 = vmatpush.xpose.msra.mxu0 0.0
    %1556 = vmatpush.xpose.msra.mxu0 0.0
    %1557 = vmatpush.xpose.msra.mxu0 0.0
    %1558 = vmatpush.xpose.msra.mxu0 0.0
    %1559 = vmatpush.xpose.msra.mxu0 0.0
    %1560 = vmatpush.xpose.msra.mxu0 0.0
    %1561 = vmatpush.xpose.msra.mxu0 0.0
    %1562 = vmatpush.xpose.msra.mxu0 0.0
    %1563 = vmatpush.xpose.msra.mxu0 0.0
    %1564 = vmatpush.xpose.msra.mxu0 0.0
    %1565 = vmatpush.xpose.msra.mxu0 0.0
    %1566 = vmatpush.xpose.msra.mxu0 0.0
    %1567 = vmatpush.xpose.msra.mxu0 0.0
    %1568 = vmatpush.xpose.msra.mxu0 0.0
    %1569 = vmatpush.xpose.msra.mxu0 0.0
    %1570 = vmatpush.xpose.msra.mxu0 %v996
    %1571 = vmatmul.f32.gmra.mxu0 %v1553
    %v1572 = vpop.f32.mrf.mxu0
    %v1573 = vadd.f32 0.0, %v1572
    %1574 = vdwg.mxu0
    %v1575 = vsel %vm1018, %v1573, -inf
    %1576 = vmax.xlane.f32.xlu0 %v1575
    %v1577 = vpop.xlane.xlu0 %1576
    %v1578 = vsub.f32 %v1573, %v1577
    %v1579 = vmul.f32 %v1578, 1.442695
    %v1580 = vpow.pop %v1579
    %v1581 = vsel %vm1018, %v1580, 0.0
    %1582 = vadd.xlane.f32.xlu0 %v1581
    %v1583 = vpop.xlane.xlu0 %1582
    %v1584 = vrcp.pop %v1583
    %v1585 = vmul.f32 %v1583, %v1584
    %v1586 = vsub.f32 1.0, %v1585
    %v1587 = vmul.f32 %v1584, %v1586
    %v1588 = vadd.f32 %v1584, %v1587
    %vm1589 = vweird.f32 %v1583
    %vm1590 = vweird.f32 %v1584
    %vm1591 = vmor %vm1589, %vm1590
    %v1592 = vsel %vm1591, %v1584, %v1588
    %v1593 = vand.u32 2147483647, %v1583
    %vm1594 = vcmp.eq.f32.partialorder %v1593, 8.507059e+37
    %v1595 = vand.u32 %v1583, 2147483648
    %v1596 = vor.u32 1.1754944e-38, %v1595
    %v1597 = vsel %vm1594, %v1596, %v1592
    %v1598 = vmul.f32 %v1580, %v1597
    %v1600 = vsel %vm377, %v1598, 0
    %1602 = vmatpush.msra.mxu0 0.0
    %1603 = vmatpush.msra.mxu0 0.0
    %1604 = vmatpush.msra.mxu0 0.0
    %1605 = vmatpush.msra.mxu0 0.0
    %1606 = vmatpush.msra.mxu0 0.0
    %1607 = vmatpush.msra.mxu0 0.0
    %1608 = vmatpush.msra.mxu0 0.0
    %1609 = vmatpush.msra.mxu0 0.0
    %1610 = vmatpush.msra.mxu0 0.0
    %1611 = vmatpush.msra.mxu0 0.0
    %1612 = vmatpush.msra.mxu0 0.0
    %1613 = vmatpush.msra.mxu0 0.0
    %1614 = vmatpush.msra.mxu0 0.0
    %1615 = vmatpush.msra.mxu0 0.0
    %1616 = vmatpush.msra.mxu0 0.0
    %1617 = vmatpush.msra.mxu0 %v302
    %1618 = vmatmul.f32.gmra.mxu0 %v1600
    %v1619 = vpop.f32.mrf.mxu0
    %v1620 = vadd.f32 0.0, %v1619
    %1621 = vdwg.mxu0
    %1624 = vrot.lane.b32.xlu0 %v1620, 24
    %v1625 = vpop.permute.xlu0 %1624
    %v1627 = vsel %vm505, %v1552, %v1625
    %1628 = vrot.lane.b32.xlu0 %v1413, 104
    %v1629 = vpop.permute.xlu0 %1628
    %v1631 = vsel %vm517, %v1627, %v1629
    %v1633 = vsel %vm799, %v1631, 0
    %1635 = vmatpush.msra.mxu0 0.0
    %1636 = vmatpush.msra.mxu0 0.0
    %1637 = vmatpush.msra.mxu0 0.0
    %1638 = vmatpush.msra.mxu0 0.0
    %1639 = vmatpush.msra.mxu0 0.0
    %1640 = vmatpush.msra.mxu0 0.0
    %1641 = vmatpush.msra.mxu0 0.0
    %1642 = vmatpush.msra.mxu0 %v783
    %1643 = vmatpush.msra.mxu0 %v782
    %1644 = vmatpush.msra.mxu0 %v781
    %1645 = vmatpush.msra.mxu0 %v780
    %1646 = vmatpush.msra.mxu0 %v779
    %1647 = vmatpush.msra.mxu0 %v778
    %1648 = vmatpush.msra.mxu0 %v777
    %1649 = vmatpush.msra.mxu0 %v776
    %1650 = vmatpush.msra.mxu0 %v775
    %1651 = vmatmul.f32.gmra.mxu0 %v1633
    %v1652 = vpop.f32.mrf.mxu0
    %v1653 = vadd.f32 %v796, %v1652
    %1654 = vdwg.mxu0
    %v1655 = vsub.f32 0.0, %v1653
    %v1656 = vmul.f32 %v1655, 1.442695
    %v1657 = vpow.pop %v1656
    %v1658 = vadd.f32 %v1657, 1.0
    %v1659 = vrcp.pop %v1658
    %v1660 = vmul.f32 %v1658, %v1659
    %v1661 = vsub.f32 1.0, %v1660
    %v1662 = vmul.f32 %v1659, %v1661
    %v1663 = vadd.f32 %v1659, %v1662
    %vm1664 = vweird.f32 %v1658
    %vm1665 = vweird.f32 %v1659
    %vm1666 = vmor %vm1664, %vm1665
    %v1667 = vsel %vm1666, %v1659, %v1663
    %v1668 = vand.u32 2147483647, %v1658
    %vm1669 = vcmp.eq.f32.partialorder %v1668, 8.507059e+37
    %v1670 = vand.u32 %v1658, 2147483648
    %v1671 = vor.u32 1.1754944e-38, %v1670
    %v1672 = vsel %vm1669, %v1671, %v1667
    %v1673 = vmul.f32 1.0, %v1672
    %v1674 = vtanh.pop %v1653
    %v1675 = vmul.f32 %v1673, %v1407
    %1677 = vrot.lane.b32.xlu0 %v1674, 80
    %v1678 = vpop.permute.xlu0 %1677
    %v1680 = vmul.f32 %v1673, %v1678
    %1682 = vrot.lane.b32.xlu0 %v1680, 24
    %v1683 = vpop.permute.xlu0 %1682
    %v1685 = vadd.f32 %v1675, %v1683
    %v1686 = vtanh.pop %v1685
    %1688 = vrot.lane.b32.xlu0 %v1686, 48
    %v1689 = vpop.permute.xlu0 %1688
    %v1691 = vmul.f32 %v1673, %v1689
    %1693 = vrot.lane.b32.xlu0 %v1691, 56
    %v1694 = vpop.permute.xlu0 %1693
    %1696 = vrot.lane.b32.xlu0 %v1481, 80
    %v1697 = vpop.permute.xlu0 %1696
    %v1699 = vsel %vm505, %v1694, %v1697
    %v1701 = vsel %vm517, %v1699, 0
    %1703 = vmatpush.msra.mxu0 0.0
    %1704 = vmatpush.msra.mxu0 0.0
    %1705 = vmatpush.msra.mxu0 0.0
    %1706 = vmatpush.msra.mxu0 0.0
    %1707 = vmatpush.msra.mxu0 0.0
    %1708 = vmatpush.msra.mxu0 0.0
    %1709 = vmatpush.msra.mxu0 0.0
    %1710 = vmatpush.msra.mxu0 0.0
    %1711 = vmatpush.msra.mxu0 0.0
    %1712 = vmatpush.msra.mxu0 0.0
    %1713 = vmatpush.msra.mxu0 %v789
    %1714 = vmatpush.msra.mxu0 %v788
    %1715 = vmatpush.msra.mxu0 %v787
    %1716 = vmatpush.msra.mxu0 %v786
    %1717 = vmatpush.msra.mxu0 %v785
    %1718 = vmatpush.msra.mxu0 %v784
    %1719 = vmatmul.f32.gmra.mxu0 %v1701
    %v1720 = vpop.f32.mrf.mxu0
    %v1721 = vadd.f32 %v797, %v1720
    %1722 = vdwg.mxu0
    %v1723 = vsub.f32 0.0, %v1721
    %v1724 = vmul.f32 %v1723, 1.442695
    %v1725 = vpow.pop %v1724
    %v1726 = vadd.f32 %v1725, 1.0
    %v1727 = vrcp.pop %v1726
    %v1728 = vmul.f32 %v1726, %v1727
    %v1729 = vsub.f32 1.0, %v1728
    %v1730 = vmul.f32 %v1727, %v1729
    %v1731 = vadd.f32 %v1727, %v1730
    %vm1732 = vweird.f32 %v1726
    %vm1733 = vweird.f32 %v1727
    %vm1734 = vmor %vm1732, %vm1733
    %v1735 = vsel %vm1734, %v1727, %v1731
    %v1736 = vand.u32 2147483647, %v1726
    %vm1737 = vcmp.eq.f32.partialorder %v1736, 8.507059e+37
    %v1738 = vand.u32 %v1726, 2147483648
    %v1739 = vor.u32 1.1754944e-38, %v1738
    %v1740 = vsel %vm1737, %v1739, %v1735
    %v1741 = vmul.f32 1.0, %v1740
    %v1742 = vtanh.pop %v1721
    %v1743 = vmul.f32 %v1741, %v1475
    %1745 = vrot.lane.b32.xlu0 %v1742, 80
    %v1746 = vpop.permute.xlu0 %1745
    %v1748 = vmul.f32 %v1741, %v1746
    %1750 = vrot.lane.b32.xlu0 %v1748, 24
    %v1751 = vpop.permute.xlu0 %1750
    %v1753 = vadd.f32 %v1743, %v1751
    %v1754 = vtanh.pop %v1753
    %1756 = vrot.lane.b32.xlu0 %v1754, 48
    %v1757 = vpop.permute.xlu0 %1756
    %v1759 = vmul.f32 %v1741, %v1757
    %1761 = vrot.lane.b32.xlu0 %v1759, 56
    %v1762 = vpop.permute.xlu0 %1761
    %1764 = vrot.lane.b32.xlu0 %v1549, 80
    %v1765 = vpop.permute.xlu0 %1764
    %v1767 = vsel %vm505, %v1762, %v1765
    %v1769 = vsel %vm517, %v1767, 0
    %1771 = vmatpush.msra.mxu0 0.0
    %1772 = vmatpush.msra.mxu0 0.0
    %1773 = vmatpush.msra.mxu0 0.0
    %1774 = vmatpush.msra.mxu0 0.0
    %1775 = vmatpush.msra.mxu0 0.0
    %1776 = vmatpush.msra.mxu0 0.0
    %1777 = vmatpush.msra.mxu0 0.0
    %1778 = vmatpush.msra.mxu0 0.0
    %1779 = vmatpush.msra.mxu0 0.0
    %1780 = vmatpush.msra.mxu0 0.0
    %1781 = vmatpush.msra.mxu0 %v795
    %1782 = vmatpush.msra.mxu0 %v794
    %1783 = vmatpush.msra.mxu0 %v793
    %1784 = vmatpush.msra.mxu0 %v792
    %1785 = vmatpush.msra.mxu0 %v791
    %1786 = vmatpush.msra.mxu0 %v790
    %1787 = vmatmul.f32.gmra.mxu0 %v1769
    %v1788 = vpop.f32.mrf.mxu0
    %v1789 = vadd.f32 %v798, %v1788
    %1790 = vdwg.mxu0
    %v1791 = vsub.f32 0.0, %v1789
    %v1792 = vmul.f32 %v1791, 1.442695
    %v1793 = vpow.pop %v1792
    %v1794 = vadd.f32 %v1793, 1.0
    %v1795 = vrcp.pop %v1794
    %v1796 = vmul.f32 %v1794, %v1795
    %v1797 = vsub.f32 1.0, %v1796
    %v1798 = vmul.f32 %v1795, %v1797
    %v1799 = vadd.f32 %v1795, %v1798
    %vm1800 = vweird.f32 %v1794
    %vm1801 = vweird.f32 %v1795
    %vm1802 = vmor %vm1800, %vm1801
    %v1803 = vsel %vm1802, %v1795, %v1799
    %v1804 = vand.u32 2147483647, %v1794
    %vm1805 = vcmp.eq.f32.partialorder %v1804, 8.507059e+37
    %v1806 = vand.u32 %v1794, 2147483648
    %v1807 = vor.u32 1.1754944e-38, %v1806
    %v1808 = vsel %vm1805, %v1807, %v1803
    %v1809 = vmul.f32 1.0, %v1808
    %v1810 = vtanh.pop %v1789
    %v1811 = vmul.f32 %v1809, %v1543
    %1813 = vrot.lane.b32.xlu0 %v1810, 80
    %v1814 = vpop.permute.xlu0 %1813
    %v1816 = vmul.f32 %v1809, %v1814
    %1818 = vrot.lane.b32.xlu0 %v1816, 24
    %v1819 = vpop.permute.xlu0 %1818
    %v1821 = vadd.f32 %v1811, %v1819
    %v1822 = vtanh.pop %v1821
    %1824 = vrot.lane.b32.xlu0 %v1822, 48
    %v1825 = vpop.permute.xlu0 %1824
    %v1827 = vmul.f32 %v1809, %v1825
    %1829 = vrot.lane.b32.xlu0 %v1827, 56
    %v1830 = vpop.permute.xlu0 %1829
    %v1831 = vsel %vm505, %v1830, 0
    %1833 = vmatpush.xpose.msra.mxu0 0.0
    %1834 = vmatpush.xpose.msra.mxu0 0.0
    %1835 = vmatpush.xpose.msra.mxu0 0.0
    %1836 = vmatpush.xpose.msra.mxu0 0.0
    %1837 = vmatpush.xpose.msra.mxu0 0.0
    %1838 = vmatpush.xpose.msra.mxu0 0.0
    %1839 = vmatpush.xpose.msra.mxu0 0.0
    %1840 = vmatpush.xpose.msra.mxu0 0.0
    %1841 = vmatpush.xpose.msra.mxu0 0.0
    %1842 = vmatpush.xpose.msra.mxu0 0.0
    %1843 = vmatpush.xpose.msra.mxu0 0.0
    %1844 = vmatpush.xpose.msra.mxu0 0.0
    %1845 = vmatpush.xpose.msra.mxu0 0.0
    %1846 = vmatpush.xpose.msra.mxu0 0.0
    %1847 = vmatpush.xpose.msra.mxu0 0.0
    %1848 = vmatpush.xpose.msra.mxu0 %v996
    %1849 = vmatmul.f32.gmra.mxu0 %v1831
    %v1850 = vpop.f32.mrf.mxu0
    %v1851 = vadd.f32 0.0, %v1850
    %1852 = vdwg.mxu0
    %v1853 = vsel %vm1018, %v1851, -inf
    %1854 = vmax.xlane.f32.xlu0 %v1853
    %v1855 = vpop.xlane.xlu0 %1854
    %v1856 = vsub.f32 %v1851, %v1855
    %v1857 = vmul.f32 %v1856, 1.442695
    %v1858 = vpow.pop %v1857
    %v1859 = vsel %vm1018, %v1858, 0.0
    %1860 = vadd.xlane.f32.xlu0 %v1859
    %v1861 = vpop.xlane.xlu0 %1860
    %v1862 = vrcp.pop %v1861
    %v1863 = vmul.f32 %v1861, %v1862
    %v1864 = vsub.f32 1.0, %v1863
    %v1865 = vmul.f32 %v1862, %v1864
    %v1866 = vadd.f32 %v1862, %v1865
    %vm1867 = vweird.f32 %v1861
    %vm1868 = vweird.f32 %v1862
    %vm1869 = vmor %vm1867, %vm1868
    %v1870 = vsel %vm1869, %v1862, %v1866
    %v1871 = vand.u32 2147483647, %v1861
    %vm1872 = vcmp.eq.f32.partialorder %v1871, 8.507059e+37
    %v1873 = vand.u32 %v1861, 2147483648
    %v1874 = vor.u32 1.1754944e-38, %v1873
    %v1875 = vsel %vm1872, %v1874, %v1870
    %v1876 = vmul.f32 %v1858, %v1875
    %v1878 = vsel %vm377, %v1876, 0
    %1880 = vmatpush.msra.mxu0 0.0
    %1881 = vmatpush.msra.mxu0 0.0
    %1882 = vmatpush.msra.mxu0 0.0
    %1883 = vmatpush.msra.mxu0 0.0
    %1884 = vmatpush.msra.mxu0 0.0
    %1885 = vmatpush.msra.mxu0 0.0
    %1886 = vmatpush.msra.mxu0 0.0
    %1887 = vmatpush.msra.mxu0 0.0
    %1888 = vmatpush.msra.mxu0 0.0
    %1889 = vmatpush.msra.mxu0 0.0
    %1890 = vmatpush.msra.mxu0 0.0
    %1891 = vmatpush.msra.mxu0 0.0
    %1892 = vmatpush.msra.mxu0 0.0
    %1893 = vmatpush.msra.mxu0 0.0
    %1894 = vmatpush.msra.mxu0 0.0
    %1895 = vmatpush.msra.mxu0 %v302
    %1896 = vmatmul.f32.gmra.mxu0 %v1878
    %v1897 = vpop.f32.mrf.mxu0
    %v1898 = vadd.f32 0.0, %v1897
    %1899 = vdwg.mxu0
    %1902 = vrot.lane.b32.xlu0 %v1898, 24
    %v1903 = vpop.permute.xlu0 %1902
    %v1905 = vsel %vm505, %v1830, %v1903
    %1906 = vrot.lane.b32.xlu0 %v1691, 104
    %v1907 = vpop.permute.xlu0 %1906
    %v1909 = vsel %vm517, %v1905, %v1907
    %v1911 = vsel %vm799, %v1909, 0
    %1913 = vmatpush.msra.mxu0 0.0
    %1914 = vmatpush.msra.mxu0 0.0
    %1915 = vmatpush.msra.mxu0 0.0
    %1916 = vmatpush.msra.mxu0 0.0
    %1917 = vmatpush.msra.mxu0 0.0
    %1918 = vmatpush.msra.mxu0 0.0
    %1919 = vmatpush.msra.mxu0 0.0
    %1920 = vmatpush.msra.mxu0 %v783
    %1921 = vmatpush.msra.mxu0 %v782
    %1922 = vmatpush.msra.mxu0 %v781
    %1923 = vmatpush.msra.mxu0 %v780
    %1924 = vmatpush.msra.mxu0 %v779
    %1925 = vmatpush.msra.mxu0 %v778
    %1926 = vmatpush.msra.mxu0 %v777
    %1927 = vmatpush.msra.mxu0 %v776
    %1928 = vmatpush.msra.mxu0 %v775
    %1929 = vmatmul.f32.gmra.mxu0 %v1911
    %v1930 = vpop.f32.mrf.mxu0
    %v1931 = vadd.f32 %v796, %v1930
    %1932 = vdwg.mxu0
    %v1933 = vsub.f32 0.0, %v1931
    %v1934 = vmul.f32 %v1933, 1.442695
    %v1935 = vpow.pop %v1934
    %v1936 = vadd.f32 %v1935, 1.0
    %v1937 = vrcp.pop %v1936
    %v1938 = vmul.f32 %v1936, %v1937
    %v1939 = vsub.f32 1.0, %v1938
    %v1940 = vmul.f32 %v1937, %v1939
    %v1941 = vadd.f32 %v1937, %v1940
    %vm1942 = vweird.f32 %v1936
    %vm1943 = vweird.f32 %v1937
    %vm1944 = vmor %vm1942, %vm1943
    %v1945 = vsel %vm1944, %v1937, %v1941
    %v1946 = vand.u32 2147483647, %v1936
    %vm1947 = vcmp.eq.f32.partialorder %v1946, 8.507059e+37
    %v1948 = vand.u32 %v1936, 2147483648
    %v1949 = vor.u32 1.1754944e-38, %v1948
    %v1950 = vsel %vm1947, %v1949, %v1945
    %v1951 = vmul.f32 1.0, %v1950
    %v1952 = vtanh.pop %v1931
    %v1953 = vmul.f32 %v1951, %v1685
    %1955 = vrot.lane.b32.xlu0 %v1952, 80
    %v1956 = vpop.permute.xlu0 %1955
    %v1958 = vmul.f32 %v1951, %v1956
    %1960 = vrot.lane.b32.xlu0 %v1958, 24
    %v1961 = vpop.permute.xlu0 %1960
    %v1963 = vadd.f32 %v1953, %v1961
    %v1964 = vtanh.pop %v1963
    %1966 = vrot.lane.b32.xlu0 %v1964, 48
    %v1967 = vpop.permute.xlu0 %1966
    %v1969 = vmul.f32 %v1951, %v1967
    %1971 = vrot.lane.b32.xlu0 %v1969, 56
    %v1972 = vpop.permute.xlu0 %1971
    %1974 = vrot.lane.b32.xlu0 %v1759, 80
    %v1975 = vpop.permute.xlu0 %1974
    %v1977 = vsel %vm505, %v1972, %v1975
    %v1979 = vsel %vm517, %v1977, 0
    %1981 = vmatpush.msra.mxu0 0.0
    %1982 = vmatpush.msra.mxu0 0.0
    %1983 = vmatpush.msra.mxu0 0.0
    %1984 = vmatpush.msra.mxu0 0.0
    %1985 = vmatpush.msra.mxu0 0.0
    %1986 = vmatpush.msra.mxu0 0.0
    %1987 = vmatpush.msra.mxu0 0.0
    %1988 = vmatpush.msra.mxu0 0.0
    %1989 = vmatpush.msra.mxu0 0.0
    %1990 = vmatpush.msra.mxu0 0.0
    %1991 = vmatpush.msra.mxu0 %v789
    %1992 = vmatpush.msra.mxu0 %v788
    %1993 = vmatpush.msra.mxu0 %v787
    %1994 = vmatpush.msra.mxu0 %v786
    %1995 = vmatpush.msra.mxu0 %v785
    %1996 = vmatpush.msra.mxu0 %v784
    %1997 = vmatmul.f32.gmra.mxu0 %v1979
    %v1998 = vpop.f32.mrf.mxu0
    %v1999 = vadd.f32 %v797, %v1998
    %2000 = vdwg.mxu0
    %v2001 = vsub.f32 0.0, %v1999
    %v2002 = vmul.f32 %v2001, 1.442695
    %v2003 = vpow.pop %v2002
    %v2004 = vadd.f32 %v2003, 1.0
    %v2005 = vrcp.pop %v2004
    %v2006 = vmul.f32 %v2004, %v2005
    %v2007 = vsub.f32 1.0, %v2006
    %v2008 = vmul.f32 %v2005, %v2007
    %v2009 = vadd.f32 %v2005, %v2008
    %vm2010 = vweird.f32 %v2004
    %vm2011 = vweird.f32 %v2005
    %vm2012 = vmor %vm2010, %vm2011
    %v2013 = vsel %vm2012, %v2005, %v2009
    %v2014 = vand.u32 2147483647, %v2004
    %vm2015 = vcmp.eq.f32.partialorder %v2014, 8.507059e+37
    %v2016 = vand.u32 %v2004, 2147483648
    %v2017 = vor.u32 1.1754944e-38, %v2016
    %v2018 = vsel %vm2015, %v2017, %v2013
    %v2019 = vmul.f32 1.0, %v2018
    %v2020 = vtanh.pop %v1999
    %v2021 = vmul.f32 %v2019, %v1753
    %2023 = vrot.lane.b32.xlu0 %v2020, 80
    %v2024 = vpop.permute.xlu0 %2023
    %v2026 = vmul.f32 %v2019, %v2024
    %2028 = vrot.lane.b32.xlu0 %v2026, 24
    %v2029 = vpop.permute.xlu0 %2028
    %v2031 = vadd.f32 %v2021, %v2029
    %v2032 = vtanh.pop %v2031
    %2034 = vrot.lane.b32.xlu0 %v2032, 48
    %v2035 = vpop.permute.xlu0 %2034
    %v2037 = vmul.f32 %v2019, %v2035
    %2039 = vrot.lane.b32.xlu0 %v2037, 56
    %v2040 = vpop.permute.xlu0 %2039
    %2042 = vrot.lane.b32.xlu0 %v1827, 80
    %v2043 = vpop.permute.xlu0 %2042
    %v2045 = vsel %vm505, %v2040, %v2043
    %v2047 = vsel %vm517, %v2045, 0
    %2049 = vmatpush.msra.mxu0 0.0
    %2050 = vmatpush.msra.mxu0 0.0
    %2051 = vmatpush.msra.mxu0 0.0
    %2052 = vmatpush.msra.mxu0 0.0
    %2053 = vmatpush.msra.mxu0 0.0
    %2054 = vmatpush.msra.mxu0 0.0
    %2055 = vmatpush.msra.mxu0 0.0
    %2056 = vmatpush.msra.mxu0 0.0
    %2057 = vmatpush.msra.mxu0 0.0
    %2058 = vmatpush.msra.mxu0 0.0
    %2059 = vmatpush.msra.mxu0 %v795
    %2060 = vmatpush.msra.mxu0 %v794
    %2061 = vmatpush.msra.mxu0 %v793
    %2062 = vmatpush.msra.mxu0 %v792
    %2063 = vmatpush.msra.mxu0 %v791
    %2064 = vmatpush.msra.mxu0 %v790
    %2065 = vmatmul.f32.gmra.mxu0 %v2047
    %v2066 = vpop.f32.mrf.mxu0
    %v2067 = vadd.f32 %v798, %v2066
    %2068 = vdwg.mxu0
    %v2069 = vsub.f32 0.0, %v2067
    %v2070 = vmul.f32 %v2069, 1.442695
    %v2071 = vpow.pop %v2070
    %v2072 = vadd.f32 %v2071, 1.0
    %v2073 = vrcp.pop %v2072
    %v2074 = vmul.f32 %v2072, %v2073
    %v2075 = vsub.f32 1.0, %v2074
    %v2076 = vmul.f32 %v2073, %v2075
    %v2077 = vadd.f32 %v2073, %v2076
    %vm2078 = vweird.f32 %v2072
    %vm2079 = vweird.f32 %v2073
    %vm2080 = vmor %vm2078, %vm2079
    %v2081 = vsel %vm2080, %v2073, %v2077
    %v2082 = vand.u32 2147483647, %v2072
    %vm2083 = vcmp.eq.f32.partialorder %v2082, 8.507059e+37
    %v2084 = vand.u32 %v2072, 2147483648
    %v2085 = vor.u32 1.1754944e-38, %v2084
    %v2086 = vsel %vm2083, %v2085, %v2081
    %v2087 = vmul.f32 1.0, %v2086
    %v2088 = vtanh.pop %v2067
    %v2089 = vmul.f32 %v2087, %v1821
    %2091 = vrot.lane.b32.xlu0 %v2088, 80
    %v2092 = vpop.permute.xlu0 %2091
    %v2094 = vmul.f32 %v2087, %v2092
    %2096 = vrot.lane.b32.xlu0 %v2094, 24
    %v2097 = vpop.permute.xlu0 %2096
    %v2099 = vadd.f32 %v2089, %v2097
    %v2100 = vtanh.pop %v2099
    %2102 = vrot.lane.b32.xlu0 %v2100, 48
    %v2103 = vpop.permute.xlu0 %2102
    %v2105 = vmul.f32 %v2087, %v2103
    %2107 = vrot.lane.b32.xlu0 %v2105, 56
    %v2108 = vpop.permute.xlu0 %2107
    %v2109 = vsel %vm505, %v2108, 0
    %2111 = vmatpush.xpose.msra.mxu0 0.0
    %2112 = vmatpush.xpose.msra.mxu0 0.0
    %2113 = vmatpush.xpose.msra.mxu0 0.0
    %2114 = vmatpush.xpose.msra.mxu0 0.0
    %2115 = vmatpush.xpose.msra.mxu0 0.0
    %2116 = vmatpush.xpose.msra.mxu0 0.0
    %2117 = vmatpush.xpose.msra.mxu0 0.0
    %2118 = vmatpush.xpose.msra.mxu0 0.0
    %2119 = vmatpush.xpose.msra.mxu0 0.0
    %2120 = vmatpush.xpose.msra.mxu0 0.0
    %2121 = vmatpush.xpose.msra.mxu0 0.0
    %2122 = vmatpush.xpose.msra.mxu0 0.0
    %2123 = vmatpush.xpose.msra.mxu0 0.0
    %2124 = vmatpush.xpose.msra.mxu0 0.0
    %2125 = vmatpush.xpose.msra.mxu0 0.0
    %2126 = vmatpush.xpose.msra.mxu0 %v996
    %2127 = vmatmul.f32.gmra.mxu0 %v2109
    %v2128 = vpop.f32.mrf.mxu0
    %v2129 = vadd.f32 0.0, %v2128
    %2130 = vdwg.mxu0
    %v2131 = vsel %vm1018, %v2129, -inf
    %2132 = vmax.xlane.f32.xlu0 %v2131
    %v2133 = vpop.xlane.xlu0 %2132
    %v2134 = vsub.f32 %v2129, %v2133
    %v2135 = vmul.f32 %v2134, 1.442695
    %v2136 = vpow.pop %v2135
    %v2137 = vsel %vm1018, %v2136, 0.0
    %2138 = vadd.xlane.f32.xlu0 %v2137
    %v2139 = vpop.xlane.xlu0 %2138
    %v2140 = vrcp.pop %v2139
    %v2141 = vmul.f32 %v2139, %v2140
    %v2142 = vsub.f32 1.0, %v2141
    %v2143 = vmul.f32 %v2140, %v2142
    %v2144 = vadd.f32 %v2140, %v2143
    %vm2145 = vweird.f32 %v2139
    %vm2146 = vweird.f32 %v2140
    %vm2147 = vmor %vm2145, %vm2146
    %v2148 = vsel %vm2147, %v2140, %v2144
    %v2149 = vand.u32 2147483647, %v2139
    %vm2150 = vcmp.eq.f32.partialorder %v2149, 8.507059e+37
    %v2151 = vand.u32 %v2139, 2147483648
    %v2152 = vor.u32 1.1754944e-38, %v2151
    %v2153 = vsel %vm2150, %v2152, %v2148
    %v2154 = vmul.f32 %v2136, %v2153
    %v2156 = vsel %vm377, %v2154, 0
    %2158 = vmatpush.msra.mxu0 0.0
    %2159 = vmatpush.msra.mxu0 0.0
    %2160 = vmatpush.msra.mxu0 0.0
    %2161 = vmatpush.msra.mxu0 0.0
    %2162 = vmatpush.msra.mxu0 0.0
    %2163 = vmatpush.msra.mxu0 0.0
    %2164 = vmatpush.msra.mxu0 0.0
    %2165 = vmatpush.msra.mxu0 0.0
    %2166 = vmatpush.msra.mxu0 0.0
    %2167 = vmatpush.msra.mxu0 0.0
    %2168 = vmatpush.msra.mxu0 0.0
    %2169 = vmatpush.msra.mxu0 0.0
    %2170 = vmatpush.msra.mxu0 0.0
    %2171 = vmatpush.msra.mxu0 0.0
    %2172 = vmatpush.msra.mxu0 0.0
    %2173 = vmatpush.msra.mxu0 %v302
    %2174 = vmatmul.f32.gmra.mxu0 %v2156
    %v2175 = vpop.f32.mrf.mxu0
    %v2176 = vadd.f32 0.0, %v2175
    %2177 = vdwg.mxu0
    %2180 = vrot.lane.b32.xlu0 %v2176, 24
    %v2181 = vpop.permute.xlu0 %2180
    %v2183 = vsel %vm505, %v2108, %v2181
    %2184 = vrot.lane.b32.xlu0 %v1969, 104
    %v2185 = vpop.permute.xlu0 %2184
    %v2187 = vsel %vm517, %v2183, %v2185
    %v2189 = vsel %vm799, %v2187, 0
    %2191 = vmatpush.msra.mxu0 0.0
    %2192 = vmatpush.msra.mxu0 0.0
    %2193 = vmatpush.msra.mxu0 0.0
    %2194 = vmatpush.msra.mxu0 0.0
    %2195 = vmatpush.msra.mxu0 0.0
    %2196 = vmatpush.msra.mxu0 0.0
    %2197 = vmatpush.msra.mxu0 0.0
    %2198 = vmatpush.msra.mxu0 %v783
    %2199 = vmatpush.msra.mxu0 %v782
    %2200 = vmatpush.msra.mxu0 %v781
    %2201 = vmatpush.msra.mxu0 %v780
    %2202 = vmatpush.msra.mxu0 %v779
    %2203 = vmatpush.msra.mxu0 %v778
    %2204 = vmatpush.msra.mxu0 %v777
    %2205 = vmatpush.msra.mxu0 %v776
    %2206 = vmatpush.msra.mxu0 %v775
    %2207 = vmatmul.f32.gmra.mxu0 %v2189
    %v2208 = vpop.f32.mrf.mxu0
    %v2209 = vadd.f32 %v796, %v2208
    %2210 = vdwg.mxu0
    %v2211 = vsub.f32 0.0, %v2209
    %v2212 = vmul.f32 %v2211, 1.442695
    %v2213 = vpow.pop %v2212
    %v2214 = vadd.f32 %v2213, 1.0
    %v2215 = vrcp.pop %v2214
    %v2216 = vmul.f32 %v2214, %v2215
    %v2217 = vsub.f32 1.0, %v2216
    %v2218 = vmul.f32 %v2215, %v2217
    %v2219 = vadd.f32 %v2215, %v2218
    %vm2220 = vweird.f32 %v2214
    %vm2221 = vweird.f32 %v2215
    %vm2222 = vmor %vm2220, %vm2221
    %v2223 = vsel %vm2222, %v2215, %v2219
    %v2224 = vand.u32 2147483647, %v2214
    %vm2225 = vcmp.eq.f32.partialorder %v2224, 8.507059e+37
    %v2226 = vand.u32 %v2214, 2147483648
    %v2227 = vor.u32 1.1754944e-38, %v2226
    %v2228 = vsel %vm2225, %v2227, %v2223
    %v2229 = vmul.f32 1.0, %v2228
    %v2230 = vtanh.pop %v2209
    %v2231 = vmul.f32 %v2229, %v1963
    %2233 = vrot.lane.b32.xlu0 %v2230, 80
    %v2234 = vpop.permute.xlu0 %2233
    %v2236 = vmul.f32 %v2229, %v2234
    %2238 = vrot.lane.b32.xlu0 %v2236, 24
    %v2239 = vpop.permute.xlu0 %2238
    %v2241 = vadd.f32 %v2231, %v2239
    %v2242 = vtanh.pop %v2241
    %2244 = vrot.lane.b32.xlu0 %v2242, 48
    %v2245 = vpop.permute.xlu0 %2244
    %v2247 = vmul.f32 %v2229, %v2245
    %2249 = vrot.lane.b32.xlu0 %v2247, 56
    %v2250 = vpop.permute.xlu0 %2249
    %2252 = vrot.lane.b32.xlu0 %v2037, 80
    %v2253 = vpop.permute.xlu0 %2252
    %v2255 = vsel %vm505, %v2250, %v2253
    %v2257 = vsel %vm517, %v2255, 0
    %2259 = vmatpush.msra.mxu0 0.0
    %2260 = vmatpush.msra.mxu0 0.0
    %2261 = vmatpush.msra.mxu0 0.0
    %2262 = vmatpush.msra.mxu0 0.0
    %2263 = vmatpush.msra.mxu0 0.0
    %2264 = vmatpush.msra.mxu0 0.0
    %2265 = vmatpush.msra.mxu0 0.0
    %2266 = vmatpush.msra.mxu0 0.0
    %2267 = vmatpush.msra.mxu0 0.0
    %2268 = vmatpush.msra.mxu0 0.0
    %2269 = vmatpush.msra.mxu0 %v789
    %2270 = vmatpush.msra.mxu0 %v788
    %2271 = vmatpush.msra.mxu0 %v787
    %2272 = vmatpush.msra.mxu0 %v786
    %2273 = vmatpush.msra.mxu0 %v785
    %2274 = vmatpush.msra.mxu0 %v784
    %2275 = vmatmul.f32.gmra.mxu0 %v2257
    %v2276 = vpop.f32.mrf.mxu0
    %v2277 = vadd.f32 %v797, %v2276
    %2278 = vdwg.mxu0
    %v2279 = vsub.f32 0.0, %v2277
    %v2280 = vmul.f32 %v2279, 1.442695
    %v2281 = vpow.pop %v2280
    %v2282 = vadd.f32 %v2281, 1.0
    %v2283 = vrcp.pop %v2282
    %v2284 = vmul.f32 %v2282, %v2283
    %v2285 = vsub.f32 1.0, %v2284
    %v2286 = vmul.f32 %v2283, %v2285
    %v2287 = vadd.f32 %v2283, %v2286
    %vm2288 = vweird.f32 %v2282
    %vm2289 = vweird.f32 %v2283
    %vm2290 = vmor %vm2288, %vm2289
    %v2291 = vsel %vm2290, %v2283, %v2287
    %v2292 = vand.u32 2147483647, %v2282
    %vm2293 = vcmp.eq.f32.partialorder %v2292, 8.507059e+37
    %v2294 = vand.u32 %v2282, 2147483648
    %v2295 = vor.u32 1.1754944e-38, %v2294
    %v2296 = vsel %vm2293, %v2295, %v2291
    %v2297 = vmul.f32 1.0, %v2296
    %v2298 = vtanh.pop %v2277
    %v2299 = vmul.f32 %v2297, %v2031
    %2301 = vrot.lane.b32.xlu0 %v2298, 80
    %v2302 = vpop.permute.xlu0 %2301
    %v2304 = vmul.f32 %v2297, %v2302
    %2306 = vrot.lane.b32.xlu0 %v2304, 24
    %v2307 = vpop.permute.xlu0 %2306
    %v2309 = vadd.f32 %v2299, %v2307
    %v2310 = vtanh.pop %v2309
    %2312 = vrot.lane.b32.xlu0 %v2310, 48
    %v2313 = vpop.permute.xlu0 %2312
    %v2315 = vmul.f32 %v2297, %v2313
    %2317 = vrot.lane.b32.xlu0 %v2315, 56
    %v2318 = vpop.permute.xlu0 %2317
    %2320 = vrot.lane.b32.xlu0 %v2105, 80
    %v2321 = vpop.permute.xlu0 %2320
    %v2323 = vsel %vm505, %v2318, %v2321
    %v2325 = vsel %vm517, %v2323, 0
    %2327 = vmatpush.msra.mxu0 0.0
    %2328 = vmatpush.msra.mxu0 0.0
    %2329 = vmatpush.msra.mxu0 0.0
    %2330 = vmatpush.msra.mxu0 0.0
    %2331 = vmatpush.msra.mxu0 0.0
    %2332 = vmatpush.msra.mxu0 0.0
    %2333 = vmatpush.msra.mxu0 0.0
    %2334 = vmatpush.msra.mxu0 0.0
    %2335 = vmatpush.msra.mxu0 0.0
    %2336 = vmatpush.msra.mxu0 0.0
    %2337 = vmatpush.msra.mxu0 %v795
    %2338 = vmatpush.msra.mxu0 %v794
    %2339 = vmatpush.msra.mxu0 %v793
    %2340 = vmatpush.msra.mxu0 %v792
    %2341 = vmatpush.msra.mxu0 %v791
    %2342 = vmatpush.msra.mxu0 %v790
    %2343 = vmatmul.f32.gmra.mxu0 %v2325
    %v2344 = vpop.f32.mrf.mxu0
    %v2345 = vadd.f32 %v798, %v2344
    %2346 = vdwg.mxu0
    %v2347 = vsub.f32 0.0, %v2345
    %v2348 = vmul.f32 %v2347, 1.442695
    %v2349 = vpow.pop %v2348
    %v2350 = vadd.f32 %v2349, 1.0
    %v2351 = vrcp.pop %v2350
    %v2352 = vmul.f32 %v2350, %v2351
    %v2353 = vsub.f32 1.0, %v2352
    %v2354 = vmul.f32 %v2351, %v2353
    %v2355 = vadd.f32 %v2351, %v2354
    %vm2356 = vweird.f32 %v2350
    %vm2357 = vweird.f32 %v2351
    %vm2358 = vmor %vm2356, %vm2357
    %v2359 = vsel %vm2358, %v2351, %v2355
    %v2360 = vand.u32 2147483647, %v2350
    %vm2361 = vcmp.eq.f32.partialorder %v2360, 8.507059e+37
    %v2362 = vand.u32 %v2350, 2147483648
    %v2363 = vor.u32 1.1754944e-38, %v2362
    %v2364 = vsel %vm2361, %v2363, %v2359
    %v2365 = vmul.f32 1.0, %v2364
    %v2366 = vtanh.pop %v2345
    %v2367 = vmul.f32 %v2365, %v2099
    %2369 = vrot.lane.b32.xlu0 %v2366, 80
    %v2370 = vpop.permute.xlu0 %2369
    %v2372 = vmul.f32 %v2365, %v2370
    %2374 = vrot.lane.b32.xlu0 %v2372, 24
    %v2375 = vpop.permute.xlu0 %2374
    %v2377 = vadd.f32 %v2367, %v2375
    %v2378 = vtanh.pop %v2377
    %2380 = vrot.lane.b32.xlu0 %v2378, 48
    %v2381 = vpop.permute.xlu0 %2380
    %v2383 = vmul.f32 %v2365, %v2381
    %2385 = vrot.lane.b32.xlu0 %v2383, 56
    %v2386 = vpop.permute.xlu0 %2385
    %v2387 = vsel %vm505, %v2386, 0
    %2389 = vmatpush.xpose.msra.mxu0 0.0
    %2390 = vmatpush.xpose.msra.mxu0 0.0
    %2391 = vmatpush.xpose.msra.mxu0 0.0
    %2392 = vmatpush.xpose.msra.mxu0 0.0
    %2393 = vmatpush.xpose.msra.mxu0 0.0
    %2394 = vmatpush.xpose.msra.mxu0 0.0
    %2395 = vmatpush.xpose.msra.mxu0 0.0
    %2396 = vmatpush.xpose.msra.mxu0 0.0
    %2397 = vmatpush.xpose.msra.mxu0 0.0
    %2398 = vmatpush.xpose.msra.mxu0 0.0
    %2399 = vmatpush.xpose.msra.mxu0 0.0
    %2400 = vmatpush.xpose.msra.mxu0 0.0
    %2401 = vmatpush.xpose.msra.mxu0 0.0
    %2402 = vmatpush.xpose.msra.mxu0 0.0
    %2403 = vmatpush.xpose.msra.mxu0 0.0
    %2404 = vmatpush.xpose.msra.mxu0 %v996
    %2405 = vmatmul.f32.gmra.mxu0 %v2387
    %v2406 = vpop.f32.mrf.mxu0
    %v2407 = vadd.f32 0.0, %v2406
    %2408 = vdwg.mxu0
    %v2409 = vsel %vm1018, %v2407, -inf
    %2410 = vmax.xlane.f32.xlu0 %v2409
    %v2411 = vpop.xlane.xlu0 %2410
    %v2412 = vsub.f32 %v2407, %v2411
    %v2413 = vmul.f32 %v2412, 1.442695
    %v2414 = vpow.pop %v2413
    %v2415 = vsel %vm1018, %v2414, 0.0
    %2416 = vadd.xlane.f32.xlu0 %v2415
    %v2417 = vpop.xlane.xlu0 %2416
    %v2418 = vrcp.pop %v2417
    %v2419 = vmul.f32 %v2417, %v2418
    %v2420 = vsub.f32 1.0, %v2419
    %v2421 = vmul.f32 %v2418, %v2420
    %v2422 = vadd.f32 %v2418, %v2421
    %vm2423 = vweird.f32 %v2417
    %vm2424 = vweird.f32 %v2418
    %vm2425 = vmor %vm2423, %vm2424
    %v2426 = vsel %vm2425, %v2418, %v2422
    %v2427 = vand.u32 2147483647, %v2417
    %vm2428 = vcmp.eq.f32.partialorder %v2427, 8.507059e+37
    %v2429 = vand.u32 %v2417, 2147483648
    %v2430 = vor.u32 1.1754944e-38, %v2429
    %v2431 = vsel %vm2428, %v2430, %v2426
    %v2432 = vmul.f32 %v2414, %v2431
    %v2434 = vsel %vm377, %v2432, 0
    %2436 = vmatpush.msra.mxu0 0.0
    %2437 = vmatpush.msra.mxu0 0.0
    %2438 = vmatpush.msra.mxu0 0.0
    %2439 = vmatpush.msra.mxu0 0.0
    %2440 = vmatpush.msra.mxu0 0.0
    %2441 = vmatpush.msra.mxu0 0.0
    %2442 = vmatpush.msra.mxu0 0.0
    %2443 = vmatpush.msra.mxu0 0.0
    %2444 = vmatpush.msra.mxu0 0.0
    %2445 = vmatpush.msra.mxu0 0.0
    %2446 = vmatpush.msra.mxu0 0.0
    %2447 = vmatpush.msra.mxu0 0.0
    %2448 = vmatpush.msra.mxu0 0.0
    %2449 = vmatpush.msra.mxu0 0.0
    %2450 = vmatpush.msra.mxu0 0.0
    %2451 = vmatpush.msra.mxu0 %v302
    %2452 = vmatmul.f32.gmra.mxu0 %v2434
    %v2453 = vpop.f32.mrf.mxu0
    %v2454 = vadd.f32 0.0, %v2453
    %2455 = vdwg.mxu0
    %2458 = vrot.lane.b32.xlu0 %v2454, 24
    %v2459 = vpop.permute.xlu0 %2458
    %v2461 = vsel %vm505, %v2386, %v2459
    %v2462 = vld [vmem:[#allocation14] sm:$0xff]
    %v2463 = vld [vmem:[#allocation14 + $0x8] sm:$0xff]
    %v2464 = vld [vmem:[#allocation14 + $0x10] sm:$0xff]
    %v2465 = vld [vmem:[#allocation14 + $0x18] sm:$0xff]
    %v2466 = vld [vmem:[#allocation14 + $0x20] sm:$0xff]
    %v2467 = vld [vmem:[#allocation14 + $0x28] sm:$0xff]
    %v2468 = vld [vmem:[#allocation14 + $0x30] sm:$0xff]
    %v2469 = vld [vmem:[#allocation14 + $0x38] sm:$0xff]
    %v2470 = vld [vmem:[#allocation14 + $0x40] sm:$0xff]
    %v2471 = vld [vmem:[#allocation15] sm:$0xff]
    %v2472 = vld [vmem:[#allocation15 + $0x8] sm:$0xff]
    %v2473 = vld [vmem:[#allocation15 + $0x10] sm:$0xff]
    %v2474 = vld [vmem:[#allocation15 + $0x18] sm:$0xff]
    %v2475 = vld [vmem:[#allocation15 + $0x20] sm:$0xff]
    %v2476 = vld [vmem:[#allocation15 + $0x28] sm:$0xff]
    %v2477 = vld [vmem:[#allocation17] sm:$0xff]
    %v2478 = vld [vmem:[#allocation17 + $0x8] sm:$0xff]
    %v2479 = vld [vmem:[#allocation17 + $0x10] sm:$0xff]
    %v2480 = vld [vmem:[#allocation17 + $0x18] sm:$0xff]
    %v2481 = vld [vmem:[#allocation17 + $0x20] sm:$0xff]
    %v2482 = vld [vmem:[#allocation17 + $0x28] sm:$0xff]
    %v2483 = vld [vmem:[%s37] sm:$0x1]
    %v2484 = vld [vmem:[%s41] sm:$0x1]
    %v2485 = vld [vmem:[%s45] sm:$0x1]
    %2486 = vmatpush.msra.mxu0 0.0
    %2487 = vmatpush.msra.mxu0 0.0
    %2488 = vmatpush.msra.mxu0 0.0
    %2489 = vmatpush.msra.mxu0 0.0
    %2490 = vmatpush.msra.mxu0 0.0
    %2491 = vmatpush.msra.mxu0 0.0
    %2492 = vmatpush.msra.mxu0 0.0
    %2493 = vmatpush.msra.mxu0 %v2470
    %2494 = vmatpush.msra.mxu0 %v2469
    %2495 = vmatpush.msra.mxu0 %v2468
    %2496 = vmatpush.msra.mxu0 %v2467
    %2497 = vmatpush.msra.mxu0 %v2466
    %2498 = vmatpush.msra.mxu0 %v2465
    %2499 = vmatpush.msra.mxu0 %v2464
    %2500 = vmatpush.msra.mxu0 %v2463
    %2501 = vmatpush.msra.mxu0 %v2462
    %2502 = vmatmul.f32.gmra.mxu0 %v801
    %v2503 = vpop.f32.mrf.mxu0
    %v2504 = vadd.f32 %v2483, %v2503
    %2505 = vdwg.mxu0
    %v2506 = vsub.f32 0.0, %v2504
    %v2507 = vmul.f32 %v2506, 1.442695
    %v2508 = vpow.pop %v2507
    %v2509 = vadd.f32 %v2508, 1.0
    %v2510 = vrcp.pop %v2509
    %v2511 = vmul.f32 %v2509, %v2510
    %v2512 = vsub.f32 1.0, %v2511
    %v2513 = vmul.f32 %v2510, %v2512
    %v2514 = vadd.f32 %v2510, %v2513
    %vm2515 = vweird.f32 %v2509
    %vm2516 = vweird.f32 %v2510
    %vm2517 = vmor %vm2515, %vm2516
    %v2518 = vsel %vm2517, %v2510, %v2514
    %v2519 = vand.u32 2147483647, %v2509
    %vm2520 = vcmp.eq.f32.partialorder %v2519, 8.507059e+37
    %v2521 = vand.u32 %v2509, 2147483648
    %v2522 = vor.u32 1.1754944e-38, %v2521
    %v2523 = vsel %vm2520, %v2522, %v2518
    %v2524 = vmul.f32 1.0, %v2523
    %v2525 = vtanh.pop %v2504
    %v2526 = vmul.f32 %v2524, 0.0
    %2528 = vrot.lane.b32.xlu0 %v2525, 80
    %v2529 = vpop.permute.xlu0 %2528
    %v2531 = vmul.f32 %v2524, %v2529
    %2533 = vrot.lane.b32.xlu0 %v2531, 24
    %v2534 = vpop.permute.xlu0 %2533
    %v2536 = vadd.f32 %v2526, %v2534
    %v2537 = vtanh.pop %v2536
    %2539 = vrot.lane.b32.xlu0 %v2537, 48
    %v2540 = vpop.permute.xlu0 %2539
    %v2542 = vmul.f32 %v2524, %v2540
    %2544 = vrot.lane.b32.xlu0 %v2542, 56
    %v2545 = vpop.permute.xlu0 %2544
    %v2547 = vsel %vm505, %v2545, 0.0
    %v2549 = vsel %vm517, %v2547, 0
    %2551 = vmatpush.msra.mxu0 0.0
    %2552 = vmatpush.msra.mxu0 0.0
    %2553 = vmatpush.msra.mxu0 0.0
    %2554 = vmatpush.msra.mxu0 0.0
    %2555 = vmatpush.msra.mxu0 0.0
    %2556 = vmatpush.msra.mxu0 0.0
    %2557 = vmatpush.msra.mxu0 0.0
    %2558 = vmatpush.msra.mxu0 0.0
    %2559 = vmatpush.msra.mxu0 0.0
    %2560 = vmatpush.msra.mxu0 0.0
    %2561 = vmatpush.msra.mxu0 %v2476
    %2562 = vmatpush.msra.mxu0 %v2475
    %2563 = vmatpush.msra.mxu0 %v2474
    %2564 = vmatpush.msra.mxu0 %v2473
    %2565 = vmatpush.msra.mxu0 %v2472
    %2566 = vmatpush.msra.mxu0 %v2471
    %2567 = vmatmul.f32.gmra.mxu0 %v2549
    %v2568 = vpop.f32.mrf.mxu0
    %v2569 = vadd.f32 %v2484, %v2568
    %2570 = vdwg.mxu0
    %v2571 = vsub.f32 0.0, %v2569
    %v2572 = vmul.f32 %v2571, 1.442695
    %v2573 = vpow.pop %v2572
    %v2574 = vadd.f32 %v2573, 1.0
    %v2575 = vrcp.pop %v2574
    %v2576 = vmul.f32 %v2574, %v2575
    %v2577 = vsub.f32 1.0, %v2576
    %v2578 = vmul.f32 %v2575, %v2577
    %v2579 = vadd.f32 %v2575, %v2578
    %vm2580 = vweird.f32 %v2574
    %vm2581 = vweird.f32 %v2575
    %vm2582 = vmor %vm2580, %vm2581
    %v2583 = vsel %vm2582, %v2575, %v2579
    %v2584 = vand.u32 2147483647, %v2574
    %vm2585 = vcmp.eq.f32.partialorder %v2584, 8.507059e+37
    %v2586 = vand.u32 %v2574, 2147483648
    %v2587 = vor.u32 1.1754944e-38, %v2586
    %v2588 = vsel %vm2585, %v2587, %v2583
    %v2589 = vmul.f32 1.0, %v2588
    %v2590 = vtanh.pop %v2569
    %v2591 = vmul.f32 %v2589, 0.0
    %2593 = vrot.lane.b32.xlu0 %v2590, 80
    %v2594 = vpop.permute.xlu0 %2593
    %v2596 = vmul.f32 %v2589, %v2594
    %2598 = vrot.lane.b32.xlu0 %v2596, 24
    %v2599 = vpop.permute.xlu0 %2598
    %v2601 = vadd.f32 %v2591, %v2599
    %v2602 = vtanh.pop %v2601
    %2604 = vrot.lane.b32.xlu0 %v2602, 48
    %v2605 = vpop.permute.xlu0 %2604
    %v2607 = vmul.f32 %v2589, %v2605
    %2609 = vrot.lane.b32.xlu0 %v2607, 56
    %v2610 = vpop.permute.xlu0 %2609
    %v2612 = vsel %vm505, %v2610, 0.0
    %v2614 = vsel %vm517, %v2612, 0
    %2616 = vmatpush.msra.mxu0 0.0
    %2617 = vmatpush.msra.mxu0 0.0
    %2618 = vmatpush.msra.mxu0 0.0
    %2619 = vmatpush.msra.mxu0 0.0
    %2620 = vmatpush.msra.mxu0 0.0
    %2621 = vmatpush.msra.mxu0 0.0
    %2622 = vmatpush.msra.mxu0 0.0
    %2623 = vmatpush.msra.mxu0 0.0
    %2624 = vmatpush.msra.mxu0 0.0
    %2625 = vmatpush.msra.mxu0 0.0
    %2626 = vmatpush.msra.mxu0 %v2482
    %2627 = vmatpush.msra.mxu0 %v2481
    %2628 = vmatpush.msra.mxu0 %v2480
    %2629 = vmatpush.msra.mxu0 %v2479
    %2630 = vmatpush.msra.mxu0 %v2478
    %2631 = vmatpush.msra.mxu0 %v2477
    %2632 = vmatmul.f32.gmra.mxu0 %v2614
    %v2633 = vpop.f32.mrf.mxu0
    %v2634 = vadd.f32 %v2485, %v2633
    %2635 = vdwg.mxu0
    %v2636 = vsub.f32 0.0, %v2634
    %v2637 = vmul.f32 %v2636, 1.442695
    %v2638 = vpow.pop %v2637
    %v2639 = vadd.f32 %v2638, 1.0
    %v2640 = vrcp.pop %v2639
    %v2641 = vmul.f32 %v2639, %v2640
    %v2642 = vsub.f32 1.0, %v2641
    %v2643 = vmul.f32 %v2640, %v2642
    %v2644 = vadd.f32 %v2640, %v2643
    %vm2645 = vweird.f32 %v2639
    %vm2646 = vweird.f32 %v2640
    %vm2647 = vmor %vm2645, %vm2646
    %v2648 = vsel %vm2647, %v2640, %v2644
    %v2649 = vand.u32 2147483647, %v2639
    %vm2650 = vcmp.eq.f32.partialorder %v2649, 8.507059e+37
    %v2651 = vand.u32 %v2639, 2147483648
    %v2652 = vor.u32 1.1754944e-38, %v2651
    %v2653 = vsel %vm2650, %v2652, %v2648
    %v2654 = vmul.f32 1.0, %v2653
    %v2655 = vtanh.pop %v2634
    %v2656 = vmul.f32 %v2654, 0.0
    %2658 = vrot.lane.b32.xlu0 %v2655, 80
    %v2659 = vpop.permute.xlu0 %2658
    %v2661 = vmul.f32 %v2654, %v2659
    %2663 = vrot.lane.b32.xlu0 %v2661, 24
    %v2664 = vpop.permute.xlu0 %2663
    %v2666 = vadd.f32 %v2656, %v2664
    %v2667 = vtanh.pop %v2666
    %2669 = vrot.lane.b32.xlu0 %v2667, 48
    %v2670 = vpop.permute.xlu0 %2669
    %v2672 = vmul.f32 %v2654, %v2670
    %2674 = vrot.lane.b32.xlu0 %v2672, 56
    %v2675 = vpop.permute.xlu0 %2674
    %v2676 = vsel %vm505, %v2675, 0
    %v2679 = vsel %vm505, %v773, 0
    %v2682 = vsel %vm505, %v774, 0
    %2684 = vmatpush.xpose.msra.mxu0 0.0
    %2685 = vmatpush.xpose.msra.mxu0 0.0
    %2686 = vmatpush.xpose.msra.mxu0 0.0
    %2687 = vmatpush.xpose.msra.mxu0 0.0
    %2688 = vmatpush.xpose.msra.mxu0 0.0
    %2689 = vmatpush.xpose.msra.mxu0 0.0
    %2690 = vmatpush.xpose.msra.mxu0 0.0
    %2691 = vmatpush.xpose.msra.mxu0 0.0
    %2692 = vmatpush.xpose.msra.mxu0 0.0
    %2693 = vmatpush.xpose.msra.mxu0 0.0
    %2694 = vmatpush.xpose.msra.mxu0 0.0
    %2695 = vmatpush.xpose.msra.mxu0 0.0
    %2696 = vmatpush.xpose.msra.mxu0 0.0
    %2697 = vmatpush.xpose.msra.mxu0 0.0
    %2698 = vmatpush.xpose.msra.mxu0 %v2682
    %2699 = vmatpush.xpose.msra.mxu0 %v2679
    %2700 = vmatmul.f32.gmra.mxu0 %v2676
    %v2701 = vpop.f32.mrf.mxu0
    %v2702 = vadd.f32 0.0, %v2701
    %2703 = vdwg.mxu0
    %vm2704 = vcmask 90112
    %v2705 = vsel %vm2704, %v2702, -inf
    %2706 = vmax.xlane.f32.xlu0 %v2705
    %v2707 = vpop.xlane.xlu0 %2706
    %v2708 = vsub.f32 %v2702, %v2707
    %v2709 = vmul.f32 %v2708, 1.442695
    %v2710 = vpow.pop %v2709
    %v2711 = vsel %vm2704, %v2710, 0.0
    %2712 = vadd.xlane.f32.xlu0 %v2711
    %v2713 = vpop.xlane.xlu0 %2712
    %v2714 = vrcp.pop %v2713
    %v2715 = vmul.f32 %v2713, %v2714
    %v2716 = vsub.f32 1.0, %v2715
    %v2717 = vmul.f32 %v2714, %v2716
    %v2718 = vadd.f32 %v2714, %v2717
    %vm2719 = vweird.f32 %v2713
    %vm2720 = vweird.f32 %v2714
    %vm2721 = vmor %vm2719, %vm2720
    %v2722 = vsel %vm2721, %v2714, %v2718
    %v2723 = vand.u32 2147483647, %v2713
    %vm2724 = vcmp.eq.f32.partialorder %v2723, 8.507059e+37
    %v2725 = vand.u32 %v2713, 2147483648
    %v2726 = vor.u32 1.1754944e-38, %v2725
    %v2727 = vsel %vm2724, %v2726, %v2722
    %v2728 = vmul.f32 %v2710, %v2727
    %vm2729 = vcmask 97280
    %v2731 = vsel %vm2729, %v2728, 0
    %vm2733 = vcmask 1043456
    %v2734 = vsel %vm2733, %v774, 0
    %2736 = vmatpush.msra.mxu0 0.0
    %2737 = vmatpush.msra.mxu0 0.0
    %2738 = vmatpush.msra.mxu0 0.0
    %2739 = vmatpush.msra.mxu0 0.0
    %2740 = vmatpush.msra.mxu0 0.0
    %2741 = vmatpush.msra.mxu0 0.0
    %2742 = vmatpush.msra.mxu0 0.0
    %2743 = vmatpush.msra.mxu0 0.0
    %2744 = vmatpush.msra.mxu0 0.0
    %2745 = vmatpush.msra.mxu0 0.0
    %2746 = vmatpush.msra.mxu0 0.0
    %2747 = vmatpush.msra.mxu0 0.0
    %2748 = vmatpush.msra.mxu0 0.0
    %2749 = vmatpush.msra.mxu0 0.0
    %2750 = vmatpush.msra.mxu0 %v2734
    %2751 = vmatpush.msra.mxu0 %v773
    %2752 = vmatmul.f32.gmra.mxu0 %v2731
    %v2753 = vpop.f32.mrf.mxu0
    %v2754 = vadd.f32 0.0, %v2753
    %2755 = vdwg.mxu0
    %2758 = vrot.lane.b32.xlu0 %v2754, 24
    %v2759 = vpop.permute.xlu0 %2758
    %v2761 = vsel %vm505, %v2675, %v2759
    %2762 = vrot.lane.b32.xlu0 %v2542, 104
    %v2763 = vpop.permute.xlu0 %2762
    %v2765 = vsel %vm517, %v2761, %v2763
    %v2767 = vsel %vm799, %v2765, 0
    %2769 = vmatpush.msra.mxu0 0.0
    %2770 = vmatpush.msra.mxu0 0.0
    %2771 = vmatpush.msra.mxu0 0.0
    %2772 = vmatpush.msra.mxu0 0.0
    %2773 = vmatpush.msra.mxu0 0.0
    %2774 = vmatpush.msra.mxu0 0.0
    %2775 = vmatpush.msra.mxu0 0.0
    %2776 = vmatpush.msra.mxu0 %v2470
    %2777 = vmatpush.msra.mxu0 %v2469
    %2778 = vmatpush.msra.mxu0 %v2468
    %2779 = vmatpush.msra.mxu0 %v2467
    %2780 = vmatpush.msra.mxu0 %v2466
    %2781 = vmatpush.msra.mxu0 %v2465
    %2782 = vmatpush.msra.mxu0 %v2464
    %2783 = vmatpush.msra.mxu0 %v2463
    %2784 = vmatpush.msra.mxu0 %v2462
    %2785 = vmatmul.f32.gmra.mxu0 %v2767
    %v2786 = vpop.f32.mrf.mxu0
    %v2787 = vadd.f32 %v2483, %v2786
    %2788 = vdwg.mxu0
    %v2789 = vsub.f32 0.0, %v2787
    %v2790 = vmul.f32 %v2789, 1.442695
    %v2791 = vpow.pop %v2790
    %v2792 = vadd.f32 %v2791, 1.0
    %v2793 = vrcp.pop %v2792
    %v2794 = vmul.f32 %v2792, %v2793
    %v2795 = vsub.f32 1.0, %v2794
    %v2796 = vmul.f32 %v2793, %v2795
    %v2797 = vadd.f32 %v2793, %v2796
    %vm2798 = vweird.f32 %v2792
    %vm2799 = vweird.f32 %v2793
    %vm2800 = vmor %vm2798, %vm2799
    %v2801 = vsel %vm2800, %v2793, %v2797
    %v2802 = vand.u32 2147483647, %v2792
    %vm2803 = vcmp.eq.f32.partialorder %v2802, 8.507059e+37
    %v2804 = vand.u32 %v2792, 2147483648
    %v2805 = vor.u32 1.1754944e-38, %v2804
    %v2806 = vsel %vm2803, %v2805, %v2801
    %v2807 = vmul.f32 1.0, %v2806
    %v2808 = vtanh.pop %v2787
    %v2809 = vmul.f32 %v2807, %v2536
    %2811 = vrot.lane.b32.xlu0 %v2808, 80
    %v2812 = vpop.permute.xlu0 %2811
    %v2814 = vmul.f32 %v2807, %v2812
    %2816 = vrot.lane.b32.xlu0 %v2814, 24
    %v2817 = vpop.permute.xlu0 %2816
    %v2819 = vadd.f32 %v2809, %v2817
    %v2820 = vtanh.pop %v2819
    %2822 = vrot.lane.b32.xlu0 %v2820, 48
    %v2823 = vpop.permute.xlu0 %2822
    %v2825 = vmul.f32 %v2807, %v2823
    %2827 = vrot.lane.b32.xlu0 %v2825, 56
    %v2828 = vpop.permute.xlu0 %2827
    %2830 = vrot.lane.b32.xlu0 %v2607, 80
    %v2831 = vpop.permute.xlu0 %2830
    %v2833 = vsel %vm505, %v2828, %v2831
    %v2835 = vsel %vm517, %v2833, 0
    %2837 = vmatpush.msra.mxu0 0.0
    %2838 = vmatpush.msra.mxu0 0.0
    %2839 = vmatpush.msra.mxu0 0.0
    %2840 = vmatpush.msra.mxu0 0.0
    %2841 = vmatpush.msra.mxu0 0.0
    %2842 = vmatpush.msra.mxu0 0.0
    %2843 = vmatpush.msra.mxu0 0.0
    %2844 = vmatpush.msra.mxu0 0.0
    %2845 = vmatpush.msra.mxu0 0.0
    %2846 = vmatpush.msra.mxu0 0.0
    %2847 = vmatpush.msra.mxu0 %v2476
    %2848 = vmatpush.msra.mxu0 %v2475
    %2849 = vmatpush.msra.mxu0 %v2474
    %2850 = vmatpush.msra.mxu0 %v2473
    %2851 = vmatpush.msra.mxu0 %v2472
    %2852 = vmatpush.msra.mxu0 %v2471
    %2853 = vmatmul.f32.gmra.mxu0 %v2835
    %v2854 = vpop.f32.mrf.mxu0
    %v2855 = vadd.f32 %v2484, %v2854
    %2856 = vdwg.mxu0
    %v2857 = vsub.f32 0.0, %v2855
    %v2858 = vmul.f32 %v2857, 1.442695
    %v2859 = vpow.pop %v2858
    %v2860 = vadd.f32 %v2859, 1.0
    %v2861 = vrcp.pop %v2860
    %v2862 = vmul.f32 %v2860, %v2861
    %v2863 = vsub.f32 1.0, %v2862
    %v2864 = vmul.f32 %v2861, %v2863
    %v2865 = vadd.f32 %v2861, %v2864
    %vm2866 = vweird.f32 %v2860
    %vm2867 = vweird.f32 %v2861
    %vm2868 = vmor %vm2866, %vm2867
    %v2869 = vsel %vm2868, %v2861, %v2865
    %v2870 = vand.u32 2147483647, %v2860
    %vm2871 = vcmp.eq.f32.partialorder %v2870, 8.507059e+37
    %v2872 = vand.u32 %v2860, 2147483648
    %v2873 = vor.u32 1.1754944e-38, %v2872
    %v2874 = vsel %vm2871, %v2873, %v2869
    %v2875 = vmul.f32 1.0, %v2874
    %v2876 = vtanh.pop %v2855
    %v2877 = vmul.f32 %v2875, %v2601
    %2879 = vrot.lane.b32.xlu0 %v2876, 80
    %v2880 = vpop.permute.xlu0 %2879
    %v2882 = vmul.f32 %v2875, %v2880
    %2884 = vrot.lane.b32.xlu0 %v2882, 24
    %v2885 = vpop.permute.xlu0 %2884
    %v2887 = vadd.f32 %v2877, %v2885
    %v2888 = vtanh.pop %v2887
    %2890 = vrot.lane.b32.xlu0 %v2888, 48
    %v2891 = vpop.permute.xlu0 %2890
    %v2893 = vmul.f32 %v2875, %v2891
    %2895 = vrot.lane.b32.xlu0 %v2893, 56
    %v2896 = vpop.permute.xlu0 %2895
    %2898 = vrot.lane.b32.xlu0 %v2672, 80
    %v2899 = vpop.permute.xlu0 %2898
    %v2901 = vsel %vm505, %v2896, %v2899
    %v2903 = vsel %vm517, %v2901, 0
    %2905 = vmatpush.msra.mxu0 0.0
    %2906 = vmatpush.msra.mxu0 0.0
    %2907 = vmatpush.msra.mxu0 0.0
    %2908 = vmatpush.msra.mxu0 0.0
    %2909 = vmatpush.msra.mxu0 0.0
    %2910 = vmatpush.msra.mxu0 0.0
    %2911 = vmatpush.msra.mxu0 0.0
    %2912 = vmatpush.msra.mxu0 0.0
    %2913 = vmatpush.msra.mxu0 0.0
    %2914 = vmatpush.msra.mxu0 0.0
    %2915 = vmatpush.msra.mxu0 %v2482
    %2916 = vmatpush.msra.mxu0 %v2481
    %2917 = vmatpush.msra.mxu0 %v2480
    %2918 = vmatpush.msra.mxu0 %v2479
    %2919 = vmatpush.msra.mxu0 %v2478
    %2920 = vmatpush.msra.mxu0 %v2477
    %2921 = vmatmul.f32.gmra.mxu0 %v2903
    %v2922 = vpop.f32.mrf.mxu0
    %v2923 = vadd.f32 %v2485, %v2922
    %2924 = vdwg.mxu0
    %v2925 = vsub.f32 0.0, %v2923
    %v2926 = vmul.f32 %v2925, 1.442695
    %v2927 = vpow.pop %v2926
    %v2928 = vadd.f32 %v2927, 1.0
    %v2929 = vrcp.pop %v2928
    %v2930 = vmul.f32 %v2928, %v2929
    %v2931 = vsub.f32 1.0, %v2930
    %v2932 = vmul.f32 %v2929, %v2931
    %v2933 = vadd.f32 %v2929, %v2932
    %vm2934 = vweird.f32 %v2928
    %vm2935 = vweird.f32 %v2929
    %vm2936 = vmor %vm2934, %vm2935
    %v2937 = vsel %vm2936, %v2929, %v2933
    %v2938 = vand.u32 2147483647, %v2928
    %vm2939 = vcmp.eq.f32.partialorder %v2938, 8.507059e+37
    %v2940 = vand.u32 %v2928, 2147483648
    %v2941 = vor.u32 1.1754944e-38, %v2940
    %v2942 = vsel %vm2939, %v2941, %v2937
    %v2943 = vmul.f32 1.0, %v2942
    %v2944 = vtanh.pop %v2923
    %v2945 = vmul.f32 %v2943, %v2666
    %2947 = vrot.lane.b32.xlu0 %v2944, 80
    %v2948 = vpop.permute.xlu0 %2947
    %v2950 = vmul.f32 %v2943, %v2948
    %2952 = vrot.lane.b32.xlu0 %v2950, 24
    %v2953 = vpop.permute.xlu0 %2952
    %v2955 = vadd.f32 %v2945, %v2953
    %v2956 = vtanh.pop %v2955
    %2958 = vrot.lane.b32.xlu0 %v2956, 48
    %v2959 = vpop.permute.xlu0 %2958
    %v2961 = vmul.f32 %v2943, %v2959
    %2963 = vrot.lane.b32.xlu0 %v2961, 56
    %v2964 = vpop.permute.xlu0 %2963
    %v2965 = vsel %vm505, %v2964, 0
    %2967 = vmatpush.xpose.msra.mxu0 0.0
    %2968 = vmatpush.xpose.msra.mxu0 0.0
    %2969 = vmatpush.xpose.msra.mxu0 0.0
    %2970 = vmatpush.xpose.msra.mxu0 0.0
    %2971 = vmatpush.xpose.msra.mxu0 0.0
    %2972 = vmatpush.xpose.msra.mxu0 0.0
    %2973 = vmatpush.xpose.msra.mxu0 0.0
    %2974 = vmatpush.xpose.msra.mxu0 0.0
    %2975 = vmatpush.xpose.msra.mxu0 0.0
    %2976 = vmatpush.xpose.msra.mxu0 0.0
    %2977 = vmatpush.xpose.msra.mxu0 0.0
    %2978 = vmatpush.xpose.msra.mxu0 0.0
    %2979 = vmatpush.xpose.msra.mxu0 0.0
    %2980 = vmatpush.xpose.msra.mxu0 0.0
    %2981 = vmatpush.xpose.msra.mxu0 %v2682
    %2982 = vmatpush.xpose.msra.mxu0 %v2679
    %2983 = vmatmul.f32.gmra.mxu0 %v2965
    %v2984 = vpop.f32.mrf.mxu0
    %v2985 = vadd.f32 0.0, %v2984
    %2986 = vdwg.mxu0
    %v2987 = vsel %vm2704, %v2985, -inf
    %2988 = vmax.xlane.f32.xlu0 %v2987
    %v2989 = vpop.xlane.xlu0 %2988
    %v2990 = vsub.f32 %v2985, %v2989
    %v2991 = vmul.f32 %v2990, 1.442695
    %v2992 = vpow.pop %v2991
    %v2993 = vsel %vm2704, %v2992, 0.0
    %2994 = vadd.xlane.f32.xlu0 %v2993
    %v2995 = vpop.xlane.xlu0 %2994
    %v2996 = vrcp.pop %v2995
    %v2997 = vmul.f32 %v2995, %v2996
    %v2998 = vsub.f32 1.0, %v2997
    %v2999 = vmul.f32 %v2996, %v2998
    %v3000 = vadd.f32 %v2996, %v2999
    %vm3001 = vweird.f32 %v2995
    %vm3002 = vweird.f32 %v2996
    %vm3003 = vmor %vm3001, %vm3002
    %v3004 = vsel %vm3003, %v2996, %v3000
    %v3005 = vand.u32 2147483647, %v2995
    %vm3006 = vcmp.eq.f32.partialorder %v3005, 8.507059e+37
    %v3007 = vand.u32 %v2995, 2147483648
    %v3008 = vor.u32 1.1754944e-38, %v3007
    %v3009 = vsel %vm3006, %v3008, %v3004
    %v3010 = vmul.f32 %v2992, %v3009
    %v3012 = vsel %vm2729, %v3010, 0
    %3014 = vmatpush.msra.mxu0 0.0
    %3015 = vmatpush.msra.mxu0 0.0
    %3016 = vmatpush.msra.mxu0 0.0
    %3017 = vmatpush.msra.mxu0 0.0
    %3018 = vmatpush.msra.mxu0 0.0
    %3019 = vmatpush.msra.mxu0 0.0
    %3020 = vmatpush.msra.mxu0 0.0
    %3021 = vmatpush.msra.mxu0 0.0
    %3022 = vmatpush.msra.mxu0 0.0
    %3023 = vmatpush.msra.mxu0 0.0
    %3024 = vmatpush.msra.mxu0 0.0
    %3025 = vmatpush.msra.mxu0 0.0
    %3026 = vmatpush.msra.mxu0 0.0
    %3027 = vmatpush.msra.mxu0 0.0
    %3028 = vmatpush.msra.mxu0 %v2734
    %3029 = vmatpush.msra.mxu0 %v773
    %3030 = vmatmul.f32.gmra.mxu0 %v3012
    %v3031 = vpop.f32.mrf.mxu0
    %v3032 = vadd.f32 0.0, %v3031
    %3033 = vdwg.mxu0
    %3036 = vrot.lane.b32.xlu0 %v3032, 24
    %v3037 = vpop.permute.xlu0 %3036
    %v3039 = vsel %vm505, %v2964, %v3037
    %3040 = vrot.lane.b32.xlu0 %v2825, 104
    %v3041 = vpop.permute.xlu0 %3040
    %v3043 = vsel %vm517, %v3039, %v3041
    %v3045 = vsel %vm799, %v3043, 0
    %3047 = vmatpush.msra.mxu0 0.0
    %3048 = vmatpush.msra.mxu0 0.0
    %3049 = vmatpush.msra.mxu0 0.0
    %3050 = vmatpush.msra.mxu0 0.0
    %3051 = vmatpush.msra.mxu0 0.0
    %3052 = vmatpush.msra.mxu0 0.0
    %3053 = vmatpush.msra.mxu0 0.0
    %3054 = vmatpush.msra.mxu0 %v2470
    %3055 = vmatpush.msra.mxu0 %v2469
    %3056 = vmatpush.msra.mxu0 %v2468
    %3057 = vmatpush.msra.mxu0 %v2467
    %3058 = vmatpush.msra.mxu0 %v2466
    %3059 = vmatpush.msra.mxu0 %v2465
    %3060 = vmatpush.msra.mxu0 %v2464
    %3061 = vmatpush.msra.mxu0 %v2463
    %3062 = vmatpush.msra.mxu0 %v2462
    %3063 = vmatmul.f32.gmra.mxu0 %v3045
    %v3064 = vpop.f32.mrf.mxu0
    %v3065 = vadd.f32 %v2483, %v3064
    %3066 = vdwg.mxu0
    %v3067 = vsub.f32 0.0, %v3065
    %v3068 = vmul.f32 %v3067, 1.442695
    %v3069 = vpow.pop %v3068
    %v3070 = vadd.f32 %v3069, 1.0
    %v3071 = vrcp.pop %v3070
    %v3072 = vmul.f32 %v3070, %v3071
    %v3073 = vsub.f32 1.0, %v3072
    %v3074 = vmul.f32 %v3071, %v3073
    %v3075 = vadd.f32 %v3071, %v3074
    %vm3076 = vweird.f32 %v3070
    %vm3077 = vweird.f32 %v3071
    %vm3078 = vmor %vm3076, %vm3077
    %v3079 = vsel %vm3078, %v3071, %v3075
    %v3080 = vand.u32 2147483647, %v3070
    %vm3081 = vcmp.eq.f32.partialorder %v3080, 8.507059e+37
    %v3082 = vand.u32 %v3070, 2147483648
    %v3083 = vor.u32 1.1754944e-38, %v3082
    %v3084 = vsel %vm3081, %v3083, %v3079
    %v3085 = vmul.f32 1.0, %v3084
    %v3086 = vtanh.pop %v3065
    %v3087 = vmul.f32 %v3085, %v2819
    %3089 = vrot.lane.b32.xlu0 %v3086, 80
    %v3090 = vpop.permute.xlu0 %3089
    %v3092 = vmul.f32 %v3085, %v3090
    %3094 = vrot.lane.b32.xlu0 %v3092, 24
    %v3095 = vpop.permute.xlu0 %3094
    %v3097 = vadd.f32 %v3087, %v3095
    %v3098 = vtanh.pop %v3097
    %3100 = vrot.lane.b32.xlu0 %v3098, 48
    %v3101 = vpop.permute.xlu0 %3100
    %v3103 = vmul.f32 %v3085, %v3101
    %3105 = vrot.lane.b32.xlu0 %v3103, 56
    %v3106 = vpop.permute.xlu0 %3105
    %3108 = vrot.lane.b32.xlu0 %v2893, 80
    %v3109 = vpop.permute.xlu0 %3108
    %v3111 = vsel %vm505, %v3106, %v3109
    %v3113 = vsel %vm517, %v3111, 0
    %3115 = vmatpush.msra.mxu0 0.0
    %3116 = vmatpush.msra.mxu0 0.0
    %3117 = vmatpush.msra.mxu0 0.0
    %3118 = vmatpush.msra.mxu0 0.0
    %3119 = vmatpush.msra.mxu0 0.0
    %3120 = vmatpush.msra.mxu0 0.0
    %3121 = vmatpush.msra.mxu0 0.0
    %3122 = vmatpush.msra.mxu0 0.0
    %3123 = vmatpush.msra.mxu0 0.0
    %3124 = vmatpush.msra.mxu0 0.0
    %3125 = vmatpush.msra.mxu0 %v2476
    %3126 = vmatpush.msra.mxu0 %v2475
    %3127 = vmatpush.msra.mxu0 %v2474
    %3128 = vmatpush.msra.mxu0 %v2473
    %3129 = vmatpush.msra.mxu0 %v2472
    %3130 = vmatpush.msra.mxu0 %v2471
    %3131 = vmatmul.f32.gmra.mxu0 %v3113
    %v3132 = vpop.f32.mrf.mxu0
    %v3133 = vadd.f32 %v2484, %v3132
    %3134 = vdwg.mxu0
    %v3135 = vsub.f32 0.0, %v3133
    %v3136 = vmul.f32 %v3135, 1.442695
    %v3137 = vpow.pop %v3136
    %v3138 = vadd.f32 %v3137, 1.0
    %v3139 = vrcp.pop %v3138
    %v3140 = vmul.f32 %v3138, %v3139
    %v3141 = vsub.f32 1.0, %v3140
    %v3142 = vmul.f32 %v3139, %v3141
    %v3143 = vadd.f32 %v3139, %v3142
    %vm3144 = vweird.f32 %v3138
    %vm3145 = vweird.f32 %v3139
    %vm3146 = vmor %vm3144, %vm3145
    %v3147 = vsel %vm3146, %v3139, %v3143
    %v3148 = vand.u32 2147483647, %v3138
    %vm3149 = vcmp.eq.f32.partialorder %v3148, 8.507059e+37
    %v3150 = vand.u32 %v3138, 2147483648
    %v3151 = vor.u32 1.1754944e-38, %v3150
    %v3152 = vsel %vm3149, %v3151, %v3147
    %v3153 = vmul.f32 1.0, %v3152
    %v3154 = vtanh.pop %v3133
    %v3155 = vmul.f32 %v3153, %v2887
    %3157 = vrot.lane.b32.xlu0 %v3154, 80
    %v3158 = vpop.permute.xlu0 %3157
    %v3160 = vmul.f32 %v3153, %v3158
    %3162 = vrot.lane.b32.xlu0 %v3160, 24
    %v3163 = vpop.permute.xlu0 %3162
    %v3165 = vadd.f32 %v3155, %v3163
    %v3166 = vtanh.pop %v3165
    %3168 = vrot.lane.b32.xlu0 %v3166, 48
    %v3169 = vpop.permute.xlu0 %3168
    %v3171 = vmul.f32 %v3153, %v3169
    %3173 = vrot.lane.b32.xlu0 %v3171, 56
    %v3174 = vpop.permute.xlu0 %3173
    %3176 = vrot.lane.b32.xlu0 %v2961, 80
    %v3177 = vpop.permute.xlu0 %3176
    %v3179 = vsel %vm505, %v3174, %v3177
    %v3181 = vsel %vm517, %v3179, 0
    %3183 = vmatpush.msra.mxu0 0.0
    %3184 = vmatpush.msra.mxu0 0.0
    %3185 = vmatpush.msra.mxu0 0.0
    %3186 = vmatpush.msra.mxu0 0.0
    %3187 = vmatpush.msra.mxu0 0.0
    %3188 = vmatpush.msra.mxu0 0.0
    %3189 = vmatpush.msra.mxu0 0.0
    %3190 = vmatpush.msra.mxu0 0.0
    %3191 = vmatpush.msra.mxu0 0.0
    %3192 = vmatpush.msra.mxu0 0.0
    %3193 = vmatpush.msra.mxu0 %v2482
    %3194 = vmatpush.msra.mxu0 %v2481
    %3195 = vmatpush.msra.mxu0 %v2480
    %3196 = vmatpush.msra.mxu0 %v2479
    %3197 = vmatpush.msra.mxu0 %v2478
    %3198 = vmatpush.msra.mxu0 %v2477
    %3199 = vmatmul.f32.gmra.mxu0 %v3181
    %v3200 = vpop.f32.mrf.mxu0
    %v3201 = vadd.f32 %v2485, %v3200
    %3202 = vdwg.mxu0
    %v3203 = vsub.f32 0.0, %v3201
    %v3204 = vmul.f32 %v3203, 1.442695
    %v3205 = vpow.pop %v3204
    %v3206 = vadd.f32 %v3205, 1.0
    %v3207 = vrcp.pop %v3206
    %v3208 = vmul.f32 %v3206, %v3207
    %v3209 = vsub.f32 1.0, %v3208
    %v3210 = vmul.f32 %v3207, %v3209
    %v3211 = vadd.f32 %v3207, %v3210
    %vm3212 = vweird.f32 %v3206
    %vm3213 = vweird.f32 %v3207
    %vm3214 = vmor %vm3212, %vm3213
    %v3215 = vsel %vm3214, %v3207, %v3211
    %v3216 = vand.u32 2147483647, %v3206
    %vm3217 = vcmp.eq.f32.partialorder %v3216, 8.507059e+37
    %v3218 = vand.u32 %v3206, 2147483648
    %v3219 = vor.u32 1.1754944e-38, %v3218
    %v3220 = vsel %vm3217, %v3219, %v3215
    %v3221 = vmul.f32 1.0, %v3220
    %v3222 = vtanh.pop %v3201
    %v3223 = vmul.f32 %v3221, %v2955
    %3225 = vrot.lane.b32.xlu0 %v3222, 80
    %v3226 = vpop.permute.xlu0 %3225
    %v3228 = vmul.f32 %v3221, %v3226
    %3230 = vrot.lane.b32.xlu0 %v3228, 24
    %v3231 = vpop.permute.xlu0 %3230
    %v3233 = vadd.f32 %v3223, %v3231
    %v3234 = vtanh.pop %v3233
    %3236 = vrot.lane.b32.xlu0 %v3234, 48
    %v3237 = vpop.permute.xlu0 %3236
    %v3239 = vmul.f32 %v3221, %v3237
    %3241 = vrot.lane.b32.xlu0 %v3239, 56
    %v3242 = vpop.permute.xlu0 %3241
    %v3243 = vsel %vm505, %v3242, 0
    %3245 = vmatpush.xpose.msra.mxu0 0.0
    %3246 = vmatpush.xpose.msra.mxu0 0.0
    %3247 = vmatpush.xpose.msra.mxu0 0.0
    %3248 = vmatpush.xpose.msra.mxu0 0.0
    %3249 = vmatpush.xpose.msra.mxu0 0.0
    %3250 = vmatpush.xpose.msra.mxu0 0.0
    %3251 = vmatpush.xpose.msra.mxu0 0.0
    %3252 = vmatpush.xpose.msra.mxu0 0.0
    %3253 = vmatpush.xpose.msra.mxu0 0.0
    %3254 = vmatpush.xpose.msra.mxu0 0.0
    %3255 = vmatpush.xpose.msra.mxu0 0.0
    %3256 = vmatpush.xpose.msra.mxu0 0.0
    %3257 = vmatpush.xpose.msra.mxu0 0.0
    %3258 = vmatpush.xpose.msra.mxu0 0.0
    %3259 = vmatpush.xpose.msra.mxu0 %v2682
    %3260 = vmatpush.xpose.msra.mxu0 %v2679
    %3261 = vmatmul.f32.gmra.mxu0 %v3243
    %v3262 = vpop.f32.mrf.mxu0
    %v3263 = vadd.f32 0.0, %v3262
    %3264 = vdwg.mxu0
    %v3265 = vsel %vm2704, %v3263, -inf
    %3266 = vmax.xlane.f32.xlu0 %v3265
    %v3267 = vpop.xlane.xlu0 %3266
    %v3268 = vsub.f32 %v3263, %v3267
    %v3269 = vmul.f32 %v3268, 1.442695
    %v3270 = vpow.pop %v3269
    %v3271 = vsel %vm2704, %v3270, 0.0
    %3272 = vadd.xlane.f32.xlu0 %v3271
    %v3273 = vpop.xlane.xlu0 %3272
    %v3274 = vrcp.pop %v3273
    %v3275 = vmul.f32 %v3273, %v3274
    %v3276 = vsub.f32 1.0, %v3275
    %v3277 = vmul.f32 %v3274, %v3276
    %v3278 = vadd.f32 %v3274, %v3277
    %vm3279 = vweird.f32 %v3273
    %vm3280 = vweird.f32 %v3274
    %vm3281 = vmor %vm3279, %vm3280
    %v3282 = vsel %vm3281, %v3274, %v3278
    %v3283 = vand.u32 2147483647, %v3273
    %vm3284 = vcmp.eq.f32.partialorder %v3283, 8.507059e+37
    %v3285 = vand.u32 %v3273, 2147483648
    %v3286 = vor.u32 1.1754944e-38, %v3285
    %v3287 = vsel %vm3284, %v3286, %v3282
    %v3288 = vmul.f32 %v3270, %v3287
    %v3290 = vsel %vm2729, %v3288, 0
    %3292 = vmatpush.msra.mxu0 0.0
    %3293 = vmatpush.msra.mxu0 0.0
    %3294 = vmatpush.msra.mxu0 0.0
    %3295 = vmatpush.msra.mxu0 0.0
    %3296 = vmatpush.msra.mxu0 0.0
    %3297 = vmatpush.msra.mxu0 0.0
    %3298 = vmatpush.msra.mxu0 0.0
    %3299 = vmatpush.msra.mxu0 0.0
    %3300 = vmatpush.msra.mxu0 0.0
    %3301 = vmatpush.msra.mxu0 0.0
    %3302 = vmatpush.msra.mxu0 0.0
    %3303 = vmatpush.msra.mxu0 0.0
    %3304 = vmatpush.msra.mxu0 0.0
    %3305 = vmatpush.msra.mxu0 0.0
    %3306 = vmatpush.msra.mxu0 %v2734
    %3307 = vmatpush.msra.mxu0 %v773
    %3308 = vmatmul.f32.gmra.mxu0 %v3290
    %v3309 = vpop.f32.mrf.mxu0
    %v3310 = vadd.f32 0.0, %v3309
    %3311 = vdwg.mxu0
    %3314 = vrot.lane.b32.xlu0 %v3310, 24
    %v3315 = vpop.permute.xlu0 %3314
    %v3317 = vsel %vm505, %v3242, %v3315
    %3318 = vrot.lane.b32.xlu0 %v3103, 104
    %v3319 = vpop.permute.xlu0 %3318
    %v3321 = vsel %vm517, %v3317, %v3319
    %v3323 = vsel %vm799, %v3321, 0
    %3325 = vmatpush.msra.mxu0 0.0
    %3326 = vmatpush.msra.mxu0 0.0
    %3327 = vmatpush.msra.mxu0 0.0
    %3328 = vmatpush.msra.mxu0 0.0
    %3329 = vmatpush.msra.mxu0 0.0
    %3330 = vmatpush.msra.mxu0 0.0
    %3331 = vmatpush.msra.mxu0 0.0
    %3332 = vmatpush.msra.mxu0 %v2470
    %3333 = vmatpush.msra.mxu0 %v2469
    %3334 = vmatpush.msra.mxu0 %v2468
    %3335 = vmatpush.msra.mxu0 %v2467
    %3336 = vmatpush.msra.mxu0 %v2466
    %3337 = vmatpush.msra.mxu0 %v2465
    %3338 = vmatpush.msra.mxu0 %v2464
    %3339 = vmatpush.msra.mxu0 %v2463
    %3340 = vmatpush.msra.mxu0 %v2462
    %3341 = vmatmul.f32.gmra.mxu0 %v3323
    %v3342 = vpop.f32.mrf.mxu0
    %v3343 = vadd.f32 %v2483, %v3342
    %3344 = vdwg.mxu0
    %v3345 = vsub.f32 0.0, %v3343
    %v3346 = vmul.f32 %v3345, 1.442695
    %v3347 = vpow.pop %v3346
    %v3348 = vadd.f32 %v3347, 1.0
    %v3349 = vrcp.pop %v3348
    %v3350 = vmul.f32 %v3348, %v3349
    %v3351 = vsub.f32 1.0, %v3350
    %v3352 = vmul.f32 %v3349, %v3351
    %v3353 = vadd.f32 %v3349, %v3352
    %vm3354 = vweird.f32 %v3348
    %vm3355 = vweird.f32 %v3349
    %vm3356 = vmor %vm3354, %vm3355
    %v3357 = vsel %vm3356, %v3349, %v3353
    %v3358 = vand.u32 2147483647, %v3348
    %vm3359 = vcmp.eq.f32.partialorder %v3358, 8.507059e+37
    %v3360 = vand.u32 %v3348, 2147483648
    %v3361 = vor.u32 1.1754944e-38, %v3360
    %v3362 = vsel %vm3359, %v3361, %v3357
    %v3363 = vmul.f32 1.0, %v3362
    %v3364 = vtanh.pop %v3343
    %v3365 = vmul.f32 %v3363, %v3097
    %3367 = vrot.lane.b32.xlu0 %v3364, 80
    %v3368 = vpop.permute.xlu0 %3367
    %v3370 = vmul.f32 %v3363, %v3368
    %3372 = vrot.lane.b32.xlu0 %v3370, 24
    %v3373 = vpop.permute.xlu0 %3372
    %v3375 = vadd.f32 %v3365, %v3373
    %v3376 = vtanh.pop %v3375
    %3378 = vrot.lane.b32.xlu0 %v3376, 48
    %v3379 = vpop.permute.xlu0 %3378
    %v3381 = vmul.f32 %v3363, %v3379
    %3383 = vrot.lane.b32.xlu0 %v3381, 56
    %v3384 = vpop.permute.xlu0 %3383
    %3386 = vrot.lane.b32.xlu0 %v3171, 80
    %v3387 = vpop.permute.xlu0 %3386
    %v3389 = vsel %vm505, %v3384, %v3387
    %v3391 = vsel %vm517, %v3389, 0
    %3393 = vmatpush.msra.mxu0 0.0
    %3394 = vmatpush.msra.mxu0 0.0
    %3395 = vmatpush.msra.mxu0 0.0
    %3396 = vmatpush.msra.mxu0 0.0
    %3397 = vmatpush.msra.mxu0 0.0
    %3398 = vmatpush.msra.mxu0 0.0
    %3399 = vmatpush.msra.mxu0 0.0
    %3400 = vmatpush.msra.mxu0 0.0
    %3401 = vmatpush.msra.mxu0 0.0
    %3402 = vmatpush.msra.mxu0 0.0
    %3403 = vmatpush.msra.mxu0 %v2476
    %3404 = vmatpush.msra.mxu0 %v2475
    %3405 = vmatpush.msra.mxu0 %v2474
    %3406 = vmatpush.msra.mxu0 %v2473
    %3407 = vmatpush.msra.mxu0 %v2472
    %3408 = vmatpush.msra.mxu0 %v2471
    %3409 = vmatmul.f32.gmra.mxu0 %v3391
    %v3410 = vpop.f32.mrf.mxu0
    %v3411 = vadd.f32 %v2484, %v3410
    %3412 = vdwg.mxu0
    %v3413 = vsub.f32 0.0, %v3411
    %v3414 = vmul.f32 %v3413, 1.442695
    %v3415 = vpow.pop %v3414
    %v3416 = vadd.f32 %v3415, 1.0
    %v3417 = vrcp.pop %v3416
    %v3418 = vmul.f32 %v3416, %v3417
    %v3419 = vsub.f32 1.0, %v3418
    %v3420 = vmul.f32 %v3417, %v3419
    %v3421 = vadd.f32 %v3417, %v3420
    %vm3422 = vweird.f32 %v3416
    %vm3423 = vweird.f32 %v3417
    %vm3424 = vmor %vm3422, %vm3423
    %v3425 = vsel %vm3424, %v3417, %v3421
    %v3426 = vand.u32 2147483647, %v3416
    %vm3427 = vcmp.eq.f32.partialorder %v3426, 8.507059e+37
    %v3428 = vand.u32 %v3416, 2147483648
    %v3429 = vor.u32 1.1754944e-38, %v3428
    %v3430 = vsel %vm3427, %v3429, %v3425
    %v3431 = vmul.f32 1.0, %v3430
    %v3432 = vtanh.pop %v3411
    %v3433 = vmul.f32 %v3431, %v3165
    %3435 = vrot.lane.b32.xlu0 %v3432, 80
    %v3436 = vpop.permute.xlu0 %3435
    %v3438 = vmul.f32 %v3431, %v3436
    %3440 = vrot.lane.b32.xlu0 %v3438, 24
    %v3441 = vpop.permute.xlu0 %3440
    %v3443 = vadd.f32 %v3433, %v3441
    %v3444 = vtanh.pop %v3443
    %3446 = vrot.lane.b32.xlu0 %v3444, 48
    %v3447 = vpop.permute.xlu0 %3446
    %v3449 = vmul.f32 %v3431, %v3447
    %3451 = vrot.lane.b32.xlu0 %v3449, 56
    %v3452 = vpop.permute.xlu0 %3451
    %3454 = vrot.lane.b32.xlu0 %v3239, 80
    %v3455 = vpop.permute.xlu0 %3454
    %v3457 = vsel %vm505, %v3452, %v3455
    %v3459 = vsel %vm517, %v3457, 0
    %3461 = vmatpush.msra.mxu0 0.0
    %3462 = vmatpush.msra.mxu0 0.0
    %3463 = vmatpush.msra.mxu0 0.0
    %3464 = vmatpush.msra.mxu0 0.0
    %3465 = vmatpush.msra.mxu0 0.0
    %3466 = vmatpush.msra.mxu0 0.0
    %3467 = vmatpush.msra.mxu0 0.0
    %3468 = vmatpush.msra.mxu0 0.0
    %3469 = vmatpush.msra.mxu0 0.0
    %3470 = vmatpush.msra.mxu0 0.0
    %3471 = vmatpush.msra.mxu0 %v2482
    %3472 = vmatpush.msra.mxu0 %v2481
    %3473 = vmatpush.msra.mxu0 %v2480
    %3474 = vmatpush.msra.mxu0 %v2479
    %3475 = vmatpush.msra.mxu0 %v2478
    %3476 = vmatpush.msra.mxu0 %v2477
    %3477 = vmatmul.f32.gmra.mxu0 %v3459
    %v3478 = vpop.f32.mrf.mxu0
    %v3479 = vadd.f32 %v2485, %v3478
    %3480 = vdwg.mxu0
    %v3481 = vsub.f32 0.0, %v3479
    %v3482 = vmul.f32 %v3481, 1.442695
    %v3483 = vpow.pop %v3482
    %v3484 = vadd.f32 %v3483, 1.0
    %v3485 = vrcp.pop %v3484
    %v3486 = vmul.f32 %v3484, %v3485
    %v3487 = vsub.f32 1.0, %v3486
    %v3488 = vmul.f32 %v3485, %v3487
    %v3489 = vadd.f32 %v3485, %v3488
    %vm3490 = vweird.f32 %v3484
    %vm3491 = vweird.f32 %v3485
    %vm3492 = vmor %vm3490, %vm3491
    %v3493 = vsel %vm3492, %v3485, %v3489
    %v3494 = vand.u32 2147483647, %v3484
    %vm3495 = vcmp.eq.f32.partialorder %v3494, 8.507059e+37
    %v3496 = vand.u32 %v3484, 2147483648
    %v3497 = vor.u32 1.1754944e-38, %v3496
    %v3498 = vsel %vm3495, %v3497, %v3493
    %v3499 = vmul.f32 1.0, %v3498
    %v3500 = vtanh.pop %v3479
    %v3501 = vmul.f32 %v3499, %v3233
    %3503 = vrot.lane.b32.xlu0 %v3500, 80
    %v3504 = vpop.permute.xlu0 %3503
    %v3506 = vmul.f32 %v3499, %v3504
    %3508 = vrot.lane.b32.xlu0 %v3506, 24
    %v3509 = vpop.permute.xlu0 %3508
    %v3511 = vadd.f32 %v3501, %v3509
    %v3512 = vtanh.pop %v3511
    %3514 = vrot.lane.b32.xlu0 %v3512, 48
    %v3515 = vpop.permute.xlu0 %3514
    %v3517 = vmul.f32 %v3499, %v3515
    %3519 = vrot.lane.b32.xlu0 %v3517, 56
    %v3520 = vpop.permute.xlu0 %3519
    %v3521 = vsel %vm505, %v3520, 0
    %3523 = vmatpush.xpose.msra.mxu0 0.0
    %3524 = vmatpush.xpose.msra.mxu0 0.0
    %3525 = vmatpush.xpose.msra.mxu0 0.0
    %3526 = vmatpush.xpose.msra.mxu0 0.0
    %3527 = vmatpush.xpose.msra.mxu0 0.0
    %3528 = vmatpush.xpose.msra.mxu0 0.0
    %3529 = vmatpush.xpose.msra.mxu0 0.0
    %3530 = vmatpush.xpose.msra.mxu0 0.0
    %3531 = vmatpush.xpose.msra.mxu0 0.0
    %3532 = vmatpush.xpose.msra.mxu0 0.0
    %3533 = vmatpush.xpose.msra.mxu0 0.0
    %3534 = vmatpush.xpose.msra.mxu0 0.0
    %3535 = vmatpush.xpose.msra.mxu0 0.0
    %3536 = vmatpush.xpose.msra.mxu0 0.0
    %3537 = vmatpush.xpose.msra.mxu0 %v2682
    %3538 = vmatpush.xpose.msra.mxu0 %v2679
    %3539 = vmatmul.f32.gmra.mxu0 %v3521
    %v3540 = vpop.f32.mrf.mxu0
    %v3541 = vadd.f32 0.0, %v3540
    %3542 = vdwg.mxu0
    %v3543 = vsel %vm2704, %v3541, -inf
    %3544 = vmax.xlane.f32.xlu0 %v3543
    %v3545 = vpop.xlane.xlu0 %3544
    %v3546 = vsub.f32 %v3541, %v3545
    %v3547 = vmul.f32 %v3546, 1.442695
    %v3548 = vpow.pop %v3547
    %v3549 = vsel %vm2704, %v3548, 0.0
    %3550 = vadd.xlane.f32.xlu0 %v3549
    %v3551 = vpop.xlane.xlu0 %3550
    %v3552 = vrcp.pop %v3551
    %v3553 = vmul.f32 %v3551, %v3552
    %v3554 = vsub.f32 1.0, %v3553
    %v3555 = vmul.f32 %v3552, %v3554
    %v3556 = vadd.f32 %v3552, %v3555
    %vm3557 = vweird.f32 %v3551
    %vm3558 = vweird.f32 %v3552
    %vm3559 = vmor %vm3557, %vm3558
    %v3560 = vsel %vm3559, %v3552, %v3556
    %v3561 = vand.u32 2147483647, %v3551
    %vm3562 = vcmp.eq.f32.partialorder %v3561, 8.507059e+37
    %v3563 = vand.u32 %v3551, 2147483648
    %v3564 = vor.u32 1.1754944e-38, %v3563
    %v3565 = vsel %vm3562, %v3564, %v3560
    %v3566 = vmul.f32 %v3548, %v3565
    %v3568 = vsel %vm2729, %v3566, 0
    %3570 = vmatpush.msra.mxu0 0.0
    %3571 = vmatpush.msra.mxu0 0.0
    %3572 = vmatpush.msra.mxu0 0.0
    %3573 = vmatpush.msra.mxu0 0.0
    %3574 = vmatpush.msra.mxu0 0.0
    %3575 = vmatpush.msra.mxu0 0.0
    %3576 = vmatpush.msra.mxu0 0.0
    %3577 = vmatpush.msra.mxu0 0.0
    %3578 = vmatpush.msra.mxu0 0.0
    %3579 = vmatpush.msra.mxu0 0.0
    %3580 = vmatpush.msra.mxu0 0.0
    %3581 = vmatpush.msra.mxu0 0.0
    %3582 = vmatpush.msra.mxu0 0.0
    %3583 = vmatpush.msra.mxu0 0.0
    %3584 = vmatpush.msra.mxu0 %v2734
    %3585 = vmatpush.msra.mxu0 %v773
    %3586 = vmatmul.f32.gmra.mxu0 %v3568
    %v3587 = vpop.f32.mrf.mxu0
    %v3588 = vadd.f32 0.0, %v3587
    %3589 = vdwg.mxu0
    %3592 = vrot.lane.b32.xlu0 %v3588, 24
    %v3593 = vpop.permute.xlu0 %3592
    %v3595 = vsel %vm505, %v3520, %v3593
    %3596 = vrot.lane.b32.xlu0 %v3381, 104
    %v3597 = vpop.permute.xlu0 %3596
    %v3599 = vsel %vm517, %v3595, %v3597
    %v3601 = vsel %vm799, %v3599, 0
    %3603 = vmatpush.msra.mxu0 0.0
    %3604 = vmatpush.msra.mxu0 0.0
    %3605 = vmatpush.msra.mxu0 0.0
    %3606 = vmatpush.msra.mxu0 0.0
    %3607 = vmatpush.msra.mxu0 0.0
    %3608 = vmatpush.msra.mxu0 0.0
    %3609 = vmatpush.msra.mxu0 0.0
    %3610 = vmatpush.msra.mxu0 %v2470
    %3611 = vmatpush.msra.mxu0 %v2469
    %3612 = vmatpush.msra.mxu0 %v2468
    %3613 = vmatpush.msra.mxu0 %v2467
    %3614 = vmatpush.msra.mxu0 %v2466
    %3615 = vmatpush.msra.mxu0 %v2465
    %3616 = vmatpush.msra.mxu0 %v2464
    %3617 = vmatpush.msra.mxu0 %v2463
    %3618 = vmatpush.msra.mxu0 %v2462
    %3619 = vmatmul.f32.gmra.mxu0 %v3601
    %v3620 = vpop.f32.mrf.mxu0
    %v3621 = vadd.f32 %v2483, %v3620
    %3622 = vdwg.mxu0
    %v3623 = vsub.f32 0.0, %v3621
    %v3624 = vmul.f32 %v3623, 1.442695
    %v3625 = vpow.pop %v3624
    %v3626 = vadd.f32 %v3625, 1.0
    %v3627 = vrcp.pop %v3626
    %v3628 = vmul.f32 %v3626, %v3627
    %v3629 = vsub.f32 1.0, %v3628
    %v3630 = vmul.f32 %v3627, %v3629
    %v3631 = vadd.f32 %v3627, %v3630
    %vm3632 = vweird.f32 %v3626
    %vm3633 = vweird.f32 %v3627
    %vm3634 = vmor %vm3632, %vm3633
    %v3635 = vsel %vm3634, %v3627, %v3631
    %v3636 = vand.u32 2147483647, %v3626
    %vm3637 = vcmp.eq.f32.partialorder %v3636, 8.507059e+37
    %v3638 = vand.u32 %v3626, 2147483648
    %v3639 = vor.u32 1.1754944e-38, %v3638
    %v3640 = vsel %vm3637, %v3639, %v3635
    %v3641 = vmul.f32 1.0, %v3640
    %v3642 = vtanh.pop %v3621
    %v3643 = vmul.f32 %v3641, %v3375
    %3645 = vrot.lane.b32.xlu0 %v3642, 80
    %v3646 = vpop.permute.xlu0 %3645
    %v3648 = vmul.f32 %v3641, %v3646
    %3650 = vrot.lane.b32.xlu0 %v3648, 24
    %v3651 = vpop.permute.xlu0 %3650
    %v3653 = vadd.f32 %v3643, %v3651
    %v3654 = vtanh.pop %v3653
    %3656 = vrot.lane.b32.xlu0 %v3654, 48
    %v3657 = vpop.permute.xlu0 %3656
    %v3659 = vmul.f32 %v3641, %v3657
    %3661 = vrot.lane.b32.xlu0 %v3659, 56
    %v3662 = vpop.permute.xlu0 %3661
    %3664 = vrot.lane.b32.xlu0 %v3449, 80
    %v3665 = vpop.permute.xlu0 %3664
    %v3667 = vsel %vm505, %v3662, %v3665
    %v3669 = vsel %vm517, %v3667, 0
    %3671 = vmatpush.msra.mxu0 0.0
    %3672 = vmatpush.msra.mxu0 0.0
    %3673 = vmatpush.msra.mxu0 0.0
    %3674 = vmatpush.msra.mxu0 0.0
    %3675 = vmatpush.msra.mxu0 0.0
    %3676 = vmatpush.msra.mxu0 0.0
    %3677 = vmatpush.msra.mxu0 0.0
    %3678 = vmatpush.msra.mxu0 0.0
    %3679 = vmatpush.msra.mxu0 0.0
    %3680 = vmatpush.msra.mxu0 0.0
    %3681 = vmatpush.msra.mxu0 %v2476
    %3682 = vmatpush.msra.mxu0 %v2475
    %3683 = vmatpush.msra.mxu0 %v2474
    %3684 = vmatpush.msra.mxu0 %v2473
    %3685 = vmatpush.msra.mxu0 %v2472
    %3686 = vmatpush.msra.mxu0 %v2471
    %3687 = vmatmul.f32.gmra.mxu0 %v3669
    %v3688 = vpop.f32.mrf.mxu0
    %v3689 = vadd.f32 %v2484, %v3688
    %3690 = vdwg.mxu0
    %v3691 = vsub.f32 0.0, %v3689
    %v3692 = vmul.f32 %v3691, 1.442695
    %v3693 = vpow.pop %v3692
    %v3694 = vadd.f32 %v3693, 1.0
    %v3695 = vrcp.pop %v3694
    %v3696 = vmul.f32 %v3694, %v3695
    %v3697 = vsub.f32 1.0, %v3696
    %v3698 = vmul.f32 %v3695, %v3697
    %v3699 = vadd.f32 %v3695, %v3698
    %vm3700 = vweird.f32 %v3694
    %vm3701 = vweird.f32 %v3695
    %vm3702 = vmor %vm3700, %vm3701
    %v3703 = vsel %vm3702, %v3695, %v3699
    %v3704 = vand.u32 2147483647, %v3694
    %vm3705 = vcmp.eq.f32.partialorder %v3704, 8.507059e+37
    %v3706 = vand.u32 %v3694, 2147483648
    %v3707 = vor.u32 1.1754944e-38, %v3706
    %v3708 = vsel %vm3705, %v3707, %v3703
    %v3709 = vmul.f32 1.0, %v3708
    %v3710 = vtanh.pop %v3689
    %v3711 = vmul.f32 %v3709, %v3443
    %3713 = vrot.lane.b32.xlu0 %v3710, 80
    %v3714 = vpop.permute.xlu0 %3713
    %v3716 = vmul.f32 %v3709, %v3714
    %3718 = vrot.lane.b32.xlu0 %v3716, 24
    %v3719 = vpop.permute.xlu0 %3718
    %v3721 = vadd.f32 %v3711, %v3719
    %v3722 = vtanh.pop %v3721
    %3724 = vrot.lane.b32.xlu0 %v3722, 48
    %v3725 = vpop.permute.xlu0 %3724
    %v3727 = vmul.f32 %v3709, %v3725
    %3729 = vrot.lane.b32.xlu0 %v3727, 56
    %v3730 = vpop.permute.xlu0 %3729
    %3732 = vrot.lane.b32.xlu0 %v3517, 80
    %v3733 = vpop.permute.xlu0 %3732
    %v3735 = vsel %vm505, %v3730, %v3733
    %v3737 = vsel %vm517, %v3735, 0
    %3739 = vmatpush.msra.mxu0 0.0
    %3740 = vmatpush.msra.mxu0 0.0
    %3741 = vmatpush.msra.mxu0 0.0
    %3742 = vmatpush.msra.mxu0 0.0
    %3743 = vmatpush.msra.mxu0 0.0
    %3744 = vmatpush.msra.mxu0 0.0
    %3745 = vmatpush.msra.mxu0 0.0
    %3746 = vmatpush.msra.mxu0 0.0
    %3747 = vmatpush.msra.mxu0 0.0
    %3748 = vmatpush.msra.mxu0 0.0
    %3749 = vmatpush.msra.mxu0 %v2482
    %3750 = vmatpush.msra.mxu0 %v2481
    %3751 = vmatpush.msra.mxu0 %v2480
    %3752 = vmatpush.msra.mxu0 %v2479
    %3753 = vmatpush.msra.mxu0 %v2478
    %3754 = vmatpush.msra.mxu0 %v2477
    %3755 = vmatmul.f32.gmra.mxu0 %v3737
    %v3756 = vpop.f32.mrf.mxu0
    %v3757 = vadd.f32 %v2485, %v3756
    %3758 = vdwg.mxu0
    %v3759 = vsub.f32 0.0, %v3757
    %v3760 = vmul.f32 %v3759, 1.442695
    %v3761 = vpow.pop %v3760
    %v3762 = vadd.f32 %v3761, 1.0
    %v3763 = vrcp.pop %v3762
    %v3764 = vmul.f32 %v3762, %v3763
    %v3765 = vsub.f32 1.0, %v3764
    %v3766 = vmul.f32 %v3763, %v3765
    %v3767 = vadd.f32 %v3763, %v3766
    %vm3768 = vweird.f32 %v3762
    %vm3769 = vweird.f32 %v3763
    %vm3770 = vmor %vm3768, %vm3769
    %v3771 = vsel %vm3770, %v3763, %v3767
    %v3772 = vand.u32 2147483647, %v3762
    %vm3773 = vcmp.eq.f32.partialorder %v3772, 8.507059e+37
    %v3774 = vand.u32 %v3762, 2147483648
    %v3775 = vor.u32 1.1754944e-38, %v3774
    %v3776 = vsel %vm3773, %v3775, %v3771
    %v3777 = vmul.f32 1.0, %v3776
    %v3778 = vtanh.pop %v3757
    %v3779 = vmul.f32 %v3777, %v3511
    %3781 = vrot.lane.b32.xlu0 %v3778, 80
    %v3782 = vpop.permute.xlu0 %3781
    %v3784 = vmul.f32 %v3777, %v3782
    %3786 = vrot.lane.b32.xlu0 %v3784, 24
    %v3787 = vpop.permute.xlu0 %3786
    %v3789 = vadd.f32 %v3779, %v3787
    %v3790 = vtanh.pop %v3789
    %3792 = vrot.lane.b32.xlu0 %v3790, 48
    %v3793 = vpop.permute.xlu0 %3792
    %v3795 = vmul.f32 %v3777, %v3793
    %3797 = vrot.lane.b32.xlu0 %v3795, 56
    %v3798 = vpop.permute.xlu0 %3797
    %v3799 = vsel %vm505, %v3798, 0
    %3801 = vmatpush.xpose.msra.mxu0 0.0
    %3802 = vmatpush.xpose.msra.mxu0 0.0
    %3803 = vmatpush.xpose.msra.mxu0 0.0
    %3804 = vmatpush.xpose.msra.mxu0 0.0
    %3805 = vmatpush.xpose.msra.mxu0 0.0
    %3806 = vmatpush.xpose.msra.mxu0 0.0
    %3807 = vmatpush.xpose.msra.mxu0 0.0
    %3808 = vmatpush.xpose.msra.mxu0 0.0
    %3809 = vmatpush.xpose.msra.mxu0 0.0
    %3810 = vmatpush.xpose.msra.mxu0 0.0
    %3811 = vmatpush.xpose.msra.mxu0 0.0
    %3812 = vmatpush.xpose.msra.mxu0 0.0
    %3813 = vmatpush.xpose.msra.mxu0 0.0
    %3814 = vmatpush.xpose.msra.mxu0 0.0
    %3815 = vmatpush.xpose.msra.mxu0 %v2682
    %3816 = vmatpush.xpose.msra.mxu0 %v2679
    %3817 = vmatmul.f32.gmra.mxu0 %v3799
    %v3818 = vpop.f32.mrf.mxu0
    %v3819 = vadd.f32 0.0, %v3818
    %3820 = vdwg.mxu0
    %v3821 = vsel %vm2704, %v3819, -inf
    %3822 = vmax.xlane.f32.xlu0 %v3821
    %v3823 = vpop.xlane.xlu0 %3822
    %v3824 = vsub.f32 %v3819, %v3823
    %v3825 = vmul.f32 %v3824, 1.442695
    %v3826 = vpow.pop %v3825
    %v3827 = vsel %vm2704, %v3826, 0.0
    %3828 = vadd.xlane.f32.xlu0 %v3827
    %v3829 = vpop.xlane.xlu0 %3828
    %v3830 = vrcp.pop %v3829
    %v3831 = vmul.f32 %v3829, %v3830
    %v3832 = vsub.f32 1.0, %v3831
    %v3833 = vmul.f32 %v3830, %v3832
    %v3834 = vadd.f32 %v3830, %v3833
    %vm3835 = vweird.f32 %v3829
    %vm3836 = vweird.f32 %v3830
    %vm3837 = vmor %vm3835, %vm3836
    %v3838 = vsel %vm3837, %v3830, %v3834
    %v3839 = vand.u32 2147483647, %v3829
    %vm3840 = vcmp.eq.f32.partialorder %v3839, 8.507059e+37
    %v3841 = vand.u32 %v3829, 2147483648
    %v3842 = vor.u32 1.1754944e-38, %v3841
    %v3843 = vsel %vm3840, %v3842, %v3838
    %v3844 = vmul.f32 %v3826, %v3843
    %v3846 = vsel %vm2729, %v3844, 0
    %3848 = vmatpush.msra.mxu0 0.0
    %3849 = vmatpush.msra.mxu0 0.0
    %3850 = vmatpush.msra.mxu0 0.0
    %3851 = vmatpush.msra.mxu0 0.0
    %3852 = vmatpush.msra.mxu0 0.0
    %3853 = vmatpush.msra.mxu0 0.0
    %3854 = vmatpush.msra.mxu0 0.0
    %3855 = vmatpush.msra.mxu0 0.0
    %3856 = vmatpush.msra.mxu0 0.0
    %3857 = vmatpush.msra.mxu0 0.0
    %3858 = vmatpush.msra.mxu0 0.0
    %3859 = vmatpush.msra.mxu0 0.0
    %3860 = vmatpush.msra.mxu0 0.0
    %3861 = vmatpush.msra.mxu0 0.0
    %3862 = vmatpush.msra.mxu0 %v2734
    %3863 = vmatpush.msra.mxu0 %v773
    %3864 = vmatmul.f32.gmra.mxu0 %v3846
    %v3865 = vpop.f32.mrf.mxu0
    %v3866 = vadd.f32 0.0, %v3865
    %3867 = vdwg.mxu0
    %3870 = vrot.lane.b32.xlu0 %v3866, 24
    %v3871 = vpop.permute.xlu0 %3870
    %v3873 = vsel %vm505, %v3798, %v3871
    %3874 = vrot.lane.b32.xlu0 %v3659, 104
    %v3875 = vpop.permute.xlu0 %3874
    %v3877 = vsel %vm517, %v3873, %v3875
    %v3879 = vsel %vm799, %v3877, 0
    %3881 = vmatpush.msra.mxu0 0.0
    %3882 = vmatpush.msra.mxu0 0.0
    %3883 = vmatpush.msra.mxu0 0.0
    %3884 = vmatpush.msra.mxu0 0.0
    %3885 = vmatpush.msra.mxu0 0.0
    %3886 = vmatpush.msra.mxu0 0.0
    %3887 = vmatpush.msra.mxu0 0.0
    %3888 = vmatpush.msra.mxu0 %v2470
    %3889 = vmatpush.msra.mxu0 %v2469
    %3890 = vmatpush.msra.mxu0 %v2468
    %3891 = vmatpush.msra.mxu0 %v2467
    %3892 = vmatpush.msra.mxu0 %v2466
    %3893 = vmatpush.msra.mxu0 %v2465
    %3894 = vmatpush.msra.mxu0 %v2464
    %3895 = vmatpush.msra.mxu0 %v2463
    %3896 = vmatpush.msra.mxu0 %v2462
    %3897 = vmatmul.f32.gmra.mxu0 %v3879
    %v3898 = vpop.f32.mrf.mxu0
    %v3899 = vadd.f32 %v2483, %v3898
    %3900 = vdwg.mxu0
    %v3901 = vsub.f32 0.0, %v3899
    %v3902 = vmul.f32 %v3901, 1.442695
    %v3903 = vpow.pop %v3902
    %v3904 = vadd.f32 %v3903, 1.0
    %v3905 = vrcp.pop %v3904
    %v3906 = vmul.f32 %v3904, %v3905
    %v3907 = vsub.f32 1.0, %v3906
    %v3908 = vmul.f32 %v3905, %v3907
    %v3909 = vadd.f32 %v3905, %v3908
    %vm3910 = vweird.f32 %v3904
    %vm3911 = vweird.f32 %v3905
    %vm3912 = vmor %vm3910, %vm3911
    %v3913 = vsel %vm3912, %v3905, %v3909
    %v3914 = vand.u32 2147483647, %v3904
    %vm3915 = vcmp.eq.f32.partialorder %v3914, 8.507059e+37
    %v3916 = vand.u32 %v3904, 2147483648
    %v3917 = vor.u32 1.1754944e-38, %v3916
    %v3918 = vsel %vm3915, %v3917, %v3913
    %v3919 = vmul.f32 1.0, %v3918
    %v3920 = vtanh.pop %v3899
    %v3921 = vmul.f32 %v3919, %v3653
    %3923 = vrot.lane.b32.xlu0 %v3920, 80
    %v3924 = vpop.permute.xlu0 %3923
    %v3926 = vmul.f32 %v3919, %v3924
    %3928 = vrot.lane.b32.xlu0 %v3926, 24
    %v3929 = vpop.permute.xlu0 %3928
    %v3931 = vadd.f32 %v3921, %v3929
    %v3932 = vtanh.pop %v3931
    %3934 = vrot.lane.b32.xlu0 %v3932, 48
    %v3935 = vpop.permute.xlu0 %3934
    %v3937 = vmul.f32 %v3919, %v3935
    %3939 = vrot.lane.b32.xlu0 %v3937, 56
    %v3940 = vpop.permute.xlu0 %3939
    %3942 = vrot.lane.b32.xlu0 %v3727, 80
    %v3943 = vpop.permute.xlu0 %3942
    %v3945 = vsel %vm505, %v3940, %v3943
    %v3947 = vsel %vm517, %v3945, 0
    %3949 = vmatpush.msra.mxu0 0.0
    %3950 = vmatpush.msra.mxu0 0.0
    %3951 = vmatpush.msra.mxu0 0.0
    %3952 = vmatpush.msra.mxu0 0.0
    %3953 = vmatpush.msra.mxu0 0.0
    %3954 = vmatpush.msra.mxu0 0.0
    %3955 = vmatpush.msra.mxu0 0.0
    %3956 = vmatpush.msra.mxu0 0.0
    %3957 = vmatpush.msra.mxu0 0.0
    %3958 = vmatpush.msra.mxu0 0.0
    %3959 = vmatpush.msra.mxu0 %v2476
    %3960 = vmatpush.msra.mxu0 %v2475
    %3961 = vmatpush.msra.mxu0 %v2474
    %3962 = vmatpush.msra.mxu0 %v2473
    %3963 = vmatpush.msra.mxu0 %v2472
    %3964 = vmatpush.msra.mxu0 %v2471
    %3965 = vmatmul.f32.gmra.mxu0 %v3947
    %v3966 = vpop.f32.mrf.mxu0
    %v3967 = vadd.f32 %v2484, %v3966
    %3968 = vdwg.mxu0
    %v3969 = vsub.f32 0.0, %v3967
    %v3970 = vmul.f32 %v3969, 1.442695
    %v3971 = vpow.pop %v3970
    %v3972 = vadd.f32 %v3971, 1.0
    %v3973 = vrcp.pop %v3972
    %v3974 = vmul.f32 %v3972, %v3973
    %v3975 = vsub.f32 1.0, %v3974
    %v3976 = vmul.f32 %v3973, %v3975
    %v3977 = vadd.f32 %v3973, %v3976
    %vm3978 = vweird.f32 %v3972
    %vm3979 = vweird.f32 %v3973
    %vm3980 = vmor %vm3978, %vm3979
    %v3981 = vsel %vm3980, %v3973, %v3977
    %v3982 = vand.u32 2147483647, %v3972
    %vm3983 = vcmp.eq.f32.partialorder %v3982, 8.507059e+37
    %v3984 = vand.u32 %v3972, 2147483648
    %v3985 = vor.u32 1.1754944e-38, %v3984
    %v3986 = vsel %vm3983, %v3985, %v3981
    %v3987 = vmul.f32 1.0, %v3986
    %v3988 = vtanh.pop %v3967
    %v3989 = vmul.f32 %v3987, %v3721
    %3991 = vrot.lane.b32.xlu0 %v3988, 80
    %v3992 = vpop.permute.xlu0 %3991
    %v3994 = vmul.f32 %v3987, %v3992
    %3996 = vrot.lane.b32.xlu0 %v3994, 24
    %v3997 = vpop.permute.xlu0 %3996
    %v3999 = vadd.f32 %v3989, %v3997
    %v4000 = vtanh.pop %v3999
    %4002 = vrot.lane.b32.xlu0 %v4000, 48
    %v4003 = vpop.permute.xlu0 %4002
    %v4005 = vmul.f32 %v3987, %v4003
    %4007 = vrot.lane.b32.xlu0 %v4005, 56
    %v4008 = vpop.permute.xlu0 %4007
    %4010 = vrot.lane.b32.xlu0 %v3795, 80
    %v4011 = vpop.permute.xlu0 %4010
    %v4013 = vsel %vm505, %v4008, %v4011
    %v4015 = vsel %vm517, %v4013, 0
    %4017 = vmatpush.msra.mxu0 0.0
    %4018 = vmatpush.msra.mxu0 0.0
    %4019 = vmatpush.msra.mxu0 0.0
    %4020 = vmatpush.msra.mxu0 0.0
    %4021 = vmatpush.msra.mxu0 0.0
    %4022 = vmatpush.msra.mxu0 0.0
    %4023 = vmatpush.msra.mxu0 0.0
    %4024 = vmatpush.msra.mxu0 0.0
    %4025 = vmatpush.msra.mxu0 0.0
    %4026 = vmatpush.msra.mxu0 0.0
    %4027 = vmatpush.msra.mxu0 %v2482
    %4028 = vmatpush.msra.mxu0 %v2481
    %4029 = vmatpush.msra.mxu0 %v2480
    %4030 = vmatpush.msra.mxu0 %v2479
    %4031 = vmatpush.msra.mxu0 %v2478
    %4032 = vmatpush.msra.mxu0 %v2477
    %4033 = vmatmul.f32.gmra.mxu0 %v4015
    %v4034 = vpop.f32.mrf.mxu0
    %v4035 = vadd.f32 %v2485, %v4034
    %4036 = vdwg.mxu0
    %v4037 = vsub.f32 0.0, %v4035
    %v4038 = vmul.f32 %v4037, 1.442695
    %v4039 = vpow.pop %v4038
    %v4040 = vadd.f32 %v4039, 1.0
    %v4041 = vrcp.pop %v4040
    %v4042 = vmul.f32 %v4040, %v4041
    %v4043 = vsub.f32 1.0, %v4042
    %v4044 = vmul.f32 %v4041, %v4043
    %v4045 = vadd.f32 %v4041, %v4044
    %vm4046 = vweird.f32 %v4040
    %vm4047 = vweird.f32 %v4041
    %vm4048 = vmor %vm4046, %vm4047
    %v4049 = vsel %vm4048, %v4041, %v4045
    %v4050 = vand.u32 2147483647, %v4040
    %vm4051 = vcmp.eq.f32.partialorder %v4050, 8.507059e+37
    %v4052 = vand.u32 %v4040, 2147483648
    %v4053 = vor.u32 1.1754944e-38, %v4052
    %v4054 = vsel %vm4051, %v4053, %v4049
    %v4055 = vmul.f32 1.0, %v4054
    %v4056 = vtanh.pop %v4035
    %v4057 = vmul.f32 %v4055, %v3789
    %4059 = vrot.lane.b32.xlu0 %v4056, 80
    %v4060 = vpop.permute.xlu0 %4059
    %v4062 = vmul.f32 %v4055, %v4060
    %4064 = vrot.lane.b32.xlu0 %v4062, 24
    %v4065 = vpop.permute.xlu0 %4064
    %v4067 = vadd.f32 %v4057, %v4065
    %v4068 = vtanh.pop %v4067
    %4070 = vrot.lane.b32.xlu0 %v4068, 48
    %v4071 = vpop.permute.xlu0 %4070
    %v4073 = vmul.f32 %v4055, %v4071
    %4075 = vrot.lane.b32.xlu0 %v4073, 56
    %v4076 = vpop.permute.xlu0 %4075
    %v4077 = vsel %vm505, %v4076, 0
    %4079 = vmatpush.xpose.msra.mxu0 0.0
    %4080 = vmatpush.xpose.msra.mxu0 0.0
    %4081 = vmatpush.xpose.msra.mxu0 0.0
    %4082 = vmatpush.xpose.msra.mxu0 0.0
    %4083 = vmatpush.xpose.msra.mxu0 0.0
    %4084 = vmatpush.xpose.msra.mxu0 0.0
    %4085 = vmatpush.xpose.msra.mxu0 0.0
    %4086 = vmatpush.xpose.msra.mxu0 0.0
    %4087 = vmatpush.xpose.msra.mxu0 0.0
    %4088 = vmatpush.xpose.msra.mxu0 0.0
    %4089 = vmatpush.xpose.msra.mxu0 0.0
    %4090 = vmatpush.xpose.msra.mxu0 0.0
    %4091 = vmatpush.xpose.msra.mxu0 0.0
    %4092 = vmatpush.xpose.msra.mxu0 0.0
    %4093 = vmatpush.xpose.msra.mxu0 %v2682
    %4094 = vmatpush.xpose.msra.mxu0 %v2679
    %4095 = vmatmul.f32.gmra.mxu0 %v4077
    %v4096 = vpop.f32.mrf.mxu0
    %v4097 = vadd.f32 0.0, %v4096
    %4098 = vdwg.mxu0
    %v4099 = vsel %vm2704, %v4097, -inf
    %4100 = vmax.xlane.f32.xlu0 %v4099
    %v4101 = vpop.xlane.xlu0 %4100
    %v4102 = vsub.f32 %v4097, %v4101
    %v4103 = vmul.f32 %v4102, 1.442695
    %v4104 = vpow.pop %v4103
    %v4105 = vsel %vm2704, %v4104, 0.0
    %4106 = vadd.xlane.f32.xlu0 %v4105
    %v4107 = vpop.xlane.xlu0 %4106
    %v4108 = vrcp.pop %v4107
    %v4109 = vmul.f32 %v4107, %v4108
    %v4110 = vsub.f32 1.0, %v4109
    %v4111 = vmul.f32 %v4108, %v4110
    %v4112 = vadd.f32 %v4108, %v4111
    %vm4113 = vweird.f32 %v4107
    %vm4114 = vweird.f32 %v4108
    %vm4115 = vmor %vm4113, %vm4114
    %v4116 = vsel %vm4115, %v4108, %v4112
    %v4117 = vand.u32 2147483647, %v4107
    %vm4118 = vcmp.eq.f32.partialorder %v4117, 8.507059e+37
    %v4119 = vand.u32 %v4107, 2147483648
    %v4120 = vor.u32 1.1754944e-38, %v4119
    %v4121 = vsel %vm4118, %v4120, %v4116
    %v4122 = vmul.f32 %v4104, %v4121
    %v4124 = vsel %vm2729, %v4122, 0
    %4126 = vmatpush.msra.mxu0 0.0
    %4127 = vmatpush.msra.mxu0 0.0
    %4128 = vmatpush.msra.mxu0 0.0
    %4129 = vmatpush.msra.mxu0 0.0
    %4130 = vmatpush.msra.mxu0 0.0
    %4131 = vmatpush.msra.mxu0 0.0
    %4132 = vmatpush.msra.mxu0 0.0
    %4133 = vmatpush.msra.mxu0 0.0
    %4134 = vmatpush.msra.mxu0 0.0
    %4135 = vmatpush.msra.mxu0 0.0
    %4136 = vmatpush.msra.mxu0 0.0
    %4137 = vmatpush.msra.mxu0 0.0
    %4138 = vmatpush.msra.mxu0 0.0
    %4139 = vmatpush.msra.mxu0 0.0
    %4140 = vmatpush.msra.mxu0 %v2734
    %4141 = vmatpush.msra.mxu0 %v773
    %4142 = vmatmul.f32.gmra.mxu0 %v4124
    %v4143 = vpop.f32.mrf.mxu0
    %v4144 = vadd.f32 0.0, %v4143
    %4145 = vdwg.mxu0
    %4148 = vrot.lane.b32.xlu0 %v4144, 24
    %v4149 = vpop.permute.xlu0 %4148
    %v4151 = vsel %vm505, %v4076, %v4149
    %4153 = vrot.lane.b32.xlu0 %v4151, 48
    %v4154 = vpop.permute.xlu0 %4153
    %v4156 = vsel %vm517, %v2461, %v4154
    %v4157 = vld [vmem:[%s47] sm:$0xff]
    %v4158 = vld [vmem:[%s47 + $0x8] sm:$0xff]
    %v4159 = vld [vmem:[%s47 + $0x10] sm:$0xff]
    %v4160 = vld [vmem:[%s47 + $0x18] sm:$0xff]
    %v4161 = vld [vmem:[%s47 + $0x20] sm:$0xff]
    %v4162 = vld [vmem:[%s47 + $0x28] sm:$0xff]
    %v4163 = vld [vmem:[%s47 + $0x30] sm:$0xff]
    %v4164 = vld [vmem:[%s47 + $0x38] sm:$0xff]
    %v4165 = vld [vmem:[%s47 + $0x40] sm:$0xff]
    %v4166 = vld [vmem:[%s47 + $0x48] sm:$0xff]
    %v4167 = vld [vmem:[%s47 + $0x50] sm:$0xff]
    %v4168 = vld [vmem:[%s47 + $0x58] sm:$0xff]
    %v4169 = vld [vmem:[%s47 + $0x60] sm:$0xff]
    %v4170 = vld [vmem:[%s47 + $0x68] sm:$0xff]
    %v4171 = vld [vmem:[%s47 + $0x70] sm:$0xff]
    %v4172 = vld [vmem:[%s47 + $0x78] sm:$0xff]
    %v4173 = vld [vmem:[%s47 + $0x80] sm:$0xff]
    %v4174 = vld [vmem:[%s47 + $0x88] sm:$0xff]
    %v4175 = vld [vmem:[%s47 + $0x90] sm:$0xff]
    %v4176 = vld [vmem:[%s47 + $0x98] sm:$0xff]
    %v4177 = vld [vmem:[%s47 + $0xa0] sm:$0xff]
    %v4178 = vld [vmem:[%s47 + $0xa8] sm:$0xff]
    %v4179 = vld [vmem:[%s47 + $0xb0] sm:$0xff]
    %v4180 = vld [vmem:[%s47 + $0xb8] sm:$0xff]
    %v4181 = vld [vmem:[%s49] sm:$0x3]
    %v4183 = vperm.slane %v4181, 0
    %v4184 = vperm.slane %v4181, 1
    %vm4187 = vcmask 785408
    %v4189 = vsel %vm4187, %v4156, 0
    %4191 = vmatpush.msra.mxu0 0.0
    %4192 = vmatpush.msra.mxu0 0.0
    %4193 = vmatpush.msra.mxu0 0.0
    %4194 = vmatpush.msra.mxu0 0.0
    %4195 = vmatpush.msra.mxu0 %v4179
    %4196 = vmatpush.msra.mxu0 %v4177
    %4197 = vmatpush.msra.mxu0 %v4175
    %4198 = vmatpush.msra.mxu0 %v4173
    %4199 = vmatpush.msra.mxu0 %v4171
    %4200 = vmatpush.msra.mxu0 %v4169
    %4201 = vmatpush.msra.mxu0 %v4167
    %4202 = vmatpush.msra.mxu0 %v4165
    %4203 = vmatpush.msra.mxu0 %v4163
    %4204 = vmatpush.msra.mxu0 %v4161
    %4205 = vmatpush.msra.mxu0 %v4159
    %4206 = vmatpush.msra.mxu0 %v4157
    %4207 = vmatmul.f32.gmra.mxu0 %v4189
    %v4208 = vpop.f32.mrf.mxu0
    %v4209 = vadd.f32 %v4183, %v4208
    %4210 = vdwg.mxu0
    %4211 = vmatpush.msra.mxu0 0.0
    %4212 = vmatpush.msra.mxu0 0.0
    %4213 = vmatpush.msra.mxu0 0.0
    %4214 = vmatpush.msra.mxu0 0.0
    %4215 = vmatpush.msra.mxu0 %v4180
    %4216 = vmatpush.msra.mxu0 %v4178
    %4217 = vmatpush.msra.mxu0 %v4176
    %4218 = vmatpush.msra.mxu0 %v4174
    %4219 = vmatpush.msra.mxu0 %v4172
    %4220 = vmatpush.msra.mxu0 %v4170
    %4221 = vmatpush.msra.mxu0 %v4168
    %4222 = vmatpush.msra.mxu0 %v4166
    %4223 = vmatpush.msra.mxu0 %v4164
    %4224 = vmatpush.msra.mxu0 %v4162
    %4225 = vmatpush.msra.mxu0 %v4160
    %4226 = vmatpush.msra.mxu0 %v4158
    %4227 = vmatmul.f32.gmra.mxu0 %v4189
    %v4228 = vpop.f32.mrf.mxu0
    %v4229 = vadd.f32 %v4184, %v4228
    %4230 = vdwg.mxu0
    %v4231 = vmax.f32 %v4209, 0.0
    %v4232 = vmax.f32 %v4229, 0.0
    %v4233 = vld [vmem:[%s51] sm:$0xff]
    %v4234 = vld [vmem:[%s51 + $0x8] sm:$0xff]
    %v4235 = vld [vmem:[%s51 + $0x10] sm:$0xff]
    %v4236 = vld [vmem:[%s51 + $0x18] sm:$0xff]
    %v4237 = vld [vmem:[%s51 + $0x20] sm:$0xff]
    %v4238 = vld [vmem:[%s51 + $0x28] sm:$0xff]
    %v4239 = vld [vmem:[%s51 + $0x30] sm:$0xff]
    %v4240 = vld [vmem:[%s51 + $0x38] sm:$0xff]
    %v4241 = vld [vmem:[%s51 + $0x40] sm:$0xff]
    %v4242 = vld [vmem:[%s51 + $0x48] sm:$0xff]
    %v4243 = vld [vmem:[%s51 + $0x50] sm:$0xff]
    %v4244 = vld [vmem:[%s51 + $0x58] sm:$0xff]
    %v4245 = vld [vmem:[%s51 + $0x60] sm:$0xff]
    %v4246 = vld [vmem:[%s51 + $0x68] sm:$0xff]
    %v4247 = vld [vmem:[%s51 + $0x70] sm:$0xff]
    %v4248 = vld [vmem:[%s51 + $0x78] sm:$0xff]
    %v4249 = vld [vmem:[%s51 + $0x80] sm:$0xff]
    %v4250 = vld [vmem:[%s51 + $0x88] sm:$0xff]
    %v4251 = vld [vmem:[%s51 + $0x90] sm:$0xff]
    %v4252 = vld [vmem:[%s51 + $0x98] sm:$0xff]
    %v4253 = vld [vmem:[%s51 + $0xa0] sm:$0xff]
    %v4254 = vld [vmem:[%s51 + $0xa8] sm:$0xff]
    %v4255 = vld [vmem:[%s51 + $0xb0] sm:$0xff]
    %v4256 = vld [vmem:[%s51 + $0xb8] sm:$0xff]
    %v4257 = vld [vmem:[%s51 + $0xc0] sm:$0xff]
    %v4258 = vld [vmem:[%s51 + $0xc8] sm:$0xff]
    %v4259 = vld [vmem:[%s51 + $0xd0] sm:$0xff]
    %v4260 = vld [vmem:[%s51 + $0xd8] sm:$0xff]
    %v4261 = vld [vmem:[%s51 + $0xe0] sm:$0xff]
    %v4262 = vld [vmem:[%s51 + $0xe8] sm:$0xff]
    %v4263 = vld [vmem:[%s51 + $0xf0] sm:$0xff]
    %v4264 = vld [vmem:[%s51 + $0xf8] sm:$0xff]
    %v4265 = vld [vmem:[%s53] sm:$0x1]
    %4266 = vmatpush.msra.mxu0 %v4248
    %4267 = vmatpush.msra.mxu0 %v4247
    %4268 = vmatpush.msra.mxu0 %v4246
    %4269 = vmatpush.msra.mxu0 %v4245
    %4270 = vmatpush.msra.mxu0 %v4244
    %4271 = vmatpush.msra.mxu0 %v4243
    %4272 = vmatpush.msra.mxu0 %v4242
    %4273 = vmatpush.msra.mxu0 %v4241
    %4274 = vmatpush.msra.mxu0 %v4240
    %4275 = vmatpush.msra.mxu0 %v4239
    %4276 = vmatpush.msra.mxu0 %v4238
    %4277 = vmatpush.msra.mxu0 %v4237
    %4278 = vmatpush.msra.mxu0 %v4236
    %4279 = vmatpush.msra.mxu0 %v4235
    %4280 = vmatpush.msra.mxu0 %v4234
    %4281 = vmatpush.msra.mxu0 %v4233
    %4282 = vmatmul.f32.gmra.mxu0 %v4231
    %v4283 = vpop.f32.mrf.mxu0
    %v4284 = vadd.f32 %v4265, %v4283
    %4285 = vdwg.mxu0
    %4286 = vmatpush.msra.mxu0 %v4264
    %4287 = vmatpush.msra.mxu0 %v4263
    %4288 = vmatpush.msra.mxu0 %v4262
    %4289 = vmatpush.msra.mxu0 %v4261
    %4290 = vmatpush.msra.mxu0 %v4260
    %4291 = vmatpush.msra.mxu0 %v4259
    %4292 = vmatpush.msra.mxu0 %v4258
    %4293 = vmatpush.msra.mxu0 %v4257
    %4294 = vmatpush.msra.mxu0 %v4256
    %4295 = vmatpush.msra.mxu0 %v4255
    %4296 = vmatpush.msra.mxu0 %v4254
    %4297 = vmatpush.msra.mxu0 %v4253
    %4298 = vmatpush.msra.mxu0 %v4252
    %4299 = vmatpush.msra.mxu0 %v4251
    %4300 = vmatpush.msra.mxu0 %v4250
    %4301 = vmatpush.msra.mxu0 %v4249
    %4302 = vmatmul.f32.gmra.mxu0 %v4232
    %v4303 = vpop.f32.mrf.mxu0
    %v4304 = vadd.f32 %v4284, %v4303
    %4305 = vdwg.mxu0
    %v4306 = vmax.f32 %v4304, 0.0
    %v4307 = vld [vmem:[%s55] sm:$0xff]
    %v4308 = vld [vmem:[%s55 + $0x8] sm:$0xff]
    %v4309 = vld [vmem:[%s55 + $0x10] sm:$0xff]
    %v4310 = vld [vmem:[%s55 + $0x18] sm:$0xff]
    %v4311 = vld [vmem:[%s55 + $0x20] sm:$0xff]
    %v4312 = vld [vmem:[%s55 + $0x28] sm:$0xff]
    %v4313 = vld [vmem:[%s55 + $0x30] sm:$0xff]
    %v4314 = vld [vmem:[%s55 + $0x38] sm:$0xff]
    %v4315 = vld [vmem:[%s55 + $0x40] sm:$0xff]
    %v4316 = vld [vmem:[%s55 + $0x48] sm:$0xff]
    %v4317 = vld [vmem:[%s55 + $0x50] sm:$0xff]
    %v4318 = vld [vmem:[%s55 + $0x58] sm:$0xff]
    %v4319 = vld [vmem:[%s55 + $0x60] sm:$0xff]
    %v4320 = vld [vmem:[%s55 + $0x68] sm:$0xff]
    %v4321 = vld [vmem:[%s55 + $0x70] sm:$0xff]
    %v4322 = vld [vmem:[%s55 + $0x78] sm:$0xff]
    %v4323 = vld [vmem:[%s57] sm:$0x1]
    %4324 = vmatpush.msra.mxu0 %v4322
    %4325 = vmatpush.msra.mxu0 %v4321
    %4326 = vmatpush.msra.mxu0 %v4320
    %4327 = vmatpush.msra.mxu0 %v4319
    %4328 = vmatpush.msra.mxu0 %v4318
    %4329 = vmatpush.msra.mxu0 %v4317
    %4330 = vmatpush.msra.mxu0 %v4316
    %4331 = vmatpush.msra.mxu0 %v4315
    %4332 = vmatpush.msra.mxu0 %v4314
    %4333 = vmatpush.msra.mxu0 %v4313
    %4334 = vmatpush.msra.mxu0 %v4312
    %4335 = vmatpush.msra.mxu0 %v4311
    %4336 = vmatpush.msra.mxu0 %v4310
    %4337 = vmatpush.msra.mxu0 %v4309
    %4338 = vmatpush.msra.mxu0 %v4308
    %4339 = vmatpush.msra.mxu0 %v4307
    %4340 = vmatmul.f32.gmra.mxu0 %v4306
    %v4341 = vpop.f32.mrf.mxu0
    %v4342 = vadd.f32 %v4323, %v4341
    %4343 = vdwg.mxu0
    %v4344 = vmax.f32 %v4342, 0.0
    %v4345 = vld [vmem:[%s59] sm:$0xff]
    %v4346 = vld [vmem:[%s59 + $0x8] sm:$0xff]
    %v4347 = vld [vmem:[%s59 + $0x10] sm:$0xff]
    %v4348 = vld [vmem:[%s59 + $0x18] sm:$0xff]
    %v4349 = vld [vmem:[%s59 + $0x20] sm:$0xff]
    %v4350 = vld [vmem:[%s59 + $0x28] sm:$0xff]
    %v4351 = vld [vmem:[%s59 + $0x30] sm:$0xff]
    %v4352 = vld [vmem:[%s59 + $0x38] sm:$0xff]
    %v4353 = vld [vmem:[#allocation2] sm:$0x1]
    %vm4354 = vcmask 523264
    %v4356 = vsel %vm4354, %v4344, 0
    %4358 = vmatpush.msra.mxu0 0.0
    %4359 = vmatpush.msra.mxu0 0.0
    %4360 = vmatpush.msra.mxu0 0.0
    %4361 = vmatpush.msra.mxu0 0.0
    %4362 = vmatpush.msra.mxu0 0.0
    %4363 = vmatpush.msra.mxu0 0.0
    %4364 = vmatpush.msra.mxu0 0.0
    %4365 = vmatpush.msra.mxu0 0.0
    %4366 = vmatpush.msra.mxu0 %v4352
    %4367 = vmatpush.msra.mxu0 %v4351
    %4368 = vmatpush.msra.mxu0 %v4350
    %4369 = vmatpush.msra.mxu0 %v4349
    %4370 = vmatpush.msra.mxu0 %v4348
    %4371 = vmatpush.msra.mxu0 %v4347
    %4372 = vmatpush.msra.mxu0 %v4346
    %4373 = vmatpush.msra.mxu0 %v4345
    %4374 = vmatmul.f32.gmra.mxu0 %v4356
    %v4375 = vpop.f32.mrf.mxu0
    %v4376 = vadd.f32 %v4353, %v4375
    %4377 = vdwg.mxu0
    %vm4378 = vcmask 0
    %4379 = vst.msk [vmem:[#allocation18] sm:$0x1] %vm4378, %v4376
    // Predicated region
    $region162: #{tpu_custom_call.1} parent=1 // pred_check
      _
    $region163: #{tpu_custom_call.1} parent=1 // pred_check_branch
      %4381 = sbr.rel (0) target = $region165
    $region164: #{tpu_custom_call.1} parent=1 // pred_region
      %4383 = vsyncadd [#allocation5], 0
      %s4385 = sshll.u32 [#allocation18], 4
      %s4386 = int_to_ptr.vmem [resolvable:$true] %s4385
      %s4387 = sshll.u32 %s63, 4
      %s4388 = int_to_ptr.hbm [resolvable:$true] %s4387
      %4390 = dma.vmem_to_hbm [thread:$0]  %s4386, 16, %s4388, [#allocation5]
    $region165: #{tpu_custom_call.1} parent=1 // pred_fallthru
      _
    // Predicated region
    $region166: #{tpu_custom_call.1} parent=1 // pred_check
      _
    $region167: #{tpu_custom_call.1} parent=1 // pred_check_branch
      %4392 = sbr.rel (0) target = $region169
    $region168: #{tpu_custom_call.1} parent=1 // pred_region
      %4394 = dma.done [#allocation5], 16
    $region169: #{tpu_custom_call.1} parent=1 // pred_fallthru
      _
    %4395 = vsyncpa [#allocation4], 1
    %4396 = vsyncpa [#allocation7], 1
    %4397 = vsyncpa [#allocation10], 1
    %4398 = vsyncpa [#allocation13], 1
    %4399 = vsyncpa [#allocation16], 1
    %4400 = vsyncpa [#allocation5], 1

</llo_original>
